<compile_context>
chip_gen: v7x
topology: tpu7x:2x2x1
jax: 0.10.0
libtpu: 0.0.40
codegen_flags: <defaults>
</compile_context>

<pallas_src>
import functools
import math

import jax
import jax.numpy as jnp
from jax.experimental import pallas as pl
from jax.experimental.pallas import tpu as pltpu


# ------------------------- in-kernel building blocks -------------------------

def _layernorm(x, g, b, eps=1e-5):
    mu = jnp.mean(x, axis=-1, keepdims=True)
    xc = x - mu
    var = jnp.mean(xc * xc, axis=-1, keepdims=True)
    return xc * jax.lax.rsqrt(var + eps) * g + b


def _gelu_exact(y):
    # nn.GELU() default = exact erf formulation.
    return 0.5 * y * (1.0 + jax.lax.erf(y * 0.7071067811865476))


def _mha_heads(q_p, k_p, v_p, bias, num_heads, scale):
    """Multi-head attention core on already-projected activations.

    q_p: (Lq, E), k_p/v_p: (Lk, E), bias: (1, Lk) additive key-padding bias or
    None.  Heads are isolated with lane masks: (q * mask_h) @ k^T is exactly the
    head-h score matrix, and sum_h softmax_h @ (v * mask_h) reconstructs the
    concatenated per-head context, all with full-width matmuls (no sub-128-lane
    slicing / concatenation inside the kernel).
    """
    Lq, E = q_p.shape
    Dh = E // num_heads
    lane = jax.lax.broadcasted_iota(jnp.int32, (1, E), 1)
    k_t = k_p.T                                        # (E, Lk), hoisted out of the head loop
    ctx = jnp.zeros((Lq, E), jnp.float32)
    for h in range(num_heads):                         # small static unroll
        m = ((lane >= h * Dh) & (lane < (h + 1) * Dh)).astype(jnp.float32)
        s = jnp.dot(q_p * m, k_t, preferred_element_type=jnp.float32) * scale
        if bias is not None:
            s = s + bias                               # (1, Lk) key-padding bias
        s = s - jnp.max(s, axis=-1, keepdims=True)
        p = jnp.exp(s)
        p = p * pl.reciprocal(jnp.sum(p, axis=-1, keepdims=True), approx=True)
        ctx = ctx + jnp.dot(p, v_p * m, preferred_element_type=jnp.float32)
    return ctx


def _wrapper_tail(qn, ctx, wo, bo, w1, b1, w2, b2):
    attn = jnp.dot(ctx, wo, preferred_element_type=jnp.float32) + bo
    out = attn + qn            # residual with the NORMALIZED query (matches the PyTorch spec)
    h = _gelu_exact(jnp.dot(out, w1, preferred_element_type=jnp.float32) + b1)
    y = jnp.dot(h, w2, preferred_element_type=jnp.float32) + b2
    return y + out


# --------------------------- fused wrapper kernels ---------------------------

def _cross_wrapper_kernel(q_ref, k_ref, v_ref, bias_ref,
                          qg_ref, qb_ref, kvg_ref, kvb_ref,
                          wq_ref, bq_ref, wk_ref, bk_ref, wv_ref, bv_ref,
                          wo_ref, bo_ref, w1_ref, b1_ref, w2_ref, b2_ref,
                          o_ref, *, num_heads, scale):
    qn = _layernorm(q_ref[...], qg_ref[...], qb_ref[...])
    kn = _layernorm(k_ref[...], kvg_ref[...], kvb_ref[...])
    vn = _layernorm(v_ref[...], kvg_ref[...], kvb_ref[...])
    q_p = jnp.dot(qn, wq_ref[...], preferred_element_type=jnp.float32) + bq_ref[...]
    k_p = jnp.dot(kn, wk_ref[...], preferred_element_type=jnp.float32) + bk_ref[...]
    v_p = jnp.dot(vn, wv_ref[...], preferred_element_type=jnp.float32) + bv_ref[...]
    ctx = _mha_heads(q_p, k_p, v_p, bias_ref[...], num_heads, scale)
    y = _wrapper_tail(qn, ctx, wo_ref[...], bo_ref[...],
                      w1_ref[...], b1_ref[...], w2_ref[...], b2_ref[...])
    o_ref[...] = y.astype(o_ref.dtype)


def _self_wrapper_kernel(q_ref,
                         qg_ref, qb_ref,
                         wq_ref, bq_ref, wk_ref, bk_ref, wv_ref, bv_ref,
                         wo_ref, bo_ref, w1_ref, b1_ref, w2_ref, b2_ref,
                         o_ref, *, num_heads, scale):
    qn = _layernorm(q_ref[...], qg_ref[...], qb_ref[...])
    q_p = jnp.dot(qn, wq_ref[...], preferred_element_type=jnp.float32) + bq_ref[...]
    k_p = jnp.dot(qn, wk_ref[...], preferred_element_type=jnp.float32) + bk_ref[...]
    v_p = jnp.dot(qn, wv_ref[...], preferred_element_type=jnp.float32) + bv_ref[...]
    ctx = _mha_heads(q_p, k_p, v_p, None, num_heads, scale)
    y = _wrapper_tail(qn, ctx, wo_ref[...], bo_ref[...],
                      w1_ref[...], b1_ref[...], w2_ref[...], b2_ref[...])
    o_ref[...] = y.astype(o_ref.dtype)


# ------------------------------ pallas_call glue ------------------------------

def _param_specs(E, F):
    const = lambda b: (0, 0)      # weights resident in VMEM across grid steps
    return [
        pl.BlockSpec((E, E), const), pl.BlockSpec((1, E), const),   # wq, bq
        pl.BlockSpec((E, E), const), pl.BlockSpec((1, E), const),   # wk, bk
        pl.BlockSpec((E, E), const), pl.BlockSpec((1, E), const),   # wv, bv
        pl.BlockSpec((E, E), const), pl.BlockSpec((1, E), const),   # wo, bo
        pl.BlockSpec((E, F), const), pl.BlockSpec((1, F), const),   # ff w1, b1
        pl.BlockSpec((F, E), const), pl.BlockSpec((1, E), const),   # ff w2, b2
    ]


def _param_args(p):
    return (p["wq"], p["bq"], p["wk"], p["bk"], p["wv"], p["bv"],
            p["wo"], p["bo"], p["ff_w1"], p["ff_b1"], p["ff_w2"], p["ff_b2"])


def attention_wrapper_cross(p, query, key, value, bias, num_heads):
    B, Lq, E = query.shape
    Lk = key.shape[1]
    F = p["ff_w1"].shape[1]
    scale = 1.0 / math.sqrt(E // num_heads)
    const = lambda b: (0, 0)
    in_specs = ([pl.BlockSpec((None, Lq, E), lambda b: (b, 0, 0)),
                 pl.BlockSpec((None, Lk, E), lambda b: (b, 0, 0)),
                 pl.BlockSpec((None, Lk, E), lambda b: (b, 0, 0)),
                 pl.BlockSpec((None, 1, Lk), lambda b: (b, 0, 0)),
                 pl.BlockSpec((1, E), const), pl.BlockSpec((1, E), const),
                 pl.BlockSpec((1, E), const), pl.BlockSpec((1, E), const)]
                + _param_specs(E, F))
    return pl.pallas_call(
        functools.partial(_cross_wrapper_kernel, num_heads=num_heads, scale=scale),
        out_shape=jax.ShapeDtypeStruct((B, Lq, E), query.dtype),
        grid=(B,),
        in_specs=in_specs,
        out_specs=pl.BlockSpec((None, Lq, E), lambda b: (b, 0, 0)),
        compiler_params=pltpu.CompilerParams(dimension_semantics=("parallel",)),
    )(query, key, value, bias,
      p["q_norm_g"], p["q_norm_b"], p["kv_norm_g"], p["kv_norm_b"],
      *_param_args(p))


def attention_wrapper_self(p, query, num_heads):
    B, Lq, E = query.shape
    F = p["ff_w1"].shape[1]
    scale = 1.0 / math.sqrt(E // num_heads)
    const = lambda b: (0, 0)
    in_specs = ([pl.BlockSpec((None, Lq, E), lambda b: (b, 0, 0)),
                 pl.BlockSpec((1, E), const), pl.BlockSpec((1, E), const)]
                + _param_specs(E, F))
    return pl.pallas_call(
        functools.partial(_self_wrapper_kernel, num_heads=num_heads, scale=scale),
        out_shape=jax.ShapeDtypeStruct((B, Lq, E), query.dtype),
        grid=(B,),
        in_specs=in_specs,
        out_specs=pl.BlockSpec((None, Lq, E), lambda b: (b, 0, 0)),
        compiler_params=pltpu.CompilerParams(dimension_semantics=("parallel",)),
    )(query, p["q_norm_g"], p["q_norm_b"], *_param_args(p))


def xlayer_forward(params, cfg, query, key, value, key_padding_mask):
    # nn.MultiheadAttention key_padding_mask semantics: True = ignore that key.
    bias = jnp.where(key_padding_mask[:, None, :], -1e9, 0.0).astype(query.dtype)
    o = attention_wrapper_cross(params["cross"], query, key, value, bias,
                                num_heads=cfg["num_cross_attention_heads"])
    for ap in params["latents"]:
        o = attention_wrapper_self(ap, o,
                                   num_heads=cfg["num_latent_attention_heads"])
    return o


# ------------------------------ pure-JAX reference ----------------------------

def xlayer_reference(params, cfg, query, key, value, key_padding_mask):
    HI = jax.lax.Precision.HIGHEST

    def ln(x, g, b):
        mu = jnp.mean(x, -1, keepdims=True)
        var = jnp.mean((x - mu) ** 2, -1, keepdims=True)
        return (x - mu) * jax.lax.rsqrt(var + 1e-5) * g + b

    def mha(p, q, k, v, num_heads, bias):
        B, Lq, E = q.shape
        Lk = k.shape[1]
        Dh = E // num_heads
        qp = jnp.dot(q, p["wq"], precision=HI) + p["bq"]
        kp = jnp.dot(k, p["wk"], precision=HI) + p["bk"]
        vp = jnp.dot(v, p["wv"], precision=HI) + p["bv"]
        qh = qp.reshape(B, Lq, num_heads, Dh).transpose(0, 2, 1, 3)
        kh = kp.reshape(B, Lk, num_heads, Dh).transpose(0, 2, 1, 3)
        vh = vp.reshape(B, Lk, num_heads, Dh).transpose(0, 2, 1, 3)
        s = jnp.einsum("bhqd,bhkd->bhqk", qh, kh, precision=HI) / math.sqrt(Dh)
        if bias is not None:
            s = s + bias[:, None, :, :]
        a = jax.nn.softmax(s, axis=-1)
        o = jnp.einsum("bhqk,bhkd->bhqd", a, vh, precision=HI)
        o = o.transpose(0, 2, 1, 3).reshape(B, Lq, E)
        return jnp.dot(o, p["wo"], precision=HI) + p["bo"]

    def wrapper(p, q, k=None, v=None, bias=None, num_heads=1, is_cross=False):
        qn = ln(q, p["q_norm_g"], p["q_norm_b"])
        if is_cross:
            kn = ln(k, p["kv_norm_g"], p["kv_norm_b"])
            vn = ln(v, p["kv_norm_g"], p["kv_norm_b"])
            attn = mha(p, qn, kn, vn, num_heads, bias)
        else:
            attn = mha(p, qn, qn, qn, num_heads, None)
        out = attn + qn
        h = _gelu_exact(jnp.dot(out, p["ff_w1"], precision=HI) + p["ff_b1"])
        return jnp.dot(h, p["ff_w2"], precision=HI) + p["ff_b2"] + out

    bias = jnp.where(key_padding_mask[:, None, :], -1e9, 0.0).astype(query.dtype)
    o = wrapper(params["cross"], query, key, value, bias,
                cfg["num_cross_attention_heads"], True)
    for ap in params["latents"]:
        o = wrapper(ap, o, num_heads=cfg["num_latent_attention_heads"],
                    is_cross=False)
    return o


# ------------------------------ parameter init --------------------------------

def _dense_init(key, fan_in, fan_out):
    kw, kb = jax.random.split(key)
    bound = 1.0 / math.sqrt(fan_in)
    w = jax.random.uniform(kw, (fan_in, fan_out), jnp.float32, -bound, bound)
    b = jax.random.uniform(kb, (1, fan_out), jnp.float32, -bound, bound)
    return w, b


def _init_attention_wrapper(key, embed_dim, ff_dim, is_cross):
    ks = jax.random.split(key, 6)
    p = {
        "q_norm_g": jnp.ones((1, embed_dim), jnp.float32),
        "q_norm_b": jnp.zeros((1, embed_dim), jnp.float32),
    }
    if is_cross:
        p["kv_norm_g"] = jnp.ones((1, embed_dim), jnp.float32)
        p["kv_norm_b"] = jnp.zeros((1, embed_dim), jnp.float32)
    p["wq"], p["bq"] = _dense_init(ks[0], embed_dim, embed_dim)
    p["wk"], p["bk"] = _dense_init(ks[1], embed_dim, embed_dim)
    p["wv"], p["bv"] = _dense_init(ks[2], embed_dim, embed_dim)
    p["wo"], p["bo"] = _dense_init(ks[3], embed_dim, embed_dim)
    p["ff_w1"], p["ff_b1"] = _dense_init(ks[4], embed_dim, ff_dim)
    p["ff_w2"], p["ff_b2"] = _dense_init(ks[5], ff_dim, embed_dim)
    return p


def init_xlayer_params(key, cfg):
    ks = jax.random.split(key, 1 + cfg["num_latent_layers"])
    return {
        "cross": _init_attention_wrapper(ks[0], cfg["embed_dim"], cfg["ff_dim"], True),
        "latents": [_init_attention_wrapper(ks[1 + j], cfg["embed_dim"],
                                            cfg["ff_dim"], False)
                    for j in range(cfg["num_latent_layers"])],
    }


# ----------------------------------- main --------------------------------------

if __name__ == "__main__":
    cfg = dict(
        embed_dim=32,
        num_cross_attention_heads=4,
        num_latent_attention_heads=4,
        num_latent_layers=2,
        ff_dim=64,
    )
    B, Lq, Lk = 2, 8, 8

    root = jax.random.PRNGKey(0)
    pkey, qkey, kkey = jax.random.split(root, 3)

    params = init_xlayer_params(pkey, cfg)
    query = jax.random.normal(qkey, (B, Lq, cfg["embed_dim"]), jnp.float32)
    kv = jax.random.normal(kkey, (B, Lk, cfg["embed_dim"]), jnp.float32)
    # True = padded key position (ignored by cross-attention), PyTorch convention.
    key_padding_mask = jnp.zeros((B, Lk), jnp.bool_).at[1, 6:].set(True)

    @jax.jit
    def run(p, q, k, v, m):
        return xlayer_forward(p, cfg, q, k, v, m)

    out = run(params, query, kv, kv, key_padding_mask)
    jax.block_until_ready(out)

    assert out.shape == (B, Lq, cfg["embed_dim"])
    assert bool(jnp.all(jnp.isfinite(out)))

    ref = xlayer_reference(params, cfg, query, kv, kv, key_padding_mask)
    max_err = float(jnp.max(jnp.abs(out - ref)))
    assert max_err < 1e-1, f"kernel/reference mismatch: {max_err}"

    print("KERNEL_OK")
</pallas_src>

<mosaic_0001>
module attributes {stable_mosaic.version = 11 : i64} {
  func.func @_self_wrapper_kernel(%arg0: i32, %arg1: memref<1x8x32xf32, #tpu.memory_space<vmem>>, %arg2: memref<1x32xf32, #tpu.memory_space<vmem>>, %arg3: memref<1x32xf32, #tpu.memory_space<vmem>>, %arg4: memref<32x32xf32, #tpu.memory_space<vmem>>, %arg5: memref<1x32xf32, #tpu.memory_space<vmem>>, %arg6: memref<32x32xf32, #tpu.memory_space<vmem>>, %arg7: memref<1x32xf32, #tpu.memory_space<vmem>>, %arg8: memref<32x32xf32, #tpu.memory_space<vmem>>, %arg9: memref<1x32xf32, #tpu.memory_space<vmem>>, %arg10: memref<32x32xf32, #tpu.memory_space<vmem>>, %arg11: memref<1x32xf32, #tpu.memory_space<vmem>>, %arg12: memref<32x64xf32, #tpu.memory_space<vmem>>, %arg13: memref<1x64xf32, #tpu.memory_space<vmem>>, %arg14: memref<64x32xf32, #tpu.memory_space<vmem>>, %arg15: memref<1x32xf32, #tpu.memory_space<vmem>>, %arg16: memref<1x8x32xf32, #tpu.memory_space<vmem>>) attributes {dimension_semantics = [#tpu.dimension_semantics<parallel>], iteration_bounds = array<i64: 2>, scalar_prefetch = 0 : i64, scratch_operands = 0 : i64, tpu.core_type = #tpu.core_type<tc>, window_params = [{transform_indices = @transform_0, window_bounds = array<i64: 1, 8, 32>}, {pipeline_mode = #tpu.pipeline_mode<synchronous>, transform_indices = @transform_1, window_bounds = array<i64: 1, 32>}, {pipeline_mode = #tpu.pipeline_mode<synchronous>, transform_indices = @transform_2, window_bounds = array<i64: 1, 32>}, {pipeline_mode = #tpu.pipeline_mode<synchronous>, transform_indices = @transform_3, window_bounds = array<i64: 32, 32>}, {pipeline_mode = #tpu.pipeline_mode<synchronous>, transform_indices = @transform_4, window_bounds = array<i64: 1, 32>}, {pipeline_mode = #tpu.pipeline_mode<synchronous>, transform_indices = @transform_5, window_bounds = array<i64: 32, 32>}, {pipeline_mode = #tpu.pipeline_mode<synchronous>, transform_indices = @transform_6, window_bounds = array<i64: 1, 32>}, {pipeline_mode = #tpu.pipeline_mode<synchronous>, transform_indices = @transform_7, window_bounds = array<i64: 32, 32>}, {pipeline_mode = #tpu.pipeline_mode<synchronous>, transform_indices = @transform_8, window_bounds = array<i64: 1, 32>}, {pipeline_mode = #tpu.pipeline_mode<synchronous>, transform_indices = @transform_9, window_bounds = array<i64: 32, 32>}, {pipeline_mode = #tpu.pipeline_mode<synchronous>, transform_indices = @transform_10, window_bounds = array<i64: 1, 32>}, {pipeline_mode = #tpu.pipeline_mode<synchronous>, transform_indices = @transform_11, window_bounds = array<i64: 32, 64>}, {pipeline_mode = #tpu.pipeline_mode<synchronous>, transform_indices = @transform_12, window_bounds = array<i64: 1, 64>}, {pipeline_mode = #tpu.pipeline_mode<synchronous>, transform_indices = @transform_13, window_bounds = array<i64: 64, 32>}, {pipeline_mode = #tpu.pipeline_mode<synchronous>, transform_indices = @transform_14, window_bounds = array<i64: 1, 32>}, {transform_indices = @transform_15, window_bounds = array<i64: 1, 8, 32>}]} {
    %c0 = arith.constant 0 : index
    %c0_0 = arith.constant 0 : index
    %c0_1 = arith.constant 0 : index
    %0 = vector.load %arg1[%c0, %c0_0, %c0_1] : memref<1x8x32xf32, #tpu.memory_space<vmem>>, vector<1x8x32xf32>
    %1 = vector.shape_cast %0 : vector<1x8x32xf32> to vector<8x32xf32>
    %c0_2 = arith.constant 0 : index
    %c0_3 = arith.constant 0 : index
    %2 = vector.load %arg2[%c0_2, %c0_3] : memref<1x32xf32, #tpu.memory_space<vmem>>, vector<1x32xf32>
    %c0_4 = arith.constant 0 : index
    %c0_5 = arith.constant 0 : index
    %3 = vector.load %arg3[%c0_4, %c0_5] : memref<1x32xf32, #tpu.memory_space<vmem>>, vector<1x32xf32>
    %cst = arith.constant dense<0.000000e+00> : vector<8xf32>
    %4 = vector.multi_reduction <add>, %1, %cst [1] : vector<8x32xf32> to vector<8xf32>
    %5 = vector.shape_cast %4 : vector<8xf32> to vector<8x1xf32>
    %cst_6 = arith.constant 3.200000e+01 : f32
    %6 = vector.broadcast %cst_6 : f32 to vector<8x1xf32>
    %7 = arith.divf %5, %6 : vector<8x1xf32>
    %8 = vector.broadcast %7 : vector<8x1xf32> to vector<8x32xf32>
    %9 = arith.subf %1, %8 : vector<8x32xf32>
    %10 = arith.mulf %9, %9 : vector<8x32xf32>
    %cst_7 = arith.constant dense<0.000000e+00> : vector<8xf32>
    %11 = vector.multi_reduction <add>, %10, %cst_7 [1] : vector<8x32xf32> to vector<8xf32>
    %12 = vector.shape_cast %11 : vector<8xf32> to vector<8x1xf32>
    %cst_8 = arith.constant 3.200000e+01 : f32
    %13 = vector.broadcast %cst_8 : f32 to vector<8x1xf32>
    %14 = arith.divf %12, %13 : vector<8x1xf32>
    %cst_9 = arith.constant 9.99999974E-6 : f32
    %15 = vector.broadcast %cst_9 : f32 to vector<8x1xf32>
    %16 = arith.addf %14, %15 : vector<8x1xf32>
    %17 = math.rsqrt %16 : vector<8x1xf32>
    %18 = vector.broadcast %17 : vector<8x1xf32> to vector<8x32xf32>
    %19 = arith.mulf %9, %18 : vector<8x32xf32>
    %20 = vector.broadcast %2 : vector<1x32xf32> to vector<8x32xf32>
    %21 = arith.mulf %19, %20 : vector<8x32xf32>
    %22 = vector.broadcast %3 : vector<1x32xf32> to vector<8x32xf32>
    %23 = arith.addf %21, %22 : vector<8x32xf32>
    %c0_10 = arith.constant 0 : index
    %c0_11 = arith.constant 0 : index
    %24 = vector.load %arg4[%c0_10, %c0_11] : memref<32x32xf32, #tpu.memory_space<vmem>>, vector<32x32xf32>
    %cst_12 = arith.constant dense<0.000000e+00> : vector<8x32xf32>
    %25 = tpu.matmul %23, %24, %cst_12 {dimension_numbers = #tpu.dot_dimension_numbers<[1], [0], [0], [1], [0, 0, 1, 1], [], []>} : vector<8x32xf32>, vector<32x32xf32>, vector<8x32xf32> -> vector<8x32xf32>
    %c0_13 = arith.constant 0 : index
    %c0_14 = arith.constant 0 : index
    %26 = vector.load %arg5[%c0_13, %c0_14] : memref<1x32xf32, #tpu.memory_space<vmem>>, vector<1x32xf32>
    %27 = vector.broadcast %26 : vector<1x32xf32> to vector<8x32xf32>
    %28 = arith.addf %25, %27 : vector<8x32xf32>
    %c0_15 = arith.constant 0 : index
    %c0_16 = arith.constant 0 : index
    %29 = vector.load %arg6[%c0_15, %c0_16] : memref<32x32xf32, #tpu.memory_space<vmem>>, vector<32x32xf32>
    %cst_17 = arith.constant dense<0.000000e+00> : vector<8x32xf32>
    %30 = tpu.matmul %23, %29, %cst_17 {dimension_numbers = #tpu.dot_dimension_numbers<[1], [0], [0], [1], [0, 0, 1, 1], [], []>} : vector<8x32xf32>, vector<32x32xf32>, vector<8x32xf32> -> vector<8x32xf32>
    %c0_18 = arith.constant 0 : index
    %c0_19 = arith.constant 0 : index
    %31 = vector.load %arg7[%c0_18, %c0_19] : memref<1x32xf32, #tpu.memory_space<vmem>>, vector<1x32xf32>
    %32 = vector.broadcast %31 : vector<1x32xf32> to vector<8x32xf32>
    %33 = arith.addf %30, %32 : vector<8x32xf32>
    %c0_20 = arith.constant 0 : index
    %c0_21 = arith.constant 0 : index
    %34 = vector.load %arg8[%c0_20, %c0_21] : memref<32x32xf32, #tpu.memory_space<vmem>>, vector<32x32xf32>
    %cst_22 = arith.constant dense<0.000000e+00> : vector<8x32xf32>
    %35 = tpu.matmul %23, %34, %cst_22 {dimension_numbers = #tpu.dot_dimension_numbers<[1], [0], [0], [1], [0, 0, 1, 1], [], []>} : vector<8x32xf32>, vector<32x32xf32>, vector<8x32xf32> -> vector<8x32xf32>
    %c0_23 = arith.constant 0 : index
    %c0_24 = arith.constant 0 : index
    %36 = vector.load %arg9[%c0_23, %c0_24] : memref<1x32xf32, #tpu.memory_space<vmem>>, vector<1x32xf32>
    %37 = vector.broadcast %36 : vector<1x32xf32> to vector<8x32xf32>
    %38 = arith.addf %35, %37 : vector<8x32xf32>
    %39 = tpu.iota {dimensions = array<i32: 1>} : vector<1x32xi32>
    %40 = tpu.transpose %33, [1, 0] : vector<8x32xf32> -> vector<32x8xf32>
    %cst_25 = arith.constant 0.000000e+00 : f32
    %41 = vector.broadcast %cst_25 : f32 to vector<8x32xf32>
    %c0_i32 = arith.constant 0 : i32
    %42 = vector.broadcast %c0_i32 : i32 to vector<1x32xi32>
    %43 = arith.cmpi sge, %39, %42 : vector<1x32xi32>
    %c8_i32 = arith.constant 8 : i32
    %44 = vector.broadcast %c8_i32 : i32 to vector<1x32xi32>
    %45 = arith.cmpi slt, %39, %44 : vector<1x32xi32>
    %46 = arith.andi %43, %45 : vector<1x32xi1>
    %47 = arith.extui %46 : vector<1x32xi1> to vector<1x32xi32>
    %48 = arith.sitofp %47 : vector<1x32xi32> to vector<1x32xf32>
    %49 = vector.broadcast %48 : vector<1x32xf32> to vector<8x32xf32>
    %50 = arith.mulf %28, %49 : vector<8x32xf32>
    %cst_26 = arith.constant dense<0.000000e+00> : vector<8x8xf32>
    %51 = tpu.matmul %50, %40, %cst_26 {dimension_numbers = #tpu.dot_dimension_numbers<[1], [0], [0], [1], [0, 0, 1, 1], [], []>} : vector<8x32xf32>, vector<32x8xf32>, vector<8x8xf32> -> vector<8x8xf32>
    %cst_27 = arith.constant 0.353553385 : f32
    %52 = vector.broadcast %cst_27 : f32 to vector<8x8xf32>
    %53 = arith.mulf %51, %52 : vector<8x8xf32>
    %cst_28 = arith.constant dense<0xFF800000> : vector<8xf32>
    %54 = vector.multi_reduction <maximumf>, %53, %cst_28 [1] : vector<8x8xf32> to vector<8xf32>
    %55 = vector.shape_cast %54 : vector<8xf32> to vector<8x1xf32>
    %56 = vector.broadcast %55 : vector<8x1xf32> to vector<8x8xf32>
    %57 = arith.subf %53, %56 : vector<8x8xf32>
    %58 = math.exp %57 : vector<8x8xf32>
    %cst_29 = arith.constant dense<0.000000e+00> : vector<8xf32>
    %59 = vector.multi_reduction <add>, %58, %cst_29 [1] : vector<8x8xf32> to vector<8xf32>
    %60 = vector.shape_cast %59 : vector<8xf32> to vector<8x1xf32>
    %61 = tpu.reciprocal %60 {approx = true} : vector<8x1xf32> -> vector<8x1xf32>
    %62 = vector.broadcast %61 : vector<8x1xf32> to vector<8x8xf32>
    %63 = arith.mulf %58, %62 : vector<8x8xf32>
    %64 = vector.broadcast %48 : vector<1x32xf32> to vector<8x32xf32>
    %65 = arith.mulf %38, %64 : vector<8x32xf32>
    %cst_30 = arith.constant dense<0.000000e+00> : vector<8x32xf32>
    %66 = tpu.matmul %63, %65, %cst_30 {dimension_numbers = #tpu.dot_dimension_numbers<[1], [0], [0], [1], [0, 0, 1, 1], [], []>} : vector<8x8xf32>, vector<8x32xf32>, vector<8x32xf32> -> vector<8x32xf32>
    %67 = arith.addf %41, %66 : vector<8x32xf32>
    %c8_i32_31 = arith.constant 8 : i32
    %68 = vector.broadcast %c8_i32_31 : i32 to vector<1x32xi32>
    %69 = arith.cmpi sge, %39, %68 : vector<1x32xi32>
    %c16_i32 = arith.constant 16 : i32
    %70 = vector.broadcast %c16_i32 : i32 to vector<1x32xi32>
    %71 = arith.cmpi slt, %39, %70 : vector<1x32xi32>
    %72 = arith.andi %69, %71 : vector<1x32xi1>
    %73 = arith.extui %72 : vector<1x32xi1> to vector<1x32xi32>
    %74 = arith.sitofp %73 : vector<1x32xi32> to vector<1x32xf32>
    %75 = vector.broadcast %74 : vector<1x32xf32> to vector<8x32xf32>
    %76 = arith.mulf %28, %75 : vector<8x32xf32>
    %cst_32 = arith.constant dense<0.000000e+00> : vector<8x8xf32>
    %77 = tpu.matmul %76, %40, %cst_32 {dimension_numbers = #tpu.dot_dimension_numbers<[1], [0], [0], [1], [0, 0, 1, 1], [], []>} : vector<8x32xf32>, vector<32x8xf32>, vector<8x8xf32> -> vector<8x8xf32>
    %cst_33 = arith.constant 0.353553385 : f32
    %78 = vector.broadcast %cst_33 : f32 to vector<8x8xf32>
    %79 = arith.mulf %77, %78 : vector<8x8xf32>
    %cst_34 = arith.constant dense<0xFF800000> : vector<8xf32>
    %80 = vector.multi_reduction <maximumf>, %79, %cst_34 [1] : vector<8x8xf32> to vector<8xf32>
    %81 = vector.shape_cast %80 : vector<8xf32> to vector<8x1xf32>
    %82 = vector.broadcast %81 : vector<8x1xf32> to vector<8x8xf32>
    %83 = arith.subf %79, %82 : vector<8x8xf32>
    %84 = math.exp %83 : vector<8x8xf32>
    %cst_35 = arith.constant dense<0.000000e+00> : vector<8xf32>
    %85 = vector.multi_reduction <add>, %84, %cst_35 [1] : vector<8x8xf32> to vector<8xf32>
    %86 = vector.shape_cast %85 : vector<8xf32> to vector<8x1xf32>
    %87 = tpu.reciprocal %86 {approx = true} : vector<8x1xf32> -> vector<8x1xf32>
    %88 = vector.broadcast %87 : vector<8x1xf32> to vector<8x8xf32>
    %89 = arith.mulf %84, %88 : vector<8x8xf32>
    %90 = vector.broadcast %74 : vector<1x32xf32> to vector<8x32xf32>
    %91 = arith.mulf %38, %90 : vector<8x32xf32>
    %cst_36 = arith.constant dense<0.000000e+00> : vector<8x32xf32>
    %92 = tpu.matmul %89, %91, %cst_36 {dimension_numbers = #tpu.dot_dimension_numbers<[1], [0], [0], [1], [0, 0, 1, 1], [], []>} : vector<8x8xf32>, vector<8x32xf32>, vector<8x32xf32> -> vector<8x32xf32>
    %93 = arith.addf %67, %92 : vector<8x32xf32>
    %c16_i32_37 = arith.constant 16 : i32
    %94 = vector.broadcast %c16_i32_37 : i32 to vector<1x32xi32>
    %95 = arith.cmpi sge, %39, %94 : vector<1x32xi32>
    %c24_i32 = arith.constant 24 : i32
    %96 = vector.broadcast %c24_i32 : i32 to vector<1x32xi32>
    %97 = arith.cmpi slt, %39, %96 : vector<1x32xi32>
    %98 = arith.andi %95, %97 : vector<1x32xi1>
    %99 = arith.extui %98 : vector<1x32xi1> to vector<1x32xi32>
    %100 = arith.sitofp %99 : vector<1x32xi32> to vector<1x32xf32>
    %101 = vector.broadcast %100 : vector<1x32xf32> to vector<8x32xf32>
    %102 = arith.mulf %28, %101 : vector<8x32xf32>
    %cst_38 = arith.constant dense<0.000000e+00> : vector<8x8xf32>
    %103 = tpu.matmul %102, %40, %cst_38 {dimension_numbers = #tpu.dot_dimension_numbers<[1], [0], [0], [1], [0, 0, 1, 1], [], []>} : vector<8x32xf32>, vector<32x8xf32>, vector<8x8xf32> -> vector<8x8xf32>
    %cst_39 = arith.constant 0.353553385 : f32
    %104 = vector.broadcast %cst_39 : f32 to vector<8x8xf32>
    %105 = arith.mulf %103, %104 : vector<8x8xf32>
    %cst_40 = arith.constant dense<0xFF800000> : vector<8xf32>
    %106 = vector.multi_reduction <maximumf>, %105, %cst_40 [1] : vector<8x8xf32> to vector<8xf32>
    %107 = vector.shape_cast %106 : vector<8xf32> to vector<8x1xf32>
    %108 = vector.broadcast %107 : vector<8x1xf32> to vector<8x8xf32>
    %109 = arith.subf %105, %108 : vector<8x8xf32>
    %110 = math.exp %109 : vector<8x8xf32>
    %cst_41 = arith.constant dense<0.000000e+00> : vector<8xf32>
    %111 = vector.multi_reduction <add>, %110, %cst_41 [1] : vector<8x8xf32> to vector<8xf32>
    %112 = vector.shape_cast %111 : vector<8xf32> to vector<8x1xf32>
    %113 = tpu.reciprocal %112 {approx = true} : vector<8x1xf32> -> vector<8x1xf32>
    %114 = vector.broadcast %113 : vector<8x1xf32> to vector<8x8xf32>
    %115 = arith.mulf %110, %114 : vector<8x8xf32>
    %116 = vector.broadcast %100 : vector<1x32xf32> to vector<8x32xf32>
    %117 = arith.mulf %38, %116 : vector<8x32xf32>
    %cst_42 = arith.constant dense<0.000000e+00> : vector<8x32xf32>
    %118 = tpu.matmul %115, %117, %cst_42 {dimension_numbers = #tpu.dot_dimension_numbers<[1], [0], [0], [1], [0, 0, 1, 1], [], []>} : vector<8x8xf32>, vector<8x32xf32>, vector<8x32xf32> -> vector<8x32xf32>
    %119 = arith.addf %93, %118 : vector<8x32xf32>
    %c24_i32_43 = arith.constant 24 : i32
    %120 = vector.broadcast %c24_i32_43 : i32 to vector<1x32xi32>
    %121 = arith.cmpi sge, %39, %120 : vector<1x32xi32>
    %c32_i32 = arith.constant 32 : i32
    %122 = vector.broadcast %c32_i32 : i32 to vector<1x32xi32>
    %123 = arith.cmpi slt, %39, %122 : vector<1x32xi32>
    %124 = arith.andi %121, %123 : vector<1x32xi1>
    %125 = arith.extui %124 : vector<1x32xi1> to vector<1x32xi32>
    %126 = arith.sitofp %125 : vector<1x32xi32> to vector<1x32xf32>
    %127 = vector.broadcast %126 : vector<1x32xf32> to vector<8x32xf32>
    %128 = arith.mulf %28, %127 : vector<8x32xf32>
    %cst_44 = arith.constant dense<0.000000e+00> : vector<8x8xf32>
    %129 = tpu.matmul %128, %40, %cst_44 {dimension_numbers = #tpu.dot_dimension_numbers<[1], [0], [0], [1], [0, 0, 1, 1], [], []>} : vector<8x32xf32>, vector<32x8xf32>, vector<8x8xf32> -> vector<8x8xf32>
    %cst_45 = arith.constant 0.353553385 : f32
    %130 = vector.broadcast %cst_45 : f32 to vector<8x8xf32>
    %131 = arith.mulf %129, %130 : vector<8x8xf32>
    %cst_46 = arith.constant dense<0xFF800000> : vector<8xf32>
    %132 = vector.multi_reduction <maximumf>, %131, %cst_46 [1] : vector<8x8xf32> to vector<8xf32>
    %133 = vector.shape_cast %132 : vector<8xf32> to vector<8x1xf32>
    %134 = vector.broadcast %133 : vector<8x1xf32> to vector<8x8xf32>
    %135 = arith.subf %131, %134 : vector<8x8xf32>
    %136 = math.exp %135 : vector<8x8xf32>
    %cst_47 = arith.constant dense<0.000000e+00> : vector<8xf32>
    %137 = vector.multi_reduction <add>, %136, %cst_47 [1] : vector<8x8xf32> to vector<8xf32>
    %138 = vector.shape_cast %137 : vector<8xf32> to vector<8x1xf32>
    %139 = tpu.reciprocal %138 {approx = true} : vector<8x1xf32> -> vector<8x1xf32>
    %140 = vector.broadcast %139 : vector<8x1xf32> to vector<8x8xf32>
    %141 = arith.mulf %136, %140 : vector<8x8xf32>
    %142 = vector.broadcast %126 : vector<1x32xf32> to vector<8x32xf32>
    %143 = arith.mulf %38, %142 : vector<8x32xf32>
    %cst_48 = arith.constant dense<0.000000e+00> : vector<8x32xf32>
    %144 = tpu.matmul %141, %143, %cst_48 {dimension_numbers = #tpu.dot_dimension_numbers<[1], [0], [0], [1], [0, 0, 1, 1], [], []>} : vector<8x8xf32>, vector<8x32xf32>, vector<8x32xf32> -> vector<8x32xf32>
    %145 = arith.addf %119, %144 : vector<8x32xf32>
    %c0_49 = arith.constant 0 : index
    %c0_50 = arith.constant 0 : index
    %146 = vector.load %arg10[%c0_49, %c0_50] : memref<32x32xf32, #tpu.memory_space<vmem>>, vector<32x32xf32>
    %c0_51 = arith.constant 0 : index
    %c0_52 = arith.constant 0 : index
    %147 = vector.load %arg11[%c0_51, %c0_52] : memref<1x32xf32, #tpu.memory_space<vmem>>, vector<1x32xf32>
    %c0_53 = arith.constant 0 : index
    %c0_54 = arith.constant 0 : index
    %148 = vector.load %arg12[%c0_53, %c0_54] : memref<32x64xf32, #tpu.memory_space<vmem>>, vector<32x64xf32>
    %c0_55 = arith.constant 0 : index
    %c0_56 = arith.constant 0 : index
    %149 = vector.load %arg13[%c0_55, %c0_56] : memref<1x64xf32, #tpu.memory_space<vmem>>, vector<1x64xf32>
    %c0_57 = arith.constant 0 : index
    %c0_58 = arith.constant 0 : index
    %150 = vector.load %arg14[%c0_57, %c0_58] : memref<64x32xf32, #tpu.memory_space<vmem>>, vector<64x32xf32>
    %c0_59 = arith.constant 0 : index
    %c0_60 = arith.constant 0 : index
    %151 = vector.load %arg15[%c0_59, %c0_60] : memref<1x32xf32, #tpu.memory_space<vmem>>, vector<1x32xf32>
    %cst_61 = arith.constant dense<0.000000e+00> : vector<8x32xf32>
    %152 = tpu.matmul %145, %146, %cst_61 {dimension_numbers = #tpu.dot_dimension_numbers<[1], [0], [0], [1], [0, 0, 1, 1], [], []>} : vector<8x32xf32>, vector<32x32xf32>, vector<8x32xf32> -> vector<8x32xf32>
    %153 = vector.broadcast %147 : vector<1x32xf32> to vector<8x32xf32>
    %154 = arith.addf %152, %153 : vector<8x32xf32>
    %155 = arith.addf %154, %23 : vector<8x32xf32>
    %cst_62 = arith.constant dense<0.000000e+00> : vector<8x64xf32>
    %156 = tpu.matmul %155, %148, %cst_62 {dimension_numbers = #tpu.dot_dimension_numbers<[1], [0], [0], [1], [0, 0, 1, 1], [], []>} : vector<8x32xf32>, vector<32x64xf32>, vector<8x64xf32> -> vector<8x64xf32>
    %157 = vector.broadcast %149 : vector<1x64xf32> to vector<8x64xf32>
    %158 = arith.addf %156, %157 : vector<8x64xf32>
    %cst_63 = arith.constant 5.000000e-01 : f32
    %159 = vector.broadcast %cst_63 : f32 to vector<8x64xf32>
    %160 = arith.mulf %159, %158 : vector<8x64xf32>
    %cst_64 = arith.constant 0.707106769 : f32
    %161 = vector.broadcast %cst_64 : f32 to vector<8x64xf32>
    %162 = arith.mulf %158, %161 : vector<8x64xf32>
    %163 = math.erf %162 : vector<8x64xf32>
    %cst_65 = arith.constant 1.000000e+00 : f32
    %164 = vector.broadcast %cst_65 : f32 to vector<8x64xf32>
    %165 = arith.addf %164, %163 : vector<8x64xf32>
    %166 = arith.mulf %160, %165 : vector<8x64xf32>
    %cst_66 = arith.constant dense<0.000000e+00> : vector<8x32xf32>
    %167 = tpu.matmul %166, %150, %cst_66 {dimension_numbers = #tpu.dot_dimension_numbers<[1], [0], [0], [1], [0, 0, 1, 1], [], []>} : vector<8x64xf32>, vector<64x32xf32>, vector<8x32xf32> -> vector<8x32xf32>
    %168 = vector.broadcast %151 : vector<1x32xf32> to vector<8x32xf32>
    %169 = arith.addf %167, %168 : vector<8x32xf32>
    %170 = arith.addf %169, %155 : vector<8x32xf32>
    %c0_67 = arith.constant 0 : index
    %c0_68 = arith.constant 0 : index
    %c0_69 = arith.constant 0 : index
    %171 = vector.load %arg16[%c0_67, %c0_68, %c0_69] : memref<1x8x32xf32, #tpu.memory_space<vmem>>, vector<1x8x32xf32>
    %172 = vector.shape_cast %171 : vector<1x8x32xf32> to vector<8x32xf32>
    %173 = vector.shape_cast %170 : vector<8x32xf32> to vector<1x8x32xf32>
    tpu.vector_store %arg16[%c0_67, %c0_68, %c0_69], %173 {strides = array<i32>} : memref<1x8x32xf32, #tpu.memory_space<vmem>>, vector<1x8x32xf32>,
    return
  }
  func.func @transform_0(%arg0: i32) -> (i32, i32, i32) {
    %c0_i32 = arith.constant 0 : i32
    %c0_i32_0 = arith.constant 0 : i32
    %c0_i32_1 = arith.constant 0 : i32
    return %arg0, %c0_i32, %c0_i32_0 : i32, i32, i32
  }
  func.func @transform_1(%arg0: i32) -> (i32, i32) {
    %c0_i32 = arith.constant 0 : i32
    %c0_i32_0 = arith.constant 0 : i32
    %c0_i32_1 = arith.constant 0 : i32
    return %c0_i32, %c0_i32_0 : i32, i32
  }
  func.func @transform_2(%arg0: i32) -> (i32, i32) {
    %c0_i32 = arith.constant 0 : i32
    %c0_i32_0 = arith.constant 0 : i32
    %c0_i32_1 = arith.constant 0 : i32
    return %c0_i32, %c0_i32_0 : i32, i32
  }
  func.func @transform_3(%arg0: i32) -> (i32, i32) {
    %c0_i32 = arith.constant 0 : i32
    %c0_i32_0 = arith.constant 0 : i32
    %c0_i32_1 = arith.constant 0 : i32
    return %c0_i32, %c0_i32_0 : i32, i32
  }
  func.func @transform_4(%arg0: i32) -> (i32, i32) {
    %c0_i32 = arith.constant 0 : i32
    %c0_i32_0 = arith.constant 0 : i32
    %c0_i32_1 = arith.constant 0 : i32
    return %c0_i32, %c0_i32_0 : i32, i32
  }
  func.func @transform_5(%arg0: i32) -> (i32, i32) {
    %c0_i32 = arith.constant 0 : i32
    %c0_i32_0 = arith.constant 0 : i32
    %c0_i32_1 = arith.constant 0 : i32
    return %c0_i32, %c0_i32_0 : i32, i32
  }
  func.func @transform_6(%arg0: i32) -> (i32, i32) {
    %c0_i32 = arith.constant 0 : i32
    %c0_i32_0 = arith.constant 0 : i32
    %c0_i32_1 = arith.constant 0 : i32
    return %c0_i32, %c0_i32_0 : i32, i32
  }
  func.func @transform_7(%arg0: i32) -> (i32, i32) {
    %c0_i32 = arith.constant 0 : i32
    %c0_i32_0 = arith.constant 0 : i32
    %c0_i32_1 = arith.constant 0 : i32
    return %c0_i32, %c0_i32_0 : i32, i32
  }
  func.func @transform_8(%arg0: i32) -> (i32, i32) {
    %c0_i32 = arith.constant 0 : i32
    %c0_i32_0 = arith.constant 0 : i32
    %c0_i32_1 = arith.constant 0 : i32
    return %c0_i32, %c0_i32_0 : i32, i32
  }
  func.func @transform_9(%arg0: i32) -> (i32, i32) {
    %c0_i32 = arith.constant 0 : i32
    %c0_i32_0 = arith.constant 0 : i32
    %c0_i32_1 = arith.constant 0 : i32
    return %c0_i32, %c0_i32_0 : i32, i32
  }
  func.func @transform_10(%arg0: i32) -> (i32, i32) {
    %c0_i32 = arith.constant 0 : i32
    %c0_i32_0 = arith.constant 0 : i32
    %c0_i32_1 = arith.constant 0 : i32
    return %c0_i32, %c0_i32_0 : i32, i32
  }
  func.func @transform_11(%arg0: i32) -> (i32, i32) {
    %c0_i32 = arith.constant 0 : i32
    %c0_i32_0 = arith.constant 0 : i32
    %c0_i32_1 = arith.constant 0 : i32
    return %c0_i32, %c0_i32_0 : i32, i32
  }
  func.func @transform_12(%arg0: i32) -> (i32, i32) {
    %c0_i32 = arith.constant 0 : i32
    %c0_i32_0 = arith.constant 0 : i32
    %c0_i32_1 = arith.constant 0 : i32
    return %c0_i32, %c0_i32_0 : i32, i32
  }
  func.func @transform_13(%arg0: i32) -> (i32, i32) {
    %c0_i32 = arith.constant 0 : i32
    %c0_i32_0 = arith.constant 0 : i32
    %c0_i32_1 = arith.constant 0 : i32
    return %c0_i32, %c0_i32_0 : i32, i32
  }
  func.func @transform_14(%arg0: i32) -> (i32, i32) {
    %c0_i32 = arith.constant 0 : i32
    %c0_i32_0 = arith.constant 0 : i32
    %c0_i32_1 = arith.constant 0 : i32
    return %c0_i32, %c0_i32_0 : i32, i32
  }
  func.func @transform_15(%arg0: i32) -> (i32, i32, i32) {
    %c0_i32 = arith.constant 0 : i32
    %c0_i32_0 = arith.constant 0 : i32
    %c0_i32_1 = arith.constant 0 : i32
    return %arg0, %c0_i32, %c0_i32_0 : i32, i32, i32
  }
}

module attributes {stable_mosaic.version = 11 : i64} {
  func.func @_cross_wrapper_kernel(%arg0: i32, %arg1: memref<1x8x32xf32, #tpu.memory_space<vmem>>, %arg2: memref<1x8x32xf32, #tpu.memory_space<vmem>>, %arg3: memref<1x8x32xf32, #tpu.memory_space<vmem>>, %arg4: memref<1x1x8xf32, #tpu.memory_space<vmem>>, %arg5: memref<1x32xf32, #tpu.memory_space<vmem>>, %arg6: memref<1x32xf32, #tpu.memory_space<vmem>>, %arg7: memref<1x32xf32, #tpu.memory_space<vmem>>, %arg8: memref<1x32xf32, #tpu.memory_space<vmem>>, %arg9: memref<32x32xf32, #tpu.memory_space<vmem>>, %arg10: memref<1x32xf32, #tpu.memory_space<vmem>>, %arg11: memref<32x32xf32, #tpu.memory_space<vmem>>, %arg12: memref<1x32xf32, #tpu.memory_space<vmem>>, %arg13: memref<32x32xf32, #tpu.memory_space<vmem>>, %arg14: memref<1x32xf32, #tpu.memory_space<vmem>>, %arg15: memref<32x32xf32, #tpu.memory_space<vmem>>, %arg16: memref<1x32xf32, #tpu.memory_space<vmem>>, %arg17: memref<32x64xf32, #tpu.memory_space<vmem>>, %arg18: memref<1x64xf32, #tpu.memory_space<vmem>>, %arg19: memref<64x32xf32, #tpu.memory_space<vmem>>, %arg20: memref<1x32xf32, #tpu.memory_space<vmem>>, %arg21: memref<1x8x32xf32, #tpu.memory_space<vmem>>) attributes {dimension_semantics = [#tpu.dimension_semantics<parallel>], iteration_bounds = array<i64: 2>, scalar_prefetch = 0 : i64, scratch_operands = 0 : i64, tpu.core_type = #tpu.core_type<tc>, window_params = [{transform_indices = @transform_0, window_bounds = array<i64: 1, 8, 32>}, {transform_indices = @transform_1, window_bounds = array<i64: 1, 8, 32>}, {transform_indices = @transform_2, window_bounds = array<i64: 1, 8, 32>}, {transform_indices = @transform_3, window_bounds = array<i64: 1, 1, 8>}, {pipeline_mode = #tpu.pipeline_mode<synchronous>, transform_indices = @transform_4, window_bounds = array<i64: 1, 32>}, {pipeline_mode = #tpu.pipeline_mode<synchronous>, transform_indices = @transform_5, window_bounds = array<i64: 1, 32>}, {pipeline_mode = #tpu.pipeline_mode<synchronous>, transform_indices = @transform_6, window_bounds = array<i64: 1, 32>}, {pipeline_mode = #tpu.pipeline_mode<synchronous>, transform_indices = @transform_7, window_bounds = array<i64: 1, 32>}, {pipeline_mode = #tpu.pipeline_mode<synchronous>, transform_indices = @transform_8, window_bounds = array<i64: 32, 32>}, {pipeline_mode = #tpu.pipeline_mode<synchronous>, transform_indices = @transform_9, window_bounds = array<i64: 1, 32>}, {pipeline_mode = #tpu.pipeline_mode<synchronous>, transform_indices = @transform_10, window_bounds = array<i64: 32, 32>}, {pipeline_mode = #tpu.pipeline_mode<synchronous>, transform_indices = @transform_11, window_bounds = array<i64: 1, 32>}, {pipeline_mode = #tpu.pipeline_mode<synchronous>, transform_indices = @transform_12, window_bounds = array<i64: 32, 32>}, {pipeline_mode = #tpu.pipeline_mode<synchronous>, transform_indices = @transform_13, window_bounds = array<i64: 1, 32>}, {pipeline_mode = #tpu.pipeline_mode<synchronous>, transform_indices = @transform_14, window_bounds = array<i64: 32, 32>}, {pipeline_mode = #tpu.pipeline_mode<synchronous>, transform_indices = @transform_15, window_bounds = array<i64: 1, 32>}, {pipeline_mode = #tpu.pipeline_mode<synchronous>, transform_indices = @transform_16, window_bounds = array<i64: 32, 64>}, {pipeline_mode = #tpu.pipeline_mode<synchronous>, transform_indices = @transform_17, window_bounds = array<i64: 1, 64>}, {pipeline_mode = #tpu.pipeline_mode<synchronous>, transform_indices = @transform_18, window_bounds = array<i64: 64, 32>}, {pipeline_mode = #tpu.pipeline_mode<synchronous>, transform_indices = @transform_19, window_bounds = array<i64: 1, 32>}, {transform_indices = @transform_20, window_bounds = array<i64: 1, 8, 32>}]} {
    %c0 = arith.constant 0 : index
    %c0_0 = arith.constant 0 : index
    %c0_1 = arith.constant 0 : index
    %0 = vector.load %arg1[%c0, %c0_0, %c0_1] : memref<1x8x32xf32, #tpu.memory_space<vmem>>, vector<1x8x32xf32>
    %1 = vector.shape_cast %0 : vector<1x8x32xf32> to vector<8x32xf32>
    %c0_2 = arith.constant 0 : index
    %c0_3 = arith.constant 0 : index
    %2 = vector.load %arg5[%c0_2, %c0_3] : memref<1x32xf32, #tpu.memory_space<vmem>>, vector<1x32xf32>
    %c0_4 = arith.constant 0 : index
    %c0_5 = arith.constant 0 : index
    %3 = vector.load %arg6[%c0_4, %c0_5] : memref<1x32xf32, #tpu.memory_space<vmem>>, vector<1x32xf32>
    %cst = arith.constant dense<0.000000e+00> : vector<8xf32>
    %4 = vector.multi_reduction <add>, %1, %cst [1] : vector<8x32xf32> to vector<8xf32>
    %5 = vector.shape_cast %4 : vector<8xf32> to vector<8x1xf32>
    %cst_6 = arith.constant 3.200000e+01 : f32
    %6 = vector.broadcast %cst_6 : f32 to vector<8x1xf32>
    %7 = arith.divf %5, %6 : vector<8x1xf32>
    %8 = vector.broadcast %7 : vector<8x1xf32> to vector<8x32xf32>
    %9 = arith.subf %1, %8 : vector<8x32xf32>
    %10 = arith.mulf %9, %9 : vector<8x32xf32>
    %cst_7 = arith.constant dense<0.000000e+00> : vector<8xf32>
    %11 = vector.multi_reduction <add>, %10, %cst_7 [1] : vector<8x32xf32> to vector<8xf32>
    %12 = vector.shape_cast %11 : vector<8xf32> to vector<8x1xf32>
    %cst_8 = arith.constant 3.200000e+01 : f32
    %13 = vector.broadcast %cst_8 : f32 to vector<8x1xf32>
    %14 = arith.divf %12, %13 : vector<8x1xf32>
    %cst_9 = arith.constant 9.99999974E-6 : f32
    %15 = vector.broadcast %cst_9 : f32 to vector<8x1xf32>
    %16 = arith.addf %14, %15 : vector<8x1xf32>
    %17 = math.rsqrt %16 : vector<8x1xf32>
    %18 = vector.broadcast %17 : vector<8x1xf32> to vector<8x32xf32>
    %19 = arith.mulf %9, %18 : vector<8x32xf32>
    %20 = vector.broadcast %2 : vector<1x32xf32> to vector<8x32xf32>
    %21 = arith.mulf %19, %20 : vector<8x32xf32>
    %22 = vector.broadcast %3 : vector<1x32xf32> to vector<8x32xf32>
    %23 = arith.addf %21, %22 : vector<8x32xf32>
    %c0_10 = arith.constant 0 : index
    %c0_11 = arith.constant 0 : index
    %c0_12 = arith.constant 0 : index
    %24 = vector.load %arg2[%c0_10, %c0_11, %c0_12] : memref<1x8x32xf32, #tpu.memory_space<vmem>>, vector<1x8x32xf32>
    %25 = vector.shape_cast %24 : vector<1x8x32xf32> to vector<8x32xf32>
    %c0_13 = arith.constant 0 : index
    %c0_14 = arith.constant 0 : index
    %26 = vector.load %arg7[%c0_13, %c0_14] : memref<1x32xf32, #tpu.memory_space<vmem>>, vector<1x32xf32>
    %c0_15 = arith.constant 0 : index
    %c0_16 = arith.constant 0 : index
    %27 = vector.load %arg8[%c0_15, %c0_16] : memref<1x32xf32, #tpu.memory_space<vmem>>, vector<1x32xf32>
    %cst_17 = arith.constant dense<0.000000e+00> : vector<8xf32>
    %28 = vector.multi_reduction <add>, %25, %cst_17 [1] : vector<8x32xf32> to vector<8xf32>
    %29 = vector.shape_cast %28 : vector<8xf32> to vector<8x1xf32>
    %cst_18 = arith.constant 3.200000e+01 : f32
    %30 = vector.broadcast %cst_18 : f32 to vector<8x1xf32>
    %31 = arith.divf %29, %30 : vector<8x1xf32>
    %32 = vector.broadcast %31 : vector<8x1xf32> to vector<8x32xf32>
    %33 = arith.subf %25, %32 : vector<8x32xf32>
    %34 = arith.mulf %33, %33 : vector<8x32xf32>
    %cst_19 = arith.constant dense<0.000000e+00> : vector<8xf32>
    %35 = vector.multi_reduction <add>, %34, %cst_19 [1] : vector<8x32xf32> to vector<8xf32>
    %36 = vector.shape_cast %35 : vector<8xf32> to vector<8x1xf32>
    %cst_20 = arith.constant 3.200000e+01 : f32
    %37 = vector.broadcast %cst_20 : f32 to vector<8x1xf32>
    %38 = arith.divf %36, %37 : vector<8x1xf32>
    %cst_21 = arith.constant 9.99999974E-6 : f32
    %39 = vector.broadcast %cst_21 : f32 to vector<8x1xf32>
    %40 = arith.addf %38, %39 : vector<8x1xf32>
    %41 = math.rsqrt %40 : vector<8x1xf32>
    %42 = vector.broadcast %41 : vector<8x1xf32> to vector<8x32xf32>
    %43 = arith.mulf %33, %42 : vector<8x32xf32>
    %44 = vector.broadcast %26 : vector<1x32xf32> to vector<8x32xf32>
    %45 = arith.mulf %43, %44 : vector<8x32xf32>
    %46 = vector.broadcast %27 : vector<1x32xf32> to vector<8x32xf32>
    %47 = arith.addf %45, %46 : vector<8x32xf32>
    %c0_22 = arith.constant 0 : index
    %c0_23 = arith.constant 0 : index
    %c0_24 = arith.constant 0 : index
    %48 = vector.load %arg3[%c0_22, %c0_23, %c0_24] : memref<1x8x32xf32, #tpu.memory_space<vmem>>, vector<1x8x32xf32>
    %49 = vector.shape_cast %48 : vector<1x8x32xf32> to vector<8x32xf32>
    %c0_25 = arith.constant 0 : index
    %c0_26 = arith.constant 0 : index
    %50 = vector.load %arg7[%c0_25, %c0_26] : memref<1x32xf32, #tpu.memory_space<vmem>>, vector<1x32xf32>
    %c0_27 = arith.constant 0 : index
    %c0_28 = arith.constant 0 : index
    %51 = vector.load %arg8[%c0_27, %c0_28] : memref<1x32xf32, #tpu.memory_space<vmem>>, vector<1x32xf32>
    %cst_29 = arith.constant dense<0.000000e+00> : vector<8xf32>
    %52 = vector.multi_reduction <add>, %49, %cst_29 [1] : vector<8x32xf32> to vector<8xf32>
    %53 = vector.shape_cast %52 : vector<8xf32> to vector<8x1xf32>
    %cst_30 = arith.constant 3.200000e+01 : f32
    %54 = vector.broadcast %cst_30 : f32 to vector<8x1xf32>
    %55 = arith.divf %53, %54 : vector<8x1xf32>
    %56 = vector.broadcast %55 : vector<8x1xf32> to vector<8x32xf32>
    %57 = arith.subf %49, %56 : vector<8x32xf32>
    %58 = arith.mulf %57, %57 : vector<8x32xf32>
    %cst_31 = arith.constant dense<0.000000e+00> : vector<8xf32>
    %59 = vector.multi_reduction <add>, %58, %cst_31 [1] : vector<8x32xf32> to vector<8xf32>
    %60 = vector.shape_cast %59 : vector<8xf32> to vector<8x1xf32>
    %cst_32 = arith.constant 3.200000e+01 : f32
    %61 = vector.broadcast %cst_32 : f32 to vector<8x1xf32>
    %62 = arith.divf %60, %61 : vector<8x1xf32>
    %cst_33 = arith.constant 9.99999974E-6 : f32
    %63 = vector.broadcast %cst_33 : f32 to vector<8x1xf32>
    %64 = arith.addf %62, %63 : vector<8x1xf32>
    %65 = math.rsqrt %64 : vector<8x1xf32>
    %66 = vector.broadcast %65 : vector<8x1xf32> to vector<8x32xf32>
    %67 = arith.mulf %57, %66 : vector<8x32xf32>
    %68 = vector.broadcast %50 : vector<1x32xf32> to vector<8x32xf32>
    %69 = arith.mulf %67, %68 : vector<8x32xf32>
    %70 = vector.broadcast %51 : vector<1x32xf32> to vector<8x32xf32>
    %71 = arith.addf %69, %70 : vector<8x32xf32>
    %c0_34 = arith.constant 0 : index
    %c0_35 = arith.constant 0 : index
    %72 = vector.load %arg9[%c0_34, %c0_35] : memref<32x32xf32, #tpu.memory_space<vmem>>, vector<32x32xf32>
    %cst_36 = arith.constant dense<0.000000e+00> : vector<8x32xf32>
    %73 = tpu.matmul %23, %72, %cst_36 {dimension_numbers = #tpu.dot_dimension_numbers<[1], [0], [0], [1], [0, 0, 1, 1], [], []>} : vector<8x32xf32>, vector<32x32xf32>, vector<8x32xf32> -> vector<8x32xf32>
    %c0_37 = arith.constant 0 : index
    %c0_38 = arith.constant 0 : index
    %74 = vector.load %arg10[%c0_37, %c0_38] : memref<1x32xf32, #tpu.memory_space<vmem>>, vector<1x32xf32>
    %75 = vector.broadcast %74 : vector<1x32xf32> to vector<8x32xf32>
    %76 = arith.addf %73, %75 : vector<8x32xf32>
    %c0_39 = arith.constant 0 : index
    %c0_40 = arith.constant 0 : index
    %77 = vector.load %arg11[%c0_39, %c0_40] : memref<32x32xf32, #tpu.memory_space<vmem>>, vector<32x32xf32>
    %cst_41 = arith.constant dense<0.000000e+00> : vector<8x32xf32>
    %78 = tpu.matmul %47, %77, %cst_41 {dimension_numbers = #tpu.dot_dimension_numbers<[1], [0], [0], [1], [0, 0, 1, 1], [], []>} : vector<8x32xf32>, vector<32x32xf32>, vector<8x32xf32> -> vector<8x32xf32>
    %c0_42 = arith.constant 0 : index
    %c0_43 = arith.constant 0 : index
    %79 = vector.load %arg12[%c0_42, %c0_43] : memref<1x32xf32, #tpu.memory_space<vmem>>, vector<1x32xf32>
    %80 = vector.broadcast %79 : vector<1x32xf32> to vector<8x32xf32>
    %81 = arith.addf %78, %80 : vector<8x32xf32>
    %c0_44 = arith.constant 0 : index
    %c0_45 = arith.constant 0 : index
    %82 = vector.load %arg13[%c0_44, %c0_45] : memref<32x32xf32, #tpu.memory_space<vmem>>, vector<32x32xf32>
    %cst_46 = arith.constant dense<0.000000e+00> : vector<8x32xf32>
    %83 = tpu.matmul %71, %82, %cst_46 {dimension_numbers = #tpu.dot_dimension_numbers<[1], [0], [0], [1], [0, 0, 1, 1], [], []>} : vector<8x32xf32>, vector<32x32xf32>, vector<8x32xf32> -> vector<8x32xf32>
    %c0_47 = arith.constant 0 : index
    %c0_48 = arith.constant 0 : index
    %84 = vector.load %arg14[%c0_47, %c0_48] : memref<1x32xf32, #tpu.memory_space<vmem>>, vector<1x32xf32>
    %85 = vector.broadcast %84 : vector<1x32xf32> to vector<8x32xf32>
    %86 = arith.addf %83, %85 : vector<8x32xf32>
    %c0_49 = arith.constant 0 : index
    %c0_50 = arith.constant 0 : index
    %c0_51 = arith.constant 0 : index
    %87 = vector.load %arg4[%c0_49, %c0_50, %c0_51] : memref<1x1x8xf32, #tpu.memory_space<vmem>>, vector<1x1x8xf32>
    %88 = vector.shape_cast %87 : vector<1x1x8xf32> to vector<1x8xf32>
    %89 = tpu.iota {dimensions = array<i32: 1>} : vector<1x32xi32>
    %90 = tpu.transpose %81, [1, 0] : vector<8x32xf32> -> vector<32x8xf32>
    %cst_52 = arith.constant 0.000000e+00 : f32
    %91 = vector.broadcast %cst_52 : f32 to vector<8x32xf32>
    %c0_i32 = arith.constant 0 : i32
    %92 = vector.broadcast %c0_i32 : i32 to vector<1x32xi32>
    %93 = arith.cmpi sge, %89, %92 : vector<1x32xi32>
    %c8_i32 = arith.constant 8 : i32
    %94 = vector.broadcast %c8_i32 : i32 to vector<1x32xi32>
    %95 = arith.cmpi slt, %89, %94 : vector<1x32xi32>
    %96 = arith.andi %93, %95 : vector<1x32xi1>
    %97 = arith.extui %96 : vector<1x32xi1> to vector<1x32xi32>
    %98 = arith.sitofp %97 : vector<1x32xi32> to vector<1x32xf32>
    %99 = vector.broadcast %98 : vector<1x32xf32> to vector<8x32xf32>
    %100 = arith.mulf %76, %99 : vector<8x32xf32>
    %cst_53 = arith.constant dense<0.000000e+00> : vector<8x8xf32>
    %101 = tpu.matmul %100, %90, %cst_53 {dimension_numbers = #tpu.dot_dimension_numbers<[1], [0], [0], [1], [0, 0, 1, 1], [], []>} : vector<8x32xf32>, vector<32x8xf32>, vector<8x8xf32> -> vector<8x8xf32>
    %cst_54 = arith.constant 0.353553385 : f32
    %102 = vector.broadcast %cst_54 : f32 to vector<8x8xf32>
    %103 = arith.mulf %101, %102 : vector<8x8xf32>
    %104 = vector.broadcast %88 : vector<1x8xf32> to vector<8x8xf32>
    %105 = arith.addf %103, %104 : vector<8x8xf32>
    %cst_55 = arith.constant dense<0xFF800000> : vector<8xf32>
    %106 = vector.multi_reduction <maximumf>, %105, %cst_55 [1] : vector<8x8xf32> to vector<8xf32>
    %107 = vector.shape_cast %106 : vector<8xf32> to vector<8x1xf32>
    %108 = vector.broadcast %107 : vector<8x1xf32> to vector<8x8xf32>
    %109 = arith.subf %105, %108 : vector<8x8xf32>
    %110 = math.exp %109 : vector<8x8xf32>
    %cst_56 = arith.constant dense<0.000000e+00> : vector<8xf32>
    %111 = vector.multi_reduction <add>, %110, %cst_56 [1] : vector<8x8xf32> to vector<8xf32>
    %112 = vector.shape_cast %111 : vector<8xf32> to vector<8x1xf32>
    %113 = tpu.reciprocal %112 {approx = true} : vector<8x1xf32> -> vector<8x1xf32>
    %114 = vector.broadcast %113 : vector<8x1xf32> to vector<8x8xf32>
    %115 = arith.mulf %110, %114 : vector<8x8xf32>
    %116 = vector.broadcast %98 : vector<1x32xf32> to vector<8x32xf32>
    %117 = arith.mulf %86, %116 : vector<8x32xf32>
    %cst_57 = arith.constant dense<0.000000e+00> : vector<8x32xf32>
    %118 = tpu.matmul %115, %117, %cst_57 {dimension_numbers = #tpu.dot_dimension_numbers<[1], [0], [0], [1], [0, 0, 1, 1], [], []>} : vector<8x8xf32>, vector<8x32xf32>, vector<8x32xf32> -> vector<8x32xf32>
    %119 = arith.addf %91, %118 : vector<8x32xf32>
    %c8_i32_58 = arith.constant 8 : i32
    %120 = vector.broadcast %c8_i32_58 : i32 to vector<1x32xi32>
    %121 = arith.cmpi sge, %89, %120 : vector<1x32xi32>
    %c16_i32 = arith.constant 16 : i32
    %122 = vector.broadcast %c16_i32 : i32 to vector<1x32xi32>
    %123 = arith.cmpi slt, %89, %122 : vector<1x32xi32>
    %124 = arith.andi %121, %123 : vector<1x32xi1>
    %125 = arith.extui %124 : vector<1x32xi1> to vector<1x32xi32>
    %126 = arith.sitofp %125 : vector<1x32xi32> to vector<1x32xf32>
    %127 = vector.broadcast %126 : vector<1x32xf32> to vector<8x32xf32>
    %128 = arith.mulf %76, %127 : vector<8x32xf32>
    %cst_59 = arith.constant dense<0.000000e+00> : vector<8x8xf32>
    %129 = tpu.matmul %128, %90, %cst_59 {dimension_numbers = #tpu.dot_dimension_numbers<[1], [0], [0], [1], [0, 0, 1, 1], [], []>} : vector<8x32xf32>, vector<32x8xf32>, vector<8x8xf32> -> vector<8x8xf32>
    %cst_60 = arith.constant 0.353553385 : f32
    %130 = vector.broadcast %cst_60 : f32 to vector<8x8xf32>
    %131 = arith.mulf %129, %130 : vector<8x8xf32>
    %132 = vector.broadcast %88 : vector<1x8xf32> to vector<8x8xf32>
    %133 = arith.addf %131, %132 : vector<8x8xf32>
    %cst_61 = arith.constant dense<0xFF800000> : vector<8xf32>
    %134 = vector.multi_reduction <maximumf>, %133, %cst_61 [1] : vector<8x8xf32> to vector<8xf32>
    %135 = vector.shape_cast %134 : vector<8xf32> to vector<8x1xf32>
    %136 = vector.broadcast %135 : vector<8x1xf32> to vector<8x8xf32>
    %137 = arith.subf %133, %136 : vector<8x8xf32>
    %138 = math.exp %137 : vector<8x8xf32>
    %cst_62 = arith.constant dense<0.000000e+00> : vector<8xf32>
    %139 = vector.multi_reduction <add>, %138, %cst_62 [1] : vector<8x8xf32> to vector<8xf32>
    %140 = vector.shape_cast %139 : vector<8xf32> to vector<8x1xf32>
    %141 = tpu.reciprocal %140 {approx = true} : vector<8x1xf32> -> vector<8x1xf32>
    %142 = vector.broadcast %141 : vector<8x1xf32> to vector<8x8xf32>
    %143 = arith.mulf %138, %142 : vector<8x8xf32>
    %144 = vector.broadcast %126 : vector<1x32xf32> to vector<8x32xf32>
    %145 = arith.mulf %86, %144 : vector<8x32xf32>
    %cst_63 = arith.constant dense<0.000000e+00> : vector<8x32xf32>
    %146 = tpu.matmul %143, %145, %cst_63 {dimension_numbers = #tpu.dot_dimension_numbers<[1], [0], [0], [1], [0, 0, 1, 1], [], []>} : vector<8x8xf32>, vector<8x32xf32>, vector<8x32xf32> -> vector<8x32xf32>
    %147 = arith.addf %119, %146 : vector<8x32xf32>
    %c16_i32_64 = arith.constant 16 : i32
    %148 = vector.broadcast %c16_i32_64 : i32 to vector<1x32xi32>
    %149 = arith.cmpi sge, %89, %148 : vector<1x32xi32>
    %c24_i32 = arith.constant 24 : i32
    %150 = vector.broadcast %c24_i32 : i32 to vector<1x32xi32>
    %151 = arith.cmpi slt, %89, %150 : vector<1x32xi32>
    %152 = arith.andi %149, %151 : vector<1x32xi1>
    %153 = arith.extui %152 : vector<1x32xi1> to vector<1x32xi32>
    %154 = arith.sitofp %153 : vector<1x32xi32> to vector<1x32xf32>
    %155 = vector.broadcast %154 : vector<1x32xf32> to vector<8x32xf32>
    %156 = arith.mulf %76, %155 : vector<8x32xf32>
    %cst_65 = arith.constant dense<0.000000e+00> : vector<8x8xf32>
    %157 = tpu.matmul %156, %90, %cst_65 {dimension_numbers = #tpu.dot_dimension_numbers<[1], [0], [0], [1], [0, 0, 1, 1], [], []>} : vector<8x32xf32>, vector<32x8xf32>, vector<8x8xf32> -> vector<8x8xf32>
    %cst_66 = arith.constant 0.353553385 : f32
    %158 = vector.broadcast %cst_66 : f32 to vector<8x8xf32>
    %159 = arith.mulf %157, %158 : vector<8x8xf32>
    %160 = vector.broadcast %88 : vector<1x8xf32> to vector<8x8xf32>
    %161 = arith.addf %159, %160 : vector<8x8xf32>
    %cst_67 = arith.constant dense<0xFF800000> : vector<8xf32>
    %162 = vector.multi_reduction <maximumf>, %161, %cst_67 [1] : vector<8x8xf32> to vector<8xf32>
    %163 = vector.shape_cast %162 : vector<8xf32> to vector<8x1xf32>
    %164 = vector.broadcast %163 : vector<8x1xf32> to vector<8x8xf32>
    %165 = arith.subf %161, %164 : vector<8x8xf32>
    %166 = math.exp %165 : vector<8x8xf32>
    %cst_68 = arith.constant dense<0.000000e+00> : vector<8xf32>
    %167 = vector.multi_reduction <add>, %166, %cst_68 [1] : vector<8x8xf32> to vector<8xf32>
    %168 = vector.shape_cast %167 : vector<8xf32> to vector<8x1xf32>
    %169 = tpu.reciprocal %168 {approx = true} : vector<8x1xf32> -> vector<8x1xf32>
    %170 = vector.broadcast %169 : vector<8x1xf32> to vector<8x8xf32>
    %171 = arith.mulf %166, %170 : vector<8x8xf32>
    %172 = vector.broadcast %154 : vector<1x32xf32> to vector<8x32xf32>
    %173 = arith.mulf %86, %172 : vector<8x32xf32>
    %cst_69 = arith.constant dense<0.000000e+00> : vector<8x32xf32>
    %174 = tpu.matmul %171, %173, %cst_69 {dimension_numbers = #tpu.dot_dimension_numbers<[1], [0], [0], [1], [0, 0, 1, 1], [], []>} : vector<8x8xf32>, vector<8x32xf32>, vector<8x32xf32> -> vector<8x32xf32>
    %175 = arith.addf %147, %174 : vector<8x32xf32>
    %c24_i32_70 = arith.constant 24 : i32
    %176 = vector.broadcast %c24_i32_70 : i32 to vector<1x32xi32>
    %177 = arith.cmpi sge, %89, %176 : vector<1x32xi32>
    %c32_i32 = arith.constant 32 : i32
    %178 = vector.broadcast %c32_i32 : i32 to vector<1x32xi32>
    %179 = arith.cmpi slt, %89, %178 : vector<1x32xi32>
    %180 = arith.andi %177, %179 : vector<1x32xi1>
    %181 = arith.extui %180 : vector<1x32xi1> to vector<1x32xi32>
    %182 = arith.sitofp %181 : vector<1x32xi32> to vector<1x32xf32>
    %183 = vector.broadcast %182 : vector<1x32xf32> to vector<8x32xf32>
    %184 = arith.mulf %76, %183 : vector<8x32xf32>
    %cst_71 = arith.constant dense<0.000000e+00> : vector<8x8xf32>
    %185 = tpu.matmul %184, %90, %cst_71 {dimension_numbers = #tpu.dot_dimension_numbers<[1], [0], [0], [1], [0, 0, 1, 1], [], []>} : vector<8x32xf32>, vector<32x8xf32>, vector<8x8xf32> -> vector<8x8xf32>
    %cst_72 = arith.constant 0.353553385 : f32
    %186 = vector.broadcast %cst_72 : f32 to vector<8x8xf32>
    %187 = arith.mulf %185, %186 : vector<8x8xf32>
    %188 = vector.broadcast %88 : vector<1x8xf32> to vector<8x8xf32>
    %189 = arith.addf %187, %188 : vector<8x8xf32>
    %cst_73 = arith.constant dense<0xFF800000> : vector<8xf32>
    %190 = vector.multi_reduction <maximumf>, %189, %cst_73 [1] : vector<8x8xf32> to vector<8xf32>
    %191 = vector.shape_cast %190 : vector<8xf32> to vector<8x1xf32>
    %192 = vector.broadcast %191 : vector<8x1xf32> to vector<8x8xf32>
    %193 = arith.subf %189, %192 : vector<8x8xf32>
    %194 = math.exp %193 : vector<8x8xf32>
    %cst_74 = arith.constant dense<0.000000e+00> : vector<8xf32>
    %195 = vector.multi_reduction <add>, %194, %cst_74 [1] : vector<8x8xf32> to vector<8xf32>
    %196 = vector.shape_cast %195 : vector<8xf32> to vector<8x1xf32>
    %197 = tpu.reciprocal %196 {approx = true} : vector<8x1xf32> -> vector<8x1xf32>
    %198 = vector.broadcast %197 : vector<8x1xf32> to vector<8x8xf32>
    %199 = arith.mulf %194, %198 : vector<8x8xf32>
    %200 = vector.broadcast %182 : vector<1x32xf32> to vector<8x32xf32>
    %201 = arith.mulf %86, %200 : vector<8x32xf32>
    %cst_75 = arith.constant dense<0.000000e+00> : vector<8x32xf32>
    %202 = tpu.matmul %199, %201, %cst_75 {dimension_numbers = #tpu.dot_dimension_numbers<[1], [0], [0], [1], [0, 0, 1, 1], [], []>} : vector<8x8xf32>, vector<8x32xf32>, vector<8x32xf32> -> vector<8x32xf32>
    %203 = arith.addf %175, %202 : vector<8x32xf32>
    %c0_76 = arith.constant 0 : index
    %c0_77 = arith.constant 0 : index
    %204 = vector.load %arg15[%c0_76, %c0_77] : memref<32x32xf32, #tpu.memory_space<vmem>>, vector<32x32xf32>
    %c0_78 = arith.constant 0 : index
    %c0_79 = arith.constant 0 : index
    %205 = vector.load %arg16[%c0_78, %c0_79] : memref<1x32xf32, #tpu.memory_space<vmem>>, vector<1x32xf32>
    %c0_80 = arith.constant 0 : index
    %c0_81 = arith.constant 0 : index
    %206 = vector.load %arg17[%c0_80, %c0_81] : memref<32x64xf32, #tpu.memory_space<vmem>>, vector<32x64xf32>
    %c0_82 = arith.constant 0 : index
    %c0_83 = arith.constant 0 : index
    %207 = vector.load %arg18[%c0_82, %c0_83] : memref<1x64xf32, #tpu.memory_space<vmem>>, vector<1x64xf32>
    %c0_84 = arith.constant 0 : index
    %c0_85 = arith.constant 0 : index
    %208 = vector.load %arg19[%c0_84, %c0_85] : memref<64x32xf32, #tpu.memory_space<vmem>>, vector<64x32xf32>
    %c0_86 = arith.constant 0 : index
    %c0_87 = arith.constant 0 : index
    %209 = vector.load %arg20[%c0_86, %c0_87] : memref<1x32xf32, #tpu.memory_space<vmem>>, vector<1x32xf32>
    %cst_88 = arith.constant dense<0.000000e+00> : vector<8x32xf32>
    %210 = tpu.matmul %203, %204, %cst_88 {dimension_numbers = #tpu.dot_dimension_numbers<[1], [0], [0], [1], [0, 0, 1, 1], [], []>} : vector<8x32xf32>, vector<32x32xf32>, vector<8x32xf32> -> vector<8x32xf32>
    %211 = vector.broadcast %205 : vector<1x32xf32> to vector<8x32xf32>
    %212 = arith.addf %210, %211 : vector<8x32xf32>
    %213 = arith.addf %212, %23 : vector<8x32xf32>
    %cst_89 = arith.constant dense<0.000000e+00> : vector<8x64xf32>
    %214 = tpu.matmul %213, %206, %cst_89 {dimension_numbers = #tpu.dot_dimension_numbers<[1], [0], [0], [1], [0, 0, 1, 1], [], []>} : vector<8x32xf32>, vector<32x64xf32>, vector<8x64xf32> -> vector<8x64xf32>
    %215 = vector.broadcast %207 : vector<1x64xf32> to vector<8x64xf32>
    %216 = arith.addf %214, %215 : vector<8x64xf32>
    %cst_90 = arith.constant 5.000000e-01 : f32
    %217 = vector.broadcast %cst_90 : f32 to vector<8x64xf32>
    %218 = arith.mulf %217, %216 : vector<8x64xf32>
    %cst_91 = arith.constant 0.707106769 : f32
    %219 = vector.broadcast %cst_91 : f32 to vector<8x64xf32>
    %220 = arith.mulf %216, %219 : vector<8x64xf32>
    %221 = math.erf %220 : vector<8x64xf32>
    %cst_92 = arith.constant 1.000000e+00 : f32
    %222 = vector.broadcast %cst_92 : f32 to vector<8x64xf32>
    %223 = arith.addf %222, %221 : vector<8x64xf32>
    %224 = arith.mulf %218, %223 : vector<8x64xf32>
    %cst_93 = arith.constant dense<0.000000e+00> : vector<8x32xf32>
    %225 = tpu.matmul %224, %208, %cst_93 {dimension_numbers = #tpu.dot_dimension_numbers<[1], [0], [0], [1], [0, 0, 1, 1], [], []>} : vector<8x64xf32>, vector<64x32xf32>, vector<8x32xf32> -> vector<8x32xf32>
    %226 = vector.broadcast %209 : vector<1x32xf32> to vector<8x32xf32>
    %227 = arith.addf %225, %226 : vector<8x32xf32>
    %228 = arith.addf %227, %213 : vector<8x32xf32>
    %c0_94 = arith.constant 0 : index
    %c0_95 = arith.constant 0 : index
    %c0_96 = arith.constant 0 : index
    %229 = vector.load %arg21[%c0_94, %c0_95, %c0_96] : memref<1x8x32xf32, #tpu.memory_space<vmem>>, vector<1x8x32xf32>
    %230 = vector.shape_cast %229 : vector<1x8x32xf32> to vector<8x32xf32>
    %231 = vector.shape_cast %228 : vector<8x32xf32> to vector<1x8x32xf32>
    tpu.vector_store %arg21[%c0_94, %c0_95, %c0_96], %231 {strides = array<i32>} : memref<1x8x32xf32, #tpu.memory_space<vmem>>, vector<1x8x32xf32>,
    return
  }
  func.func @transform_0(%arg0: i32) -> (i32, i32, i32) {
    %c0_i32 = arith.constant 0 : i32
    %c0_i32_0 = arith.constant 0 : i32
    %c0_i32_1 = arith.constant 0 : i32
    return %arg0, %c0_i32, %c0_i32_0 : i32, i32, i32
  }
  func.func @transform_1(%arg0: i32) -> (i32, i32, i32) {
    %c0_i32 = arith.constant 0 : i32
    %c0_i32_0 = arith.constant 0 : i32
    %c0_i32_1 = arith.constant 0 : i32
    return %arg0, %c0_i32, %c0_i32_0 : i32, i32, i32
  }
  func.func @transform_2(%arg0: i32) -> (i32, i32, i32) {
    %c0_i32 = arith.constant 0 : i32
    %c0_i32_0 = arith.constant 0 : i32
    %c0_i32_1 = arith.constant 0 : i32
    return %arg0, %c0_i32, %c0_i32_0 : i32, i32, i32
  }
  func.func @transform_3(%arg0: i32) -> (i32, i32, i32) {
    %c0_i32 = arith.constant 0 : i32
    %c0_i32_0 = arith.constant 0 : i32
    %c0_i32_1 = arith.constant 0 : i32
    return %arg0, %c0_i32, %c0_i32_0 : i32, i32, i32
  }
  func.func @transform_4(%arg0: i32) -> (i32, i32) {
    %c0_i32 = arith.constant 0 : i32
    %c0_i32_0 = arith.constant 0 : i32
    %c0_i32_1 = arith.constant 0 : i32
    return %c0_i32, %c0_i32_0 : i32, i32
  }
  func.func @transform_5(%arg0: i32) -> (i32, i32) {
    %c0_i32 = arith.constant 0 : i32
    %c0_i32_0 = arith.constant 0 : i32
    %c0_i32_1 = arith.constant 0 : i32
    return %c0_i32, %c0_i32_0 : i32, i32
  }
  func.func @transform_6(%arg0: i32) -> (i32, i32) {
    %c0_i32 = arith.constant 0 : i32
    %c0_i32_0 = arith.constant 0 : i32
    %c0_i32_1 = arith.constant 0 : i32
    return %c0_i32, %c0_i32_0 : i32, i32
  }
  func.func @transform_7(%arg0: i32) -> (i32, i32) {
    %c0_i32 = arith.constant 0 : i32
    %c0_i32_0 = arith.constant 0 : i32
    %c0_i32_1 = arith.constant 0 : i32
    return %c0_i32, %c0_i32_0 : i32, i32
  }
  func.func @transform_8(%arg0: i32) -> (i32, i32) {
    %c0_i32 = arith.constant 0 : i32
    %c0_i32_0 = arith.constant 0 : i32
    %c0_i32_1 = arith.constant 0 : i32
    return %c0_i32, %c0_i32_0 : i32, i32
  }
  func.func @transform_9(%arg0: i32) -> (i32, i32) {
    %c0_i32 = arith.constant 0 : i32
    %c0_i32_0 = arith.constant 0 : i32
    %c0_i32_1 = arith.constant 0 : i32
    return %c0_i32, %c0_i32_0 : i32, i32
  }
  func.func @transform_10(%arg0: i32) -> (i32, i32) {
    %c0_i32 = arith.constant 0 : i32
    %c0_i32_0 = arith.constant 0 : i32
    %c0_i32_1 = arith.constant 0 : i32
    return %c0_i32, %c0_i32_0 : i32, i32
  }
  func.func @transform_11(%arg0: i32) -> (i32, i32) {
    %c0_i32 = arith.constant 0 : i32
    %c0_i32_0 = arith.constant 0 : i32
    %c0_i32_1 = arith.constant 0 : i32
    return %c0_i32, %c0_i32_0 : i32, i32
  }
  func.func @transform_12(%arg0: i32) -> (i32, i32) {
    %c0_i32 = arith.constant 0 : i32
    %c0_i32_0 = arith.constant 0 : i32
    %c0_i32_1 = arith.constant 0 : i32
    return %c0_i32, %c0_i32_0 : i32, i32
  }
  func.func @transform_13(%arg0: i32) -> (i32, i32) {
    %c0_i32 = arith.constant 0 : i32
    %c0_i32_0 = arith.constant 0 : i32
    %c0_i32_1 = arith.constant 0 : i32
    return %c0_i32, %c0_i32_0 : i32, i32
  }
  func.func @transform_14(%arg0: i32) -> (i32, i32) {
    %c0_i32 = arith.constant 0 : i32
    %c0_i32_0 = arith.constant 0 : i32
    %c0_i32_1 = arith.constant 0 : i32
    return %c0_i32, %c0_i32_0 : i32, i32
  }
  func.func @transform_15(%arg0: i32) -> (i32, i32) {
    %c0_i32 = arith.constant 0 : i32
    %c0_i32_0 = arith.constant 0 : i32
    %c0_i32_1 = arith.constant 0 : i32
    return %c0_i32, %c0_i32_0 : i32, i32
  }
  func.func @transform_16(%arg0: i32) -> (i32, i32) {
    %c0_i32 = arith.constant 0 : i32
    %c0_i32_0 = arith.constant 0 : i32
    %c0_i32_1 = arith.constant 0 : i32
    return %c0_i32, %c0_i32_0 : i32, i32
  }
  func.func @transform_17(%arg0: i32) -> (i32, i32) {
    %c0_i32 = arith.constant 0 : i32
    %c0_i32_0 = arith.constant 0 : i32
    %c0_i32_1 = arith.constant 0 : i32
    return %c0_i32, %c0_i32_0 : i32, i32
  }
  func.func @transform_18(%arg0: i32) -> (i32, i32) {
    %c0_i32 = arith.constant 0 : i32
    %c0_i32_0 = arith.constant 0 : i32
    %c0_i32_1 = arith.constant 0 : i32
    return %c0_i32, %c0_i32_0 : i32, i32
  }
  func.func @transform_19(%arg0: i32) -> (i32, i32) {
    %c0_i32 = arith.constant 0 : i32
    %c0_i32_0 = arith.constant 0 : i32
    %c0_i32_1 = arith.constant 0 : i32
    return %c0_i32, %c0_i32_0 : i32, i32
  }
  func.func @transform_20(%arg0: i32) -> (i32, i32, i32) {
    %c0_i32 = arith.constant 0 : i32
    %c0_i32_0 = arith.constant 0 : i32
    %c0_i32_1 = arith.constant 0 : i32
    return %arg0, %c0_i32, %c0_i32_0 : i32, i32, i32
  }
}

module attributes {stable_mosaic.version = 11 : i64} {
  func.func @_self_wrapper_kernel(%arg0: i32, %arg1: memref<1x8x32xf32, #tpu.memory_space<vmem>>, %arg2: memref<1x32xf32, #tpu.memory_space<vmem>>, %arg3: memref<1x32xf32, #tpu.memory_space<vmem>>, %arg4: memref<32x32xf32, #tpu.memory_space<vmem>>, %arg5: memref<1x32xf32, #tpu.memory_space<vmem>>, %arg6: memref<32x32xf32, #tpu.memory_space<vmem>>, %arg7: memref<1x32xf32, #tpu.memory_space<vmem>>, %arg8: memref<32x32xf32, #tpu.memory_space<vmem>>, %arg9: memref<1x32xf32, #tpu.memory_space<vmem>>, %arg10: memref<32x32xf32, #tpu.memory_space<vmem>>, %arg11: memref<1x32xf32, #tpu.memory_space<vmem>>, %arg12: memref<32x64xf32, #tpu.memory_space<vmem>>, %arg13: memref<1x64xf32, #tpu.memory_space<vmem>>, %arg14: memref<64x32xf32, #tpu.memory_space<vmem>>, %arg15: memref<1x32xf32, #tpu.memory_space<vmem>>, %arg16: memref<1x8x32xf32, #tpu.memory_space<vmem>>) attributes {dimension_semantics = [#tpu.dimension_semantics<parallel>], iteration_bounds = array<i64: 2>, scalar_prefetch = 0 : i64, scratch_operands = 0 : i64, tpu.core_type = #tpu.core_type<tc>, window_params = [{transform_indices = @transform_0, window_bounds = array<i64: 1, 8, 32>}, {pipeline_mode = #tpu.pipeline_mode<synchronous>, transform_indices = @transform_1, window_bounds = array<i64: 1, 32>}, {pipeline_mode = #tpu.pipeline_mode<synchronous>, transform_indices = @transform_2, window_bounds = array<i64: 1, 32>}, {pipeline_mode = #tpu.pipeline_mode<synchronous>, transform_indices = @transform_3, window_bounds = array<i64: 32, 32>}, {pipeline_mode = #tpu.pipeline_mode<synchronous>, transform_indices = @transform_4, window_bounds = array<i64: 1, 32>}, {pipeline_mode = #tpu.pipeline_mode<synchronous>, transform_indices = @transform_5, window_bounds = array<i64: 32, 32>}, {pipeline_mode = #tpu.pipeline_mode<synchronous>, transform_indices = @transform_6, window_bounds = array<i64: 1, 32>}, {pipeline_mode = #tpu.pipeline_mode<synchronous>, transform_indices = @transform_7, window_bounds = array<i64: 32, 32>}, {pipeline_mode = #tpu.pipeline_mode<synchronous>, transform_indices = @transform_8, window_bounds = array<i64: 1, 32>}, {pipeline_mode = #tpu.pipeline_mode<synchronous>, transform_indices = @transform_9, window_bounds = array<i64: 32, 32>}, {pipeline_mode = #tpu.pipeline_mode<synchronous>, transform_indices = @transform_10, window_bounds = array<i64: 1, 32>}, {pipeline_mode = #tpu.pipeline_mode<synchronous>, transform_indices = @transform_11, window_bounds = array<i64: 32, 64>}, {pipeline_mode = #tpu.pipeline_mode<synchronous>, transform_indices = @transform_12, window_bounds = array<i64: 1, 64>}, {pipeline_mode = #tpu.pipeline_mode<synchronous>, transform_indices = @transform_13, window_bounds = array<i64: 64, 32>}, {pipeline_mode = #tpu.pipeline_mode<synchronous>, transform_indices = @transform_14, window_bounds = array<i64: 1, 32>}, {transform_indices = @transform_15, window_bounds = array<i64: 1, 8, 32>}]} {
    %c0 = arith.constant 0 : index
    %c0_0 = arith.constant 0 : index
    %c0_1 = arith.constant 0 : index
    %0 = vector.load %arg1[%c0, %c0_0, %c0_1] : memref<1x8x32xf32, #tpu.memory_space<vmem>>, vector<1x8x32xf32>
    %1 = vector.shape_cast %0 : vector<1x8x32xf32> to vector<8x32xf32>
    %c0_2 = arith.constant 0 : index
    %c0_3 = arith.constant 0 : index
    %2 = vector.load %arg2[%c0_2, %c0_3] : memref<1x32xf32, #tpu.memory_space<vmem>>, vector<1x32xf32>
    %c0_4 = arith.constant 0 : index
    %c0_5 = arith.constant 0 : index
    %3 = vector.load %arg3[%c0_4, %c0_5] : memref<1x32xf32, #tpu.memory_space<vmem>>, vector<1x32xf32>
    %cst = arith.constant dense<0.000000e+00> : vector<8xf32>
    %4 = vector.multi_reduction <add>, %1, %cst [1] : vector<8x32xf32> to vector<8xf32>
    %5 = vector.shape_cast %4 : vector<8xf32> to vector<8x1xf32>
    %cst_6 = arith.constant 3.200000e+01 : f32
    %6 = vector.broadcast %cst_6 : f32 to vector<8x1xf32>
    %7 = arith.divf %5, %6 : vector<8x1xf32>
    %8 = vector.broadcast %7 : vector<8x1xf32> to vector<8x32xf32>
    %9 = arith.subf %1, %8 : vector<8x32xf32>
    %10 = arith.mulf %9, %9 : vector<8x32xf32>
    %cst_7 = arith.constant dense<0.000000e+00> : vector<8xf32>
    %11 = vector.multi_reduction <add>, %10, %cst_7 [1] : vector<8x32xf32> to vector<8xf32>
    %12 = vector.shape_cast %11 : vector<8xf32> to vector<8x1xf32>
    %cst_8 = arith.constant 3.200000e+01 : f32
    %13 = vector.broadcast %cst_8 : f32 to vector<8x1xf32>
    %14 = arith.divf %12, %13 : vector<8x1xf32>
    %cst_9 = arith.constant 9.99999974E-6 : f32
    %15 = vector.broadcast %cst_9 : f32 to vector<8x1xf32>
    %16 = arith.addf %14, %15 : vector<8x1xf32>
    %17 = math.rsqrt %16 : vector<8x1xf32>
    %18 = vector.broadcast %17 : vector<8x1xf32> to vector<8x32xf32>
    %19 = arith.mulf %9, %18 : vector<8x32xf32>
    %20 = vector.broadcast %2 : vector<1x32xf32> to vector<8x32xf32>
    %21 = arith.mulf %19, %20 : vector<8x32xf32>
    %22 = vector.broadcast %3 : vector<1x32xf32> to vector<8x32xf32>
    %23 = arith.addf %21, %22 : vector<8x32xf32>
    %c0_10 = arith.constant 0 : index
    %c0_11 = arith.constant 0 : index
    %24 = vector.load %arg4[%c0_10, %c0_11] : memref<32x32xf32, #tpu.memory_space<vmem>>, vector<32x32xf32>
    %cst_12 = arith.constant dense<0.000000e+00> : vector<8x32xf32>
    %25 = tpu.matmul %23, %24, %cst_12 {dimension_numbers = #tpu.dot_dimension_numbers<[1], [0], [0], [1], [0, 0, 1, 1], [], []>} : vector<8x32xf32>, vector<32x32xf32>, vector<8x32xf32> -> vector<8x32xf32>
    %c0_13 = arith.constant 0 : index
    %c0_14 = arith.constant 0 : index
    %26 = vector.load %arg5[%c0_13, %c0_14] : memref<1x32xf32, #tpu.memory_space<vmem>>, vector<1x32xf32>
    %27 = vector.broadcast %26 : vector<1x32xf32> to vector<8x32xf32>
    %28 = arith.addf %25, %27 : vector<8x32xf32>
    %c0_15 = arith.constant 0 : index
    %c0_16 = arith.constant 0 : index
    %29 = vector.load %arg6[%c0_15, %c0_16] : memref<32x32xf32, #tpu.memory_space<vmem>>, vector<32x32xf32>
    %cst_17 = arith.constant dense<0.000000e+00> : vector<8x32xf32>
    %30 = tpu.matmul %23, %29, %cst_17 {dimension_numbers = #tpu.dot_dimension_numbers<[1], [0], [0], [1], [0, 0, 1, 1], [], []>} : vector<8x32xf32>, vector<32x32xf32>, vector<8x32xf32> -> vector<8x32xf32>
    %c0_18 = arith.constant 0 : index
    %c0_19 = arith.constant 0 : index
    %31 = vector.load %arg7[%c0_18, %c0_19] : memref<1x32xf32, #tpu.memory_space<vmem>>, vector<1x32xf32>
    %32 = vector.broadcast %31 : vector<1x32xf32> to vector<8x32xf32>
    %33 = arith.addf %30, %32 : vector<8x32xf32>
    %c0_20 = arith.constant 0 : index
    %c0_21 = arith.constant 0 : index
    %34 = vector.load %arg8[%c0_20, %c0_21] : memref<32x32xf32, #tpu.memory_space<vmem>>, vector<32x32xf32>
    %cst_22 = arith.constant dense<0.000000e+00> : vector<8x32xf32>
    %35 = tpu.matmul %23, %34, %cst_22 {dimension_numbers = #tpu.dot_dimension_numbers<[1], [0], [0], [1], [0, 0, 1, 1], [], []>} : vector<8x32xf32>, vector<32x32xf32>, vector<8x32xf32> -> vector<8x32xf32>
    %c0_23 = arith.constant 0 : index
    %c0_24 = arith.constant 0 : index
    %36 = vector.load %arg9[%c0_23, %c0_24] : memref<1x32xf32, #tpu.memory_space<vmem>>, vector<1x32xf32>
    %37 = vector.broadcast %36 : vector<1x32xf32> to vector<8x32xf32>
    %38 = arith.addf %35, %37 : vector<8x32xf32>
    %39 = tpu.iota {dimensions = array<i32: 1>} : vector<1x32xi32>
    %40 = tpu.transpose %33, [1, 0] : vector<8x32xf32> -> vector<32x8xf32>
    %cst_25 = arith.constant 0.000000e+00 : f32
    %41 = vector.broadcast %cst_25 : f32 to vector<8x32xf32>
    %c0_i32 = arith.constant 0 : i32
    %42 = vector.broadcast %c0_i32 : i32 to vector<1x32xi32>
    %43 = arith.cmpi sge, %39, %42 : vector<1x32xi32>
    %c8_i32 = arith.constant 8 : i32
    %44 = vector.broadcast %c8_i32 : i32 to vector<1x32xi32>
    %45 = arith.cmpi slt, %39, %44 : vector<1x32xi32>
    %46 = arith.andi %43, %45 : vector<1x32xi1>
    %47 = arith.extui %46 : vector<1x32xi1> to vector<1x32xi32>
    %48 = arith.sitofp %47 : vector<1x32xi32> to vector<1x32xf32>
    %49 = vector.broadcast %48 : vector<1x32xf32> to vector<8x32xf32>
    %50 = arith.mulf %28, %49 : vector<8x32xf32>
    %cst_26 = arith.constant dense<0.000000e+00> : vector<8x8xf32>
    %51 = tpu.matmul %50, %40, %cst_26 {dimension_numbers = #tpu.dot_dimension_numbers<[1], [0], [0], [1], [0, 0, 1, 1], [], []>} : vector<8x32xf32>, vector<32x8xf32>, vector<8x8xf32> -> vector<8x8xf32>
    %cst_27 = arith.constant 0.353553385 : f32
    %52 = vector.broadcast %cst_27 : f32 to vector<8x8xf32>
    %53 = arith.mulf %51, %52 : vector<8x8xf32>
    %cst_28 = arith.constant dense<0xFF800000> : vector<8xf32>
    %54 = vector.multi_reduction <maximumf>, %53, %cst_28 [1] : vector<8x8xf32> to vector<8xf32>
    %55 = vector.shape_cast %54 : vector<8xf32> to vector<8x1xf32>
    %56 = vector.broadcast %55 : vector<8x1xf32> to vector<8x8xf32>
    %57 = arith.subf %53, %56 : vector<8x8xf32>
    %58 = math.exp %57 : vector<8x8xf32>
    %cst_29 = arith.constant dense<0.000000e+00> : vector<8xf32>
    %59 = vector.multi_reduction <add>, %58, %cst_29 [1] : vector<8x8xf32> to vector<8xf32>
    %60 = vector.shape_cast %59 : vector<8xf32> to vector<8x1xf32>
    %61 = tpu.reciprocal %60 {approx = true} : vector<8x1xf32> -> vector<8x1xf32>
    %62 = vector.broadcast %61 : vector<8x1xf32> to vector<8x8xf32>
    %63 = arith.mulf %58, %62 : vector<8x8xf32>
    %64 = vector.broadcast %48 : vector<1x32xf32> to vector<8x32xf32>
    %65 = arith.mulf %38, %64 : vector<8x32xf32>
    %cst_30 = arith.constant dense<0.000000e+00> : vector<8x32xf32>
    %66 = tpu.matmul %63, %65, %cst_30 {dimension_numbers = #tpu.dot_dimension_numbers<[1], [0], [0], [1], [0, 0, 1, 1], [], []>} : vector<8x8xf32>, vector<8x32xf32>, vector<8x32xf32> -> vector<8x32xf32>
    %67 = arith.addf %41, %66 : vector<8x32xf32>
    %c8_i32_31 = arith.constant 8 : i32
    %68 = vector.broadcast %c8_i32_31 : i32 to vector<1x32xi32>
    %69 = arith.cmpi sge, %39, %68 : vector<1x32xi32>
    %c16_i32 = arith.constant 16 : i32
    %70 = vector.broadcast %c16_i32 : i32 to vector<1x32xi32>
    %71 = arith.cmpi slt, %39, %70 : vector<1x32xi32>
    %72 = arith.andi %69, %71 : vector<1x32xi1>
    %73 = arith.extui %72 : vector<1x32xi1> to vector<1x32xi32>
    %74 = arith.sitofp %73 : vector<1x32xi32> to vector<1x32xf32>
    %75 = vector.broadcast %74 : vector<1x32xf32> to vector<8x32xf32>
    %76 = arith.mulf %28, %75 : vector<8x32xf32>
    %cst_32 = arith.constant dense<0.000000e+00> : vector<8x8xf32>
    %77 = tpu.matmul %76, %40, %cst_32 {dimension_numbers = #tpu.dot_dimension_numbers<[1], [0], [0], [1], [0, 0, 1, 1], [], []>} : vector<8x32xf32>, vector<32x8xf32>, vector<8x8xf32> -> vector<8x8xf32>
    %cst_33 = arith.constant 0.353553385 : f32
    %78 = vector.broadcast %cst_33 : f32 to vector<8x8xf32>
    %79 = arith.mulf %77, %78 : vector<8x8xf32>
    %cst_34 = arith.constant dense<0xFF800000> : vector<8xf32>
    %80 = vector.multi_reduction <maximumf>, %79, %cst_34 [1] : vector<8x8xf32> to vector<8xf32>
    %81 = vector.shape_cast %80 : vector<8xf32> to vector<8x1xf32>
    %82 = vector.broadcast %81 : vector<8x1xf32> to vector<8x8xf32>
    %83 = arith.subf %79, %82 : vector<8x8xf32>
    %84 = math.exp %83 : vector<8x8xf32>
    %cst_35 = arith.constant dense<0.000000e+00> : vector<8xf32>
    %85 = vector.multi_reduction <add>, %84, %cst_35 [1] : vector<8x8xf32> to vector<8xf32>
    %86 = vector.shape_cast %85 : vector<8xf32> to vector<8x1xf32>
    %87 = tpu.reciprocal %86 {approx = true} : vector<8x1xf32> -> vector<8x1xf32>
    %88 = vector.broadcast %87 : vector<8x1xf32> to vector<8x8xf32>
    %89 = arith.mulf %84, %88 : vector<8x8xf32>
    %90 = vector.broadcast %74 : vector<1x32xf32> to vector<8x32xf32>
    %91 = arith.mulf %38, %90 : vector<8x32xf32>
    %cst_36 = arith.constant dense<0.000000e+00> : vector<8x32xf32>
    %92 = tpu.matmul %89, %91, %cst_36 {dimension_numbers = #tpu.dot_dimension_numbers<[1], [0], [0], [1], [0, 0, 1, 1], [], []>} : vector<8x8xf32>, vector<8x32xf32>, vector<8x32xf32> -> vector<8x32xf32>
    %93 = arith.addf %67, %92 : vector<8x32xf32>
    %c16_i32_37 = arith.constant 16 : i32
    %94 = vector.broadcast %c16_i32_37 : i32 to vector<1x32xi32>
    %95 = arith.cmpi sge, %39, %94 : vector<1x32xi32>
    %c24_i32 = arith.constant 24 : i32
    %96 = vector.broadcast %c24_i32 : i32 to vector<1x32xi32>
    %97 = arith.cmpi slt, %39, %96 : vector<1x32xi32>
    %98 = arith.andi %95, %97 : vector<1x32xi1>
    %99 = arith.extui %98 : vector<1x32xi1> to vector<1x32xi32>
    %100 = arith.sitofp %99 : vector<1x32xi32> to vector<1x32xf32>
    %101 = vector.broadcast %100 : vector<1x32xf32> to vector<8x32xf32>
    %102 = arith.mulf %28, %101 : vector<8x32xf32>
    %cst_38 = arith.constant dense<0.000000e+00> : vector<8x8xf32>
    %103 = tpu.matmul %102, %40, %cst_38 {dimension_numbers = #tpu.dot_dimension_numbers<[1], [0], [0], [1], [0, 0, 1, 1], [], []>} : vector<8x32xf32>, vector<32x8xf32>, vector<8x8xf32> -> vector<8x8xf32>
    %cst_39 = arith.constant 0.353553385 : f32
    %104 = vector.broadcast %cst_39 : f32 to vector<8x8xf32>
    %105 = arith.mulf %103, %104 : vector<8x8xf32>
    %cst_40 = arith.constant dense<0xFF800000> : vector<8xf32>
    %106 = vector.multi_reduction <maximumf>, %105, %cst_40 [1] : vector<8x8xf32> to vector<8xf32>
    %107 = vector.shape_cast %106 : vector<8xf32> to vector<8x1xf32>
    %108 = vector.broadcast %107 : vector<8x1xf32> to vector<8x8xf32>
    %109 = arith.subf %105, %108 : vector<8x8xf32>
    %110 = math.exp %109 : vector<8x8xf32>
    %cst_41 = arith.constant dense<0.000000e+00> : vector<8xf32>
    %111 = vector.multi_reduction <add>, %110, %cst_41 [1] : vector<8x8xf32> to vector<8xf32>
    %112 = vector.shape_cast %111 : vector<8xf32> to vector<8x1xf32>
    %113 = tpu.reciprocal %112 {approx = true} : vector<8x1xf32> -> vector<8x1xf32>
    %114 = vector.broadcast %113 : vector<8x1xf32> to vector<8x8xf32>
    %115 = arith.mulf %110, %114 : vector<8x8xf32>
    %116 = vector.broadcast %100 : vector<1x32xf32> to vector<8x32xf32>
    %117 = arith.mulf %38, %116 : vector<8x32xf32>
    %cst_42 = arith.constant dense<0.000000e+00> : vector<8x32xf32>
    %118 = tpu.matmul %115, %117, %cst_42 {dimension_numbers = #tpu.dot_dimension_numbers<[1], [0], [0], [1], [0, 0, 1, 1], [], []>} : vector<8x8xf32>, vector<8x32xf32>, vector<8x32xf32> -> vector<8x32xf32>
    %119 = arith.addf %93, %118 : vector<8x32xf32>
    %c24_i32_43 = arith.constant 24 : i32
    %120 = vector.broadcast %c24_i32_43 : i32 to vector<1x32xi32>
    %121 = arith.cmpi sge, %39, %120 : vector<1x32xi32>
    %c32_i32 = arith.constant 32 : i32
    %122 = vector.broadcast %c32_i32 : i32 to vector<1x32xi32>
    %123 = arith.cmpi slt, %39, %122 : vector<1x32xi32>
    %124 = arith.andi %121, %123 : vector<1x32xi1>
    %125 = arith.extui %124 : vector<1x32xi1> to vector<1x32xi32>
    %126 = arith.sitofp %125 : vector<1x32xi32> to vector<1x32xf32>
    %127 = vector.broadcast %126 : vector<1x32xf32> to vector<8x32xf32>
    %128 = arith.mulf %28, %127 : vector<8x32xf32>
    %cst_44 = arith.constant dense<0.000000e+00> : vector<8x8xf32>
    %129 = tpu.matmul %128, %40, %cst_44 {dimension_numbers = #tpu.dot_dimension_numbers<[1], [0], [0], [1], [0, 0, 1, 1], [], []>} : vector<8x32xf32>, vector<32x8xf32>, vector<8x8xf32> -> vector<8x8xf32>
    %cst_45 = arith.constant 0.353553385 : f32
    %130 = vector.broadcast %cst_45 : f32 to vector<8x8xf32>
    %131 = arith.mulf %129, %130 : vector<8x8xf32>
    %cst_46 = arith.constant dense<0xFF800000> : vector<8xf32>
    %132 = vector.multi_reduction <maximumf>, %131, %cst_46 [1] : vector<8x8xf32> to vector<8xf32>
    %133 = vector.shape_cast %132 : vector<8xf32> to vector<8x1xf32>
    %134 = vector.broadcast %133 : vector<8x1xf32> to vector<8x8xf32>
    %135 = arith.subf %131, %134 : vector<8x8xf32>
    %136 = math.exp %135 : vector<8x8xf32>
    %cst_47 = arith.constant dense<0.000000e+00> : vector<8xf32>
    %137 = vector.multi_reduction <add>, %136, %cst_47 [1] : vector<8x8xf32> to vector<8xf32>
    %138 = vector.shape_cast %137 : vector<8xf32> to vector<8x1xf32>
    %139 = tpu.reciprocal %138 {approx = true} : vector<8x1xf32> -> vector<8x1xf32>
    %140 = vector.broadcast %139 : vector<8x1xf32> to vector<8x8xf32>
    %141 = arith.mulf %136, %140 : vector<8x8xf32>
    %142 = vector.broadcast %126 : vector<1x32xf32> to vector<8x32xf32>
    %143 = arith.mulf %38, %142 : vector<8x32xf32>
    %cst_48 = arith.constant dense<0.000000e+00> : vector<8x32xf32>
    %144 = tpu.matmul %141, %143, %cst_48 {dimension_numbers = #tpu.dot_dimension_numbers<[1], [0], [0], [1], [0, 0, 1, 1], [], []>} : vector<8x8xf32>, vector<8x32xf32>, vector<8x32xf32> -> vector<8x32xf32>
    %145 = arith.addf %119, %144 : vector<8x32xf32>
    %c0_49 = arith.constant 0 : index
    %c0_50 = arith.constant 0 : index
    %146 = vector.load %arg10[%c0_49, %c0_50] : memref<32x32xf32, #tpu.memory_space<vmem>>, vector<32x32xf32>
    %c0_51 = arith.constant 0 : index
    %c0_52 = arith.constant 0 : index
    %147 = vector.load %arg11[%c0_51, %c0_52] : memref<1x32xf32, #tpu.memory_space<vmem>>, vector<1x32xf32>
    %c0_53 = arith.constant 0 : index
    %c0_54 = arith.constant 0 : index
    %148 = vector.load %arg12[%c0_53, %c0_54] : memref<32x64xf32, #tpu.memory_space<vmem>>, vector<32x64xf32>
    %c0_55 = arith.constant 0 : index
    %c0_56 = arith.constant 0 : index
    %149 = vector.load %arg13[%c0_55, %c0_56] : memref<1x64xf32, #tpu.memory_space<vmem>>, vector<1x64xf32>
    %c0_57 = arith.constant 0 : index
    %c0_58 = arith.constant 0 : index
    %150 = vector.load %arg14[%c0_57, %c0_58] : memref<64x32xf32, #tpu.memory_space<vmem>>, vector<64x32xf32>
    %c0_59 = arith.constant 0 : index
    %c0_60 = arith.constant 0 : index
    %151 = vector.load %arg15[%c0_59, %c0_60] : memref<1x32xf32, #tpu.memory_space<vmem>>, vector<1x32xf32>
    %cst_61 = arith.constant dense<0.000000e+00> : vector<8x32xf32>
    %152 = tpu.matmul %145, %146, %cst_61 {dimension_numbers = #tpu.dot_dimension_numbers<[1], [0], [0], [1], [0, 0, 1, 1], [], []>} : vector<8x32xf32>, vector<32x32xf32>, vector<8x32xf32> -> vector<8x32xf32>
    %153 = vector.broadcast %147 : vector<1x32xf32> to vector<8x32xf32>
    %154 = arith.addf %152, %153 : vector<8x32xf32>
    %155 = arith.addf %154, %23 : vector<8x32xf32>
    %cst_62 = arith.constant dense<0.000000e+00> : vector<8x64xf32>
    %156 = tpu.matmul %155, %148, %cst_62 {dimension_numbers = #tpu.dot_dimension_numbers<[1], [0], [0], [1], [0, 0, 1, 1], [], []>} : vector<8x32xf32>, vector<32x64xf32>, vector<8x64xf32> -> vector<8x64xf32>
    %157 = vector.broadcast %149 : vector<1x64xf32> to vector<8x64xf32>
    %158 = arith.addf %156, %157 : vector<8x64xf32>
    %cst_63 = arith.constant 5.000000e-01 : f32
    %159 = vector.broadcast %cst_63 : f32 to vector<8x64xf32>
    %160 = arith.mulf %159, %158 : vector<8x64xf32>
    %cst_64 = arith.constant 0.707106769 : f32
    %161 = vector.broadcast %cst_64 : f32 to vector<8x64xf32>
    %162 = arith.mulf %158, %161 : vector<8x64xf32>
    %163 = math.erf %162 : vector<8x64xf32>
    %cst_65 = arith.constant 1.000000e+00 : f32
    %164 = vector.broadcast %cst_65 : f32 to vector<8x64xf32>
    %165 = arith.addf %164, %163 : vector<8x64xf32>
    %166 = arith.mulf %160, %165 : vector<8x64xf32>
    %cst_66 = arith.constant dense<0.000000e+00> : vector<8x32xf32>
    %167 = tpu.matmul %166, %150, %cst_66 {dimension_numbers = #tpu.dot_dimension_numbers<[1], [0], [0], [1], [0, 0, 1, 1], [], []>} : vector<8x64xf32>, vector<64x32xf32>, vector<8x32xf32> -> vector<8x32xf32>
    %168 = vector.broadcast %151 : vector<1x32xf32> to vector<8x32xf32>
    %169 = arith.addf %167, %168 : vector<8x32xf32>
    %170 = arith.addf %169, %155 : vector<8x32xf32>
    %c0_67 = arith.constant 0 : index
    %c0_68 = arith.constant 0 : index
    %c0_69 = arith.constant 0 : index
    %171 = vector.load %arg16[%c0_67, %c0_68, %c0_69] : memref<1x8x32xf32, #tpu.memory_space<vmem>>, vector<1x8x32xf32>
    %172 = vector.shape_cast %171 : vector<1x8x32xf32> to vector<8x32xf32>
    %173 = vector.shape_cast %170 : vector<8x32xf32> to vector<1x8x32xf32>
    tpu.vector_store %arg16[%c0_67, %c0_68, %c0_69], %173 {strides = array<i32>} : memref<1x8x32xf32, #tpu.memory_space<vmem>>, vector<1x8x32xf32>,
    return
  }
  func.func @transform_0(%arg0: i32) -> (i32, i32, i32) {
    %c0_i32 = arith.constant 0 : i32
    %c0_i32_0 = arith.constant 0 : i32
    %c0_i32_1 = arith.constant 0 : i32
    return %arg0, %c0_i32, %c0_i32_0 : i32, i32, i32
  }
  func.func @transform_1(%arg0: i32) -> (i32, i32) {
    %c0_i32 = arith.constant 0 : i32
    %c0_i32_0 = arith.constant 0 : i32
    %c0_i32_1 = arith.constant 0 : i32
    return %c0_i32, %c0_i32_0 : i32, i32
  }
  func.func @transform_2(%arg0: i32) -> (i32, i32) {
    %c0_i32 = arith.constant 0 : i32
    %c0_i32_0 = arith.constant 0 : i32
    %c0_i32_1 = arith.constant 0 : i32
    return %c0_i32, %c0_i32_0 : i32, i32
  }
  func.func @transform_3(%arg0: i32) -> (i32, i32) {
    %c0_i32 = arith.constant 0 : i32
    %c0_i32_0 = arith.constant 0 : i32
    %c0_i32_1 = arith.constant 0 : i32
    return %c0_i32, %c0_i32_0 : i32, i32
  }
  func.func @transform_4(%arg0: i32) -> (i32, i32) {
    %c0_i32 = arith.constant 0 : i32
    %c0_i32_0 = arith.constant 0 : i32
    %c0_i32_1 = arith.constant 0 : i32
    return %c0_i32, %c0_i32_0 : i32, i32
  }
  func.func @transform_5(%arg0: i32) -> (i32, i32) {
    %c0_i32 = arith.constant 0 : i32
    %c0_i32_0 = arith.constant 0 : i32
    %c0_i32_1 = arith.constant 0 : i32
    return %c0_i32, %c0_i32_0 : i32, i32
  }
  func.func @transform_6(%arg0: i32) -> (i32, i32) {
    %c0_i32 = arith.constant 0 : i32
    %c0_i32_0 = arith.constant 0 : i32
    %c0_i32_1 = arith.constant 0 : i32
    return %c0_i32, %c0_i32_0 : i32, i32
  }
  func.func @transform_7(%arg0: i32) -> (i32, i32) {
    %c0_i32 = arith.constant 0 : i32
    %c0_i32_0 = arith.constant 0 : i32
    %c0_i32_1 = arith.constant 0 : i32
    return %c0_i32, %c0_i32_0 : i32, i32
  }
  func.func @transform_8(%arg0: i32) -> (i32, i32) {
    %c0_i32 = arith.constant 0 : i32
    %c0_i32_0 = arith.constant 0 : i32
    %c0_i32_1 = arith.constant 0 : i32
    return %c0_i32, %c0_i32_0 : i32, i32
  }
  func.func @transform_9(%arg0: i32) -> (i32, i32) {
    %c0_i32 = arith.constant 0 : i32
    %c0_i32_0 = arith.constant 0 : i32
    %c0_i32_1 = arith.constant 0 : i32
    return %c0_i32, %c0_i32_0 : i32, i32
  }
  func.func @transform_10(%arg0: i32) -> (i32, i32) {
    %c0_i32 = arith.constant 0 : i32
    %c0_i32_0 = arith.constant 0 : i32
    %c0_i32_1 = arith.constant 0 : i32
    return %c0_i32, %c0_i32_0 : i32, i32
  }
  func.func @transform_11(%arg0: i32) -> (i32, i32) {
    %c0_i32 = arith.constant 0 : i32
    %c0_i32_0 = arith.constant 0 : i32
    %c0_i32_1 = arith.constant 0 : i32
    return %c0_i32, %c0_i32_0 : i32, i32
  }
  func.func @transform_12(%arg0: i32) -> (i32, i32) {
    %c0_i32 = arith.constant 0 : i32
    %c0_i32_0 = arith.constant 0 : i32
    %c0_i32_1 = arith.constant 0 : i32
    return %c0_i32, %c0_i32_0 : i32, i32
  }
  func.func @transform_13(%arg0: i32) -> (i32, i32) {
    %c0_i32 = arith.constant 0 : i32
    %c0_i32_0 = arith.constant 0 : i32
    %c0_i32_1 = arith.constant 0 : i32
    return %c0_i32, %c0_i32_0 : i32, i32
  }
  func.func @transform_14(%arg0: i32) -> (i32, i32) {
    %c0_i32 = arith.constant 0 : i32
    %c0_i32_0 = arith.constant 0 : i32
    %c0_i32_1 = arith.constant 0 : i32
    return %c0_i32, %c0_i32_0 : i32, i32
  }
  func.func @transform_15(%arg0: i32) -> (i32, i32, i32) {
    %c0_i32 = arith.constant 0 : i32
    %c0_i32_0 = arith.constant 0 : i32
    %c0_i32_1 = arith.constant 0 : i32
    return %arg0, %c0_i32, %c0_i32_0 : i32, i32, i32
  }
}

</mosaic_0001>

<llo_original>
// kernel: run.4
$region0: #{run.4}
  #allocation0 [shape = 'u32[]', space=smem, size = 0x4, offset = 0x4, fixed_abs, tag = 'smem constant byte address 0x4 - core index']
  #allocation1 [shape = 'u32[144,128]{1,0:T(1,128)}', space=vmem, size = 0x12000, scoped, tag = 'internal scratch']
  %s0 = inlined_call_operand.vmem [shape: f32[2,8,32], index: 0, kind: input, shape index: {}]
  %s1 = inlined_call_operand.vmem [shape: f32[1,32], index: 1, kind: input, shape index: {}]
  %s2 = inlined_call_operand.vmem [shape: f32[1,32], index: 2, kind: input, shape index: {}]
  %s3 = inlined_call_operand.vmem [shape: f32[32,32], index: 3, kind: input, shape index: {}]
  %s4 = inlined_call_operand.vmem [shape: f32[1,32], index: 4, kind: input, shape index: {}]
  %s5 = inlined_call_operand.vmem [shape: f32[32,32], index: 5, kind: input, shape index: {}]
  %s6 = inlined_call_operand.vmem [shape: f32[1,32], index: 6, kind: input, shape index: {}]
  %s7 = inlined_call_operand.vmem [shape: f32[32,32], index: 7, kind: input, shape index: {}]
  %s8 = inlined_call_operand.vmem [shape: f32[1,32], index: 8, kind: input, shape index: {}]
  %s9 = inlined_call_operand.vmem [shape: f32[32,32], index: 9, kind: input, shape index: {}]
  %s10 = inlined_call_operand.vmem [shape: f32[1,32], index: 10, kind: input, shape index: {}]
  %s11 = inlined_call_operand.vmem [shape: f32[32,64], index: 11, kind: input, shape index: {}]
  %s12 = inlined_call_operand.vmem [shape: f32[1,64], index: 12, kind: input, shape index: {}]
  %s13 = inlined_call_operand.vmem [shape: f32[64,32], index: 13, kind: input, shape index: {}]
  %s14 = inlined_call_operand.vmem [shape: f32[1,32], index: 14, kind: input, shape index: {}]
  %s15 = inlined_call_operand.vmem [shape: f32[2,8,32], index: 15, kind: output, shape index: {}]
  %s16 = sld [smem:[#allocation0]]
  $region93: #{run.4} parent=0
    _
  %s18 = ssub.s32 1, %s16
  %s19 = scalar_select 0, %s18, %s16
  loop: start=0, step=1, limit=4
  $region2: #{run.4} parent=0 // loop_pre_header
    _
  $region3: #{run.4} parent=0 // loop_header
    %s21 = sphi 0, %s25
    %p22 = scmp.ge.s32.totalorder %s21, 4
    %s31 = sphi 0, %s33
    %s34 = sphi 0, %s31
    %s35 = sphi 0, %s34
    %s51 = sphi 0, %s35
    %s55 = sphi 0, %s55
    %s57 = sphi 0, %s55
    %s58 = sphi 0, %s57
    %s72 = sphi 0, %s58
    %s76 = sphi 0, %s76
    %s78 = sphi 0, %s76
    %s79 = sphi 0, %s78
    %s93 = sphi 0, %s79
    %s97 = sphi 0, %s97
    %s99 = sphi 0, %s97
    %s100 = sphi 0, %s99
    %s114 = sphi 0, %s100
    %s118 = sphi 0, %s118
    %s120 = sphi 0, %s118
    %s121 = sphi 0, %s120
    %s135 = sphi 0, %s121
    %s139 = sphi 0, %s139
    %s141 = sphi 0, %s139
    %s142 = sphi 0, %s141
    %s156 = sphi 0, %s142
    %s160 = sphi 0, %s160
    %s162 = sphi 0, %s160
    %s163 = sphi 0, %s162
    %s177 = sphi 0, %s163
    %s181 = sphi 0, %s181
    %s183 = sphi 0, %s181
    %s184 = sphi 0, %s183
    %s198 = sphi 0, %s184
    %s202 = sphi 0, %s202
    %s204 = sphi 0, %s202
    %s205 = sphi 0, %s204
    %s219 = sphi 0, %s205
    %s223 = sphi 0, %s223
    %s225 = sphi 0, %s223
    %s226 = sphi 0, %s225
    %s240 = sphi 0, %s226
    %s244 = sphi 0, %s244
    %s246 = sphi 0, %s244
    %s247 = sphi 0, %s246
    %s261 = sphi 0, %s247
    %s265 = sphi 0, %s265
    %s267 = sphi 0, %s265
    %s268 = sphi 0, %s267
    %s282 = sphi 0, %s268
    %s286 = sphi 0, %s286
    %s288 = sphi 0, %s286
    %s289 = sphi 0, %s288
    %s303 = sphi 0, %s289
    %s307 = sphi 0, %s307
    %s309 = sphi 0, %s307
    %s310 = sphi 0, %s309
    %s324 = sphi 0, %s310
    %s328 = sphi 0, %s328
    %s330 = sphi 0, %s328
    %s331 = sphi 0, %s330
    %s345 = sphi 0, %s331
    %s351 = sphi 0, %s353
    %s354 = sphi 0, %s351
    %s355 = sphi 0, %s354
    %s371 = sphi 0, %s355
  $region4: #{run.4} parent=0 // loop_header_branch
    %24 = sbr.rel (%p22) target = $region8
  $region5: #{run.4} parent=0 // loop_body
    %s26 = ssub.s32 %s21, 1
    %s27 = ssub.s32 %s21, 2
    %s28 = sadd.s32 %s21, 1
    %s29 = ssub.s32 %s21, %s28
    %p30 = scmp.eq.s32.totalorder %s29, 0
    %s32 = sadd.s32 %s31, 1
    %s33 = scalar_select %p30, %s31, %s32
    %p36 = pneg %p30
    %p37 = scmp.eq.s32.totalorder %s21, 1
    %p38 = por %p36, %p37
    %p39 = scmp.ne.s32.totalorder %s31, %s34
    %p40 = scmp.eq.s32.totalorder %s21, 0
    %p41 = por %p39, %p40
    %p42 = scmp.ne.s32.totalorder %s31, %s34
    %p43 = scmp.eq.s32.totalorder %s26, 1
    %p44 = por %p42, %p43
    %p45 = scmp.ne.s32.totalorder %s34, %s35
    %p46 = scmp.eq.s32.totalorder %s26, 0
    %p47 = por %p45, %p46
    %p48 = scmp.ne.s32.totalorder %s34, %s35
    %p49 = scmp.eq.s32.totalorder %s27, 1
    %p50 = por %p48, %p49
    %p52 = scmp.ne.s32.totalorder %s35, %s51
    %p53 = scmp.eq.s32.totalorder %s27, 0
    %p54 = por %p52, %p53
    %s56 = sadd.s32 %s55, 1
    %p59 = scmp.eq.s32.totalorder %s21, 1
    %p60 = scmp.ne.s32.totalorder %s55, %s57
    %p61 = scmp.eq.s32.totalorder %s21, 0
    %p62 = por %p60, %p61
    %p63 = scmp.ne.s32.totalorder %s55, %s57
    %p64 = scmp.eq.s32.totalorder %s26, 1
    %p65 = por %p63, %p64
    %p66 = scmp.ne.s32.totalorder %s57, %s58
    %p67 = scmp.eq.s32.totalorder %s26, 0
    %p68 = por %p66, %p67
    %p69 = scmp.ne.s32.totalorder %s57, %s58
    %p70 = scmp.eq.s32.totalorder %s27, 1
    %p71 = por %p69, %p70
    %p73 = scmp.ne.s32.totalorder %s58, %s72
    %p74 = scmp.eq.s32.totalorder %s27, 0
    %p75 = por %p73, %p74
    %s77 = sadd.s32 %s76, 1
    %p80 = scmp.eq.s32.totalorder %s21, 1
    %p81 = scmp.ne.s32.totalorder %s76, %s78
    %p82 = scmp.eq.s32.totalorder %s21, 0
    %p83 = por %p81, %p82
    %p84 = scmp.ne.s32.totalorder %s76, %s78
    %p85 = scmp.eq.s32.totalorder %s26, 1
    %p86 = por %p84, %p85
    %p87 = scmp.ne.s32.totalorder %s78, %s79
    %p88 = scmp.eq.s32.totalorder %s26, 0
    %p89 = por %p87, %p88
    %p90 = scmp.ne.s32.totalorder %s78, %s79
    %p91 = scmp.eq.s32.totalorder %s27, 1
    %p92 = por %p90, %p91
    %p94 = scmp.ne.s32.totalorder %s79, %s93
    %p95 = scmp.eq.s32.totalorder %s27, 0
    %p96 = por %p94, %p95
    %s98 = sadd.s32 %s97, 1
    %p101 = scmp.eq.s32.totalorder %s21, 1
    %p102 = scmp.ne.s32.totalorder %s97, %s99
    %p103 = scmp.eq.s32.totalorder %s21, 0
    %p104 = por %p102, %p103
    %p105 = scmp.ne.s32.totalorder %s97, %s99
    %p106 = scmp.eq.s32.totalorder %s26, 1
    %p107 = por %p105, %p106
    %p108 = scmp.ne.s32.totalorder %s99, %s100
    %p109 = scmp.eq.s32.totalorder %s26, 0
    %p110 = por %p108, %p109
    %p111 = scmp.ne.s32.totalorder %s99, %s100
    %p112 = scmp.eq.s32.totalorder %s27, 1
    %p113 = por %p111, %p112
    %p115 = scmp.ne.s32.totalorder %s100, %s114
    %p116 = scmp.eq.s32.totalorder %s27, 0
    %p117 = por %p115, %p116
    %s119 = sadd.s32 %s118, 1
    %p122 = scmp.eq.s32.totalorder %s21, 1
    %p123 = scmp.ne.s32.totalorder %s118, %s120
    %p124 = scmp.eq.s32.totalorder %s21, 0
    %p125 = por %p123, %p124
    %p126 = scmp.ne.s32.totalorder %s118, %s120
    %p127 = scmp.eq.s32.totalorder %s26, 1
    %p128 = por %p126, %p127
    %p129 = scmp.ne.s32.totalorder %s120, %s121
    %p130 = scmp.eq.s32.totalorder %s26, 0
    %p131 = por %p129, %p130
    %p132 = scmp.ne.s32.totalorder %s120, %s121
    %p133 = scmp.eq.s32.totalorder %s27, 1
    %p134 = por %p132, %p133
    %p136 = scmp.ne.s32.totalorder %s121, %s135
    %p137 = scmp.eq.s32.totalorder %s27, 0
    %p138 = por %p136, %p137
    %s140 = sadd.s32 %s139, 1
    %p143 = scmp.eq.s32.totalorder %s21, 1
    %p144 = scmp.ne.s32.totalorder %s139, %s141
    %p145 = scmp.eq.s32.totalorder %s21, 0
    %p146 = por %p144, %p145
    %p147 = scmp.ne.s32.totalorder %s139, %s141
    %p148 = scmp.eq.s32.totalorder %s26, 1
    %p149 = por %p147, %p148
    %p150 = scmp.ne.s32.totalorder %s141, %s142
    %p151 = scmp.eq.s32.totalorder %s26, 0
    %p152 = por %p150, %p151
    %p153 = scmp.ne.s32.totalorder %s141, %s142
    %p154 = scmp.eq.s32.totalorder %s27, 1
    %p155 = por %p153, %p154
    %p157 = scmp.ne.s32.totalorder %s142, %s156
    %p158 = scmp.eq.s32.totalorder %s27, 0
    %p159 = por %p157, %p158
    %s161 = sadd.s32 %s160, 1
    %p164 = scmp.eq.s32.totalorder %s21, 1
    %p165 = scmp.ne.s32.totalorder %s160, %s162
    %p166 = scmp.eq.s32.totalorder %s21, 0
    %p167 = por %p165, %p166
    %p168 = scmp.ne.s32.totalorder %s160, %s162
    %p169 = scmp.eq.s32.totalorder %s26, 1
    %p170 = por %p168, %p169
    %p171 = scmp.ne.s32.totalorder %s162, %s163
    %p172 = scmp.eq.s32.totalorder %s26, 0
    %p173 = por %p171, %p172
    %p174 = scmp.ne.s32.totalorder %s162, %s163
    %p175 = scmp.eq.s32.totalorder %s27, 1
    %p176 = por %p174, %p175
    %p178 = scmp.ne.s32.totalorder %s163, %s177
    %p179 = scmp.eq.s32.totalorder %s27, 0
    %p180 = por %p178, %p179
    %s182 = sadd.s32 %s181, 1
    %p185 = scmp.eq.s32.totalorder %s21, 1
    %p186 = scmp.ne.s32.totalorder %s181, %s183
    %p187 = scmp.eq.s32.totalorder %s21, 0
    %p188 = por %p186, %p187
    %p189 = scmp.ne.s32.totalorder %s181, %s183
    %p190 = scmp.eq.s32.totalorder %s26, 1
    %p191 = por %p189, %p190
    %p192 = scmp.ne.s32.totalorder %s183, %s184
    %p193 = scmp.eq.s32.totalorder %s26, 0
    %p194 = por %p192, %p193
    %p195 = scmp.ne.s32.totalorder %s183, %s184
    %p196 = scmp.eq.s32.totalorder %s27, 1
    %p197 = por %p195, %p196
    %p199 = scmp.ne.s32.totalorder %s184, %s198
    %p200 = scmp.eq.s32.totalorder %s27, 0
    %p201 = por %p199, %p200
    %s203 = sadd.s32 %s202, 1
    %p206 = scmp.eq.s32.totalorder %s21, 1
    %p207 = scmp.ne.s32.totalorder %s202, %s204
    %p208 = scmp.eq.s32.totalorder %s21, 0
    %p209 = por %p207, %p208
    %p210 = scmp.ne.s32.totalorder %s202, %s204
    %p211 = scmp.eq.s32.totalorder %s26, 1
    %p212 = por %p210, %p211
    %p213 = scmp.ne.s32.totalorder %s204, %s205
    %p214 = scmp.eq.s32.totalorder %s26, 0
    %p215 = por %p213, %p214
    %p216 = scmp.ne.s32.totalorder %s204, %s205
    %p217 = scmp.eq.s32.totalorder %s27, 1
    %p218 = por %p216, %p217
    %p220 = scmp.ne.s32.totalorder %s205, %s219
    %p221 = scmp.eq.s32.totalorder %s27, 0
    %p222 = por %p220, %p221
    %s224 = sadd.s32 %s223, 1
    %p227 = scmp.eq.s32.totalorder %s21, 1
    %p228 = scmp.ne.s32.totalorder %s223, %s225
    %p229 = scmp.eq.s32.totalorder %s21, 0
    %p230 = por %p228, %p229
    %p231 = scmp.ne.s32.totalorder %s223, %s225
    %p232 = scmp.eq.s32.totalorder %s26, 1
    %p233 = por %p231, %p232
    %p234 = scmp.ne.s32.totalorder %s225, %s226
    %p235 = scmp.eq.s32.totalorder %s26, 0
    %p236 = por %p234, %p235
    %p237 = scmp.ne.s32.totalorder %s225, %s226
    %p238 = scmp.eq.s32.totalorder %s27, 1
    %p239 = por %p237, %p238
    %p241 = scmp.ne.s32.totalorder %s226, %s240
    %p242 = scmp.eq.s32.totalorder %s27, 0
    %p243 = por %p241, %p242
    %s245 = sadd.s32 %s244, 1
    %p248 = scmp.eq.s32.totalorder %s21, 1
    %p249 = scmp.ne.s32.totalorder %s244, %s246
    %p250 = scmp.eq.s32.totalorder %s21, 0
    %p251 = por %p249, %p250
    %p252 = scmp.ne.s32.totalorder %s244, %s246
    %p253 = scmp.eq.s32.totalorder %s26, 1
    %p254 = por %p252, %p253
    %p255 = scmp.ne.s32.totalorder %s246, %s247
    %p256 = scmp.eq.s32.totalorder %s26, 0
    %p257 = por %p255, %p256
    %p258 = scmp.ne.s32.totalorder %s246, %s247
    %p259 = scmp.eq.s32.totalorder %s27, 1
    %p260 = por %p258, %p259
    %p262 = scmp.ne.s32.totalorder %s247, %s261
    %p263 = scmp.eq.s32.totalorder %s27, 0
    %p264 = por %p262, %p263
    %s266 = sadd.s32 %s265, 1
    %p269 = scmp.eq.s32.totalorder %s21, 1
    %p270 = scmp.ne.s32.totalorder %s265, %s267
    %p271 = scmp.eq.s32.totalorder %s21, 0
    %p272 = por %p270, %p271
    %p273 = scmp.ne.s32.totalorder %s265, %s267
    %p274 = scmp.eq.s32.totalorder %s26, 1
    %p275 = por %p273, %p274
    %p276 = scmp.ne.s32.totalorder %s267, %s268
    %p277 = scmp.eq.s32.totalorder %s26, 0
    %p278 = por %p276, %p277
    %p279 = scmp.ne.s32.totalorder %s267, %s268
    %p280 = scmp.eq.s32.totalorder %s27, 1
    %p281 = por %p279, %p280
    %p283 = scmp.ne.s32.totalorder %s268, %s282
    %p284 = scmp.eq.s32.totalorder %s27, 0
    %p285 = por %p283, %p284
    %s287 = sadd.s32 %s286, 1
    %p290 = scmp.eq.s32.totalorder %s21, 1
    %p291 = scmp.ne.s32.totalorder %s286, %s288
    %p292 = scmp.eq.s32.totalorder %s21, 0
    %p293 = por %p291, %p292
    %p294 = scmp.ne.s32.totalorder %s286, %s288
    %p295 = scmp.eq.s32.totalorder %s26, 1
    %p296 = por %p294, %p295
    %p297 = scmp.ne.s32.totalorder %s288, %s289
    %p298 = scmp.eq.s32.totalorder %s26, 0
    %p299 = por %p297, %p298
    %p300 = scmp.ne.s32.totalorder %s288, %s289
    %p301 = scmp.eq.s32.totalorder %s27, 1
    %p302 = por %p300, %p301
    %p304 = scmp.ne.s32.totalorder %s289, %s303
    %p305 = scmp.eq.s32.totalorder %s27, 0
    %p306 = por %p304, %p305
    %s308 = sadd.s32 %s307, 1
    %p311 = scmp.eq.s32.totalorder %s21, 1
    %p312 = scmp.ne.s32.totalorder %s307, %s309
    %p313 = scmp.eq.s32.totalorder %s21, 0
    %p314 = por %p312, %p313
    %p315 = scmp.ne.s32.totalorder %s307, %s309
    %p316 = scmp.eq.s32.totalorder %s26, 1
    %p317 = por %p315, %p316
    %p318 = scmp.ne.s32.totalorder %s309, %s310
    %p319 = scmp.eq.s32.totalorder %s26, 0
    %p320 = por %p318, %p319
    %p321 = scmp.ne.s32.totalorder %s309, %s310
    %p322 = scmp.eq.s32.totalorder %s27, 1
    %p323 = por %p321, %p322
    %p325 = scmp.ne.s32.totalorder %s310, %s324
    %p326 = scmp.eq.s32.totalorder %s27, 0
    %p327 = por %p325, %p326
    %s329 = sadd.s32 %s328, 1
    %p332 = scmp.eq.s32.totalorder %s21, 1
    %p333 = scmp.ne.s32.totalorder %s328, %s330
    %p334 = scmp.eq.s32.totalorder %s21, 0
    %p335 = por %p333, %p334
    %p336 = scmp.ne.s32.totalorder %s328, %s330
    %p337 = scmp.eq.s32.totalorder %s26, 1
    %p338 = por %p336, %p337
    %p339 = scmp.ne.s32.totalorder %s330, %s331
    %p340 = scmp.eq.s32.totalorder %s26, 0
    %p341 = por %p339, %p340
    %p342 = scmp.ne.s32.totalorder %s330, %s331
    %p343 = scmp.eq.s32.totalorder %s27, 1
    %p344 = por %p342, %p343
    %p346 = scmp.ne.s32.totalorder %s331, %s345
    %p347 = scmp.eq.s32.totalorder %s27, 0
    %p348 = por %p346, %p347
    %s349 = ssub.s32 %s21, %s28
    %p350 = scmp.eq.s32.totalorder %s349, 0
    %s352 = sadd.s32 %s351, 1
    %s353 = scalar_select %p350, %s351, %s352
    %p356 = pneg %p350
    %p357 = scmp.eq.s32.totalorder %s21, 1
    %p358 = por %p356, %p357
    %p359 = scmp.ne.s32.totalorder %s351, %s354
    %p360 = scmp.eq.s32.totalorder %s21, 0
    %p361 = por %p359, %p360
    %p362 = scmp.ne.s32.totalorder %s351, %s354
    %p363 = scmp.eq.s32.totalorder %s26, 1
    %p364 = por %p362, %p363
    %p365 = scmp.ne.s32.totalorder %s354, %s355
    %p366 = scmp.eq.s32.totalorder %s26, 0
    %p367 = por %p365, %p366
    %p368 = scmp.ne.s32.totalorder %s354, %s355
    %p369 = scmp.eq.s32.totalorder %s27, 1
    %p370 = por %p368, %p369
    %p372 = scmp.ne.s32.totalorder %s355, %s371
    %p373 = scmp.eq.s32.totalorder %s27, 0
    %p374 = por %p372, %p373
    %p375 = scmp.le.s32.totalorder 1, %s21
    %p376 = scmp.lt.s32.totalorder %s21, 3
    %p377 = pnand %p375, %p376
    %p378 = pneg %p377
    // Predicated region
    $region9: #{run.4} parent=5 // pred_check
      _
    $region10: #{run.4} parent=5 // pred_check_branch
      %380 = sbr.rel (%p377) target = $region12
    $region11: #{run.4} parent=5 // pred_region
      %s381 = ssub.s32 %s21, 1
      // Predicated region
      $region13: #{run.4} parent=11 // pred_check
        %p382 = pneg %p68
      $region14: #{run.4} parent=11 // pred_check_branch
        %384 = sbr.rel (%p382) target = $region16
      $region15: #{run.4} parent=11 // pred_region
        _
      $region16: #{run.4} parent=11 // pred_fallthru
        _
      // Predicated region
      $region17: #{run.4} parent=11 // pred_check
        %p385 = pneg %p89
      $region18: #{run.4} parent=11 // pred_check_branch
        %387 = sbr.rel (%p385) target = $region20
      $region19: #{run.4} parent=11 // pred_region
        _
      $region20: #{run.4} parent=11 // pred_fallthru
        _
      // Predicated region
      $region21: #{run.4} parent=11 // pred_check
        %p388 = pneg %p110
      $region22: #{run.4} parent=11 // pred_check_branch
        %390 = sbr.rel (%p388) target = $region24
      $region23: #{run.4} parent=11 // pred_region
        _
      $region24: #{run.4} parent=11 // pred_fallthru
        _
      // Predicated region
      $region25: #{run.4} parent=11 // pred_check
        %p391 = pneg %p131
      $region26: #{run.4} parent=11 // pred_check_branch
        %393 = sbr.rel (%p391) target = $region28
      $region27: #{run.4} parent=11 // pred_region
        _
      $region28: #{run.4} parent=11 // pred_fallthru
        _
      // Predicated region
      $region29: #{run.4} parent=11 // pred_check
        %p394 = pneg %p152
      $region30: #{run.4} parent=11 // pred_check_branch
        %396 = sbr.rel (%p394) target = $region32
      $region31: #{run.4} parent=11 // pred_region
        _
      $region32: #{run.4} parent=11 // pred_fallthru
        _
      // Predicated region
      $region33: #{run.4} parent=11 // pred_check
        %p397 = pneg %p173
      $region34: #{run.4} parent=11 // pred_check_branch
        %399 = sbr.rel (%p397) target = $region36
      $region35: #{run.4} parent=11 // pred_region
        _
      $region36: #{run.4} parent=11 // pred_fallthru
        _
      // Predicated region
      $region37: #{run.4} parent=11 // pred_check
        %p400 = pneg %p194
      $region38: #{run.4} parent=11 // pred_check_branch
        %402 = sbr.rel (%p400) target = $region40
      $region39: #{run.4} parent=11 // pred_region
        _
      $region40: #{run.4} parent=11 // pred_fallthru
        _
      // Predicated region
      $region41: #{run.4} parent=11 // pred_check
        %p403 = pneg %p215
      $region42: #{run.4} parent=11 // pred_check_branch
        %405 = sbr.rel (%p403) target = $region44
      $region43: #{run.4} parent=11 // pred_region
        _
      $region44: #{run.4} parent=11 // pred_fallthru
        _
      // Predicated region
      $region45: #{run.4} parent=11 // pred_check
        %p406 = pneg %p236
      $region46: #{run.4} parent=11 // pred_check_branch
        %408 = sbr.rel (%p406) target = $region48
      $region47: #{run.4} parent=11 // pred_region
        _
      $region48: #{run.4} parent=11 // pred_fallthru
        _
      // Predicated region
      $region49: #{run.4} parent=11 // pred_check
        %p409 = pneg %p257
      $region50: #{run.4} parent=11 // pred_check_branch
        %411 = sbr.rel (%p409) target = $region52
      $region51: #{run.4} parent=11 // pred_region
        _
      $region52: #{run.4} parent=11 // pred_fallthru
        _
      // Predicated region
      $region53: #{run.4} parent=11 // pred_check
        %p412 = pneg %p278
      $region54: #{run.4} parent=11 // pred_check_branch
        %414 = sbr.rel (%p412) target = $region56
      $region55: #{run.4} parent=11 // pred_region
        _
      $region56: #{run.4} parent=11 // pred_fallthru
        _
      // Predicated region
      $region57: #{run.4} parent=11 // pred_check
        %p415 = pneg %p299
      $region58: #{run.4} parent=11 // pred_check_branch
        %417 = sbr.rel (%p415) target = $region60
      $region59: #{run.4} parent=11 // pred_region
        _
      $region60: #{run.4} parent=11 // pred_fallthru
        _
      // Predicated region
      $region61: #{run.4} parent=11 // pred_check
        %p418 = pneg %p320
      $region62: #{run.4} parent=11 // pred_check_branch
        %420 = sbr.rel (%p418) target = $region64
      $region63: #{run.4} parent=11 // pred_region
        _
      $region64: #{run.4} parent=11 // pred_fallthru
        _
      // Predicated region
      $region65: #{run.4} parent=11 // pred_check
        %p421 = pneg %p341
      $region66: #{run.4} parent=11 // pred_check_branch
        %423 = sbr.rel (%p421) target = $region68
      $region67: #{run.4} parent=11 // pred_region
        _
      $region68: #{run.4} parent=11 // pred_fallthru
        _
    $region12: #{run.4} parent=5 // pred_fallthru
      _
    %p424 = scmp.lt.s32.totalorder %s21, 2
    // Predicated region
    $region69: #{run.4} parent=5 // pred_check
      %p425 = pneg %p424
    $region70: #{run.4} parent=5 // pred_check_branch
      %427 = sbr.rel (%p425) target = $region72
    $region71: #{run.4} parent=5 // pred_region
      // Predicated region
      $region73: #{run.4} parent=71 // pred_check
        %p428 = pneg %p41
      $region74: #{run.4} parent=71 // pred_check_branch
        %430 = sbr.rel (%p428) target = $region76
      $region75: #{run.4} parent=71 // pred_region
        %p431 = scmp.lt.s32.totalorder %s21, 1
        %s432 = scalar_select %p431, %s21, 1
        %s433 = smul.addr %s432, 8
        %s434 = scalar_lea.vmem %s0, %s433
      $region76: #{run.4} parent=71 // pred_fallthru
        _
    $region72: #{run.4} parent=5 // pred_fallthru
      _
    %p435 = scmp.le.s32.totalorder 1, %s21
    %p436 = scmp.lt.s32.totalorder %s21, 3
    %p437 = pnand %p435, %p436
    %p438 = pneg %p437
    // Predicated region
    $region77: #{run.4} parent=5 // pred_check
      _
    $region78: #{run.4} parent=5 // pred_check_branch
      %440 = sbr.rel (%p437) target = $region80
    $region79: #{run.4} parent=5 // pred_region
      %s441 = ssub.s32 %s21, 1
      %p442 = scmp.lt.s32.totalorder %s26, 1
      %s443 = scalar_select %p442, %s26, 1
      %s444 = smul.addr %s443, 8
      %s445 = scalar_lea.vmem %s0, %s444
      %p446 = pneg %p47
      %p447 = pneg %p44
      %p448 = pneg %p68
      %p449 = pneg %p65
      %p450 = pneg %p89
      %p451 = pneg %p86
      %p452 = pneg %p110
      %p453 = pneg %p107
      %p454 = pneg %p131
      %p455 = pneg %p128
      %p456 = pneg %p152
      %p457 = pneg %p149
      %p458 = pneg %p173
      %p459 = pneg %p170
      %p460 = pneg %p194
      %p461 = pneg %p191
      %p462 = pneg %p215
      %p463 = pneg %p212
      %p464 = pneg %p236
      %p465 = pneg %p233
      %p466 = pneg %p257
      %p467 = pneg %p254
      %p468 = pneg %p278
      %p469 = pneg %p275
      %p470 = pneg %p299
      %p471 = pneg %p296
      %p472 = pneg %p320
      %p473 = pneg %p317
      %p474 = pneg %p341
      %p475 = pneg %p338
      %p476 = pneg %p367
      %p477 = pneg %p364
      %p478 = scmp.lt.s32.totalorder %s26, 1
      %s479 = scalar_select %p478, %s26, 1
      %s480 = smul.addr %s479, 8
      %s481 = scalar_lea.vmem %s15, %s480
      %p482 = scmp.lt.s32.totalorder %s26, 1
      %s483 = scalar_select %p482, %s26, 1
      %s484 = smul.addr %s483, 8
      %s485 = scalar_lea.vmem %s0, %s484
      %p486 = scmp.lt.s32.totalorder %s26, 1
      %s487 = scalar_select %p486, %s26, 1
      %s488 = smul.addr %s487, 8
      %s489 = scalar_lea.vmem %s15, %s488
      %v490 = vld [vmem:[%s485] sm:$0xff]
      %v491 = vld [vmem:[%s1] sm:$0x1]
      %v492 = vld [vmem:[%s2] sm:$0x1]
      %vm493 = vcmask 261120
      %v494 = vsel %vm493, %v490, 0.0
      %495 = vadd.xlane.f32.xlu0 %v494
      %v496 = vpop.xlane.xlu0 %495
      %v497 = vrcp.pop 32.0
      %v498 = vmul.f32 %v496, %v497
      %v499 = vsub.f32 %v490, %v498
      %v500 = vmul.f32 %v499, %v499
      %v501 = vsel %vm493, %v500, 0.0
      %502 = vadd.xlane.f32.xlu0 %v501
      %v503 = vpop.xlane.xlu0 %502
      %v504 = vmul.f32 %v503, %v497
      %v505 = vadd.f32 %v504, 1e-05
      %v506 = vrsqrt.pop %v505
      %v507 = vmul.f32 %v499, %v506
      %v509 = vlaneseq
      %v510 = vshrl.u32 %v509, 7
      %v511 = vsub.s32 0, %v510
      %v512 = vrot.slane %v491, %v511
      %v514 = vmul.f32 %v507, %v512
      %v516 = vlaneseq
      %v517 = vshrl.u32 %v516, 7
      %v518 = vsub.s32 0, %v517
      %v519 = vrot.slane %v492, %v518
      %v521 = vadd.f32 %v514, %v519
      %v522 = vld [vmem:[%s3] sm:$0xff]
      %v523 = vld [vmem:[%s3 + $0x8] sm:$0xff]
      %v524 = vld [vmem:[%s3 + $0x10] sm:$0xff]
      %v525 = vld [vmem:[%s3 + $0x18] sm:$0xff]
      %v526 = vld [vmem:[%s4] sm:$0x1]
      %v528 = vlaneseq
      %v529 = vshrl.u32 %v528, 7
      %v530 = vsub.s32 0, %v529
      %v531 = vrot.slane %v526, %v530
      %v534 = vsel %vm493, %v521, 0
      %536 = vmatprep.subr.mxu0 0.0
      %537 = vmatpush1.msra.mxu0 %v522
      %538 = vmatprep.subr.mxu0 0.0
      %539 = vmatpush1.msra.mxu0 %v523
      %540 = vmatprep.subr.mxu0 0.0
      %541 = vmatpush1.msra.mxu0 %v524
      %542 = vmatprep.subr.mxu0 0.0
      %543 = vmatpush1.msra.mxu0 %v525
      %544 = vmatprep.subr.mxu0 0.0
      %545 = vmatpush1.msra.mxu0 0.0
      %546 = vmatprep.subr.mxu0 0.0
      %547 = vmatpush1.msra.mxu0 0.0
      %548 = vmatprep.subr.mxu0 0.0
      %549 = vmatpush1.msra.mxu0 0.0
      %550 = vmatprep.subr.mxu0 0.0
      %551 = vmatpush1.msra.mxu0 0.0
      %552 = vmatprep.subr.mxu0 0.0
      %553 = vmatpush1.msra.mxu0 0.0
      %554 = vmatprep.subr.mxu0 0.0
      %555 = vmatpush1.msra.mxu0 0.0
      %556 = vmatprep.subr.mxu0 0.0
      %557 = vmatpush1.msra.mxu0 0.0
      %558 = vmatprep.subr.mxu0 0.0
      %559 = vmatpush1.msra.mxu0 0.0
      %560 = vmatprep.subr.mxu0 0.0
      %561 = vmatpush1.msra.mxu0 0.0
      %562 = vmatprep.subr.mxu0 0.0
      %563 = vmatpush1.msra.mxu0 0.0
      %564 = vmatprep.subr.mxu0 0.0
      %565 = vmatpush1.msra.mxu0 0.0
      %566 = vmatprep.subr.mxu0 0.0
      %567 = vmatpush1.msra.mxu0 0.0
      %568 = vmatprep.subr.mxu0 0.0
      %569 = vmatpush1.msra.mxu0 0.0
      %570 = vmatprep.subr.mxu0 0.0
      %571 = vmatpush1.msra.mxu0 0.0
      %572 = vmatprep.subr.mxu0 0.0
      %573 = vmatpush1.msra.mxu0 0.0
      %574 = vmatprep.subr.mxu0 0.0
      %575 = vmatpush1.msra.mxu0 0.0
      %576 = vmatprep.subr.mxu0 0.0
      %577 = vmatpush1.msra.mxu0 0.0
      %578 = vmatprep.subr.mxu0 0.0
      %579 = vmatpush1.msra.mxu0 0.0
      %580 = vmatprep.subr.mxu0 0.0
      %581 = vmatpush1.msra.mxu0 0.0
      %582 = vmatprep.subr.mxu0 0.0
      %583 = vmatpush1.msra.mxu0 0.0
      %584 = vmatprep.subr.mxu0 0.0
      %585 = vmatpush1.msra.mxu0 0.0
      %586 = vmatprep.subr.mxu0 0.0
      %587 = vmatpush1.msra.mxu0 0.0
      %588 = vmatprep.subr.mxu0 0.0
      %589 = vmatpush1.msra.mxu0 0.0
      %590 = vmatprep.subr.mxu0 0.0
      %591 = vmatpush1.msra.mxu0 0.0
      %592 = vmatprep.subr.mxu0 0.0
      %593 = vmatpush1.msra.mxu0 0.0
      %594 = vmatprep.subr.mxu0 0.0
      %595 = vmatpush1.msra.mxu0 0.0
      %596 = vmatprep.subr.mxu0 0.0
      %597 = vmatpush1.msra.mxu0 0.0
      %598 = vmatprep.subr.mxu0 0.0
      %599 = vmatpush1.msra.mxu0 0.0
      %600 = vmatprep.mubr.f32.mxu0 0.0
      %601 = vmatmul.mubr.f32.gmra.mrb[0].mxu0 %v534
      %v602 = vpop.f32.mrb[0].mxu0
      %v603 = vadd.f32 %v531, %v602
      %v604 = vpop.f32.mrb[0].mxu0
      %605 = vdwg.mxu0
      %v606 = vld [vmem:[%s5] sm:$0xff]
      %v607 = vld [vmem:[%s5 + $0x8] sm:$0xff]
      %v608 = vld [vmem:[%s5 + $0x10] sm:$0xff]
      %v609 = vld [vmem:[%s5 + $0x18] sm:$0xff]
      %v610 = vld [vmem:[%s6] sm:$0x1]
      %v612 = vlaneseq
      %v613 = vshrl.u32 %v612, 7
      %v614 = vsub.s32 0, %v613
      %v615 = vrot.slane %v610, %v614
      %617 = vmatprep.subr.mxu0 0.0
      %618 = vmatpush1.msra.mxu0 %v606
      %619 = vmatprep.subr.mxu0 0.0
      %620 = vmatpush1.msra.mxu0 %v607
      %621 = vmatprep.subr.mxu0 0.0
      %622 = vmatpush1.msra.mxu0 %v608
      %623 = vmatprep.subr.mxu0 0.0
      %624 = vmatpush1.msra.mxu0 %v609
      %625 = vmatprep.subr.mxu0 0.0
      %626 = vmatpush1.msra.mxu0 0.0
      %627 = vmatprep.subr.mxu0 0.0
      %628 = vmatpush1.msra.mxu0 0.0
      %629 = vmatprep.subr.mxu0 0.0
      %630 = vmatpush1.msra.mxu0 0.0
      %631 = vmatprep.subr.mxu0 0.0
      %632 = vmatpush1.msra.mxu0 0.0
      %633 = vmatprep.subr.mxu0 0.0
      %634 = vmatpush1.msra.mxu0 0.0
      %635 = vmatprep.subr.mxu0 0.0
      %636 = vmatpush1.msra.mxu0 0.0
      %637 = vmatprep.subr.mxu0 0.0
      %638 = vmatpush1.msra.mxu0 0.0
      %639 = vmatprep.subr.mxu0 0.0
      %640 = vmatpush1.msra.mxu0 0.0
      %641 = vmatprep.subr.mxu0 0.0
      %642 = vmatpush1.msra.mxu0 0.0
      %643 = vmatprep.subr.mxu0 0.0
      %644 = vmatpush1.msra.mxu0 0.0
      %645 = vmatprep.subr.mxu0 0.0
      %646 = vmatpush1.msra.mxu0 0.0
      %647 = vmatprep.subr.mxu0 0.0
      %648 = vmatpush1.msra.mxu0 0.0
      %649 = vmatprep.subr.mxu0 0.0
      %650 = vmatpush1.msra.mxu0 0.0
      %651 = vmatprep.subr.mxu0 0.0
      %652 = vmatpush1.msra.mxu0 0.0
      %653 = vmatprep.subr.mxu0 0.0
      %654 = vmatpush1.msra.mxu0 0.0
      %655 = vmatprep.subr.mxu0 0.0
      %656 = vmatpush1.msra.mxu0 0.0
      %657 = vmatprep.subr.mxu0 0.0
      %658 = vmatpush1.msra.mxu0 0.0
      %659 = vmatprep.subr.mxu0 0.0
      %660 = vmatpush1.msra.mxu0 0.0
      %661 = vmatprep.subr.mxu0 0.0
      %662 = vmatpush1.msra.mxu0 0.0
      %663 = vmatprep.subr.mxu0 0.0
      %664 = vmatpush1.msra.mxu0 0.0
      %665 = vmatprep.subr.mxu0 0.0
      %666 = vmatpush1.msra.mxu0 0.0
      %667 = vmatprep.subr.mxu0 0.0
      %668 = vmatpush1.msra.mxu0 0.0
      %669 = vmatprep.subr.mxu0 0.0
      %670 = vmatpush1.msra.mxu0 0.0
      %671 = vmatprep.subr.mxu0 0.0
      %672 = vmatpush1.msra.mxu0 0.0
      %673 = vmatprep.subr.mxu0 0.0
      %674 = vmatpush1.msra.mxu0 0.0
      %675 = vmatprep.subr.mxu0 0.0
      %676 = vmatpush1.msra.mxu0 0.0
      %677 = vmatprep.subr.mxu0 0.0
      %678 = vmatpush1.msra.mxu0 0.0
      %679 = vmatprep.subr.mxu0 0.0
      %680 = vmatpush1.msra.mxu0 0.0
      %681 = vmatprep.mubr.f32.mxu0 0.0
      %682 = vmatmul.mubr.f32.gmra.mrb[0].mxu0 %v534
      %v683 = vpop.f32.mrb[0].mxu0
      %v684 = vadd.f32 %v615, %v683
      %v685 = vpop.f32.mrb[0].mxu0
      %686 = vdwg.mxu0
      %v687 = vld [vmem:[%s7] sm:$0xff]
      %v688 = vld [vmem:[%s7 + $0x8] sm:$0xff]
      %v689 = vld [vmem:[%s7 + $0x10] sm:$0xff]
      %v690 = vld [vmem:[%s7 + $0x18] sm:$0xff]
      %v691 = vld [vmem:[%s8] sm:$0x1]
      %v693 = vlaneseq
      %v694 = vshrl.u32 %v693, 7
      %v695 = vsub.s32 0, %v694
      %v696 = vrot.slane %v691, %v695
      %698 = vmatprep.subr.mxu0 0.0
      %699 = vmatpush1.msra.mxu0 %v687
      %700 = vmatprep.subr.mxu0 0.0
      %701 = vmatpush1.msra.mxu0 %v688
      %702 = vmatprep.subr.mxu0 0.0
      %703 = vmatpush1.msra.mxu0 %v689
      %704 = vmatprep.subr.mxu0 0.0
      %705 = vmatpush1.msra.mxu0 %v690
      %706 = vmatprep.subr.mxu0 0.0
      %707 = vmatpush1.msra.mxu0 0.0
      %708 = vmatprep.subr.mxu0 0.0
      %709 = vmatpush1.msra.mxu0 0.0
      %710 = vmatprep.subr.mxu0 0.0
      %711 = vmatpush1.msra.mxu0 0.0
      %712 = vmatprep.subr.mxu0 0.0
      %713 = vmatpush1.msra.mxu0 0.0
      %714 = vmatprep.subr.mxu0 0.0
      %715 = vmatpush1.msra.mxu0 0.0
      %716 = vmatprep.subr.mxu0 0.0
      %717 = vmatpush1.msra.mxu0 0.0
      %718 = vmatprep.subr.mxu0 0.0
      %719 = vmatpush1.msra.mxu0 0.0
      %720 = vmatprep.subr.mxu0 0.0
      %721 = vmatpush1.msra.mxu0 0.0
      %722 = vmatprep.subr.mxu0 0.0
      %723 = vmatpush1.msra.mxu0 0.0
      %724 = vmatprep.subr.mxu0 0.0
      %725 = vmatpush1.msra.mxu0 0.0
      %726 = vmatprep.subr.mxu0 0.0
      %727 = vmatpush1.msra.mxu0 0.0
      %728 = vmatprep.subr.mxu0 0.0
      %729 = vmatpush1.msra.mxu0 0.0
      %730 = vmatprep.subr.mxu0 0.0
      %731 = vmatpush1.msra.mxu0 0.0
      %732 = vmatprep.subr.mxu0 0.0
      %733 = vmatpush1.msra.mxu0 0.0
      %734 = vmatprep.subr.mxu0 0.0
      %735 = vmatpush1.msra.mxu0 0.0
      %736 = vmatprep.subr.mxu0 0.0
      %737 = vmatpush1.msra.mxu0 0.0
      %738 = vmatprep.subr.mxu0 0.0
      %739 = vmatpush1.msra.mxu0 0.0
      %740 = vmatprep.subr.mxu0 0.0
      %741 = vmatpush1.msra.mxu0 0.0
      %742 = vmatprep.subr.mxu0 0.0
      %743 = vmatpush1.msra.mxu0 0.0
      %744 = vmatprep.subr.mxu0 0.0
      %745 = vmatpush1.msra.mxu0 0.0
      %746 = vmatprep.subr.mxu0 0.0
      %747 = vmatpush1.msra.mxu0 0.0
      %748 = vmatprep.subr.mxu0 0.0
      %749 = vmatpush1.msra.mxu0 0.0
      %750 = vmatprep.subr.mxu0 0.0
      %751 = vmatpush1.msra.mxu0 0.0
      %752 = vmatprep.subr.mxu0 0.0
      %753 = vmatpush1.msra.mxu0 0.0
      %754 = vmatprep.subr.mxu0 0.0
      %755 = vmatpush1.msra.mxu0 0.0
      %756 = vmatprep.subr.mxu0 0.0
      %757 = vmatpush1.msra.mxu0 0.0
      %758 = vmatprep.subr.mxu0 0.0
      %759 = vmatpush1.msra.mxu0 0.0
      %760 = vmatprep.subr.mxu0 0.0
      %761 = vmatpush1.msra.mxu0 0.0
      %762 = vmatprep.mubr.f32.mxu0 0.0
      %763 = vmatmul.mubr.f32.gmra.mrb[0].mxu0 %v534
      %v764 = vpop.f32.mrb[0].mxu0
      %v765 = vadd.f32 %v696, %v764
      %v766 = vpop.f32.mrb[0].mxu0
      %767 = vdwg.mxu0
      %v768 = vlaneseq
      %v769 = vand.u32 %v768, 127
      %vm770 = vcmp.ge.s32.totalorder %v769, 0
      %vm771 = vcmp.lt.s32.totalorder %v769, 8
      %vm772 = vmand %vm770, %vm771
      %v773 = vsel %vm772, 1, 0
      %v774 = vcvt.s32.f32 %v773
      %v775 = vmul.f32 %v603, %v774
      %v777 = vsel %vm493, %v775, 0
      %v780 = vsel %vm493, %v684, 0
      %782 = vmatprep.subr.mxu0 0.0
      %783 = vmatpush1.xpose.msra.mxu0 %v780
      %784 = vmatprep.subr.mxu0 0.0
      %785 = vmatpush1.xpose.msra.mxu0 0.0
      %786 = vmatprep.subr.mxu0 0.0
      %787 = vmatpush1.xpose.msra.mxu0 0.0
      %788 = vmatprep.subr.mxu0 0.0
      %789 = vmatpush1.xpose.msra.mxu0 0.0
      %790 = vmatprep.subr.mxu0 0.0
      %791 = vmatpush1.xpose.msra.mxu0 0.0
      %792 = vmatprep.subr.mxu0 0.0
      %793 = vmatpush1.xpose.msra.mxu0 0.0
      %794 = vmatprep.subr.mxu0 0.0
      %795 = vmatpush1.xpose.msra.mxu0 0.0
      %796 = vmatprep.subr.mxu0 0.0
      %797 = vmatpush1.xpose.msra.mxu0 0.0
      %798 = vmatprep.subr.mxu0 0.0
      %799 = vmatpush1.xpose.msra.mxu0 0.0
      %800 = vmatprep.subr.mxu0 0.0
      %801 = vmatpush1.xpose.msra.mxu0 0.0
      %802 = vmatprep.subr.mxu0 0.0
      %803 = vmatpush1.xpose.msra.mxu0 0.0
      %804 = vmatprep.subr.mxu0 0.0
      %805 = vmatpush1.xpose.msra.mxu0 0.0
      %806 = vmatprep.subr.mxu0 0.0
      %807 = vmatpush1.xpose.msra.mxu0 0.0
      %808 = vmatprep.subr.mxu0 0.0
      %809 = vmatpush1.xpose.msra.mxu0 0.0
      %810 = vmatprep.subr.mxu0 0.0
      %811 = vmatpush1.xpose.msra.mxu0 0.0
      %812 = vmatprep.subr.mxu0 0.0
      %813 = vmatpush1.xpose.msra.mxu0 0.0
      %814 = vmatprep.subr.mxu0 0.0
      %815 = vmatpush1.xpose.msra.mxu0 0.0
      %816 = vmatprep.subr.mxu0 0.0
      %817 = vmatpush1.xpose.msra.mxu0 0.0
      %818 = vmatprep.subr.mxu0 0.0
      %819 = vmatpush1.xpose.msra.mxu0 0.0
      %820 = vmatprep.subr.mxu0 0.0
      %821 = vmatpush1.xpose.msra.mxu0 0.0
      %822 = vmatprep.subr.mxu0 0.0
      %823 = vmatpush1.xpose.msra.mxu0 0.0
      %824 = vmatprep.subr.mxu0 0.0
      %825 = vmatpush1.xpose.msra.mxu0 0.0
      %826 = vmatprep.subr.mxu0 0.0
      %827 = vmatpush1.xpose.msra.mxu0 0.0
      %828 = vmatprep.subr.mxu0 0.0
      %829 = vmatpush1.xpose.msra.mxu0 0.0
      %830 = vmatprep.subr.mxu0 0.0
      %831 = vmatpush1.xpose.msra.mxu0 0.0
      %832 = vmatprep.subr.mxu0 0.0
      %833 = vmatpush1.xpose.msra.mxu0 0.0
      %834 = vmatprep.subr.mxu0 0.0
      %835 = vmatpush1.xpose.msra.mxu0 0.0
      %836 = vmatprep.subr.mxu0 0.0
      %837 = vmatpush1.xpose.msra.mxu0 0.0
      %838 = vmatprep.subr.mxu0 0.0
      %839 = vmatpush1.xpose.msra.mxu0 0.0
      %840 = vmatprep.subr.mxu0 0.0
      %841 = vmatpush1.xpose.msra.mxu0 0.0
      %842 = vmatprep.subr.mxu0 0.0
      %843 = vmatpush1.xpose.msra.mxu0 0.0
      %844 = vmatprep.subr.mxu0 0.0
      %845 = vmatpush1.xpose.msra.mxu0 0.0
      %846 = vmatprep.mubr.f32.mxu0 0.0
      %847 = vmatmul.mubr.f32.gmra.mrb[0].mxu0 %v777
      %v848 = vpop.f32.mrb[0].mxu0
      %v849 = vadd.f32 0.0, %v848
      %v850 = vpop.f32.mrb[0].mxu0
      %851 = vdwg.mxu0
      %v852 = vmul.f32 %v849, 0.35355338
      %vm853 = vcmask 64512
      %v854 = vsel %vm853, %v852, -inf
      %855 = vmax.xlane.f32.xlu0 %v854
      %v856 = vpop.xlane.xlu0 %855
      %v857 = vsub.f32 %v852, %v856
      %v858 = vmul.f32 %v857, 1.442695
      %v859 = vpow.pop %v858
      %v860 = vsel %vm853, %v859, 0.0
      %861 = vadd.xlane.f32.xlu0 %v860
      %v862 = vpop.xlane.xlu0 %861
      %v863 = vrcp.pop %v862
      %v864 = vmul.f32 %v859, %v863
      %v865 = vmul.f32 %v765, %v774
      %vm866 = vcmp.ge.s32.totalorder %v769, 8
      %vm867 = vcmp.lt.s32.totalorder %v769, 16
      %vm868 = vmand %vm866, %vm867
      %v869 = vsel %vm868, 1, 0
      %v870 = vcvt.s32.f32 %v869
      %v871 = vmul.f32 %v603, %v870
      %v873 = vsel %vm493, %v871, 0
      %875 = vmatprep.subr.mxu0 0.0
      %876 = vmatpush1.xpose.msra.mxu0 %v780
      %877 = vmatprep.subr.mxu0 0.0
      %878 = vmatpush1.xpose.msra.mxu0 0.0
      %879 = vmatprep.subr.mxu0 0.0
      %880 = vmatpush1.xpose.msra.mxu0 0.0
      %881 = vmatprep.subr.mxu0 0.0
      %882 = vmatpush1.xpose.msra.mxu0 0.0
      %883 = vmatprep.subr.mxu0 0.0
      %884 = vmatpush1.xpose.msra.mxu0 0.0
      %885 = vmatprep.subr.mxu0 0.0
      %886 = vmatpush1.xpose.msra.mxu0 0.0
      %887 = vmatprep.subr.mxu0 0.0
      %888 = vmatpush1.xpose.msra.mxu0 0.0
      %889 = vmatprep.subr.mxu0 0.0
      %890 = vmatpush1.xpose.msra.mxu0 0.0
      %891 = vmatprep.subr.mxu0 0.0
      %892 = vmatpush1.xpose.msra.mxu0 0.0
      %893 = vmatprep.subr.mxu0 0.0
      %894 = vmatpush1.xpose.msra.mxu0 0.0
      %895 = vmatprep.subr.mxu0 0.0
      %896 = vmatpush1.xpose.msra.mxu0 0.0
      %897 = vmatprep.subr.mxu0 0.0
      %898 = vmatpush1.xpose.msra.mxu0 0.0
      %899 = vmatprep.subr.mxu0 0.0
      %900 = vmatpush1.xpose.msra.mxu0 0.0
      %901 = vmatprep.subr.mxu0 0.0
      %902 = vmatpush1.xpose.msra.mxu0 0.0
      %903 = vmatprep.subr.mxu0 0.0
      %904 = vmatpush1.xpose.msra.mxu0 0.0
      %905 = vmatprep.subr.mxu0 0.0
      %906 = vmatpush1.xpose.msra.mxu0 0.0
      %907 = vmatprep.subr.mxu0 0.0
      %908 = vmatpush1.xpose.msra.mxu0 0.0
      %909 = vmatprep.subr.mxu0 0.0
      %910 = vmatpush1.xpose.msra.mxu0 0.0
      %911 = vmatprep.subr.mxu0 0.0
      %912 = vmatpush1.xpose.msra.mxu0 0.0
      %913 = vmatprep.subr.mxu0 0.0
      %914 = vmatpush1.xpose.msra.mxu0 0.0
      %915 = vmatprep.subr.mxu0 0.0
      %916 = vmatpush1.xpose.msra.mxu0 0.0
      %917 = vmatprep.subr.mxu0 0.0
      %918 = vmatpush1.xpose.msra.mxu0 0.0
      %919 = vmatprep.subr.mxu0 0.0
      %920 = vmatpush1.xpose.msra.mxu0 0.0
      %921 = vmatprep.subr.mxu0 0.0
      %922 = vmatpush1.xpose.msra.mxu0 0.0
      %923 = vmatprep.subr.mxu0 0.0
      %924 = vmatpush1.xpose.msra.mxu0 0.0
      %925 = vmatprep.subr.mxu0 0.0
      %926 = vmatpush1.xpose.msra.mxu0 0.0
      %927 = vmatprep.subr.mxu0 0.0
      %928 = vmatpush1.xpose.msra.mxu0 0.0
      %929 = vmatprep.subr.mxu0 0.0
      %930 = vmatpush1.xpose.msra.mxu0 0.0
      %931 = vmatprep.subr.mxu0 0.0
      %932 = vmatpush1.xpose.msra.mxu0 0.0
      %933 = vmatprep.subr.mxu0 0.0
      %934 = vmatpush1.xpose.msra.mxu0 0.0
      %935 = vmatprep.subr.mxu0 0.0
      %936 = vmatpush1.xpose.msra.mxu0 0.0
      %937 = vmatprep.subr.mxu0 0.0
      %938 = vmatpush1.xpose.msra.mxu0 0.0
      %939 = vmatprep.mubr.f32.mxu0 0.0
      %940 = vmatmul.mubr.f32.gmra.mrb[0].mxu0 %v873
      %v941 = vpop.f32.mrb[0].mxu0
      %v942 = vadd.f32 0.0, %v941
      %v943 = vpop.f32.mrb[0].mxu0
      %944 = vdwg.mxu0
      %v945 = vmul.f32 %v942, 0.35355338
      %v946 = vsel %vm853, %v945, -inf
      %947 = vmax.xlane.f32.xlu0 %v946
      %v948 = vpop.xlane.xlu0 %947
      %v949 = vsub.f32 %v945, %v948
      %v950 = vmul.f32 %v949, 1.442695
      %v951 = vpow.pop %v950
      %v952 = vsel %vm853, %v951, 0.0
      %953 = vadd.xlane.f32.xlu0 %v952
      %v954 = vpop.xlane.xlu0 %953
      %v955 = vrcp.pop %v954
      %v956 = vmul.f32 %v951, %v955
      %v957 = vmul.f32 %v765, %v870
      %v959 = vsel %vm853, %v956, 0
      %961 = vmatprep.subr.mxu0 0.0
      %962 = vmatpush1.msra.mxu0 %v957
      %963 = vmatprep.subr.mxu0 0.0
      %964 = vmatpush1.msra.mxu0 0.0
      %965 = vmatprep.subr.mxu0 0.0
      %966 = vmatpush1.msra.mxu0 0.0
      %967 = vmatprep.subr.mxu0 0.0
      %968 = vmatpush1.msra.mxu0 0.0
      %969 = vmatprep.subr.mxu0 0.0
      %970 = vmatpush1.msra.mxu0 0.0
      %971 = vmatprep.subr.mxu0 0.0
      %972 = vmatpush1.msra.mxu0 0.0
      %973 = vmatprep.subr.mxu0 0.0
      %974 = vmatpush1.msra.mxu0 0.0
      %975 = vmatprep.subr.mxu0 0.0
      %976 = vmatpush1.msra.mxu0 0.0
      %977 = vmatprep.subr.mxu0 0.0
      %978 = vmatpush1.msra.mxu0 0.0
      %979 = vmatprep.subr.mxu0 0.0
      %980 = vmatpush1.msra.mxu0 0.0
      %981 = vmatprep.subr.mxu0 0.0
      %982 = vmatpush1.msra.mxu0 0.0
      %983 = vmatprep.subr.mxu0 0.0
      %984 = vmatpush1.msra.mxu0 0.0
      %985 = vmatprep.subr.mxu0 0.0
      %986 = vmatpush1.msra.mxu0 0.0
      %987 = vmatprep.subr.mxu0 0.0
      %988 = vmatpush1.msra.mxu0 0.0
      %989 = vmatprep.subr.mxu0 0.0
      %990 = vmatpush1.msra.mxu0 0.0
      %991 = vmatprep.subr.mxu0 0.0
      %992 = vmatpush1.msra.mxu0 0.0
      %993 = vmatprep.subr.mxu0 0.0
      %994 = vmatpush1.msra.mxu0 0.0
      %995 = vmatprep.subr.mxu0 0.0
      %996 = vmatpush1.msra.mxu0 0.0
      %997 = vmatprep.subr.mxu0 0.0
      %998 = vmatpush1.msra.mxu0 0.0
      %999 = vmatprep.subr.mxu0 0.0
      %1000 = vmatpush1.msra.mxu0 0.0
      %1001 = vmatprep.subr.mxu0 0.0
      %1002 = vmatpush1.msra.mxu0 0.0
      %1003 = vmatprep.subr.mxu0 0.0
      %1004 = vmatpush1.msra.mxu0 0.0
      %1005 = vmatprep.subr.mxu0 0.0
      %1006 = vmatpush1.msra.mxu0 0.0
      %1007 = vmatprep.subr.mxu0 0.0
      %1008 = vmatpush1.msra.mxu0 0.0
      %1009 = vmatprep.subr.mxu0 0.0
      %1010 = vmatpush1.msra.mxu0 0.0
      %1011 = vmatprep.subr.mxu0 0.0
      %1012 = vmatpush1.msra.mxu0 0.0
      %1013 = vmatprep.subr.mxu0 0.0
      %1014 = vmatpush1.msra.mxu0 0.0
      %1015 = vmatprep.subr.mxu0 0.0
      %1016 = vmatpush1.msra.mxu0 0.0
      %1017 = vmatprep.subr.mxu0 0.0
      %1018 = vmatpush1.msra.mxu0 0.0
      %1019 = vmatprep.subr.mxu0 0.0
      %1020 = vmatpush1.msra.mxu0 0.0
      %1021 = vmatprep.subr.mxu0 0.0
      %1022 = vmatpush1.msra.mxu0 0.0
      %1023 = vmatprep.subr.mxu0 0.0
      %1024 = vmatpush1.msra.mxu0 0.0
      %1025 = vmatprep.mubr.f32.mxu0 0.0
      %1026 = vmatmul.mubr.f32.gmra.mrb[0].mxu0 %v959
      %v1027 = vpop.f32.mrb[0].mxu0
      %v1028 = vadd.f32 0.0, %v1027
      %v1029 = vpop.f32.mrb[0].mxu0
      %1030 = vdwg.mxu0
      %v1032 = vsel %vm853, %v864, 0
      %1034 = vmatprep.subr.mxu0 0.0
      %1035 = vmatpush1.msra.mxu0 %v865
      %1036 = vmatprep.subr.mxu0 0.0
      %1037 = vmatpush1.msra.mxu0 0.0
      %1038 = vmatprep.subr.mxu0 0.0
      %1039 = vmatpush1.msra.mxu0 0.0
      %1040 = vmatprep.subr.mxu0 0.0
      %1041 = vmatpush1.msra.mxu0 0.0
      %1042 = vmatprep.subr.mxu0 0.0
      %1043 = vmatpush1.msra.mxu0 0.0
      %1044 = vmatprep.subr.mxu0 0.0
      %1045 = vmatpush1.msra.mxu0 0.0
      %1046 = vmatprep.subr.mxu0 0.0
      %1047 = vmatpush1.msra.mxu0 0.0
      %1048 = vmatprep.subr.mxu0 0.0
      %1049 = vmatpush1.msra.mxu0 0.0
      %1050 = vmatprep.subr.mxu0 0.0
      %1051 = vmatpush1.msra.mxu0 0.0
      %1052 = vmatprep.subr.mxu0 0.0
      %1053 = vmatpush1.msra.mxu0 0.0
      %1054 = vmatprep.subr.mxu0 0.0
      %1055 = vmatpush1.msra.mxu0 0.0
      %1056 = vmatprep.subr.mxu0 0.0
      %1057 = vmatpush1.msra.mxu0 0.0
      %1058 = vmatprep.subr.mxu0 0.0
      %1059 = vmatpush1.msra.mxu0 0.0
      %1060 = vmatprep.subr.mxu0 0.0
      %1061 = vmatpush1.msra.mxu0 0.0
      %1062 = vmatprep.subr.mxu0 0.0
      %1063 = vmatpush1.msra.mxu0 0.0
      %1064 = vmatprep.subr.mxu0 0.0
      %1065 = vmatpush1.msra.mxu0 0.0
      %1066 = vmatprep.subr.mxu0 0.0
      %1067 = vmatpush1.msra.mxu0 0.0
      %1068 = vmatprep.subr.mxu0 0.0
      %1069 = vmatpush1.msra.mxu0 0.0
      %1070 = vmatprep.subr.mxu0 0.0
      %1071 = vmatpush1.msra.mxu0 0.0
      %1072 = vmatprep.subr.mxu0 0.0
      %1073 = vmatpush1.msra.mxu0 0.0
      %1074 = vmatprep.subr.mxu0 0.0
      %1075 = vmatpush1.msra.mxu0 0.0
      %1076 = vmatprep.subr.mxu0 0.0
      %1077 = vmatpush1.msra.mxu0 0.0
      %1078 = vmatprep.subr.mxu0 0.0
      %1079 = vmatpush1.msra.mxu0 0.0
      %1080 = vmatprep.subr.mxu0 0.0
      %1081 = vmatpush1.msra.mxu0 0.0
      %1082 = vmatprep.subr.mxu0 0.0
      %1083 = vmatpush1.msra.mxu0 0.0
      %1084 = vmatprep.subr.mxu0 0.0
      %1085 = vmatpush1.msra.mxu0 0.0
      %1086 = vmatprep.subr.mxu0 0.0
      %1087 = vmatpush1.msra.mxu0 0.0
      %1088 = vmatprep.subr.mxu0 0.0
      %1089 = vmatpush1.msra.mxu0 0.0
      %1090 = vmatprep.subr.mxu0 0.0
      %1091 = vmatpush1.msra.mxu0 0.0
      %1092 = vmatprep.subr.mxu0 0.0
      %1093 = vmatpush1.msra.mxu0 0.0
      %1094 = vmatprep.subr.mxu0 0.0
      %1095 = vmatpush1.msra.mxu0 0.0
      %1096 = vmatprep.subr.mxu0 0.0
      %1097 = vmatpush1.msra.mxu0 0.0
      %1098 = vmatprep.mubr.f32.mxu0 0.0
      %1099 = vmatmul.mubr.f32.gmra.mrb[0].mxu0 %v1032
      %v1100 = vpop.f32.mrb[0].mxu0
      %v1101 = vadd.f32 %v1028, %v1100
      %v1102 = vpop.f32.mrb[0].mxu0
      %1103 = vdwg.mxu0
      %vm1104 = vcmp.ge.s32.totalorder %v769, 16
      %vm1105 = vcmp.lt.s32.totalorder %v769, 24
      %vm1106 = vmand %vm1104, %vm1105
      %v1107 = vsel %vm1106, 1, 0
      %v1108 = vcvt.s32.f32 %v1107
      %v1109 = vmul.f32 %v603, %v1108
      %v1111 = vsel %vm493, %v1109, 0
      %1113 = vmatprep.subr.mxu0 0.0
      %1114 = vmatpush1.xpose.msra.mxu0 %v780
      %1115 = vmatprep.subr.mxu0 0.0
      %1116 = vmatpush1.xpose.msra.mxu0 0.0
      %1117 = vmatprep.subr.mxu0 0.0
      %1118 = vmatpush1.xpose.msra.mxu0 0.0
      %1119 = vmatprep.subr.mxu0 0.0
      %1120 = vmatpush1.xpose.msra.mxu0 0.0
      %1121 = vmatprep.subr.mxu0 0.0
      %1122 = vmatpush1.xpose.msra.mxu0 0.0
      %1123 = vmatprep.subr.mxu0 0.0
      %1124 = vmatpush1.xpose.msra.mxu0 0.0
      %1125 = vmatprep.subr.mxu0 0.0
      %1126 = vmatpush1.xpose.msra.mxu0 0.0
      %1127 = vmatprep.subr.mxu0 0.0
      %1128 = vmatpush1.xpose.msra.mxu0 0.0
      %1129 = vmatprep.subr.mxu0 0.0
      %1130 = vmatpush1.xpose.msra.mxu0 0.0
      %1131 = vmatprep.subr.mxu0 0.0
      %1132 = vmatpush1.xpose.msra.mxu0 0.0
      %1133 = vmatprep.subr.mxu0 0.0
      %1134 = vmatpush1.xpose.msra.mxu0 0.0
      %1135 = vmatprep.subr.mxu0 0.0
      %1136 = vmatpush1.xpose.msra.mxu0 0.0
      %1137 = vmatprep.subr.mxu0 0.0
      %1138 = vmatpush1.xpose.msra.mxu0 0.0
      %1139 = vmatprep.subr.mxu0 0.0
      %1140 = vmatpush1.xpose.msra.mxu0 0.0
      %1141 = vmatprep.subr.mxu0 0.0
      %1142 = vmatpush1.xpose.msra.mxu0 0.0
      %1143 = vmatprep.subr.mxu0 0.0
      %1144 = vmatpush1.xpose.msra.mxu0 0.0
      %1145 = vmatprep.subr.mxu0 0.0
      %1146 = vmatpush1.xpose.msra.mxu0 0.0
      %1147 = vmatprep.subr.mxu0 0.0
      %1148 = vmatpush1.xpose.msra.mxu0 0.0
      %1149 = vmatprep.subr.mxu0 0.0
      %1150 = vmatpush1.xpose.msra.mxu0 0.0
      %1151 = vmatprep.subr.mxu0 0.0
      %1152 = vmatpush1.xpose.msra.mxu0 0.0
      %1153 = vmatprep.subr.mxu0 0.0
      %1154 = vmatpush1.xpose.msra.mxu0 0.0
      %1155 = vmatprep.subr.mxu0 0.0
      %1156 = vmatpush1.xpose.msra.mxu0 0.0
      %1157 = vmatprep.subr.mxu0 0.0
      %1158 = vmatpush1.xpose.msra.mxu0 0.0
      %1159 = vmatprep.subr.mxu0 0.0
      %1160 = vmatpush1.xpose.msra.mxu0 0.0
      %1161 = vmatprep.subr.mxu0 0.0
      %1162 = vmatpush1.xpose.msra.mxu0 0.0
      %1163 = vmatprep.subr.mxu0 0.0
      %1164 = vmatpush1.xpose.msra.mxu0 0.0
      %1165 = vmatprep.subr.mxu0 0.0
      %1166 = vmatpush1.xpose.msra.mxu0 0.0
      %1167 = vmatprep.subr.mxu0 0.0
      %1168 = vmatpush1.xpose.msra.mxu0 0.0
      %1169 = vmatprep.subr.mxu0 0.0
      %1170 = vmatpush1.xpose.msra.mxu0 0.0
      %1171 = vmatprep.subr.mxu0 0.0
      %1172 = vmatpush1.xpose.msra.mxu0 0.0
      %1173 = vmatprep.subr.mxu0 0.0
      %1174 = vmatpush1.xpose.msra.mxu0 0.0
      %1175 = vmatprep.subr.mxu0 0.0
      %1176 = vmatpush1.xpose.msra.mxu0 0.0
      %1177 = vmatprep.mubr.f32.mxu0 0.0
      %1178 = vmatmul.mubr.f32.gmra.mrb[0].mxu0 %v1111
      %v1179 = vpop.f32.mrb[0].mxu0
      %v1180 = vadd.f32 0.0, %v1179
      %v1181 = vpop.f32.mrb[0].mxu0
      %1182 = vdwg.mxu0
      %v1183 = vmul.f32 %v1180, 0.35355338
      %v1184 = vsel %vm853, %v1183, -inf
      %1185 = vmax.xlane.f32.xlu0 %v1184
      %v1186 = vpop.xlane.xlu0 %1185
      %v1187 = vsub.f32 %v1183, %v1186
      %v1188 = vmul.f32 %v1187, 1.442695
      %v1189 = vpow.pop %v1188
      %v1190 = vsel %vm853, %v1189, 0.0
      %1191 = vadd.xlane.f32.xlu0 %v1190
      %v1192 = vpop.xlane.xlu0 %1191
      %v1193 = vrcp.pop %v1192
      %v1194 = vmul.f32 %v1189, %v1193
      %v1195 = vmul.f32 %v765, %v1108
      %v1197 = vsel %vm853, %v1194, 0
      %1199 = vmatprep.subr.mxu0 0.0
      %1200 = vmatpush1.msra.mxu0 %v1195
      %1201 = vmatprep.subr.mxu0 0.0
      %1202 = vmatpush1.msra.mxu0 0.0
      %1203 = vmatprep.subr.mxu0 0.0
      %1204 = vmatpush1.msra.mxu0 0.0
      %1205 = vmatprep.subr.mxu0 0.0
      %1206 = vmatpush1.msra.mxu0 0.0
      %1207 = vmatprep.subr.mxu0 0.0
      %1208 = vmatpush1.msra.mxu0 0.0
      %1209 = vmatprep.subr.mxu0 0.0
      %1210 = vmatpush1.msra.mxu0 0.0
      %1211 = vmatprep.subr.mxu0 0.0
      %1212 = vmatpush1.msra.mxu0 0.0
      %1213 = vmatprep.subr.mxu0 0.0
      %1214 = vmatpush1.msra.mxu0 0.0
      %1215 = vmatprep.subr.mxu0 0.0
      %1216 = vmatpush1.msra.mxu0 0.0
      %1217 = vmatprep.subr.mxu0 0.0
      %1218 = vmatpush1.msra.mxu0 0.0
      %1219 = vmatprep.subr.mxu0 0.0
      %1220 = vmatpush1.msra.mxu0 0.0
      %1221 = vmatprep.subr.mxu0 0.0
      %1222 = vmatpush1.msra.mxu0 0.0
      %1223 = vmatprep.subr.mxu0 0.0
      %1224 = vmatpush1.msra.mxu0 0.0
      %1225 = vmatprep.subr.mxu0 0.0
      %1226 = vmatpush1.msra.mxu0 0.0
      %1227 = vmatprep.subr.mxu0 0.0
      %1228 = vmatpush1.msra.mxu0 0.0
      %1229 = vmatprep.subr.mxu0 0.0
      %1230 = vmatpush1.msra.mxu0 0.0
      %1231 = vmatprep.subr.mxu0 0.0
      %1232 = vmatpush1.msra.mxu0 0.0
      %1233 = vmatprep.subr.mxu0 0.0
      %1234 = vmatpush1.msra.mxu0 0.0
      %1235 = vmatprep.subr.mxu0 0.0
      %1236 = vmatpush1.msra.mxu0 0.0
      %1237 = vmatprep.subr.mxu0 0.0
      %1238 = vmatpush1.msra.mxu0 0.0
      %1239 = vmatprep.subr.mxu0 0.0
      %1240 = vmatpush1.msra.mxu0 0.0
      %1241 = vmatprep.subr.mxu0 0.0
      %1242 = vmatpush1.msra.mxu0 0.0
      %1243 = vmatprep.subr.mxu0 0.0
      %1244 = vmatpush1.msra.mxu0 0.0
      %1245 = vmatprep.subr.mxu0 0.0
      %1246 = vmatpush1.msra.mxu0 0.0
      %1247 = vmatprep.subr.mxu0 0.0
      %1248 = vmatpush1.msra.mxu0 0.0
      %1249 = vmatprep.subr.mxu0 0.0
      %1250 = vmatpush1.msra.mxu0 0.0
      %1251 = vmatprep.subr.mxu0 0.0
      %1252 = vmatpush1.msra.mxu0 0.0
      %1253 = vmatprep.subr.mxu0 0.0
      %1254 = vmatpush1.msra.mxu0 0.0
      %1255 = vmatprep.subr.mxu0 0.0
      %1256 = vmatpush1.msra.mxu0 0.0
      %1257 = vmatprep.subr.mxu0 0.0
      %1258 = vmatpush1.msra.mxu0 0.0
      %1259 = vmatprep.subr.mxu0 0.0
      %1260 = vmatpush1.msra.mxu0 0.0
      %1261 = vmatprep.subr.mxu0 0.0
      %1262 = vmatpush1.msra.mxu0 0.0
      %1263 = vmatprep.mubr.f32.mxu0 0.0
      %1264 = vmatmul.mubr.f32.gmra.mrb[0].mxu0 %v1197
      %v1265 = vpop.f32.mrb[0].mxu0
      %v1266 = vadd.f32 0.0, %v1265
      %v1267 = vpop.f32.mrb[0].mxu0
      %1268 = vdwg.mxu0
      %v1269 = vadd.f32 %v1101, %v1266
      %vm1270 = vcmp.ge.s32.totalorder %v769, 24
      %vm1271 = vcmp.lt.s32.totalorder %v769, 32
      %vm1272 = vmand %vm1270, %vm1271
      %v1273 = vsel %vm1272, 1, 0
      %v1274 = vcvt.s32.f32 %v1273
      %v1275 = vmul.f32 %v603, %v1274
      %v1277 = vsel %vm493, %v1275, 0
      %1279 = vmatprep.subr.mxu0 0.0
      %1280 = vmatpush1.xpose.msra.mxu0 %v780
      %1281 = vmatprep.subr.mxu0 0.0
      %1282 = vmatpush1.xpose.msra.mxu0 0.0
      %1283 = vmatprep.subr.mxu0 0.0
      %1284 = vmatpush1.xpose.msra.mxu0 0.0
      %1285 = vmatprep.subr.mxu0 0.0
      %1286 = vmatpush1.xpose.msra.mxu0 0.0
      %1287 = vmatprep.subr.mxu0 0.0
      %1288 = vmatpush1.xpose.msra.mxu0 0.0
      %1289 = vmatprep.subr.mxu0 0.0
      %1290 = vmatpush1.xpose.msra.mxu0 0.0
      %1291 = vmatprep.subr.mxu0 0.0
      %1292 = vmatpush1.xpose.msra.mxu0 0.0
      %1293 = vmatprep.subr.mxu0 0.0
      %1294 = vmatpush1.xpose.msra.mxu0 0.0
      %1295 = vmatprep.subr.mxu0 0.0
      %1296 = vmatpush1.xpose.msra.mxu0 0.0
      %1297 = vmatprep.subr.mxu0 0.0
      %1298 = vmatpush1.xpose.msra.mxu0 0.0
      %1299 = vmatprep.subr.mxu0 0.0
      %1300 = vmatpush1.xpose.msra.mxu0 0.0
      %1301 = vmatprep.subr.mxu0 0.0
      %1302 = vmatpush1.xpose.msra.mxu0 0.0
      %1303 = vmatprep.subr.mxu0 0.0
      %1304 = vmatpush1.xpose.msra.mxu0 0.0
      %1305 = vmatprep.subr.mxu0 0.0
      %1306 = vmatpush1.xpose.msra.mxu0 0.0
      %1307 = vmatprep.subr.mxu0 0.0
      %1308 = vmatpush1.xpose.msra.mxu0 0.0
      %1309 = vmatprep.subr.mxu0 0.0
      %1310 = vmatpush1.xpose.msra.mxu0 0.0
      %1311 = vmatprep.subr.mxu0 0.0
      %1312 = vmatpush1.xpose.msra.mxu0 0.0
      %1313 = vmatprep.subr.mxu0 0.0
      %1314 = vmatpush1.xpose.msra.mxu0 0.0
      %1315 = vmatprep.subr.mxu0 0.0
      %1316 = vmatpush1.xpose.msra.mxu0 0.0
      %1317 = vmatprep.subr.mxu0 0.0
      %1318 = vmatpush1.xpose.msra.mxu0 0.0
      %1319 = vmatprep.subr.mxu0 0.0
      %1320 = vmatpush1.xpose.msra.mxu0 0.0
      %1321 = vmatprep.subr.mxu0 0.0
      %1322 = vmatpush1.xpose.msra.mxu0 0.0
      %1323 = vmatprep.subr.mxu0 0.0
      %1324 = vmatpush1.xpose.msra.mxu0 0.0
      %1325 = vmatprep.subr.mxu0 0.0
      %1326 = vmatpush1.xpose.msra.mxu0 0.0
      %1327 = vmatprep.subr.mxu0 0.0
      %1328 = vmatpush1.xpose.msra.mxu0 0.0
      %1329 = vmatprep.subr.mxu0 0.0
      %1330 = vmatpush1.xpose.msra.mxu0 0.0
      %1331 = vmatprep.subr.mxu0 0.0
      %1332 = vmatpush1.xpose.msra.mxu0 0.0
      %1333 = vmatprep.subr.mxu0 0.0
      %1334 = vmatpush1.xpose.msra.mxu0 0.0
      %1335 = vmatprep.subr.mxu0 0.0
      %1336 = vmatpush1.xpose.msra.mxu0 0.0
      %1337 = vmatprep.subr.mxu0 0.0
      %1338 = vmatpush1.xpose.msra.mxu0 0.0
      %1339 = vmatprep.subr.mxu0 0.0
      %1340 = vmatpush1.xpose.msra.mxu0 0.0
      %1341 = vmatprep.subr.mxu0 0.0
      %1342 = vmatpush1.xpose.msra.mxu0 0.0
      %1343 = vmatprep.mubr.f32.mxu0 0.0
      %1344 = vmatmul.mubr.f32.gmra.mrb[0].mxu0 %v1277
      %v1345 = vpop.f32.mrb[0].mxu0
      %v1346 = vadd.f32 0.0, %v1345
      %v1347 = vpop.f32.mrb[0].mxu0
      %1348 = vdwg.mxu0
      %v1349 = vmul.f32 %v1346, 0.35355338
      %v1350 = vsel %vm853, %v1349, -inf
      %1351 = vmax.xlane.f32.xlu0 %v1350
      %v1352 = vpop.xlane.xlu0 %1351
      %v1353 = vsub.f32 %v1349, %v1352
      %v1354 = vmul.f32 %v1353, 1.442695
      %v1355 = vpow.pop %v1354
      %v1356 = vsel %vm853, %v1355, 0.0
      %1357 = vadd.xlane.f32.xlu0 %v1356
      %v1358 = vpop.xlane.xlu0 %1357
      %v1359 = vrcp.pop %v1358
      %v1360 = vmul.f32 %v1355, %v1359
      %v1361 = vmul.f32 %v765, %v1274
      %v1363 = vsel %vm853, %v1360, 0
      %1365 = vmatprep.subr.mxu0 0.0
      %1366 = vmatpush1.msra.mxu0 %v1361
      %1367 = vmatprep.subr.mxu0 0.0
      %1368 = vmatpush1.msra.mxu0 0.0
      %1369 = vmatprep.subr.mxu0 0.0
      %1370 = vmatpush1.msra.mxu0 0.0
      %1371 = vmatprep.subr.mxu0 0.0
      %1372 = vmatpush1.msra.mxu0 0.0
      %1373 = vmatprep.subr.mxu0 0.0
      %1374 = vmatpush1.msra.mxu0 0.0
      %1375 = vmatprep.subr.mxu0 0.0
      %1376 = vmatpush1.msra.mxu0 0.0
      %1377 = vmatprep.subr.mxu0 0.0
      %1378 = vmatpush1.msra.mxu0 0.0
      %1379 = vmatprep.subr.mxu0 0.0
      %1380 = vmatpush1.msra.mxu0 0.0
      %1381 = vmatprep.subr.mxu0 0.0
      %1382 = vmatpush1.msra.mxu0 0.0
      %1383 = vmatprep.subr.mxu0 0.0
      %1384 = vmatpush1.msra.mxu0 0.0
      %1385 = vmatprep.subr.mxu0 0.0
      %1386 = vmatpush1.msra.mxu0 0.0
      %1387 = vmatprep.subr.mxu0 0.0
      %1388 = vmatpush1.msra.mxu0 0.0
      %1389 = vmatprep.subr.mxu0 0.0
      %1390 = vmatpush1.msra.mxu0 0.0
      %1391 = vmatprep.subr.mxu0 0.0
      %1392 = vmatpush1.msra.mxu0 0.0
      %1393 = vmatprep.subr.mxu0 0.0
      %1394 = vmatpush1.msra.mxu0 0.0
      %1395 = vmatprep.subr.mxu0 0.0
      %1396 = vmatpush1.msra.mxu0 0.0
      %1397 = vmatprep.subr.mxu0 0.0
      %1398 = vmatpush1.msra.mxu0 0.0
      %1399 = vmatprep.subr.mxu0 0.0
      %1400 = vmatpush1.msra.mxu0 0.0
      %1401 = vmatprep.subr.mxu0 0.0
      %1402 = vmatpush1.msra.mxu0 0.0
      %1403 = vmatprep.subr.mxu0 0.0
      %1404 = vmatpush1.msra.mxu0 0.0
      %1405 = vmatprep.subr.mxu0 0.0
      %1406 = vmatpush1.msra.mxu0 0.0
      %1407 = vmatprep.subr.mxu0 0.0
      %1408 = vmatpush1.msra.mxu0 0.0
      %1409 = vmatprep.subr.mxu0 0.0
      %1410 = vmatpush1.msra.mxu0 0.0
      %1411 = vmatprep.subr.mxu0 0.0
      %1412 = vmatpush1.msra.mxu0 0.0
      %1413 = vmatprep.subr.mxu0 0.0
      %1414 = vmatpush1.msra.mxu0 0.0
      %1415 = vmatprep.subr.mxu0 0.0
      %1416 = vmatpush1.msra.mxu0 0.0
      %1417 = vmatprep.subr.mxu0 0.0
      %1418 = vmatpush1.msra.mxu0 0.0
      %1419 = vmatprep.subr.mxu0 0.0
      %1420 = vmatpush1.msra.mxu0 0.0
      %1421 = vmatprep.subr.mxu0 0.0
      %1422 = vmatpush1.msra.mxu0 0.0
      %1423 = vmatprep.subr.mxu0 0.0
      %1424 = vmatpush1.msra.mxu0 0.0
      %1425 = vmatprep.subr.mxu0 0.0
      %1426 = vmatpush1.msra.mxu0 0.0
      %1427 = vmatprep.subr.mxu0 0.0
      %1428 = vmatpush1.msra.mxu0 0.0
      %1429 = vmatprep.mubr.f32.mxu0 0.0
      %1430 = vmatmul.mubr.f32.gmra.mrb[0].mxu0 %v1363
      %v1431 = vpop.f32.mrb[0].mxu0
      %v1432 = vadd.f32 0.0, %v1431
      %v1433 = vpop.f32.mrb[0].mxu0
      %1434 = vdwg.mxu0
      %v1435 = vadd.f32 %v1269, %v1432
      %v1436 = vld [vmem:[%s9] sm:$0xff]
      %v1437 = vld [vmem:[%s9 + $0x8] sm:$0xff]
      %v1438 = vld [vmem:[%s9 + $0x10] sm:$0xff]
      %v1439 = vld [vmem:[%s9 + $0x18] sm:$0xff]
      %v1440 = vld [vmem:[%s10] sm:$0x1]
      %v1441 = vld [vmem:[%s11] sm:$0xff]
      %v1442 = vld [vmem:[%s11 + $0x8] sm:$0xff]
      %v1443 = vld [vmem:[%s11 + $0x10] sm:$0xff]
      %v1444 = vld [vmem:[%s11 + $0x18] sm:$0xff]
      %v1445 = vld [vmem:[%s12] sm:$0x1]
      %v1446 = vld [vmem:[%s13] sm:$0xff]
      %v1447 = vld [vmem:[%s13 + $0x8] sm:$0xff]
      %v1448 = vld [vmem:[%s13 + $0x10] sm:$0xff]
      %v1449 = vld [vmem:[%s13 + $0x18] sm:$0xff]
      %v1450 = vld [vmem:[%s13 + $0x20] sm:$0xff]
      %v1451 = vld [vmem:[%s13 + $0x28] sm:$0xff]
      %v1452 = vld [vmem:[%s13 + $0x30] sm:$0xff]
      %v1453 = vld [vmem:[%s13 + $0x38] sm:$0xff]
      %v1454 = vld [vmem:[%s14] sm:$0x1]
      %v1456 = vlaneseq
      %v1457 = vshrl.u32 %v1456, 7
      %v1458 = vsub.s32 0, %v1457
      %v1459 = vrot.slane %v1440, %v1458
      %v1462 = vsel %vm493, %v1435, 0
      %1464 = vmatprep.subr.mxu0 0.0
      %1465 = vmatpush1.msra.mxu0 %v1436
      %1466 = vmatprep.subr.mxu0 0.0
      %1467 = vmatpush1.msra.mxu0 %v1437
      %1468 = vmatprep.subr.mxu0 0.0
      %1469 = vmatpush1.msra.mxu0 %v1438
      %1470 = vmatprep.subr.mxu0 0.0
      %1471 = vmatpush1.msra.mxu0 %v1439
      %1472 = vmatprep.subr.mxu0 0.0
      %1473 = vmatpush1.msra.mxu0 0.0
      %1474 = vmatprep.subr.mxu0 0.0
      %1475 = vmatpush1.msra.mxu0 0.0
      %1476 = vmatprep.subr.mxu0 0.0
      %1477 = vmatpush1.msra.mxu0 0.0
      %1478 = vmatprep.subr.mxu0 0.0
      %1479 = vmatpush1.msra.mxu0 0.0
      %1480 = vmatprep.subr.mxu0 0.0
      %1481 = vmatpush1.msra.mxu0 0.0
      %1482 = vmatprep.subr.mxu0 0.0
      %1483 = vmatpush1.msra.mxu0 0.0
      %1484 = vmatprep.subr.mxu0 0.0
      %1485 = vmatpush1.msra.mxu0 0.0
      %1486 = vmatprep.subr.mxu0 0.0
      %1487 = vmatpush1.msra.mxu0 0.0
      %1488 = vmatprep.subr.mxu0 0.0
      %1489 = vmatpush1.msra.mxu0 0.0
      %1490 = vmatprep.subr.mxu0 0.0
      %1491 = vmatpush1.msra.mxu0 0.0
      %1492 = vmatprep.subr.mxu0 0.0
      %1493 = vmatpush1.msra.mxu0 0.0
      %1494 = vmatprep.subr.mxu0 0.0
      %1495 = vmatpush1.msra.mxu0 0.0
      %1496 = vmatprep.subr.mxu0 0.0
      %1497 = vmatpush1.msra.mxu0 0.0
      %1498 = vmatprep.subr.mxu0 0.0
      %1499 = vmatpush1.msra.mxu0 0.0
      %1500 = vmatprep.subr.mxu0 0.0
      %1501 = vmatpush1.msra.mxu0 0.0
      %1502 = vmatprep.subr.mxu0 0.0
      %1503 = vmatpush1.msra.mxu0 0.0
      %1504 = vmatprep.subr.mxu0 0.0
      %1505 = vmatpush1.msra.mxu0 0.0
      %1506 = vmatprep.subr.mxu0 0.0
      %1507 = vmatpush1.msra.mxu0 0.0
      %1508 = vmatprep.subr.mxu0 0.0
      %1509 = vmatpush1.msra.mxu0 0.0
      %1510 = vmatprep.subr.mxu0 0.0
      %1511 = vmatpush1.msra.mxu0 0.0
      %1512 = vmatprep.subr.mxu0 0.0
      %1513 = vmatpush1.msra.mxu0 0.0
      %1514 = vmatprep.subr.mxu0 0.0
      %1515 = vmatpush1.msra.mxu0 0.0
      %1516 = vmatprep.subr.mxu0 0.0
      %1517 = vmatpush1.msra.mxu0 0.0
      %1518 = vmatprep.subr.mxu0 0.0
      %1519 = vmatpush1.msra.mxu0 0.0
      %1520 = vmatprep.subr.mxu0 0.0
      %1521 = vmatpush1.msra.mxu0 0.0
      %1522 = vmatprep.subr.mxu0 0.0
      %1523 = vmatpush1.msra.mxu0 0.0
      %1524 = vmatprep.subr.mxu0 0.0
      %1525 = vmatpush1.msra.mxu0 0.0
      %1526 = vmatprep.subr.mxu0 0.0
      %1527 = vmatpush1.msra.mxu0 0.0
      %1528 = vmatprep.mubr.f32.mxu0 0.0
      %1529 = vmatmul.mubr.f32.gmra.mrb[0].mxu0 %v1462
      %v1530 = vpop.f32.mrb[0].mxu0
      %v1531 = vadd.f32 %v1459, %v1530
      %v1532 = vpop.f32.mrb[0].mxu0
      %1533 = vdwg.mxu0
      %v1534 = vadd.f32 %v1531, %v521
      %v1536 = vlaneseq
      %v1537 = vshrl.u32 %v1536, 7
      %v1538 = vsub.s32 0, %v1537
      %v1539 = vrot.slane %v1445, %v1538
      %v1542 = vsel %vm493, %v1534, 0
      %1544 = vmatprep.subr.mxu0 0.0
      %1545 = vmatpush1.msra.mxu0 %v1441
      %1546 = vmatprep.subr.mxu0 0.0
      %1547 = vmatpush1.msra.mxu0 %v1442
      %1548 = vmatprep.subr.mxu0 0.0
      %1549 = vmatpush1.msra.mxu0 %v1443
      %1550 = vmatprep.subr.mxu0 0.0
      %1551 = vmatpush1.msra.mxu0 %v1444
      %1552 = vmatprep.subr.mxu0 0.0
      %1553 = vmatpush1.msra.mxu0 0.0
      %1554 = vmatprep.subr.mxu0 0.0
      %1555 = vmatpush1.msra.mxu0 0.0
      %1556 = vmatprep.subr.mxu0 0.0
      %1557 = vmatpush1.msra.mxu0 0.0
      %1558 = vmatprep.subr.mxu0 0.0
      %1559 = vmatpush1.msra.mxu0 0.0
      %1560 = vmatprep.subr.mxu0 0.0
      %1561 = vmatpush1.msra.mxu0 0.0
      %1562 = vmatprep.subr.mxu0 0.0
      %1563 = vmatpush1.msra.mxu0 0.0
      %1564 = vmatprep.subr.mxu0 0.0
      %1565 = vmatpush1.msra.mxu0 0.0
      %1566 = vmatprep.subr.mxu0 0.0
      %1567 = vmatpush1.msra.mxu0 0.0
      %1568 = vmatprep.subr.mxu0 0.0
      %1569 = vmatpush1.msra.mxu0 0.0
      %1570 = vmatprep.subr.mxu0 0.0
      %1571 = vmatpush1.msra.mxu0 0.0
      %1572 = vmatprep.subr.mxu0 0.0
      %1573 = vmatpush1.msra.mxu0 0.0
      %1574 = vmatprep.subr.mxu0 0.0
      %1575 = vmatpush1.msra.mxu0 0.0
      %1576 = vmatprep.subr.mxu0 0.0
      %1577 = vmatpush1.msra.mxu0 0.0
      %1578 = vmatprep.subr.mxu0 0.0
      %1579 = vmatpush1.msra.mxu0 0.0
      %1580 = vmatprep.subr.mxu0 0.0
      %1581 = vmatpush1.msra.mxu0 0.0
      %1582 = vmatprep.subr.mxu0 0.0
      %1583 = vmatpush1.msra.mxu0 0.0
      %1584 = vmatprep.subr.mxu0 0.0
      %1585 = vmatpush1.msra.mxu0 0.0
      %1586 = vmatprep.subr.mxu0 0.0
      %1587 = vmatpush1.msra.mxu0 0.0
      %1588 = vmatprep.subr.mxu0 0.0
      %1589 = vmatpush1.msra.mxu0 0.0
      %1590 = vmatprep.subr.mxu0 0.0
      %1591 = vmatpush1.msra.mxu0 0.0
      %1592 = vmatprep.subr.mxu0 0.0
      %1593 = vmatpush1.msra.mxu0 0.0
      %1594 = vmatprep.subr.mxu0 0.0
      %1595 = vmatpush1.msra.mxu0 0.0
      %1596 = vmatprep.subr.mxu0 0.0
      %1597 = vmatpush1.msra.mxu0 0.0
      %1598 = vmatprep.subr.mxu0 0.0
      %1599 = vmatpush1.msra.mxu0 0.0
      %1600 = vmatprep.subr.mxu0 0.0
      %1601 = vmatpush1.msra.mxu0 0.0
      %1602 = vmatprep.subr.mxu0 0.0
      %1603 = vmatpush1.msra.mxu0 0.0
      %1604 = vmatprep.subr.mxu0 0.0
      %1605 = vmatpush1.msra.mxu0 0.0
      %1606 = vmatprep.subr.mxu0 0.0
      %1607 = vmatpush1.msra.mxu0 0.0
      %1608 = vmatprep.mubr.f32.mxu0 0.0
      %1609 = vmatmul.mubr.f32.gmra.mrb[0].mxu0 %v1542
      %v1610 = vpop.f32.mrb[0].mxu0
      %v1611 = vadd.f32 %v1539, %v1610
      %v1612 = vpop.f32.mrb[0].mxu0
      %1613 = vdwg.mxu0
      %v1614 = vmul.f32 %v1611, 0.5
      %v1615 = vmul.f32 %v1611, 0.70710677
      %v1616 = verf.f32.pop %v1615
      %v1617 = vadd.f32 %v1616, 1.0
      %v1618 = vmul.f32 %v1614, %v1617
      %v1620 = vlaneseq
      %v1621 = vshrl.u32 %v1620, 7
      %v1622 = vsub.s32 0, %v1621
      %v1623 = vrot.slane %v1454, %v1622
      %vm1625 = vcmask 523264
      %v1627 = vsel %vm1625, %v1618, 0
      %1629 = vmatprep.subr.mxu0 0.0
      %1630 = vmatpush1.msra.mxu0 %v1446
      %1631 = vmatprep.subr.mxu0 0.0
      %1632 = vmatpush1.msra.mxu0 %v1447
      %1633 = vmatprep.subr.mxu0 0.0
      %1634 = vmatpush1.msra.mxu0 %v1448
      %1635 = vmatprep.subr.mxu0 0.0
      %1636 = vmatpush1.msra.mxu0 %v1449
      %1637 = vmatprep.subr.mxu0 0.0
      %1638 = vmatpush1.msra.mxu0 %v1450
      %1639 = vmatprep.subr.mxu0 0.0
      %1640 = vmatpush1.msra.mxu0 %v1451
      %1641 = vmatprep.subr.mxu0 0.0
      %1642 = vmatpush1.msra.mxu0 %v1452
      %1643 = vmatprep.subr.mxu0 0.0
      %1644 = vmatpush1.msra.mxu0 %v1453
      %1645 = vmatprep.subr.mxu0 0.0
      %1646 = vmatpush1.msra.mxu0 0.0
      %1647 = vmatprep.subr.mxu0 0.0
      %1648 = vmatpush1.msra.mxu0 0.0
      %1649 = vmatprep.subr.mxu0 0.0
      %1650 = vmatpush1.msra.mxu0 0.0
      %1651 = vmatprep.subr.mxu0 0.0
      %1652 = vmatpush1.msra.mxu0 0.0
      %1653 = vmatprep.subr.mxu0 0.0
      %1654 = vmatpush1.msra.mxu0 0.0
      %1655 = vmatprep.subr.mxu0 0.0
      %1656 = vmatpush1.msra.mxu0 0.0
      %1657 = vmatprep.subr.mxu0 0.0
      %1658 = vmatpush1.msra.mxu0 0.0
      %1659 = vmatprep.subr.mxu0 0.0
      %1660 = vmatpush1.msra.mxu0 0.0
      %1661 = vmatprep.subr.mxu0 0.0
      %1662 = vmatpush1.msra.mxu0 0.0
      %1663 = vmatprep.subr.mxu0 0.0
      %1664 = vmatpush1.msra.mxu0 0.0
      %1665 = vmatprep.subr.mxu0 0.0
      %1666 = vmatpush1.msra.mxu0 0.0
      %1667 = vmatprep.subr.mxu0 0.0
      %1668 = vmatpush1.msra.mxu0 0.0
      %1669 = vmatprep.subr.mxu0 0.0
      %1670 = vmatpush1.msra.mxu0 0.0
      %1671 = vmatprep.subr.mxu0 0.0
      %1672 = vmatpush1.msra.mxu0 0.0
      %1673 = vmatprep.subr.mxu0 0.0
      %1674 = vmatpush1.msra.mxu0 0.0
      %1675 = vmatprep.subr.mxu0 0.0
      %1676 = vmatpush1.msra.mxu0 0.0
      %1677 = vmatprep.subr.mxu0 0.0
      %1678 = vmatpush1.msra.mxu0 0.0
      %1679 = vmatprep.subr.mxu0 0.0
      %1680 = vmatpush1.msra.mxu0 0.0
      %1681 = vmatprep.subr.mxu0 0.0
      %1682 = vmatpush1.msra.mxu0 0.0
      %1683 = vmatprep.subr.mxu0 0.0
      %1684 = vmatpush1.msra.mxu0 0.0
      %1685 = vmatprep.subr.mxu0 0.0
      %1686 = vmatpush1.msra.mxu0 0.0
      %1687 = vmatprep.subr.mxu0 0.0
      %1688 = vmatpush1.msra.mxu0 0.0
      %1689 = vmatprep.subr.mxu0 0.0
      %1690 = vmatpush1.msra.mxu0 0.0
      %1691 = vmatprep.subr.mxu0 0.0
      %1692 = vmatpush1.msra.mxu0 0.0
      %1693 = vmatprep.mubr.f32.mxu0 0.0
      %1694 = vmatmul.mubr.f32.gmra.mrb[0].mxu0 %v1627
      %v1695 = vpop.f32.mrb[0].mxu0
      %v1696 = vadd.f32 %v1623, %v1695
      %v1697 = vpop.f32.mrb[0].mxu0
      %1698 = vdwg.mxu0
      %v1699 = vadd.f32 %v1696, %v1534
      %1700 = vst.msk [vmem:[%s489] sm:$0xff] %vm493, %v1699
      %p1701 = scmp.lt.s32.totalorder %s26, 1
      %s1702 = scalar_select %p1701, %s26, 1
      %s1703 = smul.addr %s1702, 8
      %s1704 = scalar_lea.vmem %s15, %s1703
      // Predicated region
      $region81: #{run.4} parent=79 // pred_check
        %p1705 = pneg %p364
      $region82: #{run.4} parent=79 // pred_check_branch
        %1707 = sbr.rel (%p1705) target = $region84
      $region83: #{run.4} parent=79 // pred_region
        _
      $region84: #{run.4} parent=79 // pred_fallthru
        _
    $region80: #{run.4} parent=5 // pred_fallthru
      _
    %p1708 = scmp.le.s32.totalorder 2, %s21
    // Predicated region
    $region85: #{run.4} parent=5 // pred_check
      %p1709 = pneg %p1708
    $region86: #{run.4} parent=5 // pred_check_branch
      %1711 = sbr.rel (%p1709) target = $region88
    $region87: #{run.4} parent=5 // pred_region
      %s1712 = ssub.s32 %s21, 2
      // Predicated region
      $region89: #{run.4} parent=87 // pred_check
        %p1713 = pneg %p370
      $region90: #{run.4} parent=87 // pred_check_branch
        %1715 = sbr.rel (%p1713) target = $region92
      $region91: #{run.4} parent=87 // pred_region
        %p1716 = scmp.lt.s32.totalorder %s27, 1
        %s1717 = scalar_select %p1716, %s27, 1
        %s1718 = smul.addr %s1717, 8
        %s1719 = scalar_lea.vmem %s15, %s1718
      $region92: #{run.4} parent=87 // pred_fallthru
        _
    $region88: #{run.4} parent=5 // pred_fallthru
      _
  $region6: #{run.4} parent=0 // loop_footer
    %s25 = sadd.s32 1, %s21
  $region7: #{run.4} parent=0 // loop_footer_branch
    %20 = sbr.rel target = $region3
  $region8: #{run.4} parent=0 // loop_exit
    _

// kernel: run.5
$region0: #{run.5}
  #allocation0 [shape = 'u32[]', space=smem, size = 0x4, offset = 0x4, fixed_abs, tag = 'smem constant byte address 0x4 - core index']
  #allocation1 [shape = 'u32[144,128]{1,0:T(1,128)}', space=vmem, size = 0x12000, scoped, tag = 'internal scratch']
  %s0 = inlined_call_operand.vmem [shape: f32[2,8,32], index: 0, kind: input, shape index: {}]
  %s1 = inlined_call_operand.vmem [shape: f32[1,32], index: 1, kind: input, shape index: {}]
  %s2 = inlined_call_operand.vmem [shape: f32[1,32], index: 2, kind: input, shape index: {}]
  %s3 = inlined_call_operand.vmem [shape: f32[32,32], index: 3, kind: input, shape index: {}]
  %s4 = inlined_call_operand.vmem [shape: f32[1,32], index: 4, kind: input, shape index: {}]
  %s5 = inlined_call_operand.vmem [shape: f32[32,32], index: 5, kind: input, shape index: {}]
  %s6 = inlined_call_operand.vmem [shape: f32[1,32], index: 6, kind: input, shape index: {}]
  %s7 = inlined_call_operand.vmem [shape: f32[32,32], index: 7, kind: input, shape index: {}]
  %s8 = inlined_call_operand.vmem [shape: f32[1,32], index: 8, kind: input, shape index: {}]
  %s9 = inlined_call_operand.vmem [shape: f32[32,32], index: 9, kind: input, shape index: {}]
  %s10 = inlined_call_operand.vmem [shape: f32[1,32], index: 10, kind: input, shape index: {}]
  %s11 = inlined_call_operand.vmem [shape: f32[32,64], index: 11, kind: input, shape index: {}]
  %s12 = inlined_call_operand.vmem [shape: f32[1,64], index: 12, kind: input, shape index: {}]
  %s13 = inlined_call_operand.vmem [shape: f32[64,32], index: 13, kind: input, shape index: {}]
  %s14 = inlined_call_operand.vmem [shape: f32[1,32], index: 14, kind: input, shape index: {}]
  %s15 = inlined_call_operand.hbm [shape: f32[2,8,32], index: 15, kind: output, shape index: {}]
  %s16 = sld [smem:[#allocation0]]
  $region93: #{run.5} parent=0
    _
  %s18 = ssub.s32 1, %s16
  %s19 = scalar_select 0, %s18, %s16
  $region1: #{run.5} parent=0
    #allocation2 [shape = 'u8[8192]{0}', space=vmem, size = 0x2000, scoped, tag = 'output window, operand 0']
    #allocation3 [shape = 's32[2]{0}', space=sflag, size = 0x8, scoped, tag = 'scoped memory for run.5']
    %20 = vsyncpa [#allocation3], 0
    %s21 = scalar_lea.sflag [#allocation3], 1
    %22 = vsyncpa %s21, 0
    loop: start=0, step=1, limit=4
    $region2: #{run.5} parent=1 // loop_pre_header
      _
    $region3: #{run.5} parent=1 // loop_header
      %s24 = sphi 0, %s28
      %p25 = scmp.ge.s32.totalorder %s24, 4
      %s34 = sphi 0, %s36
      %s37 = sphi 0, %s34
      %s38 = sphi 0, %s37
      %s54 = sphi 0, %s38
      %s58 = sphi 0, %s58
      %s60 = sphi 0, %s58
      %s61 = sphi 0, %s60
      %s75 = sphi 0, %s61
      %s79 = sphi 0, %s79
      %s81 = sphi 0, %s79
      %s82 = sphi 0, %s81
      %s96 = sphi 0, %s82
      %s100 = sphi 0, %s100
      %s102 = sphi 0, %s100
      %s103 = sphi 0, %s102
      %s117 = sphi 0, %s103
      %s121 = sphi 0, %s121
      %s123 = sphi 0, %s121
      %s124 = sphi 0, %s123
      %s138 = sphi 0, %s124
      %s142 = sphi 0, %s142
      %s144 = sphi 0, %s142
      %s145 = sphi 0, %s144
      %s159 = sphi 0, %s145
      %s163 = sphi 0, %s163
      %s165 = sphi 0, %s163
      %s166 = sphi 0, %s165
      %s180 = sphi 0, %s166
      %s184 = sphi 0, %s184
      %s186 = sphi 0, %s184
      %s187 = sphi 0, %s186
      %s201 = sphi 0, %s187
      %s205 = sphi 0, %s205
      %s207 = sphi 0, %s205
      %s208 = sphi 0, %s207
      %s222 = sphi 0, %s208
      %s226 = sphi 0, %s226
      %s228 = sphi 0, %s226
      %s229 = sphi 0, %s228
      %s243 = sphi 0, %s229
      %s247 = sphi 0, %s247
      %s249 = sphi 0, %s247
      %s250 = sphi 0, %s249
      %s264 = sphi 0, %s250
      %s268 = sphi 0, %s268
      %s270 = sphi 0, %s268
      %s271 = sphi 0, %s270
      %s285 = sphi 0, %s271
      %s289 = sphi 0, %s289
      %s291 = sphi 0, %s289
      %s292 = sphi 0, %s291
      %s306 = sphi 0, %s292
      %s310 = sphi 0, %s310
      %s312 = sphi 0, %s310
      %s313 = sphi 0, %s312
      %s327 = sphi 0, %s313
      %s331 = sphi 0, %s331
      %s333 = sphi 0, %s331
      %s334 = sphi 0, %s333
      %s348 = sphi 0, %s334
      %s354 = sphi 0, %s356
      %s357 = sphi 0, %s354
      %s358 = sphi 0, %s357
      %s374 = sphi 0, %s358
    $region4: #{run.5} parent=1 // loop_header_branch
      %27 = sbr.rel (%p25) target = $region8
    $region5: #{run.5} parent=1 // loop_body
      %s29 = ssub.s32 %s24, 1
      %s30 = ssub.s32 %s24, 2
      %s31 = sadd.s32 %s24, 1
      %s32 = ssub.s32 %s24, %s31
      %p33 = scmp.eq.s32.totalorder %s32, 0
      %s35 = sadd.s32 %s34, 1
      %s36 = scalar_select %p33, %s34, %s35
      %p39 = pneg %p33
      %p40 = scmp.eq.s32.totalorder %s24, 1
      %p41 = por %p39, %p40
      %p42 = scmp.ne.s32.totalorder %s34, %s37
      %p43 = scmp.eq.s32.totalorder %s24, 0
      %p44 = por %p42, %p43
      %p45 = scmp.ne.s32.totalorder %s34, %s37
      %p46 = scmp.eq.s32.totalorder %s29, 1
      %p47 = por %p45, %p46
      %p48 = scmp.ne.s32.totalorder %s37, %s38
      %p49 = scmp.eq.s32.totalorder %s29, 0
      %p50 = por %p48, %p49
      %p51 = scmp.ne.s32.totalorder %s37, %s38
      %p52 = scmp.eq.s32.totalorder %s30, 1
      %p53 = por %p51, %p52
      %p55 = scmp.ne.s32.totalorder %s38, %s54
      %p56 = scmp.eq.s32.totalorder %s30, 0
      %p57 = por %p55, %p56
      %s59 = sadd.s32 %s58, 1
      %p62 = scmp.eq.s32.totalorder %s24, 1
      %p63 = scmp.ne.s32.totalorder %s58, %s60
      %p64 = scmp.eq.s32.totalorder %s24, 0
      %p65 = por %p63, %p64
      %p66 = scmp.ne.s32.totalorder %s58, %s60
      %p67 = scmp.eq.s32.totalorder %s29, 1
      %p68 = por %p66, %p67
      %p69 = scmp.ne.s32.totalorder %s60, %s61
      %p70 = scmp.eq.s32.totalorder %s29, 0
      %p71 = por %p69, %p70
      %p72 = scmp.ne.s32.totalorder %s60, %s61
      %p73 = scmp.eq.s32.totalorder %s30, 1
      %p74 = por %p72, %p73
      %p76 = scmp.ne.s32.totalorder %s61, %s75
      %p77 = scmp.eq.s32.totalorder %s30, 0
      %p78 = por %p76, %p77
      %s80 = sadd.s32 %s79, 1
      %p83 = scmp.eq.s32.totalorder %s24, 1
      %p84 = scmp.ne.s32.totalorder %s79, %s81
      %p85 = scmp.eq.s32.totalorder %s24, 0
      %p86 = por %p84, %p85
      %p87 = scmp.ne.s32.totalorder %s79, %s81
      %p88 = scmp.eq.s32.totalorder %s29, 1
      %p89 = por %p87, %p88
      %p90 = scmp.ne.s32.totalorder %s81, %s82
      %p91 = scmp.eq.s32.totalorder %s29, 0
      %p92 = por %p90, %p91
      %p93 = scmp.ne.s32.totalorder %s81, %s82
      %p94 = scmp.eq.s32.totalorder %s30, 1
      %p95 = por %p93, %p94
      %p97 = scmp.ne.s32.totalorder %s82, %s96
      %p98 = scmp.eq.s32.totalorder %s30, 0
      %p99 = por %p97, %p98
      %s101 = sadd.s32 %s100, 1
      %p104 = scmp.eq.s32.totalorder %s24, 1
      %p105 = scmp.ne.s32.totalorder %s100, %s102
      %p106 = scmp.eq.s32.totalorder %s24, 0
      %p107 = por %p105, %p106
      %p108 = scmp.ne.s32.totalorder %s100, %s102
      %p109 = scmp.eq.s32.totalorder %s29, 1
      %p110 = por %p108, %p109
      %p111 = scmp.ne.s32.totalorder %s102, %s103
      %p112 = scmp.eq.s32.totalorder %s29, 0
      %p113 = por %p111, %p112
      %p114 = scmp.ne.s32.totalorder %s102, %s103
      %p115 = scmp.eq.s32.totalorder %s30, 1
      %p116 = por %p114, %p115
      %p118 = scmp.ne.s32.totalorder %s103, %s117
      %p119 = scmp.eq.s32.totalorder %s30, 0
      %p120 = por %p118, %p119
      %s122 = sadd.s32 %s121, 1
      %p125 = scmp.eq.s32.totalorder %s24, 1
      %p126 = scmp.ne.s32.totalorder %s121, %s123
      %p127 = scmp.eq.s32.totalorder %s24, 0
      %p128 = por %p126, %p127
      %p129 = scmp.ne.s32.totalorder %s121, %s123
      %p130 = scmp.eq.s32.totalorder %s29, 1
      %p131 = por %p129, %p130
      %p132 = scmp.ne.s32.totalorder %s123, %s124
      %p133 = scmp.eq.s32.totalorder %s29, 0
      %p134 = por %p132, %p133
      %p135 = scmp.ne.s32.totalorder %s123, %s124
      %p136 = scmp.eq.s32.totalorder %s30, 1
      %p137 = por %p135, %p136
      %p139 = scmp.ne.s32.totalorder %s124, %s138
      %p140 = scmp.eq.s32.totalorder %s30, 0
      %p141 = por %p139, %p140
      %s143 = sadd.s32 %s142, 1
      %p146 = scmp.eq.s32.totalorder %s24, 1
      %p147 = scmp.ne.s32.totalorder %s142, %s144
      %p148 = scmp.eq.s32.totalorder %s24, 0
      %p149 = por %p147, %p148
      %p150 = scmp.ne.s32.totalorder %s142, %s144
      %p151 = scmp.eq.s32.totalorder %s29, 1
      %p152 = por %p150, %p151
      %p153 = scmp.ne.s32.totalorder %s144, %s145
      %p154 = scmp.eq.s32.totalorder %s29, 0
      %p155 = por %p153, %p154
      %p156 = scmp.ne.s32.totalorder %s144, %s145
      %p157 = scmp.eq.s32.totalorder %s30, 1
      %p158 = por %p156, %p157
      %p160 = scmp.ne.s32.totalorder %s145, %s159
      %p161 = scmp.eq.s32.totalorder %s30, 0
      %p162 = por %p160, %p161
      %s164 = sadd.s32 %s163, 1
      %p167 = scmp.eq.s32.totalorder %s24, 1
      %p168 = scmp.ne.s32.totalorder %s163, %s165
      %p169 = scmp.eq.s32.totalorder %s24, 0
      %p170 = por %p168, %p169
      %p171 = scmp.ne.s32.totalorder %s163, %s165
      %p172 = scmp.eq.s32.totalorder %s29, 1
      %p173 = por %p171, %p172
      %p174 = scmp.ne.s32.totalorder %s165, %s166
      %p175 = scmp.eq.s32.totalorder %s29, 0
      %p176 = por %p174, %p175
      %p177 = scmp.ne.s32.totalorder %s165, %s166
      %p178 = scmp.eq.s32.totalorder %s30, 1
      %p179 = por %p177, %p178
      %p181 = scmp.ne.s32.totalorder %s166, %s180
      %p182 = scmp.eq.s32.totalorder %s30, 0
      %p183 = por %p181, %p182
      %s185 = sadd.s32 %s184, 1
      %p188 = scmp.eq.s32.totalorder %s24, 1
      %p189 = scmp.ne.s32.totalorder %s184, %s186
      %p190 = scmp.eq.s32.totalorder %s24, 0
      %p191 = por %p189, %p190
      %p192 = scmp.ne.s32.totalorder %s184, %s186
      %p193 = scmp.eq.s32.totalorder %s29, 1
      %p194 = por %p192, %p193
      %p195 = scmp.ne.s32.totalorder %s186, %s187
      %p196 = scmp.eq.s32.totalorder %s29, 0
      %p197 = por %p195, %p196
      %p198 = scmp.ne.s32.totalorder %s186, %s187
      %p199 = scmp.eq.s32.totalorder %s30, 1
      %p200 = por %p198, %p199
      %p202 = scmp.ne.s32.totalorder %s187, %s201
      %p203 = scmp.eq.s32.totalorder %s30, 0
      %p204 = por %p202, %p203
      %s206 = sadd.s32 %s205, 1
      %p209 = scmp.eq.s32.totalorder %s24, 1
      %p210 = scmp.ne.s32.totalorder %s205, %s207
      %p211 = scmp.eq.s32.totalorder %s24, 0
      %p212 = por %p210, %p211
      %p213 = scmp.ne.s32.totalorder %s205, %s207
      %p214 = scmp.eq.s32.totalorder %s29, 1
      %p215 = por %p213, %p214
      %p216 = scmp.ne.s32.totalorder %s207, %s208
      %p217 = scmp.eq.s32.totalorder %s29, 0
      %p218 = por %p216, %p217
      %p219 = scmp.ne.s32.totalorder %s207, %s208
      %p220 = scmp.eq.s32.totalorder %s30, 1
      %p221 = por %p219, %p220
      %p223 = scmp.ne.s32.totalorder %s208, %s222
      %p224 = scmp.eq.s32.totalorder %s30, 0
      %p225 = por %p223, %p224
      %s227 = sadd.s32 %s226, 1
      %p230 = scmp.eq.s32.totalorder %s24, 1
      %p231 = scmp.ne.s32.totalorder %s226, %s228
      %p232 = scmp.eq.s32.totalorder %s24, 0
      %p233 = por %p231, %p232
      %p234 = scmp.ne.s32.totalorder %s226, %s228
      %p235 = scmp.eq.s32.totalorder %s29, 1
      %p236 = por %p234, %p235
      %p237 = scmp.ne.s32.totalorder %s228, %s229
      %p238 = scmp.eq.s32.totalorder %s29, 0
      %p239 = por %p237, %p238
      %p240 = scmp.ne.s32.totalorder %s228, %s229
      %p241 = scmp.eq.s32.totalorder %s30, 1
      %p242 = por %p240, %p241
      %p244 = scmp.ne.s32.totalorder %s229, %s243
      %p245 = scmp.eq.s32.totalorder %s30, 0
      %p246 = por %p244, %p245
      %s248 = sadd.s32 %s247, 1
      %p251 = scmp.eq.s32.totalorder %s24, 1
      %p252 = scmp.ne.s32.totalorder %s247, %s249
      %p253 = scmp.eq.s32.totalorder %s24, 0
      %p254 = por %p252, %p253
      %p255 = scmp.ne.s32.totalorder %s247, %s249
      %p256 = scmp.eq.s32.totalorder %s29, 1
      %p257 = por %p255, %p256
      %p258 = scmp.ne.s32.totalorder %s249, %s250
      %p259 = scmp.eq.s32.totalorder %s29, 0
      %p260 = por %p258, %p259
      %p261 = scmp.ne.s32.totalorder %s249, %s250
      %p262 = scmp.eq.s32.totalorder %s30, 1
      %p263 = por %p261, %p262
      %p265 = scmp.ne.s32.totalorder %s250, %s264
      %p266 = scmp.eq.s32.totalorder %s30, 0
      %p267 = por %p265, %p266
      %s269 = sadd.s32 %s268, 1
      %p272 = scmp.eq.s32.totalorder %s24, 1
      %p273 = scmp.ne.s32.totalorder %s268, %s270
      %p274 = scmp.eq.s32.totalorder %s24, 0
      %p275 = por %p273, %p274
      %p276 = scmp.ne.s32.totalorder %s268, %s270
      %p277 = scmp.eq.s32.totalorder %s29, 1
      %p278 = por %p276, %p277
      %p279 = scmp.ne.s32.totalorder %s270, %s271
      %p280 = scmp.eq.s32.totalorder %s29, 0
      %p281 = por %p279, %p280
      %p282 = scmp.ne.s32.totalorder %s270, %s271
      %p283 = scmp.eq.s32.totalorder %s30, 1
      %p284 = por %p282, %p283
      %p286 = scmp.ne.s32.totalorder %s271, %s285
      %p287 = scmp.eq.s32.totalorder %s30, 0
      %p288 = por %p286, %p287
      %s290 = sadd.s32 %s289, 1
      %p293 = scmp.eq.s32.totalorder %s24, 1
      %p294 = scmp.ne.s32.totalorder %s289, %s291
      %p295 = scmp.eq.s32.totalorder %s24, 0
      %p296 = por %p294, %p295
      %p297 = scmp.ne.s32.totalorder %s289, %s291
      %p298 = scmp.eq.s32.totalorder %s29, 1
      %p299 = por %p297, %p298
      %p300 = scmp.ne.s32.totalorder %s291, %s292
      %p301 = scmp.eq.s32.totalorder %s29, 0
      %p302 = por %p300, %p301
      %p303 = scmp.ne.s32.totalorder %s291, %s292
      %p304 = scmp.eq.s32.totalorder %s30, 1
      %p305 = por %p303, %p304
      %p307 = scmp.ne.s32.totalorder %s292, %s306
      %p308 = scmp.eq.s32.totalorder %s30, 0
      %p309 = por %p307, %p308
      %s311 = sadd.s32 %s310, 1
      %p314 = scmp.eq.s32.totalorder %s24, 1
      %p315 = scmp.ne.s32.totalorder %s310, %s312
      %p316 = scmp.eq.s32.totalorder %s24, 0
      %p317 = por %p315, %p316
      %p318 = scmp.ne.s32.totalorder %s310, %s312
      %p319 = scmp.eq.s32.totalorder %s29, 1
      %p320 = por %p318, %p319
      %p321 = scmp.ne.s32.totalorder %s312, %s313
      %p322 = scmp.eq.s32.totalorder %s29, 0
      %p323 = por %p321, %p322
      %p324 = scmp.ne.s32.totalorder %s312, %s313
      %p325 = scmp.eq.s32.totalorder %s30, 1
      %p326 = por %p324, %p325
      %p328 = scmp.ne.s32.totalorder %s313, %s327
      %p329 = scmp.eq.s32.totalorder %s30, 0
      %p330 = por %p328, %p329
      %s332 = sadd.s32 %s331, 1
      %p335 = scmp.eq.s32.totalorder %s24, 1
      %p336 = scmp.ne.s32.totalorder %s331, %s333
      %p337 = scmp.eq.s32.totalorder %s24, 0
      %p338 = por %p336, %p337
      %p339 = scmp.ne.s32.totalorder %s331, %s333
      %p340 = scmp.eq.s32.totalorder %s29, 1
      %p341 = por %p339, %p340
      %p342 = scmp.ne.s32.totalorder %s333, %s334
      %p343 = scmp.eq.s32.totalorder %s29, 0
      %p344 = por %p342, %p343
      %p345 = scmp.ne.s32.totalorder %s333, %s334
      %p346 = scmp.eq.s32.totalorder %s30, 1
      %p347 = por %p345, %p346
      %p349 = scmp.ne.s32.totalorder %s334, %s348
      %p350 = scmp.eq.s32.totalorder %s30, 0
      %p351 = por %p349, %p350
      %s352 = ssub.s32 %s24, %s31
      %p353 = scmp.eq.s32.totalorder %s352, 0
      %s355 = sadd.s32 %s354, 1
      %s356 = scalar_select %p353, %s354, %s355
      %p359 = pneg %p353
      %p360 = scmp.eq.s32.totalorder %s24, 1
      %p361 = por %p359, %p360
      %p362 = scmp.ne.s32.totalorder %s354, %s357
      %p363 = scmp.eq.s32.totalorder %s24, 0
      %p364 = por %p362, %p363
      %p365 = scmp.ne.s32.totalorder %s354, %s357
      %p366 = scmp.eq.s32.totalorder %s29, 1
      %p367 = por %p365, %p366
      %p368 = scmp.ne.s32.totalorder %s357, %s358
      %p369 = scmp.eq.s32.totalorder %s29, 0
      %p370 = por %p368, %p369
      %p371 = scmp.ne.s32.totalorder %s357, %s358
      %p372 = scmp.eq.s32.totalorder %s30, 1
      %p373 = por %p371, %p372
      %p375 = scmp.ne.s32.totalorder %s358, %s374
      %p376 = scmp.eq.s32.totalorder %s30, 0
      %p377 = por %p375, %p376
      %p378 = scmp.le.s32.totalorder 1, %s24
      %p379 = scmp.lt.s32.totalorder %s24, 3
      %p380 = pnand %p378, %p379
      %p381 = pneg %p380
      // Predicated region
      $region9: #{run.5} parent=5 // pred_check
        _
      $region10: #{run.5} parent=5 // pred_check_branch
        %383 = sbr.rel (%p380) target = $region12
      $region11: #{run.5} parent=5 // pred_region
        %s384 = ssub.s32 %s24, 1
        // Predicated region
        $region13: #{run.5} parent=11 // pred_check
          %p385 = pneg %p71
        $region14: #{run.5} parent=11 // pred_check_branch
          %387 = sbr.rel (%p385) target = $region16
        $region15: #{run.5} parent=11 // pred_region
          _
        $region16: #{run.5} parent=11 // pred_fallthru
          _
        // Predicated region
        $region17: #{run.5} parent=11 // pred_check
          %p388 = pneg %p92
        $region18: #{run.5} parent=11 // pred_check_branch
          %390 = sbr.rel (%p388) target = $region20
        $region19: #{run.5} parent=11 // pred_region
          _
        $region20: #{run.5} parent=11 // pred_fallthru
          _
        // Predicated region
        $region21: #{run.5} parent=11 // pred_check
          %p391 = pneg %p113
        $region22: #{run.5} parent=11 // pred_check_branch
          %393 = sbr.rel (%p391) target = $region24
        $region23: #{run.5} parent=11 // pred_region
          _
        $region24: #{run.5} parent=11 // pred_fallthru
          _
        // Predicated region
        $region25: #{run.5} parent=11 // pred_check
          %p394 = pneg %p134
        $region26: #{run.5} parent=11 // pred_check_branch
          %396 = sbr.rel (%p394) target = $region28
        $region27: #{run.5} parent=11 // pred_region
          _
        $region28: #{run.5} parent=11 // pred_fallthru
          _
        // Predicated region
        $region29: #{run.5} parent=11 // pred_check
          %p397 = pneg %p155
        $region30: #{run.5} parent=11 // pred_check_branch
          %399 = sbr.rel (%p397) target = $region32
        $region31: #{run.5} parent=11 // pred_region
          _
        $region32: #{run.5} parent=11 // pred_fallthru
          _
        // Predicated region
        $region33: #{run.5} parent=11 // pred_check
          %p400 = pneg %p176
        $region34: #{run.5} parent=11 // pred_check_branch
          %402 = sbr.rel (%p400) target = $region36
        $region35: #{run.5} parent=11 // pred_region
          _
        $region36: #{run.5} parent=11 // pred_fallthru
          _
        // Predicated region
        $region37: #{run.5} parent=11 // pred_check
          %p403 = pneg %p197
        $region38: #{run.5} parent=11 // pred_check_branch
          %405 = sbr.rel (%p403) target = $region40
        $region39: #{run.5} parent=11 // pred_region
          _
        $region40: #{run.5} parent=11 // pred_fallthru
          _
        // Predicated region
        $region41: #{run.5} parent=11 // pred_check
          %p406 = pneg %p218
        $region42: #{run.5} parent=11 // pred_check_branch
          %408 = sbr.rel (%p406) target = $region44
        $region43: #{run.5} parent=11 // pred_region
          _
        $region44: #{run.5} parent=11 // pred_fallthru
          _
        // Predicated region
        $region45: #{run.5} parent=11 // pred_check
          %p409 = pneg %p239
        $region46: #{run.5} parent=11 // pred_check_branch
          %411 = sbr.rel (%p409) target = $region48
        $region47: #{run.5} parent=11 // pred_region
          _
        $region48: #{run.5} parent=11 // pred_fallthru
          _
        // Predicated region
        $region49: #{run.5} parent=11 // pred_check
          %p412 = pneg %p260
        $region50: #{run.5} parent=11 // pred_check_branch
          %414 = sbr.rel (%p412) target = $region52
        $region51: #{run.5} parent=11 // pred_region
          _
        $region52: #{run.5} parent=11 // pred_fallthru
          _
        // Predicated region
        $region53: #{run.5} parent=11 // pred_check
          %p415 = pneg %p281
        $region54: #{run.5} parent=11 // pred_check_branch
          %417 = sbr.rel (%p415) target = $region56
        $region55: #{run.5} parent=11 // pred_region
          _
        $region56: #{run.5} parent=11 // pred_fallthru
          _
        // Predicated region
        $region57: #{run.5} parent=11 // pred_check
          %p418 = pneg %p302
        $region58: #{run.5} parent=11 // pred_check_branch
          %420 = sbr.rel (%p418) target = $region60
        $region59: #{run.5} parent=11 // pred_region
          _
        $region60: #{run.5} parent=11 // pred_fallthru
          _
        // Predicated region
        $region61: #{run.5} parent=11 // pred_check
          %p421 = pneg %p323
        $region62: #{run.5} parent=11 // pred_check_branch
          %423 = sbr.rel (%p421) target = $region64
        $region63: #{run.5} parent=11 // pred_region
          _
        $region64: #{run.5} parent=11 // pred_fallthru
          _
        // Predicated region
        $region65: #{run.5} parent=11 // pred_check
          %p424 = pneg %p344
        $region66: #{run.5} parent=11 // pred_check_branch
          %426 = sbr.rel (%p424) target = $region68
        $region67: #{run.5} parent=11 // pred_region
          _
        $region68: #{run.5} parent=11 // pred_fallthru
          _
      $region12: #{run.5} parent=5 // pred_fallthru
        _
      %p427 = scmp.lt.s32.totalorder %s24, 2
      // Predicated region
      $region69: #{run.5} parent=5 // pred_check
        %p428 = pneg %p427
      $region70: #{run.5} parent=5 // pred_check_branch
        %430 = sbr.rel (%p428) target = $region72
      $region71: #{run.5} parent=5 // pred_region
        // Predicated region
        $region73: #{run.5} parent=71 // pred_check
          %p431 = pneg %p44
        $region74: #{run.5} parent=71 // pred_check_branch
          %433 = sbr.rel (%p431) target = $region76
        $region75: #{run.5} parent=71 // pred_region
          %p434 = scmp.lt.s32.totalorder %s24, 1
          %s435 = scalar_select %p434, %s24, 1
          %s436 = smul.addr %s435, 8
          %s437 = scalar_lea.vmem %s0, %s436
        $region76: #{run.5} parent=71 // pred_fallthru
          _
      $region72: #{run.5} parent=5 // pred_fallthru
        _
      %p438 = scmp.le.s32.totalorder 1, %s24
      %p439 = scmp.lt.s32.totalorder %s24, 3
      %p440 = pnand %p438, %p439
      %p441 = pneg %p440
      // Predicated region
      $region77: #{run.5} parent=5 // pred_check
        _
      $region78: #{run.5} parent=5 // pred_check_branch
        %443 = sbr.rel (%p440) target = $region80
      $region79: #{run.5} parent=5 // pred_region
        %s444 = ssub.s32 %s24, 1
        %p445 = scmp.lt.s32.totalorder %s29, 1
        %s446 = scalar_select %p445, %s29, 1
        %s447 = smul.addr %s446, 8
        %s448 = scalar_lea.vmem %s0, %s447
        %p449 = pneg %p50
        %p450 = pneg %p47
        %p451 = pneg %p71
        %p452 = pneg %p68
        %p453 = pneg %p92
        %p454 = pneg %p89
        %p455 = pneg %p113
        %p456 = pneg %p110
        %p457 = pneg %p134
        %p458 = pneg %p131
        %p459 = pneg %p155
        %p460 = pneg %p152
        %p461 = pneg %p176
        %p462 = pneg %p173
        %p463 = pneg %p197
        %p464 = pneg %p194
        %p465 = pneg %p218
        %p466 = pneg %p215
        %p467 = pneg %p239
        %p468 = pneg %p236
        %p469 = pneg %p260
        %p470 = pneg %p257
        %p471 = pneg %p281
        %p472 = pneg %p278
        %p473 = pneg %p302
        %p474 = pneg %p299
        %p475 = pneg %p323
        %p476 = pneg %p320
        %p477 = pneg %p344
        %p478 = pneg %p341
        %p479 = pneg %p370
        %p480 = pneg %p367
        %s481 = sand.u32 %s357, 1
        %s482 = scalar_lea.sflag [#allocation3], %s481
        %s483 = sand.u32 %s357, 1
        %s484 = smul.addr %s483, 8
        %s485 = scalar_lea.vmem [#allocation2], %s484
        %p486 = scmp.lt.s32.totalorder %s29, 1
        %s487 = scalar_select %p486, %s29, 1
        %s488 = smul.addr %s487, 8
        %s489 = scalar_lea.vmem %s0, %s488
        %v490 = vld [vmem:[%s489] sm:$0xff]
        %v491 = vld [vmem:[%s1] sm:$0x1]
        %v492 = vld [vmem:[%s2] sm:$0x1]
        %vm493 = vcmask 261120
        %v494 = vsel %vm493, %v490, 0.0
        %495 = vadd.xlane.f32.xlu0 %v494
        %v496 = vpop.xlane.xlu0 %495
        %v497 = vrcp.pop 32.0
        %v498 = vmul.f32 %v496, %v497
        %v499 = vsub.f32 %v490, %v498
        %v500 = vmul.f32 %v499, %v499
        %v501 = vsel %vm493, %v500, 0.0
        %502 = vadd.xlane.f32.xlu0 %v501
        %v503 = vpop.xlane.xlu0 %502
        %v504 = vmul.f32 %v503, %v497
        %v505 = vadd.f32 %v504, 1e-05
        %v506 = vrsqrt.pop %v505
        %v507 = vmul.f32 %v499, %v506
        %v509 = vlaneseq
        %v510 = vshrl.u32 %v509, 7
        %v511 = vsub.s32 0, %v510
        %v512 = vrot.slane %v491, %v511
        %v514 = vmul.f32 %v507, %v512
        %v516 = vlaneseq
        %v517 = vshrl.u32 %v516, 7
        %v518 = vsub.s32 0, %v517
        %v519 = vrot.slane %v492, %v518
        %v521 = vadd.f32 %v514, %v519
        %v522 = vld [vmem:[%s3] sm:$0xff]
        %v523 = vld [vmem:[%s3 + $0x8] sm:$0xff]
        %v524 = vld [vmem:[%s3 + $0x10] sm:$0xff]
        %v525 = vld [vmem:[%s3 + $0x18] sm:$0xff]
        %v526 = vld [vmem:[%s4] sm:$0x1]
        %v528 = vlaneseq
        %v529 = vshrl.u32 %v528, 7
        %v530 = vsub.s32 0, %v529
        %v531 = vrot.slane %v526, %v530
        %v534 = vsel %vm493, %v521, 0
        %536 = vmatprep.subr.mxu0 0.0
        %537 = vmatpush1.msra.mxu0 %v522
        %538 = vmatprep.subr.mxu0 0.0
        %539 = vmatpush1.msra.mxu0 %v523
        %540 = vmatprep.subr.mxu0 0.0
        %541 = vmatpush1.msra.mxu0 %v524
        %542 = vmatprep.subr.mxu0 0.0
        %543 = vmatpush1.msra.mxu0 %v525
        %544 = vmatprep.subr.mxu0 0.0
        %545 = vmatpush1.msra.mxu0 0.0
        %546 = vmatprep.subr.mxu0 0.0
        %547 = vmatpush1.msra.mxu0 0.0
        %548 = vmatprep.subr.mxu0 0.0
        %549 = vmatpush1.msra.mxu0 0.0
        %550 = vmatprep.subr.mxu0 0.0
        %551 = vmatpush1.msra.mxu0 0.0
        %552 = vmatprep.subr.mxu0 0.0
        %553 = vmatpush1.msra.mxu0 0.0
        %554 = vmatprep.subr.mxu0 0.0
        %555 = vmatpush1.msra.mxu0 0.0
        %556 = vmatprep.subr.mxu0 0.0
        %557 = vmatpush1.msra.mxu0 0.0
        %558 = vmatprep.subr.mxu0 0.0
        %559 = vmatpush1.msra.mxu0 0.0
        %560 = vmatprep.subr.mxu0 0.0
        %561 = vmatpush1.msra.mxu0 0.0
        %562 = vmatprep.subr.mxu0 0.0
        %563 = vmatpush1.msra.mxu0 0.0
        %564 = vmatprep.subr.mxu0 0.0
        %565 = vmatpush1.msra.mxu0 0.0
        %566 = vmatprep.subr.mxu0 0.0
        %567 = vmatpush1.msra.mxu0 0.0
        %568 = vmatprep.subr.mxu0 0.0
        %569 = vmatpush1.msra.mxu0 0.0
        %570 = vmatprep.subr.mxu0 0.0
        %571 = vmatpush1.msra.mxu0 0.0
        %572 = vmatprep.subr.mxu0 0.0
        %573 = vmatpush1.msra.mxu0 0.0
        %574 = vmatprep.subr.mxu0 0.0
        %575 = vmatpush1.msra.mxu0 0.0
        %576 = vmatprep.subr.mxu0 0.0
        %577 = vmatpush1.msra.mxu0 0.0
        %578 = vmatprep.subr.mxu0 0.0
        %579 = vmatpush1.msra.mxu0 0.0
        %580 = vmatprep.subr.mxu0 0.0
        %581 = vmatpush1.msra.mxu0 0.0
        %582 = vmatprep.subr.mxu0 0.0
        %583 = vmatpush1.msra.mxu0 0.0
        %584 = vmatprep.subr.mxu0 0.0
        %585 = vmatpush1.msra.mxu0 0.0
        %586 = vmatprep.subr.mxu0 0.0
        %587 = vmatpush1.msra.mxu0 0.0
        %588 = vmatprep.subr.mxu0 0.0
        %589 = vmatpush1.msra.mxu0 0.0
        %590 = vmatprep.subr.mxu0 0.0
        %591 = vmatpush1.msra.mxu0 0.0
        %592 = vmatprep.subr.mxu0 0.0
        %593 = vmatpush1.msra.mxu0 0.0
        %594 = vmatprep.subr.mxu0 0.0
        %595 = vmatpush1.msra.mxu0 0.0
        %596 = vmatprep.subr.mxu0 0.0
        %597 = vmatpush1.msra.mxu0 0.0
        %598 = vmatprep.subr.mxu0 0.0
        %599 = vmatpush1.msra.mxu0 0.0
        %600 = vmatprep.mubr.f32.mxu0 0.0
        %601 = vmatmul.mubr.f32.gmra.mrb[0].mxu0 %v534
        %v602 = vpop.f32.mrb[0].mxu0
        %v603 = vadd.f32 %v531, %v602
        %v604 = vpop.f32.mrb[0].mxu0
        %605 = vdwg.mxu0
        %v606 = vld [vmem:[%s5] sm:$0xff]
        %v607 = vld [vmem:[%s5 + $0x8] sm:$0xff]
        %v608 = vld [vmem:[%s5 + $0x10] sm:$0xff]
        %v609 = vld [vmem:[%s5 + $0x18] sm:$0xff]
        %v610 = vld [vmem:[%s6] sm:$0x1]
        %v612 = vlaneseq
        %v613 = vshrl.u32 %v612, 7
        %v614 = vsub.s32 0, %v613
        %v615 = vrot.slane %v610, %v614
        %617 = vmatprep.subr.mxu0 0.0
        %618 = vmatpush1.msra.mxu0 %v606
        %619 = vmatprep.subr.mxu0 0.0
        %620 = vmatpush1.msra.mxu0 %v607
        %621 = vmatprep.subr.mxu0 0.0
        %622 = vmatpush1.msra.mxu0 %v608
        %623 = vmatprep.subr.mxu0 0.0
        %624 = vmatpush1.msra.mxu0 %v609
        %625 = vmatprep.subr.mxu0 0.0
        %626 = vmatpush1.msra.mxu0 0.0
        %627 = vmatprep.subr.mxu0 0.0
        %628 = vmatpush1.msra.mxu0 0.0
        %629 = vmatprep.subr.mxu0 0.0
        %630 = vmatpush1.msra.mxu0 0.0
        %631 = vmatprep.subr.mxu0 0.0
        %632 = vmatpush1.msra.mxu0 0.0
        %633 = vmatprep.subr.mxu0 0.0
        %634 = vmatpush1.msra.mxu0 0.0
        %635 = vmatprep.subr.mxu0 0.0
        %636 = vmatpush1.msra.mxu0 0.0
        %637 = vmatprep.subr.mxu0 0.0
        %638 = vmatpush1.msra.mxu0 0.0
        %639 = vmatprep.subr.mxu0 0.0
        %640 = vmatpush1.msra.mxu0 0.0
        %641 = vmatprep.subr.mxu0 0.0
        %642 = vmatpush1.msra.mxu0 0.0
        %643 = vmatprep.subr.mxu0 0.0
        %644 = vmatpush1.msra.mxu0 0.0
        %645 = vmatprep.subr.mxu0 0.0
        %646 = vmatpush1.msra.mxu0 0.0
        %647 = vmatprep.subr.mxu0 0.0
        %648 = vmatpush1.msra.mxu0 0.0
        %649 = vmatprep.subr.mxu0 0.0
        %650 = vmatpush1.msra.mxu0 0.0
        %651 = vmatprep.subr.mxu0 0.0
        %652 = vmatpush1.msra.mxu0 0.0
        %653 = vmatprep.subr.mxu0 0.0
        %654 = vmatpush1.msra.mxu0 0.0
        %655 = vmatprep.subr.mxu0 0.0
        %656 = vmatpush1.msra.mxu0 0.0
        %657 = vmatprep.subr.mxu0 0.0
        %658 = vmatpush1.msra.mxu0 0.0
        %659 = vmatprep.subr.mxu0 0.0
        %660 = vmatpush1.msra.mxu0 0.0
        %661 = vmatprep.subr.mxu0 0.0
        %662 = vmatpush1.msra.mxu0 0.0
        %663 = vmatprep.subr.mxu0 0.0
        %664 = vmatpush1.msra.mxu0 0.0
        %665 = vmatprep.subr.mxu0 0.0
        %666 = vmatpush1.msra.mxu0 0.0
        %667 = vmatprep.subr.mxu0 0.0
        %668 = vmatpush1.msra.mxu0 0.0
        %669 = vmatprep.subr.mxu0 0.0
        %670 = vmatpush1.msra.mxu0 0.0
        %671 = vmatprep.subr.mxu0 0.0
        %672 = vmatpush1.msra.mxu0 0.0
        %673 = vmatprep.subr.mxu0 0.0
        %674 = vmatpush1.msra.mxu0 0.0
        %675 = vmatprep.subr.mxu0 0.0
        %676 = vmatpush1.msra.mxu0 0.0
        %677 = vmatprep.subr.mxu0 0.0
        %678 = vmatpush1.msra.mxu0 0.0
        %679 = vmatprep.subr.mxu0 0.0
        %680 = vmatpush1.msra.mxu0 0.0
        %681 = vmatprep.mubr.f32.mxu0 0.0
        %682 = vmatmul.mubr.f32.gmra.mrb[0].mxu0 %v534
        %v683 = vpop.f32.mrb[0].mxu0
        %v684 = vadd.f32 %v615, %v683
        %v685 = vpop.f32.mrb[0].mxu0
        %686 = vdwg.mxu0
        %v687 = vld [vmem:[%s7] sm:$0xff]
        %v688 = vld [vmem:[%s7 + $0x8] sm:$0xff]
        %v689 = vld [vmem:[%s7 + $0x10] sm:$0xff]
        %v690 = vld [vmem:[%s7 + $0x18] sm:$0xff]
        %v691 = vld [vmem:[%s8] sm:$0x1]
        %v693 = vlaneseq
        %v694 = vshrl.u32 %v693, 7
        %v695 = vsub.s32 0, %v694
        %v696 = vrot.slane %v691, %v695
        %698 = vmatprep.subr.mxu0 0.0
        %699 = vmatpush1.msra.mxu0 %v687
        %700 = vmatprep.subr.mxu0 0.0
        %701 = vmatpush1.msra.mxu0 %v688
        %702 = vmatprep.subr.mxu0 0.0
        %703 = vmatpush1.msra.mxu0 %v689
        %704 = vmatprep.subr.mxu0 0.0
        %705 = vmatpush1.msra.mxu0 %v690
        %706 = vmatprep.subr.mxu0 0.0
        %707 = vmatpush1.msra.mxu0 0.0
        %708 = vmatprep.subr.mxu0 0.0
        %709 = vmatpush1.msra.mxu0 0.0
        %710 = vmatprep.subr.mxu0 0.0
        %711 = vmatpush1.msra.mxu0 0.0
        %712 = vmatprep.subr.mxu0 0.0
        %713 = vmatpush1.msra.mxu0 0.0
        %714 = vmatprep.subr.mxu0 0.0
        %715 = vmatpush1.msra.mxu0 0.0
        %716 = vmatprep.subr.mxu0 0.0
        %717 = vmatpush1.msra.mxu0 0.0
        %718 = vmatprep.subr.mxu0 0.0
        %719 = vmatpush1.msra.mxu0 0.0
        %720 = vmatprep.subr.mxu0 0.0
        %721 = vmatpush1.msra.mxu0 0.0
        %722 = vmatprep.subr.mxu0 0.0
        %723 = vmatpush1.msra.mxu0 0.0
        %724 = vmatprep.subr.mxu0 0.0
        %725 = vmatpush1.msra.mxu0 0.0
        %726 = vmatprep.subr.mxu0 0.0
        %727 = vmatpush1.msra.mxu0 0.0
        %728 = vmatprep.subr.mxu0 0.0
        %729 = vmatpush1.msra.mxu0 0.0
        %730 = vmatprep.subr.mxu0 0.0
        %731 = vmatpush1.msra.mxu0 0.0
        %732 = vmatprep.subr.mxu0 0.0
        %733 = vmatpush1.msra.mxu0 0.0
        %734 = vmatprep.subr.mxu0 0.0
        %735 = vmatpush1.msra.mxu0 0.0
        %736 = vmatprep.subr.mxu0 0.0
        %737 = vmatpush1.msra.mxu0 0.0
        %738 = vmatprep.subr.mxu0 0.0
        %739 = vmatpush1.msra.mxu0 0.0
        %740 = vmatprep.subr.mxu0 0.0
        %741 = vmatpush1.msra.mxu0 0.0
        %742 = vmatprep.subr.mxu0 0.0
        %743 = vmatpush1.msra.mxu0 0.0
        %744 = vmatprep.subr.mxu0 0.0
        %745 = vmatpush1.msra.mxu0 0.0
        %746 = vmatprep.subr.mxu0 0.0
        %747 = vmatpush1.msra.mxu0 0.0
        %748 = vmatprep.subr.mxu0 0.0
        %749 = vmatpush1.msra.mxu0 0.0
        %750 = vmatprep.subr.mxu0 0.0
        %751 = vmatpush1.msra.mxu0 0.0
        %752 = vmatprep.subr.mxu0 0.0
        %753 = vmatpush1.msra.mxu0 0.0
        %754 = vmatprep.subr.mxu0 0.0
        %755 = vmatpush1.msra.mxu0 0.0
        %756 = vmatprep.subr.mxu0 0.0
        %757 = vmatpush1.msra.mxu0 0.0
        %758 = vmatprep.subr.mxu0 0.0
        %759 = vmatpush1.msra.mxu0 0.0
        %760 = vmatprep.subr.mxu0 0.0
        %761 = vmatpush1.msra.mxu0 0.0
        %762 = vmatprep.mubr.f32.mxu0 0.0
        %763 = vmatmul.mubr.f32.gmra.mrb[0].mxu0 %v534
        %v764 = vpop.f32.mrb[0].mxu0
        %v765 = vadd.f32 %v696, %v764
        %v766 = vpop.f32.mrb[0].mxu0
        %767 = vdwg.mxu0
        %v768 = vlaneseq
        %v769 = vand.u32 %v768, 127
        %vm770 = vcmp.ge.s32.totalorder %v769, 0
        %vm771 = vcmp.lt.s32.totalorder %v769, 8
        %vm772 = vmand %vm770, %vm771
        %v773 = vsel %vm772, 1, 0
        %v774 = vcvt.s32.f32 %v773
        %v775 = vmul.f32 %v603, %v774
        %v777 = vsel %vm493, %v775, 0
        %v780 = vsel %vm493, %v684, 0
        %782 = vmatprep.subr.mxu0 0.0
        %783 = vmatpush1.xpose.msra.mxu0 %v780
        %784 = vmatprep.subr.mxu0 0.0
        %785 = vmatpush1.xpose.msra.mxu0 0.0
        %786 = vmatprep.subr.mxu0 0.0
        %787 = vmatpush1.xpose.msra.mxu0 0.0
        %788 = vmatprep.subr.mxu0 0.0
        %789 = vmatpush1.xpose.msra.mxu0 0.0
        %790 = vmatprep.subr.mxu0 0.0
        %791 = vmatpush1.xpose.msra.mxu0 0.0
        %792 = vmatprep.subr.mxu0 0.0
        %793 = vmatpush1.xpose.msra.mxu0 0.0
        %794 = vmatprep.subr.mxu0 0.0
        %795 = vmatpush1.xpose.msra.mxu0 0.0
        %796 = vmatprep.subr.mxu0 0.0
        %797 = vmatpush1.xpose.msra.mxu0 0.0
        %798 = vmatprep.subr.mxu0 0.0
        %799 = vmatpush1.xpose.msra.mxu0 0.0
        %800 = vmatprep.subr.mxu0 0.0
        %801 = vmatpush1.xpose.msra.mxu0 0.0
        %802 = vmatprep.subr.mxu0 0.0
        %803 = vmatpush1.xpose.msra.mxu0 0.0
        %804 = vmatprep.subr.mxu0 0.0
        %805 = vmatpush1.xpose.msra.mxu0 0.0
        %806 = vmatprep.subr.mxu0 0.0
        %807 = vmatpush1.xpose.msra.mxu0 0.0
        %808 = vmatprep.subr.mxu0 0.0
        %809 = vmatpush1.xpose.msra.mxu0 0.0
        %810 = vmatprep.subr.mxu0 0.0
        %811 = vmatpush1.xpose.msra.mxu0 0.0
        %812 = vmatprep.subr.mxu0 0.0
        %813 = vmatpush1.xpose.msra.mxu0 0.0
        %814 = vmatprep.subr.mxu0 0.0
        %815 = vmatpush1.xpose.msra.mxu0 0.0
        %816 = vmatprep.subr.mxu0 0.0
        %817 = vmatpush1.xpose.msra.mxu0 0.0
        %818 = vmatprep.subr.mxu0 0.0
        %819 = vmatpush1.xpose.msra.mxu0 0.0
        %820 = vmatprep.subr.mxu0 0.0
        %821 = vmatpush1.xpose.msra.mxu0 0.0
        %822 = vmatprep.subr.mxu0 0.0
        %823 = vmatpush1.xpose.msra.mxu0 0.0
        %824 = vmatprep.subr.mxu0 0.0
        %825 = vmatpush1.xpose.msra.mxu0 0.0
        %826 = vmatprep.subr.mxu0 0.0
        %827 = vmatpush1.xpose.msra.mxu0 0.0
        %828 = vmatprep.subr.mxu0 0.0
        %829 = vmatpush1.xpose.msra.mxu0 0.0
        %830 = vmatprep.subr.mxu0 0.0
        %831 = vmatpush1.xpose.msra.mxu0 0.0
        %832 = vmatprep.subr.mxu0 0.0
        %833 = vmatpush1.xpose.msra.mxu0 0.0
        %834 = vmatprep.subr.mxu0 0.0
        %835 = vmatpush1.xpose.msra.mxu0 0.0
        %836 = vmatprep.subr.mxu0 0.0
        %837 = vmatpush1.xpose.msra.mxu0 0.0
        %838 = vmatprep.subr.mxu0 0.0
        %839 = vmatpush1.xpose.msra.mxu0 0.0
        %840 = vmatprep.subr.mxu0 0.0
        %841 = vmatpush1.xpose.msra.mxu0 0.0
        %842 = vmatprep.subr.mxu0 0.0
        %843 = vmatpush1.xpose.msra.mxu0 0.0
        %844 = vmatprep.subr.mxu0 0.0
        %845 = vmatpush1.xpose.msra.mxu0 0.0
        %846 = vmatprep.mubr.f32.mxu0 0.0
        %847 = vmatmul.mubr.f32.gmra.mrb[0].mxu0 %v777
        %v848 = vpop.f32.mrb[0].mxu0
        %v849 = vadd.f32 0.0, %v848
        %v850 = vpop.f32.mrb[0].mxu0
        %851 = vdwg.mxu0
        %v852 = vmul.f32 %v849, 0.35355338
        %vm853 = vcmask 64512
        %v854 = vsel %vm853, %v852, -inf
        %855 = vmax.xlane.f32.xlu0 %v854
        %v856 = vpop.xlane.xlu0 %855
        %v857 = vsub.f32 %v852, %v856
        %v858 = vmul.f32 %v857, 1.442695
        %v859 = vpow.pop %v858
        %v860 = vsel %vm853, %v859, 0.0
        %861 = vadd.xlane.f32.xlu0 %v860
        %v862 = vpop.xlane.xlu0 %861
        %v863 = vrcp.pop %v862
        %v864 = vmul.f32 %v859, %v863
        %v865 = vmul.f32 %v765, %v774
        %vm866 = vcmp.ge.s32.totalorder %v769, 8
        %vm867 = vcmp.lt.s32.totalorder %v769, 16
        %vm868 = vmand %vm866, %vm867
        %v869 = vsel %vm868, 1, 0
        %v870 = vcvt.s32.f32 %v869
        %v871 = vmul.f32 %v603, %v870
        %v873 = vsel %vm493, %v871, 0
        %875 = vmatprep.subr.mxu0 0.0
        %876 = vmatpush1.xpose.msra.mxu0 %v780
        %877 = vmatprep.subr.mxu0 0.0
        %878 = vmatpush1.xpose.msra.mxu0 0.0
        %879 = vmatprep.subr.mxu0 0.0
        %880 = vmatpush1.xpose.msra.mxu0 0.0
        %881 = vmatprep.subr.mxu0 0.0
        %882 = vmatpush1.xpose.msra.mxu0 0.0
        %883 = vmatprep.subr.mxu0 0.0
        %884 = vmatpush1.xpose.msra.mxu0 0.0
        %885 = vmatprep.subr.mxu0 0.0
        %886 = vmatpush1.xpose.msra.mxu0 0.0
        %887 = vmatprep.subr.mxu0 0.0
        %888 = vmatpush1.xpose.msra.mxu0 0.0
        %889 = vmatprep.subr.mxu0 0.0
        %890 = vmatpush1.xpose.msra.mxu0 0.0
        %891 = vmatprep.subr.mxu0 0.0
        %892 = vmatpush1.xpose.msra.mxu0 0.0
        %893 = vmatprep.subr.mxu0 0.0
        %894 = vmatpush1.xpose.msra.mxu0 0.0
        %895 = vmatprep.subr.mxu0 0.0
        %896 = vmatpush1.xpose.msra.mxu0 0.0
        %897 = vmatprep.subr.mxu0 0.0
        %898 = vmatpush1.xpose.msra.mxu0 0.0
        %899 = vmatprep.subr.mxu0 0.0
        %900 = vmatpush1.xpose.msra.mxu0 0.0
        %901 = vmatprep.subr.mxu0 0.0
        %902 = vmatpush1.xpose.msra.mxu0 0.0
        %903 = vmatprep.subr.mxu0 0.0
        %904 = vmatpush1.xpose.msra.mxu0 0.0
        %905 = vmatprep.subr.mxu0 0.0
        %906 = vmatpush1.xpose.msra.mxu0 0.0
        %907 = vmatprep.subr.mxu0 0.0
        %908 = vmatpush1.xpose.msra.mxu0 0.0
        %909 = vmatprep.subr.mxu0 0.0
        %910 = vmatpush1.xpose.msra.mxu0 0.0
        %911 = vmatprep.subr.mxu0 0.0
        %912 = vmatpush1.xpose.msra.mxu0 0.0
        %913 = vmatprep.subr.mxu0 0.0
        %914 = vmatpush1.xpose.msra.mxu0 0.0
        %915 = vmatprep.subr.mxu0 0.0
        %916 = vmatpush1.xpose.msra.mxu0 0.0
        %917 = vmatprep.subr.mxu0 0.0
        %918 = vmatpush1.xpose.msra.mxu0 0.0
        %919 = vmatprep.subr.mxu0 0.0
        %920 = vmatpush1.xpose.msra.mxu0 0.0
        %921 = vmatprep.subr.mxu0 0.0
        %922 = vmatpush1.xpose.msra.mxu0 0.0
        %923 = vmatprep.subr.mxu0 0.0
        %924 = vmatpush1.xpose.msra.mxu0 0.0
        %925 = vmatprep.subr.mxu0 0.0
        %926 = vmatpush1.xpose.msra.mxu0 0.0
        %927 = vmatprep.subr.mxu0 0.0
        %928 = vmatpush1.xpose.msra.mxu0 0.0
        %929 = vmatprep.subr.mxu0 0.0
        %930 = vmatpush1.xpose.msra.mxu0 0.0
        %931 = vmatprep.subr.mxu0 0.0
        %932 = vmatpush1.xpose.msra.mxu0 0.0
        %933 = vmatprep.subr.mxu0 0.0
        %934 = vmatpush1.xpose.msra.mxu0 0.0
        %935 = vmatprep.subr.mxu0 0.0
        %936 = vmatpush1.xpose.msra.mxu0 0.0
        %937 = vmatprep.subr.mxu0 0.0
        %938 = vmatpush1.xpose.msra.mxu0 0.0
        %939 = vmatprep.mubr.f32.mxu0 0.0
        %940 = vmatmul.mubr.f32.gmra.mrb[0].mxu0 %v873
        %v941 = vpop.f32.mrb[0].mxu0
        %v942 = vadd.f32 0.0, %v941
        %v943 = vpop.f32.mrb[0].mxu0
        %944 = vdwg.mxu0
        %v945 = vmul.f32 %v942, 0.35355338
        %v946 = vsel %vm853, %v945, -inf
        %947 = vmax.xlane.f32.xlu0 %v946
        %v948 = vpop.xlane.xlu0 %947
        %v949 = vsub.f32 %v945, %v948
        %v950 = vmul.f32 %v949, 1.442695
        %v951 = vpow.pop %v950
        %v952 = vsel %vm853, %v951, 0.0
        %953 = vadd.xlane.f32.xlu0 %v952
        %v954 = vpop.xlane.xlu0 %953
        %v955 = vrcp.pop %v954
        %v956 = vmul.f32 %v951, %v955
        %v957 = vmul.f32 %v765, %v870
        %v959 = vsel %vm853, %v956, 0
        %961 = vmatprep.subr.mxu0 0.0
        %962 = vmatpush1.msra.mxu0 %v957
        %963 = vmatprep.subr.mxu0 0.0
        %964 = vmatpush1.msra.mxu0 0.0
        %965 = vmatprep.subr.mxu0 0.0
        %966 = vmatpush1.msra.mxu0 0.0
        %967 = vmatprep.subr.mxu0 0.0
        %968 = vmatpush1.msra.mxu0 0.0
        %969 = vmatprep.subr.mxu0 0.0
        %970 = vmatpush1.msra.mxu0 0.0
        %971 = vmatprep.subr.mxu0 0.0
        %972 = vmatpush1.msra.mxu0 0.0
        %973 = vmatprep.subr.mxu0 0.0
        %974 = vmatpush1.msra.mxu0 0.0
        %975 = vmatprep.subr.mxu0 0.0
        %976 = vmatpush1.msra.mxu0 0.0
        %977 = vmatprep.subr.mxu0 0.0
        %978 = vmatpush1.msra.mxu0 0.0
        %979 = vmatprep.subr.mxu0 0.0
        %980 = vmatpush1.msra.mxu0 0.0
        %981 = vmatprep.subr.mxu0 0.0
        %982 = vmatpush1.msra.mxu0 0.0
        %983 = vmatprep.subr.mxu0 0.0
        %984 = vmatpush1.msra.mxu0 0.0
        %985 = vmatprep.subr.mxu0 0.0
        %986 = vmatpush1.msra.mxu0 0.0
        %987 = vmatprep.subr.mxu0 0.0
        %988 = vmatpush1.msra.mxu0 0.0
        %989 = vmatprep.subr.mxu0 0.0
        %990 = vmatpush1.msra.mxu0 0.0
        %991 = vmatprep.subr.mxu0 0.0
        %992 = vmatpush1.msra.mxu0 0.0
        %993 = vmatprep.subr.mxu0 0.0
        %994 = vmatpush1.msra.mxu0 0.0
        %995 = vmatprep.subr.mxu0 0.0
        %996 = vmatpush1.msra.mxu0 0.0
        %997 = vmatprep.subr.mxu0 0.0
        %998 = vmatpush1.msra.mxu0 0.0
        %999 = vmatprep.subr.mxu0 0.0
        %1000 = vmatpush1.msra.mxu0 0.0
        %1001 = vmatprep.subr.mxu0 0.0
        %1002 = vmatpush1.msra.mxu0 0.0
        %1003 = vmatprep.subr.mxu0 0.0
        %1004 = vmatpush1.msra.mxu0 0.0
        %1005 = vmatprep.subr.mxu0 0.0
        %1006 = vmatpush1.msra.mxu0 0.0
        %1007 = vmatprep.subr.mxu0 0.0
        %1008 = vmatpush1.msra.mxu0 0.0
        %1009 = vmatprep.subr.mxu0 0.0
        %1010 = vmatpush1.msra.mxu0 0.0
        %1011 = vmatprep.subr.mxu0 0.0
        %1012 = vmatpush1.msra.mxu0 0.0
        %1013 = vmatprep.subr.mxu0 0.0
        %1014 = vmatpush1.msra.mxu0 0.0
        %1015 = vmatprep.subr.mxu0 0.0
        %1016 = vmatpush1.msra.mxu0 0.0
        %1017 = vmatprep.subr.mxu0 0.0
        %1018 = vmatpush1.msra.mxu0 0.0
        %1019 = vmatprep.subr.mxu0 0.0
        %1020 = vmatpush1.msra.mxu0 0.0
        %1021 = vmatprep.subr.mxu0 0.0
        %1022 = vmatpush1.msra.mxu0 0.0
        %1023 = vmatprep.subr.mxu0 0.0
        %1024 = vmatpush1.msra.mxu0 0.0
        %1025 = vmatprep.mubr.f32.mxu0 0.0
        %1026 = vmatmul.mubr.f32.gmra.mrb[0].mxu0 %v959
        %v1027 = vpop.f32.mrb[0].mxu0
        %v1028 = vadd.f32 0.0, %v1027
        %v1029 = vpop.f32.mrb[0].mxu0
        %1030 = vdwg.mxu0
        %v1032 = vsel %vm853, %v864, 0
        %1034 = vmatprep.subr.mxu0 0.0
        %1035 = vmatpush1.msra.mxu0 %v865
        %1036 = vmatprep.subr.mxu0 0.0
        %1037 = vmatpush1.msra.mxu0 0.0
        %1038 = vmatprep.subr.mxu0 0.0
        %1039 = vmatpush1.msra.mxu0 0.0
        %1040 = vmatprep.subr.mxu0 0.0
        %1041 = vmatpush1.msra.mxu0 0.0
        %1042 = vmatprep.subr.mxu0 0.0
        %1043 = vmatpush1.msra.mxu0 0.0
        %1044 = vmatprep.subr.mxu0 0.0
        %1045 = vmatpush1.msra.mxu0 0.0
        %1046 = vmatprep.subr.mxu0 0.0
        %1047 = vmatpush1.msra.mxu0 0.0
        %1048 = vmatprep.subr.mxu0 0.0
        %1049 = vmatpush1.msra.mxu0 0.0
        %1050 = vmatprep.subr.mxu0 0.0
        %1051 = vmatpush1.msra.mxu0 0.0
        %1052 = vmatprep.subr.mxu0 0.0
        %1053 = vmatpush1.msra.mxu0 0.0
        %1054 = vmatprep.subr.mxu0 0.0
        %1055 = vmatpush1.msra.mxu0 0.0
        %1056 = vmatprep.subr.mxu0 0.0
        %1057 = vmatpush1.msra.mxu0 0.0
        %1058 = vmatprep.subr.mxu0 0.0
        %1059 = vmatpush1.msra.mxu0 0.0
        %1060 = vmatprep.subr.mxu0 0.0
        %1061 = vmatpush1.msra.mxu0 0.0
        %1062 = vmatprep.subr.mxu0 0.0
        %1063 = vmatpush1.msra.mxu0 0.0
        %1064 = vmatprep.subr.mxu0 0.0
        %1065 = vmatpush1.msra.mxu0 0.0
        %1066 = vmatprep.subr.mxu0 0.0
        %1067 = vmatpush1.msra.mxu0 0.0
        %1068 = vmatprep.subr.mxu0 0.0
        %1069 = vmatpush1.msra.mxu0 0.0
        %1070 = vmatprep.subr.mxu0 0.0
        %1071 = vmatpush1.msra.mxu0 0.0
        %1072 = vmatprep.subr.mxu0 0.0
        %1073 = vmatpush1.msra.mxu0 0.0
        %1074 = vmatprep.subr.mxu0 0.0
        %1075 = vmatpush1.msra.mxu0 0.0
        %1076 = vmatprep.subr.mxu0 0.0
        %1077 = vmatpush1.msra.mxu0 0.0
        %1078 = vmatprep.subr.mxu0 0.0
        %1079 = vmatpush1.msra.mxu0 0.0
        %1080 = vmatprep.subr.mxu0 0.0
        %1081 = vmatpush1.msra.mxu0 0.0
        %1082 = vmatprep.subr.mxu0 0.0
        %1083 = vmatpush1.msra.mxu0 0.0
        %1084 = vmatprep.subr.mxu0 0.0
        %1085 = vmatpush1.msra.mxu0 0.0
        %1086 = vmatprep.subr.mxu0 0.0
        %1087 = vmatpush1.msra.mxu0 0.0
        %1088 = vmatprep.subr.mxu0 0.0
        %1089 = vmatpush1.msra.mxu0 0.0
        %1090 = vmatprep.subr.mxu0 0.0
        %1091 = vmatpush1.msra.mxu0 0.0
        %1092 = vmatprep.subr.mxu0 0.0
        %1093 = vmatpush1.msra.mxu0 0.0
        %1094 = vmatprep.subr.mxu0 0.0
        %1095 = vmatpush1.msra.mxu0 0.0
        %1096 = vmatprep.subr.mxu0 0.0
        %1097 = vmatpush1.msra.mxu0 0.0
        %1098 = vmatprep.mubr.f32.mxu0 0.0
        %1099 = vmatmul.mubr.f32.gmra.mrb[0].mxu0 %v1032
        %v1100 = vpop.f32.mrb[0].mxu0
        %v1101 = vadd.f32 %v1028, %v1100
        %v1102 = vpop.f32.mrb[0].mxu0
        %1103 = vdwg.mxu0
        %vm1104 = vcmp.ge.s32.totalorder %v769, 16
        %vm1105 = vcmp.lt.s32.totalorder %v769, 24
        %vm1106 = vmand %vm1104, %vm1105
        %v1107 = vsel %vm1106, 1, 0
        %v1108 = vcvt.s32.f32 %v1107
        %v1109 = vmul.f32 %v603, %v1108
        %v1111 = vsel %vm493, %v1109, 0
        %1113 = vmatprep.subr.mxu0 0.0
        %1114 = vmatpush1.xpose.msra.mxu0 %v780
        %1115 = vmatprep.subr.mxu0 0.0
        %1116 = vmatpush1.xpose.msra.mxu0 0.0
        %1117 = vmatprep.subr.mxu0 0.0
        %1118 = vmatpush1.xpose.msra.mxu0 0.0
        %1119 = vmatprep.subr.mxu0 0.0
        %1120 = vmatpush1.xpose.msra.mxu0 0.0
        %1121 = vmatprep.subr.mxu0 0.0
        %1122 = vmatpush1.xpose.msra.mxu0 0.0
        %1123 = vmatprep.subr.mxu0 0.0
        %1124 = vmatpush1.xpose.msra.mxu0 0.0
        %1125 = vmatprep.subr.mxu0 0.0
        %1126 = vmatpush1.xpose.msra.mxu0 0.0
        %1127 = vmatprep.subr.mxu0 0.0
        %1128 = vmatpush1.xpose.msra.mxu0 0.0
        %1129 = vmatprep.subr.mxu0 0.0
        %1130 = vmatpush1.xpose.msra.mxu0 0.0
        %1131 = vmatprep.subr.mxu0 0.0
        %1132 = vmatpush1.xpose.msra.mxu0 0.0
        %1133 = vmatprep.subr.mxu0 0.0
        %1134 = vmatpush1.xpose.msra.mxu0 0.0
        %1135 = vmatprep.subr.mxu0 0.0
        %1136 = vmatpush1.xpose.msra.mxu0 0.0
        %1137 = vmatprep.subr.mxu0 0.0
        %1138 = vmatpush1.xpose.msra.mxu0 0.0
        %1139 = vmatprep.subr.mxu0 0.0
        %1140 = vmatpush1.xpose.msra.mxu0 0.0
        %1141 = vmatprep.subr.mxu0 0.0
        %1142 = vmatpush1.xpose.msra.mxu0 0.0
        %1143 = vmatprep.subr.mxu0 0.0
        %1144 = vmatpush1.xpose.msra.mxu0 0.0
        %1145 = vmatprep.subr.mxu0 0.0
        %1146 = vmatpush1.xpose.msra.mxu0 0.0
        %1147 = vmatprep.subr.mxu0 0.0
        %1148 = vmatpush1.xpose.msra.mxu0 0.0
        %1149 = vmatprep.subr.mxu0 0.0
        %1150 = vmatpush1.xpose.msra.mxu0 0.0
        %1151 = vmatprep.subr.mxu0 0.0
        %1152 = vmatpush1.xpose.msra.mxu0 0.0
        %1153 = vmatprep.subr.mxu0 0.0
        %1154 = vmatpush1.xpose.msra.mxu0 0.0
        %1155 = vmatprep.subr.mxu0 0.0
        %1156 = vmatpush1.xpose.msra.mxu0 0.0
        %1157 = vmatprep.subr.mxu0 0.0
        %1158 = vmatpush1.xpose.msra.mxu0 0.0
        %1159 = vmatprep.subr.mxu0 0.0
        %1160 = vmatpush1.xpose.msra.mxu0 0.0
        %1161 = vmatprep.subr.mxu0 0.0
        %1162 = vmatpush1.xpose.msra.mxu0 0.0
        %1163 = vmatprep.subr.mxu0 0.0
        %1164 = vmatpush1.xpose.msra.mxu0 0.0
        %1165 = vmatprep.subr.mxu0 0.0
        %1166 = vmatpush1.xpose.msra.mxu0 0.0
        %1167 = vmatprep.subr.mxu0 0.0
        %1168 = vmatpush1.xpose.msra.mxu0 0.0
        %1169 = vmatprep.subr.mxu0 0.0
        %1170 = vmatpush1.xpose.msra.mxu0 0.0
        %1171 = vmatprep.subr.mxu0 0.0
        %1172 = vmatpush1.xpose.msra.mxu0 0.0
        %1173 = vmatprep.subr.mxu0 0.0
        %1174 = vmatpush1.xpose.msra.mxu0 0.0
        %1175 = vmatprep.subr.mxu0 0.0
        %1176 = vmatpush1.xpose.msra.mxu0 0.0
        %1177 = vmatprep.mubr.f32.mxu0 0.0
        %1178 = vmatmul.mubr.f32.gmra.mrb[0].mxu0 %v1111
        %v1179 = vpop.f32.mrb[0].mxu0
        %v1180 = vadd.f32 0.0, %v1179
        %v1181 = vpop.f32.mrb[0].mxu0
        %1182 = vdwg.mxu0
        %v1183 = vmul.f32 %v1180, 0.35355338
        %v1184 = vsel %vm853, %v1183, -inf
        %1185 = vmax.xlane.f32.xlu0 %v1184
        %v1186 = vpop.xlane.xlu0 %1185
        %v1187 = vsub.f32 %v1183, %v1186
        %v1188 = vmul.f32 %v1187, 1.442695
        %v1189 = vpow.pop %v1188
        %v1190 = vsel %vm853, %v1189, 0.0
        %1191 = vadd.xlane.f32.xlu0 %v1190
        %v1192 = vpop.xlane.xlu0 %1191
        %v1193 = vrcp.pop %v1192
        %v1194 = vmul.f32 %v1189, %v1193
        %v1195 = vmul.f32 %v765, %v1108
        %v1197 = vsel %vm853, %v1194, 0
        %1199 = vmatprep.subr.mxu0 0.0
        %1200 = vmatpush1.msra.mxu0 %v1195
        %1201 = vmatprep.subr.mxu0 0.0
        %1202 = vmatpush1.msra.mxu0 0.0
        %1203 = vmatprep.subr.mxu0 0.0
        %1204 = vmatpush1.msra.mxu0 0.0
        %1205 = vmatprep.subr.mxu0 0.0
        %1206 = vmatpush1.msra.mxu0 0.0
        %1207 = vmatprep.subr.mxu0 0.0
        %1208 = vmatpush1.msra.mxu0 0.0
        %1209 = vmatprep.subr.mxu0 0.0
        %1210 = vmatpush1.msra.mxu0 0.0
        %1211 = vmatprep.subr.mxu0 0.0
        %1212 = vmatpush1.msra.mxu0 0.0
        %1213 = vmatprep.subr.mxu0 0.0
        %1214 = vmatpush1.msra.mxu0 0.0
        %1215 = vmatprep.subr.mxu0 0.0
        %1216 = vmatpush1.msra.mxu0 0.0
        %1217 = vmatprep.subr.mxu0 0.0
        %1218 = vmatpush1.msra.mxu0 0.0
        %1219 = vmatprep.subr.mxu0 0.0
        %1220 = vmatpush1.msra.mxu0 0.0
        %1221 = vmatprep.subr.mxu0 0.0
        %1222 = vmatpush1.msra.mxu0 0.0
        %1223 = vmatprep.subr.mxu0 0.0
        %1224 = vmatpush1.msra.mxu0 0.0
        %1225 = vmatprep.subr.mxu0 0.0
        %1226 = vmatpush1.msra.mxu0 0.0
        %1227 = vmatprep.subr.mxu0 0.0
        %1228 = vmatpush1.msra.mxu0 0.0
        %1229 = vmatprep.subr.mxu0 0.0
        %1230 = vmatpush1.msra.mxu0 0.0
        %1231 = vmatprep.subr.mxu0 0.0
        %1232 = vmatpush1.msra.mxu0 0.0
        %1233 = vmatprep.subr.mxu0 0.0
        %1234 = vmatpush1.msra.mxu0 0.0
        %1235 = vmatprep.subr.mxu0 0.0
        %1236 = vmatpush1.msra.mxu0 0.0
        %1237 = vmatprep.subr.mxu0 0.0
        %1238 = vmatpush1.msra.mxu0 0.0
        %1239 = vmatprep.subr.mxu0 0.0
        %1240 = vmatpush1.msra.mxu0 0.0
        %1241 = vmatprep.subr.mxu0 0.0
        %1242 = vmatpush1.msra.mxu0 0.0
        %1243 = vmatprep.subr.mxu0 0.0
        %1244 = vmatpush1.msra.mxu0 0.0
        %1245 = vmatprep.subr.mxu0 0.0
        %1246 = vmatpush1.msra.mxu0 0.0
        %1247 = vmatprep.subr.mxu0 0.0
        %1248 = vmatpush1.msra.mxu0 0.0
        %1249 = vmatprep.subr.mxu0 0.0
        %1250 = vmatpush1.msra.mxu0 0.0
        %1251 = vmatprep.subr.mxu0 0.0
        %1252 = vmatpush1.msra.mxu0 0.0
        %1253 = vmatprep.subr.mxu0 0.0
        %1254 = vmatpush1.msra.mxu0 0.0
        %1255 = vmatprep.subr.mxu0 0.0
        %1256 = vmatpush1.msra.mxu0 0.0
        %1257 = vmatprep.subr.mxu0 0.0
        %1258 = vmatpush1.msra.mxu0 0.0
        %1259 = vmatprep.subr.mxu0 0.0
        %1260 = vmatpush1.msra.mxu0 0.0
        %1261 = vmatprep.subr.mxu0 0.0
        %1262 = vmatpush1.msra.mxu0 0.0
        %1263 = vmatprep.mubr.f32.mxu0 0.0
        %1264 = vmatmul.mubr.f32.gmra.mrb[0].mxu0 %v1197
        %v1265 = vpop.f32.mrb[0].mxu0
        %v1266 = vadd.f32 0.0, %v1265
        %v1267 = vpop.f32.mrb[0].mxu0
        %1268 = vdwg.mxu0
        %v1269 = vadd.f32 %v1101, %v1266
        %vm1270 = vcmp.ge.s32.totalorder %v769, 24
        %vm1271 = vcmp.lt.s32.totalorder %v769, 32
        %vm1272 = vmand %vm1270, %vm1271
        %v1273 = vsel %vm1272, 1, 0
        %v1274 = vcvt.s32.f32 %v1273
        %v1275 = vmul.f32 %v603, %v1274
        %v1277 = vsel %vm493, %v1275, 0
        %1279 = vmatprep.subr.mxu0 0.0
        %1280 = vmatpush1.xpose.msra.mxu0 %v780
        %1281 = vmatprep.subr.mxu0 0.0
        %1282 = vmatpush1.xpose.msra.mxu0 0.0
        %1283 = vmatprep.subr.mxu0 0.0
        %1284 = vmatpush1.xpose.msra.mxu0 0.0
        %1285 = vmatprep.subr.mxu0 0.0
        %1286 = vmatpush1.xpose.msra.mxu0 0.0
        %1287 = vmatprep.subr.mxu0 0.0
        %1288 = vmatpush1.xpose.msra.mxu0 0.0
        %1289 = vmatprep.subr.mxu0 0.0
        %1290 = vmatpush1.xpose.msra.mxu0 0.0
        %1291 = vmatprep.subr.mxu0 0.0
        %1292 = vmatpush1.xpose.msra.mxu0 0.0
        %1293 = vmatprep.subr.mxu0 0.0
        %1294 = vmatpush1.xpose.msra.mxu0 0.0
        %1295 = vmatprep.subr.mxu0 0.0
        %1296 = vmatpush1.xpose.msra.mxu0 0.0
        %1297 = vmatprep.subr.mxu0 0.0
        %1298 = vmatpush1.xpose.msra.mxu0 0.0
        %1299 = vmatprep.subr.mxu0 0.0
        %1300 = vmatpush1.xpose.msra.mxu0 0.0
        %1301 = vmatprep.subr.mxu0 0.0
        %1302 = vmatpush1.xpose.msra.mxu0 0.0
        %1303 = vmatprep.subr.mxu0 0.0
        %1304 = vmatpush1.xpose.msra.mxu0 0.0
        %1305 = vmatprep.subr.mxu0 0.0
        %1306 = vmatpush1.xpose.msra.mxu0 0.0
        %1307 = vmatprep.subr.mxu0 0.0
        %1308 = vmatpush1.xpose.msra.mxu0 0.0
        %1309 = vmatprep.subr.mxu0 0.0
        %1310 = vmatpush1.xpose.msra.mxu0 0.0
        %1311 = vmatprep.subr.mxu0 0.0
        %1312 = vmatpush1.xpose.msra.mxu0 0.0
        %1313 = vmatprep.subr.mxu0 0.0
        %1314 = vmatpush1.xpose.msra.mxu0 0.0
        %1315 = vmatprep.subr.mxu0 0.0
        %1316 = vmatpush1.xpose.msra.mxu0 0.0
        %1317 = vmatprep.subr.mxu0 0.0
        %1318 = vmatpush1.xpose.msra.mxu0 0.0
        %1319 = vmatprep.subr.mxu0 0.0
        %1320 = vmatpush1.xpose.msra.mxu0 0.0
        %1321 = vmatprep.subr.mxu0 0.0
        %1322 = vmatpush1.xpose.msra.mxu0 0.0
        %1323 = vmatprep.subr.mxu0 0.0
        %1324 = vmatpush1.xpose.msra.mxu0 0.0
        %1325 = vmatprep.subr.mxu0 0.0
        %1326 = vmatpush1.xpose.msra.mxu0 0.0
        %1327 = vmatprep.subr.mxu0 0.0
        %1328 = vmatpush1.xpose.msra.mxu0 0.0
        %1329 = vmatprep.subr.mxu0 0.0
        %1330 = vmatpush1.xpose.msra.mxu0 0.0
        %1331 = vmatprep.subr.mxu0 0.0
        %1332 = vmatpush1.xpose.msra.mxu0 0.0
        %1333 = vmatprep.subr.mxu0 0.0
        %1334 = vmatpush1.xpose.msra.mxu0 0.0
        %1335 = vmatprep.subr.mxu0 0.0
        %1336 = vmatpush1.xpose.msra.mxu0 0.0
        %1337 = vmatprep.subr.mxu0 0.0
        %1338 = vmatpush1.xpose.msra.mxu0 0.0
        %1339 = vmatprep.subr.mxu0 0.0
        %1340 = vmatpush1.xpose.msra.mxu0 0.0
        %1341 = vmatprep.subr.mxu0 0.0
        %1342 = vmatpush1.xpose.msra.mxu0 0.0
        %1343 = vmatprep.mubr.f32.mxu0 0.0
        %1344 = vmatmul.mubr.f32.gmra.mrb[0].mxu0 %v1277
        %v1345 = vpop.f32.mrb[0].mxu0
        %v1346 = vadd.f32 0.0, %v1345
        %v1347 = vpop.f32.mrb[0].mxu0
        %1348 = vdwg.mxu0
        %v1349 = vmul.f32 %v1346, 0.35355338
        %v1350 = vsel %vm853, %v1349, -inf
        %1351 = vmax.xlane.f32.xlu0 %v1350
        %v1352 = vpop.xlane.xlu0 %1351
        %v1353 = vsub.f32 %v1349, %v1352
        %v1354 = vmul.f32 %v1353, 1.442695
        %v1355 = vpow.pop %v1354
        %v1356 = vsel %vm853, %v1355, 0.0
        %1357 = vadd.xlane.f32.xlu0 %v1356
        %v1358 = vpop.xlane.xlu0 %1357
        %v1359 = vrcp.pop %v1358
        %v1360 = vmul.f32 %v1355, %v1359
        %v1361 = vmul.f32 %v765, %v1274
        %v1363 = vsel %vm853, %v1360, 0
        %1365 = vmatprep.subr.mxu0 0.0
        %1366 = vmatpush1.msra.mxu0 %v1361
        %1367 = vmatprep.subr.mxu0 0.0
        %1368 = vmatpush1.msra.mxu0 0.0
        %1369 = vmatprep.subr.mxu0 0.0
        %1370 = vmatpush1.msra.mxu0 0.0
        %1371 = vmatprep.subr.mxu0 0.0
        %1372 = vmatpush1.msra.mxu0 0.0
        %1373 = vmatprep.subr.mxu0 0.0
        %1374 = vmatpush1.msra.mxu0 0.0
        %1375 = vmatprep.subr.mxu0 0.0
        %1376 = vmatpush1.msra.mxu0 0.0
        %1377 = vmatprep.subr.mxu0 0.0
        %1378 = vmatpush1.msra.mxu0 0.0
        %1379 = vmatprep.subr.mxu0 0.0
        %1380 = vmatpush1.msra.mxu0 0.0
        %1381 = vmatprep.subr.mxu0 0.0
        %1382 = vmatpush1.msra.mxu0 0.0
        %1383 = vmatprep.subr.mxu0 0.0
        %1384 = vmatpush1.msra.mxu0 0.0
        %1385 = vmatprep.subr.mxu0 0.0
        %1386 = vmatpush1.msra.mxu0 0.0
        %1387 = vmatprep.subr.mxu0 0.0
        %1388 = vmatpush1.msra.mxu0 0.0
        %1389 = vmatprep.subr.mxu0 0.0
        %1390 = vmatpush1.msra.mxu0 0.0
        %1391 = vmatprep.subr.mxu0 0.0
        %1392 = vmatpush1.msra.mxu0 0.0
        %1393 = vmatprep.subr.mxu0 0.0
        %1394 = vmatpush1.msra.mxu0 0.0
        %1395 = vmatprep.subr.mxu0 0.0
        %1396 = vmatpush1.msra.mxu0 0.0
        %1397 = vmatprep.subr.mxu0 0.0
        %1398 = vmatpush1.msra.mxu0 0.0
        %1399 = vmatprep.subr.mxu0 0.0
        %1400 = vmatpush1.msra.mxu0 0.0
        %1401 = vmatprep.subr.mxu0 0.0
        %1402 = vmatpush1.msra.mxu0 0.0
        %1403 = vmatprep.subr.mxu0 0.0
        %1404 = vmatpush1.msra.mxu0 0.0
        %1405 = vmatprep.subr.mxu0 0.0
        %1406 = vmatpush1.msra.mxu0 0.0
        %1407 = vmatprep.subr.mxu0 0.0
        %1408 = vmatpush1.msra.mxu0 0.0
        %1409 = vmatprep.subr.mxu0 0.0
        %1410 = vmatpush1.msra.mxu0 0.0
        %1411 = vmatprep.subr.mxu0 0.0
        %1412 = vmatpush1.msra.mxu0 0.0
        %1413 = vmatprep.subr.mxu0 0.0
        %1414 = vmatpush1.msra.mxu0 0.0
        %1415 = vmatprep.subr.mxu0 0.0
        %1416 = vmatpush1.msra.mxu0 0.0
        %1417 = vmatprep.subr.mxu0 0.0
        %1418 = vmatpush1.msra.mxu0 0.0
        %1419 = vmatprep.subr.mxu0 0.0
        %1420 = vmatpush1.msra.mxu0 0.0
        %1421 = vmatprep.subr.mxu0 0.0
        %1422 = vmatpush1.msra.mxu0 0.0
        %1423 = vmatprep.subr.mxu0 0.0
        %1424 = vmatpush1.msra.mxu0 0.0
        %1425 = vmatprep.subr.mxu0 0.0
        %1426 = vmatpush1.msra.mxu0 0.0
        %1427 = vmatprep.subr.mxu0 0.0
        %1428 = vmatpush1.msra.mxu0 0.0
        %1429 = vmatprep.mubr.f32.mxu0 0.0
        %1430 = vmatmul.mubr.f32.gmra.mrb[0].mxu0 %v1363
        %v1431 = vpop.f32.mrb[0].mxu0
        %v1432 = vadd.f32 0.0, %v1431
        %v1433 = vpop.f32.mrb[0].mxu0
        %1434 = vdwg.mxu0
        %v1435 = vadd.f32 %v1269, %v1432
        %v1436 = vld [vmem:[%s9] sm:$0xff]
        %v1437 = vld [vmem:[%s9 + $0x8] sm:$0xff]
        %v1438 = vld [vmem:[%s9 + $0x10] sm:$0xff]
        %v1439 = vld [vmem:[%s9 + $0x18] sm:$0xff]
        %v1440 = vld [vmem:[%s10] sm:$0x1]
        %v1441 = vld [vmem:[%s11] sm:$0xff]
        %v1442 = vld [vmem:[%s11 + $0x8] sm:$0xff]
        %v1443 = vld [vmem:[%s11 + $0x10] sm:$0xff]
        %v1444 = vld [vmem:[%s11 + $0x18] sm:$0xff]
        %v1445 = vld [vmem:[%s12] sm:$0x1]
        %v1446 = vld [vmem:[%s13] sm:$0xff]
        %v1447 = vld [vmem:[%s13 + $0x8] sm:$0xff]
        %v1448 = vld [vmem:[%s13 + $0x10] sm:$0xff]
        %v1449 = vld [vmem:[%s13 + $0x18] sm:$0xff]
        %v1450 = vld [vmem:[%s13 + $0x20] sm:$0xff]
        %v1451 = vld [vmem:[%s13 + $0x28] sm:$0xff]
        %v1452 = vld [vmem:[%s13 + $0x30] sm:$0xff]
        %v1453 = vld [vmem:[%s13 + $0x38] sm:$0xff]
        %v1454 = vld [vmem:[%s14] sm:$0x1]
        %v1456 = vlaneseq
        %v1457 = vshrl.u32 %v1456, 7
        %v1458 = vsub.s32 0, %v1457
        %v1459 = vrot.slane %v1440, %v1458
        %v1462 = vsel %vm493, %v1435, 0
        %1464 = vmatprep.subr.mxu0 0.0
        %1465 = vmatpush1.msra.mxu0 %v1436
        %1466 = vmatprep.subr.mxu0 0.0
        %1467 = vmatpush1.msra.mxu0 %v1437
        %1468 = vmatprep.subr.mxu0 0.0
        %1469 = vmatpush1.msra.mxu0 %v1438
        %1470 = vmatprep.subr.mxu0 0.0
        %1471 = vmatpush1.msra.mxu0 %v1439
        %1472 = vmatprep.subr.mxu0 0.0
        %1473 = vmatpush1.msra.mxu0 0.0
        %1474 = vmatprep.subr.mxu0 0.0
        %1475 = vmatpush1.msra.mxu0 0.0
        %1476 = vmatprep.subr.mxu0 0.0
        %1477 = vmatpush1.msra.mxu0 0.0
        %1478 = vmatprep.subr.mxu0 0.0
        %1479 = vmatpush1.msra.mxu0 0.0
        %1480 = vmatprep.subr.mxu0 0.0
        %1481 = vmatpush1.msra.mxu0 0.0
        %1482 = vmatprep.subr.mxu0 0.0
        %1483 = vmatpush1.msra.mxu0 0.0
        %1484 = vmatprep.subr.mxu0 0.0
        %1485 = vmatpush1.msra.mxu0 0.0
        %1486 = vmatprep.subr.mxu0 0.0
        %1487 = vmatpush1.msra.mxu0 0.0
        %1488 = vmatprep.subr.mxu0 0.0
        %1489 = vmatpush1.msra.mxu0 0.0
        %1490 = vmatprep.subr.mxu0 0.0
        %1491 = vmatpush1.msra.mxu0 0.0
        %1492 = vmatprep.subr.mxu0 0.0
        %1493 = vmatpush1.msra.mxu0 0.0
        %1494 = vmatprep.subr.mxu0 0.0
        %1495 = vmatpush1.msra.mxu0 0.0
        %1496 = vmatprep.subr.mxu0 0.0
        %1497 = vmatpush1.msra.mxu0 0.0
        %1498 = vmatprep.subr.mxu0 0.0
        %1499 = vmatpush1.msra.mxu0 0.0
        %1500 = vmatprep.subr.mxu0 0.0
        %1501 = vmatpush1.msra.mxu0 0.0
        %1502 = vmatprep.subr.mxu0 0.0
        %1503 = vmatpush1.msra.mxu0 0.0
        %1504 = vmatprep.subr.mxu0 0.0
        %1505 = vmatpush1.msra.mxu0 0.0
        %1506 = vmatprep.subr.mxu0 0.0
        %1507 = vmatpush1.msra.mxu0 0.0
        %1508 = vmatprep.subr.mxu0 0.0
        %1509 = vmatpush1.msra.mxu0 0.0
        %1510 = vmatprep.subr.mxu0 0.0
        %1511 = vmatpush1.msra.mxu0 0.0
        %1512 = vmatprep.subr.mxu0 0.0
        %1513 = vmatpush1.msra.mxu0 0.0
        %1514 = vmatprep.subr.mxu0 0.0
        %1515 = vmatpush1.msra.mxu0 0.0
        %1516 = vmatprep.subr.mxu0 0.0
        %1517 = vmatpush1.msra.mxu0 0.0
        %1518 = vmatprep.subr.mxu0 0.0
        %1519 = vmatpush1.msra.mxu0 0.0
        %1520 = vmatprep.subr.mxu0 0.0
        %1521 = vmatpush1.msra.mxu0 0.0
        %1522 = vmatprep.subr.mxu0 0.0
        %1523 = vmatpush1.msra.mxu0 0.0
        %1524 = vmatprep.subr.mxu0 0.0
        %1525 = vmatpush1.msra.mxu0 0.0
        %1526 = vmatprep.subr.mxu0 0.0
        %1527 = vmatpush1.msra.mxu0 0.0
        %1528 = vmatprep.mubr.f32.mxu0 0.0
        %1529 = vmatmul.mubr.f32.gmra.mrb[0].mxu0 %v1462
        %v1530 = vpop.f32.mrb[0].mxu0
        %v1531 = vadd.f32 %v1459, %v1530
        %v1532 = vpop.f32.mrb[0].mxu0
        %1533 = vdwg.mxu0
        %v1534 = vadd.f32 %v1531, %v521
        %v1536 = vlaneseq
        %v1537 = vshrl.u32 %v1536, 7
        %v1538 = vsub.s32 0, %v1537
        %v1539 = vrot.slane %v1445, %v1538
        %v1542 = vsel %vm493, %v1534, 0
        %1544 = vmatprep.subr.mxu0 0.0
        %1545 = vmatpush1.msra.mxu0 %v1441
        %1546 = vmatprep.subr.mxu0 0.0
        %1547 = vmatpush1.msra.mxu0 %v1442
        %1548 = vmatprep.subr.mxu0 0.0
        %1549 = vmatpush1.msra.mxu0 %v1443
        %1550 = vmatprep.subr.mxu0 0.0
        %1551 = vmatpush1.msra.mxu0 %v1444
        %1552 = vmatprep.subr.mxu0 0.0
        %1553 = vmatpush1.msra.mxu0 0.0
        %1554 = vmatprep.subr.mxu0 0.0
        %1555 = vmatpush1.msra.mxu0 0.0
        %1556 = vmatprep.subr.mxu0 0.0
        %1557 = vmatpush1.msra.mxu0 0.0
        %1558 = vmatprep.subr.mxu0 0.0
        %1559 = vmatpush1.msra.mxu0 0.0
        %1560 = vmatprep.subr.mxu0 0.0
        %1561 = vmatpush1.msra.mxu0 0.0
        %1562 = vmatprep.subr.mxu0 0.0
        %1563 = vmatpush1.msra.mxu0 0.0
        %1564 = vmatprep.subr.mxu0 0.0
        %1565 = vmatpush1.msra.mxu0 0.0
        %1566 = vmatprep.subr.mxu0 0.0
        %1567 = vmatpush1.msra.mxu0 0.0
        %1568 = vmatprep.subr.mxu0 0.0
        %1569 = vmatpush1.msra.mxu0 0.0
        %1570 = vmatprep.subr.mxu0 0.0
        %1571 = vmatpush1.msra.mxu0 0.0
        %1572 = vmatprep.subr.mxu0 0.0
        %1573 = vmatpush1.msra.mxu0 0.0
        %1574 = vmatprep.subr.mxu0 0.0
        %1575 = vmatpush1.msra.mxu0 0.0
        %1576 = vmatprep.subr.mxu0 0.0
        %1577 = vmatpush1.msra.mxu0 0.0
        %1578 = vmatprep.subr.mxu0 0.0
        %1579 = vmatpush1.msra.mxu0 0.0
        %1580 = vmatprep.subr.mxu0 0.0
        %1581 = vmatpush1.msra.mxu0 0.0
        %1582 = vmatprep.subr.mxu0 0.0
        %1583 = vmatpush1.msra.mxu0 0.0
        %1584 = vmatprep.subr.mxu0 0.0
        %1585 = vmatpush1.msra.mxu0 0.0
        %1586 = vmatprep.subr.mxu0 0.0
        %1587 = vmatpush1.msra.mxu0 0.0
        %1588 = vmatprep.subr.mxu0 0.0
        %1589 = vmatpush1.msra.mxu0 0.0
        %1590 = vmatprep.subr.mxu0 0.0
        %1591 = vmatpush1.msra.mxu0 0.0
        %1592 = vmatprep.subr.mxu0 0.0
        %1593 = vmatpush1.msra.mxu0 0.0
        %1594 = vmatprep.subr.mxu0 0.0
        %1595 = vmatpush1.msra.mxu0 0.0
        %1596 = vmatprep.subr.mxu0 0.0
        %1597 = vmatpush1.msra.mxu0 0.0
        %1598 = vmatprep.subr.mxu0 0.0
        %1599 = vmatpush1.msra.mxu0 0.0
        %1600 = vmatprep.subr.mxu0 0.0
        %1601 = vmatpush1.msra.mxu0 0.0
        %1602 = vmatprep.subr.mxu0 0.0
        %1603 = vmatpush1.msra.mxu0 0.0
        %1604 = vmatprep.subr.mxu0 0.0
        %1605 = vmatpush1.msra.mxu0 0.0
        %1606 = vmatprep.subr.mxu0 0.0
        %1607 = vmatpush1.msra.mxu0 0.0
        %1608 = vmatprep.mubr.f32.mxu0 0.0
        %1609 = vmatmul.mubr.f32.gmra.mrb[0].mxu0 %v1542
        %v1610 = vpop.f32.mrb[0].mxu0
        %v1611 = vadd.f32 %v1539, %v1610
        %v1612 = vpop.f32.mrb[0].mxu0
        %1613 = vdwg.mxu0
        %v1614 = vmul.f32 %v1611, 0.5
        %v1615 = vmul.f32 %v1611, 0.70710677
        %v1616 = verf.f32.pop %v1615
        %v1617 = vadd.f32 %v1616, 1.0
        %v1618 = vmul.f32 %v1614, %v1617
        %v1620 = vlaneseq
        %v1621 = vshrl.u32 %v1620, 7
        %v1622 = vsub.s32 0, %v1621
        %v1623 = vrot.slane %v1454, %v1622
        %vm1625 = vcmask 523264
        %v1627 = vsel %vm1625, %v1618, 0
        %1629 = vmatprep.subr.mxu0 0.0
        %1630 = vmatpush1.msra.mxu0 %v1446
        %1631 = vmatprep.subr.mxu0 0.0
        %1632 = vmatpush1.msra.mxu0 %v1447
        %1633 = vmatprep.subr.mxu0 0.0
        %1634 = vmatpush1.msra.mxu0 %v1448
        %1635 = vmatprep.subr.mxu0 0.0
        %1636 = vmatpush1.msra.mxu0 %v1449
        %1637 = vmatprep.subr.mxu0 0.0
        %1638 = vmatpush1.msra.mxu0 %v1450
        %1639 = vmatprep.subr.mxu0 0.0
        %1640 = vmatpush1.msra.mxu0 %v1451
        %1641 = vmatprep.subr.mxu0 0.0
        %1642 = vmatpush1.msra.mxu0 %v1452
        %1643 = vmatprep.subr.mxu0 0.0
        %1644 = vmatpush1.msra.mxu0 %v1453
        %1645 = vmatprep.subr.mxu0 0.0
        %1646 = vmatpush1.msra.mxu0 0.0
        %1647 = vmatprep.subr.mxu0 0.0
        %1648 = vmatpush1.msra.mxu0 0.0
        %1649 = vmatprep.subr.mxu0 0.0
        %1650 = vmatpush1.msra.mxu0 0.0
        %1651 = vmatprep.subr.mxu0 0.0
        %1652 = vmatpush1.msra.mxu0 0.0
        %1653 = vmatprep.subr.mxu0 0.0
        %1654 = vmatpush1.msra.mxu0 0.0
        %1655 = vmatprep.subr.mxu0 0.0
        %1656 = vmatpush1.msra.mxu0 0.0
        %1657 = vmatprep.subr.mxu0 0.0
        %1658 = vmatpush1.msra.mxu0 0.0
        %1659 = vmatprep.subr.mxu0 0.0
        %1660 = vmatpush1.msra.mxu0 0.0
        %1661 = vmatprep.subr.mxu0 0.0
        %1662 = vmatpush1.msra.mxu0 0.0
        %1663 = vmatprep.subr.mxu0 0.0
        %1664 = vmatpush1.msra.mxu0 0.0
        %1665 = vmatprep.subr.mxu0 0.0
        %1666 = vmatpush1.msra.mxu0 0.0
        %1667 = vmatprep.subr.mxu0 0.0
        %1668 = vmatpush1.msra.mxu0 0.0
        %1669 = vmatprep.subr.mxu0 0.0
        %1670 = vmatpush1.msra.mxu0 0.0
        %1671 = vmatprep.subr.mxu0 0.0
        %1672 = vmatpush1.msra.mxu0 0.0
        %1673 = vmatprep.subr.mxu0 0.0
        %1674 = vmatpush1.msra.mxu0 0.0
        %1675 = vmatprep.subr.mxu0 0.0
        %1676 = vmatpush1.msra.mxu0 0.0
        %1677 = vmatprep.subr.mxu0 0.0
        %1678 = vmatpush1.msra.mxu0 0.0
        %1679 = vmatprep.subr.mxu0 0.0
        %1680 = vmatpush1.msra.mxu0 0.0
        %1681 = vmatprep.subr.mxu0 0.0
        %1682 = vmatpush1.msra.mxu0 0.0
        %1683 = vmatprep.subr.mxu0 0.0
        %1684 = vmatpush1.msra.mxu0 0.0
        %1685 = vmatprep.subr.mxu0 0.0
        %1686 = vmatpush1.msra.mxu0 0.0
        %1687 = vmatprep.subr.mxu0 0.0
        %1688 = vmatpush1.msra.mxu0 0.0
        %1689 = vmatprep.subr.mxu0 0.0
        %1690 = vmatpush1.msra.mxu0 0.0
        %1691 = vmatprep.subr.mxu0 0.0
        %1692 = vmatpush1.msra.mxu0 0.0
        %1693 = vmatprep.mubr.f32.mxu0 0.0
        %1694 = vmatmul.mubr.f32.gmra.mrb[0].mxu0 %v1627
        %v1695 = vpop.f32.mrb[0].mxu0
        %v1696 = vadd.f32 %v1623, %v1695
        %v1697 = vpop.f32.mrb[0].mxu0
        %1698 = vdwg.mxu0
        %v1699 = vadd.f32 %v1696, %v1534
        %1700 = vst.msk [vmem:[%s485] sm:$0xff] %vm493, %v1699
        %s1701 = sand.u32 %s357, 1
        %s1702 = scalar_lea.sflag [#allocation3], %s1701
        %s1703 = sand.u32 %s357, 1
        %s1704 = smul.addr %s1703, 8
        %s1705 = scalar_lea.vmem [#allocation2], %s1704
        // Predicated region
        $region81: #{run.5} parent=79 // pred_check
          %p1706 = pneg %p367
        $region82: #{run.5} parent=79 // pred_check_branch
          %1708 = sbr.rel (%p1706) target = $region84
        $region83: #{run.5} parent=79 // pred_region
          %s1710 = ssub.s32 128, 128
          %1711 = vsyncadd %s1702, %s1710
          %s1712 = smul.addr %s29, 128
          %s1713 = scalar_lea.hbm %s15, %s1712
          %s1715 = sshll.u32 %s1705, 4
          %s1716 = int_to_ptr.vmem [resolvable:$true] %s1715
          %1718 = dma.vmem_to_hbm [thread:$0]  %s1716, 128, %s1713, %s1702
        $region84: #{run.5} parent=79 // pred_fallthru
          _
      $region80: #{run.5} parent=5 // pred_fallthru
        _
      %p1719 = scmp.le.s32.totalorder 2, %s24
      // Predicated region
      $region85: #{run.5} parent=5 // pred_check
        %p1720 = pneg %p1719
      $region86: #{run.5} parent=5 // pred_check_branch
        %1722 = sbr.rel (%p1720) target = $region88
      $region87: #{run.5} parent=5 // pred_region
        %s1723 = ssub.s32 %s24, 2
        // Predicated region
        $region89: #{run.5} parent=87 // pred_check
          %p1724 = pneg %p373
        $region90: #{run.5} parent=87 // pred_check_branch
          %1726 = sbr.rel (%p1724) target = $region92
        $region91: #{run.5} parent=87 // pred_region
          %s1727 = sand.u32 %s358, 1
          %s1728 = scalar_lea.sflag [#allocation3], %s1727
          %s1729 = sand.u32 %s358, 1
          %s1730 = smul.addr %s1729, 8
          %s1731 = scalar_lea.vmem [#allocation2], %s1730
          %1732 = dma.done %s1728, 128
        $region92: #{run.5} parent=87 // pred_fallthru
          _
      $region88: #{run.5} parent=5 // pred_fallthru
        _
    $region6: #{run.5} parent=1 // loop_footer
      %s28 = sadd.s32 1, %s24
    $region7: #{run.5} parent=1 // loop_footer_branch
      %23 = sbr.rel target = $region3
    $region8: #{run.5} parent=1 // loop_exit
      _
    %1733 = vsyncpa [#allocation3], 1
    %s1734 = scalar_lea.sflag [#allocation3], 1
    %1735 = vsyncpa %s1734, 1

// kernel: run.3
$region0: #{run.3}
  #allocation0 [shape = 'u32[]', space=smem, size = 0x4, offset = 0x4, fixed_abs, tag = 'smem constant byte address 0x4 - core index']
  #allocation1 [shape = 'u32[144,128]{1,0:T(1,128)}', space=vmem, size = 0x12000, scoped, tag = 'internal scratch']
  %s0 = inlined_call_operand.vmem [shape: f32[2,8,32], index: 0, kind: input, shape index: {}]
  %s1 = inlined_call_operand.vmem [shape: f32[2,8,32], index: 1, kind: input, shape index: {}]
  %s2 = inlined_call_operand.vmem [shape: f32[2,8,32], index: 2, kind: input, shape index: {}]
  %s3 = inlined_call_operand.vmem [shape: f32[2,1,8], index: 3, kind: input, shape index: {}]
  %s4 = inlined_call_operand.hbm [shape: f32[1,32], index: 4, kind: input, shape index: {}]
  %s5 = inlined_call_operand.hbm [shape: f32[1,32], index: 5, kind: input, shape index: {}]
  %s6 = inlined_call_operand.hbm [shape: f32[1,32], index: 6, kind: input, shape index: {}]
  %s7 = inlined_call_operand.hbm [shape: f32[1,32], index: 7, kind: input, shape index: {}]
  %s8 = inlined_call_operand.vmem [shape: f32[32,32], index: 8, kind: input, shape index: {}]
  %s9 = inlined_call_operand.hbm [shape: f32[1,32], index: 9, kind: input, shape index: {}]
  %s10 = inlined_call_operand.vmem [shape: f32[32,32], index: 10, kind: input, shape index: {}]
  %s11 = inlined_call_operand.hbm [shape: f32[1,32], index: 11, kind: input, shape index: {}]
  %s12 = inlined_call_operand.vmem [shape: f32[32,32], index: 12, kind: input, shape index: {}]
  %s13 = inlined_call_operand.hbm [shape: f32[1,32], index: 13, kind: input, shape index: {}]
  %s14 = inlined_call_operand.hbm [shape: f32[32,32], index: 14, kind: input, shape index: {}]
  %s15 = inlined_call_operand.hbm [shape: f32[1,32], index: 15, kind: input, shape index: {}]
  %s16 = inlined_call_operand.hbm [shape: f32[32,64], index: 16, kind: input, shape index: {}]
  %s17 = inlined_call_operand.hbm [shape: f32[1,64], index: 17, kind: input, shape index: {}]
  %s18 = inlined_call_operand.vmem [shape: f32[64,32], index: 18, kind: input, shape index: {}]
  %s19 = inlined_call_operand.hbm [shape: f32[1,32], index: 19, kind: input, shape index: {}]
  %s20 = inlined_call_operand.vmem [shape: f32[2,8,32], index: 20, kind: output, shape index: {}]
  %s21 = sld [smem:[#allocation0]]
  $region161: #{run.3} parent=0
    _
  %s23 = ssub.s32 1, %s21
  %s24 = scalar_select 0, %s23, %s21
  $region1: #{run.3} parent=0
    #allocation2 [shape = 'u8[512]{0}', space=vmem, size = 0x400, scoped, tag = 'input window, operand 4, single buffered']
    #allocation3 [shape = 's32[2]{0}', space=sflag, size = 0x8, scoped, tag = 'scoped memory for run.3']
    #allocation4 [shape = 'u8[512]{0}', space=vmem, size = 0x400, scoped, tag = 'input window, operand 5, single buffered']
    #allocation5 [shape = 's32[1]{0}', space=sflag, size = 0x4, scoped, tag = 'scoped memory for run.3']
    #allocation6 [shape = 'u8[512]{0}', space=vmem, size = 0x400, scoped, tag = 'input window, operand 6, single buffered']
    #allocation7 [shape = 'u8[512]{0}', space=vmem, size = 0x400, scoped, tag = 'input window, operand 7, single buffered']
    #allocation8 [shape = 's32[1]{0}', space=sflag, size = 0x4, scoped, tag = 'scoped memory for run.3']
    #allocation9 [shape = 'u8[512]{0}', space=vmem, size = 0x400, scoped, tag = 'input window, operand 9, single buffered']
    #allocation10 [shape = 'u8[512]{0}', space=vmem, size = 0x400, scoped, tag = 'input window, operand 11, single buffered']
    #allocation11 [shape = 's32[1]{0}', space=sflag, size = 0x4, scoped, tag = 'scoped memory for run.3']
    #allocation12 [shape = 'u8[512]{0}', space=vmem, size = 0x400, scoped, tag = 'input window, operand 13, single buffered']
    #allocation13 [shape = 'u8[16384]{0}', space=vmem, size = 0x4000, scoped, tag = 'input window, operand 14, single buffered']
    #allocation14 [shape = 's32[1]{0}', space=sflag, size = 0x4, scoped, tag = 'scoped memory for run.3']
    #allocation15 [shape = 'u8[512]{0}', space=vmem, size = 0x400, scoped, tag = 'input window, operand 15, single buffered']
    #allocation16 [shape = 'u8[16384]{0}', space=vmem, size = 0x4000, scoped, tag = 'input window, operand 16, single buffered']
    #allocation17 [shape = 's32[1]{0}', space=sflag, size = 0x4, scoped, tag = 'scoped memory for run.3']
    #allocation18 [shape = 'u8[512]{0}', space=vmem, size = 0x400, scoped, tag = 'input window, operand 17, single buffered']
    #allocation19 [shape = 'u8[512]{0}', space=vmem, size = 0x400, scoped, tag = 'input window, operand 19, single buffered']
    #allocation20 [shape = 's32[1]{0}', space=sflag, size = 0x4, scoped, tag = 'scoped memory for run.3']
    %25 = vsyncpa [#allocation3], 0
    %26 = vsyncpa [#allocation5], 0
    %27 = vsyncpa [#allocation8], 0
    %28 = vsyncpa [#allocation11], 0
    %29 = vsyncpa [#allocation14], 0
    %30 = vsyncpa [#allocation17], 0
    %31 = vsyncpa [#allocation20], 0
    loop: start=0, step=1, limit=4
    $region2: #{run.3} parent=1 // loop_pre_header
      _
    $region3: #{run.3} parent=1 // loop_header
      %s33 = sphi 0, %s37
      %p34 = scmp.ge.s32.totalorder %s33, 4
      %s43 = sphi 0, %s45
      %s46 = sphi 0, %s43
      %s47 = sphi 0, %s46
      %s63 = sphi 0, %s47
      %s69 = sphi 0, %s71
      %s72 = sphi 0, %s69
      %s73 = sphi 0, %s72
      %s89 = sphi 0, %s73
      %s95 = sphi 0, %s97
      %s98 = sphi 0, %s95
      %s99 = sphi 0, %s98
      %s115 = sphi 0, %s99
      %s121 = sphi 0, %s123
      %s124 = sphi 0, %s121
      %s125 = sphi 0, %s124
      %s141 = sphi 0, %s125
      %s145 = sphi 0, %s145
      %s147 = sphi 0, %s145
      %s148 = sphi 0, %s147
      %s162 = sphi 0, %s148
      %s166 = sphi 0, %s166
      %s168 = sphi 0, %s166
      %s169 = sphi 0, %s168
      %s183 = sphi 0, %s169
      %s187 = sphi 0, %s187
      %s189 = sphi 0, %s187
      %s190 = sphi 0, %s189
      %s204 = sphi 0, %s190
      %s208 = sphi 0, %s208
      %s210 = sphi 0, %s208
      %s211 = sphi 0, %s210
      %s225 = sphi 0, %s211
      %s229 = sphi 0, %s229
      %s231 = sphi 0, %s229
      %s232 = sphi 0, %s231
      %s246 = sphi 0, %s232
      %s250 = sphi 0, %s250
      %s252 = sphi 0, %s250
      %s253 = sphi 0, %s252
      %s267 = sphi 0, %s253
      %s271 = sphi 0, %s271
      %s273 = sphi 0, %s271
      %s274 = sphi 0, %s273
      %s288 = sphi 0, %s274
      %s292 = sphi 0, %s292
      %s294 = sphi 0, %s292
      %s295 = sphi 0, %s294
      %s309 = sphi 0, %s295
      %s313 = sphi 0, %s313
      %s315 = sphi 0, %s313
      %s316 = sphi 0, %s315
      %s330 = sphi 0, %s316
      %s334 = sphi 0, %s334
      %s336 = sphi 0, %s334
      %s337 = sphi 0, %s336
      %s351 = sphi 0, %s337
      %s355 = sphi 0, %s355
      %s357 = sphi 0, %s355
      %s358 = sphi 0, %s357
      %s372 = sphi 0, %s358
      %s376 = sphi 0, %s376
      %s378 = sphi 0, %s376
      %s379 = sphi 0, %s378
      %s393 = sphi 0, %s379
      %s397 = sphi 0, %s397
      %s399 = sphi 0, %s397
      %s400 = sphi 0, %s399
      %s414 = sphi 0, %s400
      %s418 = sphi 0, %s418
      %s420 = sphi 0, %s418
      %s421 = sphi 0, %s420
      %s435 = sphi 0, %s421
      %s439 = sphi 0, %s439
      %s441 = sphi 0, %s439
      %s442 = sphi 0, %s441
      %s456 = sphi 0, %s442
      %s460 = sphi 0, %s460
      %s462 = sphi 0, %s460
      %s463 = sphi 0, %s462
      %s477 = sphi 0, %s463
      %s483 = sphi 0, %s485
      %s486 = sphi 0, %s483
      %s487 = sphi 0, %s486
      %s503 = sphi 0, %s487
    $region4: #{run.3} parent=1 // loop_header_branch
      %36 = sbr.rel (%p34) target = $region8
    $region5: #{run.3} parent=1 // loop_body
      %s38 = ssub.s32 %s33, 1
      %s39 = ssub.s32 %s33, 2
      %s40 = sadd.s32 %s33, 1
      %s41 = ssub.s32 %s33, %s40
      %p42 = scmp.eq.s32.totalorder %s41, 0
      %s44 = sadd.s32 %s43, 1
      %s45 = scalar_select %p42, %s43, %s44
      %p48 = pneg %p42
      %p49 = scmp.eq.s32.totalorder %s33, 1
      %p50 = por %p48, %p49
      %p51 = scmp.ne.s32.totalorder %s43, %s46
      %p52 = scmp.eq.s32.totalorder %s33, 0
      %p53 = por %p51, %p52
      %p54 = scmp.ne.s32.totalorder %s43, %s46
      %p55 = scmp.eq.s32.totalorder %s38, 1
      %p56 = por %p54, %p55
      %p57 = scmp.ne.s32.totalorder %s46, %s47
      %p58 = scmp.eq.s32.totalorder %s38, 0
      %p59 = por %p57, %p58
      %p60 = scmp.ne.s32.totalorder %s46, %s47
      %p61 = scmp.eq.s32.totalorder %s39, 1
      %p62 = por %p60, %p61
      %p64 = scmp.ne.s32.totalorder %s47, %s63
      %p65 = scmp.eq.s32.totalorder %s39, 0
      %p66 = por %p64, %p65
      %s67 = ssub.s32 %s33, %s40
      %p68 = scmp.eq.s32.totalorder %s67, 0
      %s70 = sadd.s32 %s69, 1
      %s71 = scalar_select %p68, %s69, %s70
      %p74 = pneg %p68
      %p75 = scmp.eq.s32.totalorder %s33, 1
      %p76 = por %p74, %p75
      %p77 = scmp.ne.s32.totalorder %s69, %s72
      %p78 = scmp.eq.s32.totalorder %s33, 0
      %p79 = por %p77, %p78
      %p80 = scmp.ne.s32.totalorder %s69, %s72
      %p81 = scmp.eq.s32.totalorder %s38, 1
      %p82 = por %p80, %p81
      %p83 = scmp.ne.s32.totalorder %s72, %s73
      %p84 = scmp.eq.s32.totalorder %s38, 0
      %p85 = por %p83, %p84
      %p86 = scmp.ne.s32.totalorder %s72, %s73
      %p87 = scmp.eq.s32.totalorder %s39, 1
      %p88 = por %p86, %p87
      %p90 = scmp.ne.s32.totalorder %s73, %s89
      %p91 = scmp.eq.s32.totalorder %s39, 0
      %p92 = por %p90, %p91
      %s93 = ssub.s32 %s33, %s40
      %p94 = scmp.eq.s32.totalorder %s93, 0
      %s96 = sadd.s32 %s95, 1
      %s97 = scalar_select %p94, %s95, %s96
      %p100 = pneg %p94
      %p101 = scmp.eq.s32.totalorder %s33, 1
      %p102 = por %p100, %p101
      %p103 = scmp.ne.s32.totalorder %s95, %s98
      %p104 = scmp.eq.s32.totalorder %s33, 0
      %p105 = por %p103, %p104
      %p106 = scmp.ne.s32.totalorder %s95, %s98
      %p107 = scmp.eq.s32.totalorder %s38, 1
      %p108 = por %p106, %p107
      %p109 = scmp.ne.s32.totalorder %s98, %s99
      %p110 = scmp.eq.s32.totalorder %s38, 0
      %p111 = por %p109, %p110
      %p112 = scmp.ne.s32.totalorder %s98, %s99
      %p113 = scmp.eq.s32.totalorder %s39, 1
      %p114 = por %p112, %p113
      %p116 = scmp.ne.s32.totalorder %s99, %s115
      %p117 = scmp.eq.s32.totalorder %s39, 0
      %p118 = por %p116, %p117
      %s119 = ssub.s32 %s33, %s40
      %p120 = scmp.eq.s32.totalorder %s119, 0
      %s122 = sadd.s32 %s121, 1
      %s123 = scalar_select %p120, %s121, %s122
      %p126 = pneg %p120
      %p127 = scmp.eq.s32.totalorder %s33, 1
      %p128 = por %p126, %p127
      %p129 = scmp.ne.s32.totalorder %s121, %s124
      %p130 = scmp.eq.s32.totalorder %s33, 0
      %p131 = por %p129, %p130
      %p132 = scmp.ne.s32.totalorder %s121, %s124
      %p133 = scmp.eq.s32.totalorder %s38, 1
      %p134 = por %p132, %p133
      %p135 = scmp.ne.s32.totalorder %s124, %s125
      %p136 = scmp.eq.s32.totalorder %s38, 0
      %p137 = por %p135, %p136
      %p138 = scmp.ne.s32.totalorder %s124, %s125
      %p139 = scmp.eq.s32.totalorder %s39, 1
      %p140 = por %p138, %p139
      %p142 = scmp.ne.s32.totalorder %s125, %s141
      %p143 = scmp.eq.s32.totalorder %s39, 0
      %p144 = por %p142, %p143
      %s146 = sadd.s32 %s145, 1
      %p149 = scmp.eq.s32.totalorder %s33, 1
      %p150 = scmp.ne.s32.totalorder %s145, %s147
      %p151 = scmp.eq.s32.totalorder %s33, 0
      %p152 = por %p150, %p151
      %p153 = scmp.ne.s32.totalorder %s145, %s147
      %p154 = scmp.eq.s32.totalorder %s38, 1
      %p155 = por %p153, %p154
      %p156 = scmp.ne.s32.totalorder %s147, %s148
      %p157 = scmp.eq.s32.totalorder %s38, 0
      %p158 = por %p156, %p157
      %p159 = scmp.ne.s32.totalorder %s147, %s148
      %p160 = scmp.eq.s32.totalorder %s39, 1
      %p161 = por %p159, %p160
      %p163 = scmp.ne.s32.totalorder %s148, %s162
      %p164 = scmp.eq.s32.totalorder %s39, 0
      %p165 = por %p163, %p164
      %s167 = sadd.s32 %s166, 1
      %p170 = scmp.eq.s32.totalorder %s33, 1
      %p171 = scmp.ne.s32.totalorder %s166, %s168
      %p172 = scmp.eq.s32.totalorder %s33, 0
      %p173 = por %p171, %p172
      %p174 = scmp.ne.s32.totalorder %s166, %s168
      %p175 = scmp.eq.s32.totalorder %s38, 1
      %p176 = por %p174, %p175
      %p177 = scmp.ne.s32.totalorder %s168, %s169
      %p178 = scmp.eq.s32.totalorder %s38, 0
      %p179 = por %p177, %p178
      %p180 = scmp.ne.s32.totalorder %s168, %s169
      %p181 = scmp.eq.s32.totalorder %s39, 1
      %p182 = por %p180, %p181
      %p184 = scmp.ne.s32.totalorder %s169, %s183
      %p185 = scmp.eq.s32.totalorder %s39, 0
      %p186 = por %p184, %p185
      %s188 = sadd.s32 %s187, 1
      %p191 = scmp.eq.s32.totalorder %s33, 1
      %p192 = scmp.ne.s32.totalorder %s187, %s189
      %p193 = scmp.eq.s32.totalorder %s33, 0
      %p194 = por %p192, %p193
      %p195 = scmp.ne.s32.totalorder %s187, %s189
      %p196 = scmp.eq.s32.totalorder %s38, 1
      %p197 = por %p195, %p196
      %p198 = scmp.ne.s32.totalorder %s189, %s190
      %p199 = scmp.eq.s32.totalorder %s38, 0
      %p200 = por %p198, %p199
      %p201 = scmp.ne.s32.totalorder %s189, %s190
      %p202 = scmp.eq.s32.totalorder %s39, 1
      %p203 = por %p201, %p202
      %p205 = scmp.ne.s32.totalorder %s190, %s204
      %p206 = scmp.eq.s32.totalorder %s39, 0
      %p207 = por %p205, %p206
      %s209 = sadd.s32 %s208, 1
      %p212 = scmp.eq.s32.totalorder %s33, 1
      %p213 = scmp.ne.s32.totalorder %s208, %s210
      %p214 = scmp.eq.s32.totalorder %s33, 0
      %p215 = por %p213, %p214
      %p216 = scmp.ne.s32.totalorder %s208, %s210
      %p217 = scmp.eq.s32.totalorder %s38, 1
      %p218 = por %p216, %p217
      %p219 = scmp.ne.s32.totalorder %s210, %s211
      %p220 = scmp.eq.s32.totalorder %s38, 0
      %p221 = por %p219, %p220
      %p222 = scmp.ne.s32.totalorder %s210, %s211
      %p223 = scmp.eq.s32.totalorder %s39, 1
      %p224 = por %p222, %p223
      %p226 = scmp.ne.s32.totalorder %s211, %s225
      %p227 = scmp.eq.s32.totalorder %s39, 0
      %p228 = por %p226, %p227
      %s230 = sadd.s32 %s229, 1
      %p233 = scmp.eq.s32.totalorder %s33, 1
      %p234 = scmp.ne.s32.totalorder %s229, %s231
      %p235 = scmp.eq.s32.totalorder %s33, 0
      %p236 = por %p234, %p235
      %p237 = scmp.ne.s32.totalorder %s229, %s231
      %p238 = scmp.eq.s32.totalorder %s38, 1
      %p239 = por %p237, %p238
      %p240 = scmp.ne.s32.totalorder %s231, %s232
      %p241 = scmp.eq.s32.totalorder %s38, 0
      %p242 = por %p240, %p241
      %p243 = scmp.ne.s32.totalorder %s231, %s232
      %p244 = scmp.eq.s32.totalorder %s39, 1
      %p245 = por %p243, %p244
      %p247 = scmp.ne.s32.totalorder %s232, %s246
      %p248 = scmp.eq.s32.totalorder %s39, 0
      %p249 = por %p247, %p248
      %s251 = sadd.s32 %s250, 1
      %p254 = scmp.eq.s32.totalorder %s33, 1
      %p255 = scmp.ne.s32.totalorder %s250, %s252
      %p256 = scmp.eq.s32.totalorder %s33, 0
      %p257 = por %p255, %p256
      %p258 = scmp.ne.s32.totalorder %s250, %s252
      %p259 = scmp.eq.s32.totalorder %s38, 1
      %p260 = por %p258, %p259
      %p261 = scmp.ne.s32.totalorder %s252, %s253
      %p262 = scmp.eq.s32.totalorder %s38, 0
      %p263 = por %p261, %p262
      %p264 = scmp.ne.s32.totalorder %s252, %s253
      %p265 = scmp.eq.s32.totalorder %s39, 1
      %p266 = por %p264, %p265
      %p268 = scmp.ne.s32.totalorder %s253, %s267
      %p269 = scmp.eq.s32.totalorder %s39, 0
      %p270 = por %p268, %p269
      %s272 = sadd.s32 %s271, 1
      %p275 = scmp.eq.s32.totalorder %s33, 1
      %p276 = scmp.ne.s32.totalorder %s271, %s273
      %p277 = scmp.eq.s32.totalorder %s33, 0
      %p278 = por %p276, %p277
      %p279 = scmp.ne.s32.totalorder %s271, %s273
      %p280 = scmp.eq.s32.totalorder %s38, 1
      %p281 = por %p279, %p280
      %p282 = scmp.ne.s32.totalorder %s273, %s274
      %p283 = scmp.eq.s32.totalorder %s38, 0
      %p284 = por %p282, %p283
      %p285 = scmp.ne.s32.totalorder %s273, %s274
      %p286 = scmp.eq.s32.totalorder %s39, 1
      %p287 = por %p285, %p286
      %p289 = scmp.ne.s32.totalorder %s274, %s288
      %p290 = scmp.eq.s32.totalorder %s39, 0
      %p291 = por %p289, %p290
      %s293 = sadd.s32 %s292, 1
      %p296 = scmp.eq.s32.totalorder %s33, 1
      %p297 = scmp.ne.s32.totalorder %s292, %s294
      %p298 = scmp.eq.s32.totalorder %s33, 0
      %p299 = por %p297, %p298
      %p300 = scmp.ne.s32.totalorder %s292, %s294
      %p301 = scmp.eq.s32.totalorder %s38, 1
      %p302 = por %p300, %p301
      %p303 = scmp.ne.s32.totalorder %s294, %s295
      %p304 = scmp.eq.s32.totalorder %s38, 0
      %p305 = por %p303, %p304
      %p306 = scmp.ne.s32.totalorder %s294, %s295
      %p307 = scmp.eq.s32.totalorder %s39, 1
      %p308 = por %p306, %p307
      %p310 = scmp.ne.s32.totalorder %s295, %s309
      %p311 = scmp.eq.s32.totalorder %s39, 0
      %p312 = por %p310, %p311
      %s314 = sadd.s32 %s313, 1
      %p317 = scmp.eq.s32.totalorder %s33, 1
      %p318 = scmp.ne.s32.totalorder %s313, %s315
      %p319 = scmp.eq.s32.totalorder %s33, 0
      %p320 = por %p318, %p319
      %p321 = scmp.ne.s32.totalorder %s313, %s315
      %p322 = scmp.eq.s32.totalorder %s38, 1
      %p323 = por %p321, %p322
      %p324 = scmp.ne.s32.totalorder %s315, %s316
      %p325 = scmp.eq.s32.totalorder %s38, 0
      %p326 = por %p324, %p325
      %p327 = scmp.ne.s32.totalorder %s315, %s316
      %p328 = scmp.eq.s32.totalorder %s39, 1
      %p329 = por %p327, %p328
      %p331 = scmp.ne.s32.totalorder %s316, %s330
      %p332 = scmp.eq.s32.totalorder %s39, 0
      %p333 = por %p331, %p332
      %s335 = sadd.s32 %s334, 1
      %p338 = scmp.eq.s32.totalorder %s33, 1
      %p339 = scmp.ne.s32.totalorder %s334, %s336
      %p340 = scmp.eq.s32.totalorder %s33, 0
      %p341 = por %p339, %p340
      %p342 = scmp.ne.s32.totalorder %s334, %s336
      %p343 = scmp.eq.s32.totalorder %s38, 1
      %p344 = por %p342, %p343
      %p345 = scmp.ne.s32.totalorder %s336, %s337
      %p346 = scmp.eq.s32.totalorder %s38, 0
      %p347 = por %p345, %p346
      %p348 = scmp.ne.s32.totalorder %s336, %s337
      %p349 = scmp.eq.s32.totalorder %s39, 1
      %p350 = por %p348, %p349
      %p352 = scmp.ne.s32.totalorder %s337, %s351
      %p353 = scmp.eq.s32.totalorder %s39, 0
      %p354 = por %p352, %p353
      %s356 = sadd.s32 %s355, 1
      %p359 = scmp.eq.s32.totalorder %s33, 1
      %p360 = scmp.ne.s32.totalorder %s355, %s357
      %p361 = scmp.eq.s32.totalorder %s33, 0
      %p362 = por %p360, %p361
      %p363 = scmp.ne.s32.totalorder %s355, %s357
      %p364 = scmp.eq.s32.totalorder %s38, 1
      %p365 = por %p363, %p364
      %p366 = scmp.ne.s32.totalorder %s357, %s358
      %p367 = scmp.eq.s32.totalorder %s38, 0
      %p368 = por %p366, %p367
      %p369 = scmp.ne.s32.totalorder %s357, %s358
      %p370 = scmp.eq.s32.totalorder %s39, 1
      %p371 = por %p369, %p370
      %p373 = scmp.ne.s32.totalorder %s358, %s372
      %p374 = scmp.eq.s32.totalorder %s39, 0
      %p375 = por %p373, %p374
      %s377 = sadd.s32 %s376, 1
      %p380 = scmp.eq.s32.totalorder %s33, 1
      %p381 = scmp.ne.s32.totalorder %s376, %s378
      %p382 = scmp.eq.s32.totalorder %s33, 0
      %p383 = por %p381, %p382
      %p384 = scmp.ne.s32.totalorder %s376, %s378
      %p385 = scmp.eq.s32.totalorder %s38, 1
      %p386 = por %p384, %p385
      %p387 = scmp.ne.s32.totalorder %s378, %s379
      %p388 = scmp.eq.s32.totalorder %s38, 0
      %p389 = por %p387, %p388
      %p390 = scmp.ne.s32.totalorder %s378, %s379
      %p391 = scmp.eq.s32.totalorder %s39, 1
      %p392 = por %p390, %p391
      %p394 = scmp.ne.s32.totalorder %s379, %s393
      %p395 = scmp.eq.s32.totalorder %s39, 0
      %p396 = por %p394, %p395
      %s398 = sadd.s32 %s397, 1
      %p401 = scmp.eq.s32.totalorder %s33, 1
      %p402 = scmp.ne.s32.totalorder %s397, %s399
      %p403 = scmp.eq.s32.totalorder %s33, 0
      %p404 = por %p402, %p403
      %p405 = scmp.ne.s32.totalorder %s397, %s399
      %p406 = scmp.eq.s32.totalorder %s38, 1
      %p407 = por %p405, %p406
      %p408 = scmp.ne.s32.totalorder %s399, %s400
      %p409 = scmp.eq.s32.totalorder %s38, 0
      %p410 = por %p408, %p409
      %p411 = scmp.ne.s32.totalorder %s399, %s400
      %p412 = scmp.eq.s32.totalorder %s39, 1
      %p413 = por %p411, %p412
      %p415 = scmp.ne.s32.totalorder %s400, %s414
      %p416 = scmp.eq.s32.totalorder %s39, 0
      %p417 = por %p415, %p416
      %s419 = sadd.s32 %s418, 1
      %p422 = scmp.eq.s32.totalorder %s33, 1
      %p423 = scmp.ne.s32.totalorder %s418, %s420
      %p424 = scmp.eq.s32.totalorder %s33, 0
      %p425 = por %p423, %p424
      %p426 = scmp.ne.s32.totalorder %s418, %s420
      %p427 = scmp.eq.s32.totalorder %s38, 1
      %p428 = por %p426, %p427
      %p429 = scmp.ne.s32.totalorder %s420, %s421
      %p430 = scmp.eq.s32.totalorder %s38, 0
      %p431 = por %p429, %p430
      %p432 = scmp.ne.s32.totalorder %s420, %s421
      %p433 = scmp.eq.s32.totalorder %s39, 1
      %p434 = por %p432, %p433
      %p436 = scmp.ne.s32.totalorder %s421, %s435
      %p437 = scmp.eq.s32.totalorder %s39, 0
      %p438 = por %p436, %p437
      %s440 = sadd.s32 %s439, 1
      %p443 = scmp.eq.s32.totalorder %s33, 1
      %p444 = scmp.ne.s32.totalorder %s439, %s441
      %p445 = scmp.eq.s32.totalorder %s33, 0
      %p446 = por %p444, %p445
      %p447 = scmp.ne.s32.totalorder %s439, %s441
      %p448 = scmp.eq.s32.totalorder %s38, 1
      %p449 = por %p447, %p448
      %p450 = scmp.ne.s32.totalorder %s441, %s442
      %p451 = scmp.eq.s32.totalorder %s38, 0
      %p452 = por %p450, %p451
      %p453 = scmp.ne.s32.totalorder %s441, %s442
      %p454 = scmp.eq.s32.totalorder %s39, 1
      %p455 = por %p453, %p454
      %p457 = scmp.ne.s32.totalorder %s442, %s456
      %p458 = scmp.eq.s32.totalorder %s39, 0
      %p459 = por %p457, %p458
      %s461 = sadd.s32 %s460, 1
      %p464 = scmp.eq.s32.totalorder %s33, 1
      %p465 = scmp.ne.s32.totalorder %s460, %s462
      %p466 = scmp.eq.s32.totalorder %s33, 0
      %p467 = por %p465, %p466
      %p468 = scmp.ne.s32.totalorder %s460, %s462
      %p469 = scmp.eq.s32.totalorder %s38, 1
      %p470 = por %p468, %p469
      %p471 = scmp.ne.s32.totalorder %s462, %s463
      %p472 = scmp.eq.s32.totalorder %s38, 0
      %p473 = por %p471, %p472
      %p474 = scmp.ne.s32.totalorder %s462, %s463
      %p475 = scmp.eq.s32.totalorder %s39, 1
      %p476 = por %p474, %p475
      %p478 = scmp.ne.s32.totalorder %s463, %s477
      %p479 = scmp.eq.s32.totalorder %s39, 0
      %p480 = por %p478, %p479
      %s481 = ssub.s32 %s33, %s40
      %p482 = scmp.eq.s32.totalorder %s481, 0
      %s484 = sadd.s32 %s483, 1
      %s485 = scalar_select %p482, %s483, %s484
      %p488 = pneg %p482
      %p489 = scmp.eq.s32.totalorder %s33, 1
      %p490 = por %p488, %p489
      %p491 = scmp.ne.s32.totalorder %s483, %s486
      %p492 = scmp.eq.s32.totalorder %s33, 0
      %p493 = por %p491, %p492
      %p494 = scmp.ne.s32.totalorder %s483, %s486
      %p495 = scmp.eq.s32.totalorder %s38, 1
      %p496 = por %p494, %p495
      %p497 = scmp.ne.s32.totalorder %s486, %s487
      %p498 = scmp.eq.s32.totalorder %s38, 0
      %p499 = por %p497, %p498
      %p500 = scmp.ne.s32.totalorder %s486, %s487
      %p501 = scmp.eq.s32.totalorder %s39, 1
      %p502 = por %p500, %p501
      %p504 = scmp.ne.s32.totalorder %s487, %s503
      %p505 = scmp.eq.s32.totalorder %s39, 0
      %p506 = por %p504, %p505
      %p507 = scmp.le.s32.totalorder 1, %s33
      %p508 = scmp.lt.s32.totalorder %s33, 3
      %p509 = pnand %p507, %p508
      %p510 = pneg %p509
      // Predicated region
      $region9: #{run.3} parent=5 // pred_check
        _
      $region10: #{run.3} parent=5 // pred_check_branch
        %512 = sbr.rel (%p509) target = $region12
      $region11: #{run.3} parent=5 // pred_region
        %s513 = ssub.s32 %s33, 1
        // Predicated region
        $region13: #{run.3} parent=11 // pred_check
          %p514 = pneg %p158
        $region14: #{run.3} parent=11 // pred_check_branch
          %516 = sbr.rel (%p514) target = $region16
        $region15: #{run.3} parent=11 // pred_region
          %s518 = ssub.s32 16, 16
          %519 = vsyncadd [#allocation3], %s518
          %s521 = sshll.u32 [#allocation2], 4
          %s522 = int_to_ptr.vmem [resolvable:$true] %s521
          %524 = dma.hbm_to_vmem [thread:$0]  %s4, 16, %s522, [#allocation3]
        $region16: #{run.3} parent=11 // pred_fallthru
          _
        // Predicated region
        $region17: #{run.3} parent=11 // pred_check
          %p525 = pneg %p179
        $region18: #{run.3} parent=11 // pred_check_branch
          %527 = sbr.rel (%p525) target = $region20
        $region19: #{run.3} parent=11 // pred_region
          %s529 = ssub.s32 16, 16
          %530 = vsyncadd [#allocation5], %s529
          %s532 = sshll.u32 [#allocation4], 4
          %s533 = int_to_ptr.vmem [resolvable:$true] %s532
          %535 = dma.hbm_to_vmem [thread:$0]  %s5, 16, %s533, [#allocation5]
        $region20: #{run.3} parent=11 // pred_fallthru
          _
        // Predicated region
        $region21: #{run.3} parent=11 // pred_check
          %p536 = pneg %p200
        $region22: #{run.3} parent=11 // pred_check_branch
          %538 = sbr.rel (%p536) target = $region24
        $region23: #{run.3} parent=11 // pred_region
          %s540 = ssub.s32 16, 16
          %541 = vsyncadd [#allocation5], %s540
          %s543 = sshll.u32 [#allocation6], 4
          %s544 = int_to_ptr.vmem [resolvable:$true] %s543
          %546 = dma.hbm_to_vmem [thread:$0]  %s6, 16, %s544, [#allocation5]
        $region24: #{run.3} parent=11 // pred_fallthru
          _
        // Predicated region
        $region25: #{run.3} parent=11 // pred_check
          %p547 = pneg %p221
        $region26: #{run.3} parent=11 // pred_check_branch
          %549 = sbr.rel (%p547) target = $region28
        $region27: #{run.3} parent=11 // pred_region
          %s551 = ssub.s32 16, 16
          %552 = vsyncadd [#allocation8], %s551
          %s554 = sshll.u32 [#allocation7], 4
          %s555 = int_to_ptr.vmem [resolvable:$true] %s554
          %557 = dma.hbm_to_vmem [thread:$0]  %s7, 16, %s555, [#allocation8]
        $region28: #{run.3} parent=11 // pred_fallthru
          _
        // Predicated region
        $region29: #{run.3} parent=11 // pred_check
          %p558 = pneg %p242
        $region30: #{run.3} parent=11 // pred_check_branch
          %560 = sbr.rel (%p558) target = $region32
        $region31: #{run.3} parent=11 // pred_region
          _
        $region32: #{run.3} parent=11 // pred_fallthru
          _
        // Predicated region
        $region33: #{run.3} parent=11 // pred_check
          %p561 = pneg %p263
        $region34: #{run.3} parent=11 // pred_check_branch
          %563 = sbr.rel (%p561) target = $region36
        $region35: #{run.3} parent=11 // pred_region
          %s565 = ssub.s32 16, 16
          %566 = vsyncadd [#allocation8], %s565
          %s568 = sshll.u32 [#allocation9], 4
          %s569 = int_to_ptr.vmem [resolvable:$true] %s568
          %571 = dma.hbm_to_vmem [thread:$0]  %s9, 16, %s569, [#allocation8]
        $region36: #{run.3} parent=11 // pred_fallthru
          _
        // Predicated region
        $region37: #{run.3} parent=11 // pred_check
          %p572 = pneg %p284
        $region38: #{run.3} parent=11 // pred_check_branch
          %574 = sbr.rel (%p572) target = $region40
        $region39: #{run.3} parent=11 // pred_region
          _
        $region40: #{run.3} parent=11 // pred_fallthru
          _
        // Predicated region
        $region41: #{run.3} parent=11 // pred_check
          %p575 = pneg %p305
        $region42: #{run.3} parent=11 // pred_check_branch
          %577 = sbr.rel (%p575) target = $region44
        $region43: #{run.3} parent=11 // pred_region
          %s579 = ssub.s32 16, 16
          %580 = vsyncadd [#allocation11], %s579
          %s582 = sshll.u32 [#allocation10], 4
          %s583 = int_to_ptr.vmem [resolvable:$true] %s582
          %585 = dma.hbm_to_vmem [thread:$0]  %s11, 16, %s583, [#allocation11]
        $region44: #{run.3} parent=11 // pred_fallthru
          _
        // Predicated region
        $region45: #{run.3} parent=11 // pred_check
          %p586 = pneg %p326
        $region46: #{run.3} parent=11 // pred_check_branch
          %588 = sbr.rel (%p586) target = $region48
        $region47: #{run.3} parent=11 // pred_region
          _
        $region48: #{run.3} parent=11 // pred_fallthru
          _
        // Predicated region
        $region49: #{run.3} parent=11 // pred_check
          %p589 = pneg %p347
        $region50: #{run.3} parent=11 // pred_check_branch
          %591 = sbr.rel (%p589) target = $region52
        $region51: #{run.3} parent=11 // pred_region
          %s593 = ssub.s32 16, 16
          %594 = vsyncadd [#allocation11], %s593
          %s596 = sshll.u32 [#allocation12], 4
          %s597 = int_to_ptr.vmem [resolvable:$true] %s596
          %599 = dma.hbm_to_vmem [thread:$0]  %s13, 16, %s597, [#allocation11]
        $region52: #{run.3} parent=11 // pred_fallthru
          _
        // Predicated region
        $region53: #{run.3} parent=11 // pred_check
          %p600 = pneg %p368
        $region54: #{run.3} parent=11 // pred_check_branch
          %602 = sbr.rel (%p600) target = $region56
        $region55: #{run.3} parent=11 // pred_region
          %s604 = ssub.s32 512, 512
          %605 = vsyncadd [#allocation14], %s604
          %s606 = sshll.u32 [#allocation13], 4
          %s607 = int_to_ptr.vmem [resolvable:$true] %s606
          %612 = dma.hbm_to_vmem [thread:$0]  %s14, 512, %s607, [#allocation14], 128, 128, 8
        $region56: #{run.3} parent=11 // pred_fallthru
          _
        // Predicated region
        $region57: #{run.3} parent=11 // pred_check
          %p613 = pneg %p389
        $region58: #{run.3} parent=11 // pred_check_branch
          %615 = sbr.rel (%p613) target = $region60
        $region59: #{run.3} parent=11 // pred_region
          %s617 = ssub.s32 16, 16
          %618 = vsyncadd [#allocation14], %s617
          %s620 = sshll.u32 [#allocation15], 4
          %s621 = int_to_ptr.vmem [resolvable:$true] %s620
          %623 = dma.hbm_to_vmem [thread:$0]  %s15, 16, %s621, [#allocation14]
        $region60: #{run.3} parent=11 // pred_fallthru
          _
        // Predicated region
        $region61: #{run.3} parent=11 // pred_check
          %p624 = pneg %p410
        $region62: #{run.3} parent=11 // pred_check_branch
          %626 = sbr.rel (%p624) target = $region64
        $region63: #{run.3} parent=11 // pred_region
          %s628 = ssub.s32 512, 512
          %629 = vsyncadd [#allocation17], %s628
          %s630 = sshll.u32 [#allocation16], 4
          %s631 = int_to_ptr.vmem [resolvable:$true] %s630
          %636 = dma.hbm_to_vmem [thread:$0]  %s16, 512, %s631, [#allocation17], 128, 128, 8
        $region64: #{run.3} parent=11 // pred_fallthru
          _
        // Predicated region
        $region65: #{run.3} parent=11 // pred_check
          %p637 = pneg %p431
        $region66: #{run.3} parent=11 // pred_check_branch
          %639 = sbr.rel (%p637) target = $region68
        $region67: #{run.3} parent=11 // pred_region
          %s641 = ssub.s32 16, 16
          %642 = vsyncadd [#allocation17], %s641
          %s644 = sshll.u32 [#allocation18], 4
          %s645 = int_to_ptr.vmem [resolvable:$true] %s644
          %647 = dma.hbm_to_vmem [thread:$0]  %s17, 16, %s645, [#allocation17]
        $region68: #{run.3} parent=11 // pred_fallthru
          _
        // Predicated region
        $region69: #{run.3} parent=11 // pred_check
          %p648 = pneg %p452
        $region70: #{run.3} parent=11 // pred_check_branch
          %650 = sbr.rel (%p648) target = $region72
        $region71: #{run.3} parent=11 // pred_region
          _
        $region72: #{run.3} parent=11 // pred_fallthru
          _
        // Predicated region
        $region73: #{run.3} parent=11 // pred_check
          %p651 = pneg %p473
        $region74: #{run.3} parent=11 // pred_check_branch
          %653 = sbr.rel (%p651) target = $region76
        $region75: #{run.3} parent=11 // pred_region
          %s655 = ssub.s32 16, 16
          %656 = vsyncadd [#allocation20], %s655
          %s658 = sshll.u32 [#allocation19], 4
          %s659 = int_to_ptr.vmem [resolvable:$true] %s658
          %661 = dma.hbm_to_vmem [thread:$0]  %s19, 16, %s659, [#allocation20]
        $region76: #{run.3} parent=11 // pred_fallthru
          _
      $region12: #{run.3} parent=5 // pred_fallthru
        _
      %p662 = scmp.lt.s32.totalorder %s33, 2
      // Predicated region
      $region77: #{run.3} parent=5 // pred_check
        %p663 = pneg %p662
      $region78: #{run.3} parent=5 // pred_check_branch
        %665 = sbr.rel (%p663) target = $region80
      $region79: #{run.3} parent=5 // pred_region
        // Predicated region
        $region81: #{run.3} parent=79 // pred_check
          %p666 = pneg %p53
        $region82: #{run.3} parent=79 // pred_check_branch
          %668 = sbr.rel (%p666) target = $region84
        $region83: #{run.3} parent=79 // pred_region
          %p669 = scmp.lt.s32.totalorder %s33, 1
          %s670 = scalar_select %p669, %s33, 1
          %s671 = smul.addr %s670, 8
          %s672 = scalar_lea.vmem %s0, %s671
        $region84: #{run.3} parent=79 // pred_fallthru
          _
        // Predicated region
        $region85: #{run.3} parent=79 // pred_check
          %p673 = pneg %p79
        $region86: #{run.3} parent=79 // pred_check_branch
          %675 = sbr.rel (%p673) target = $region88
        $region87: #{run.3} parent=79 // pred_region
          %p676 = scmp.lt.s32.totalorder %s33, 1
          %s677 = scalar_select %p676, %s33, 1
          %s678 = smul.addr %s677, 8
          %s679 = scalar_lea.vmem %s1, %s678
        $region88: #{run.3} parent=79 // pred_fallthru
          _
        // Predicated region
        $region89: #{run.3} parent=79 // pred_check
          %p680 = pneg %p105
        $region90: #{run.3} parent=79 // pred_check_branch
          %682 = sbr.rel (%p680) target = $region92
        $region91: #{run.3} parent=79 // pred_region
          %p683 = scmp.lt.s32.totalorder %s33, 1
          %s684 = scalar_select %p683, %s33, 1
          %s685 = smul.addr %s684, 8
          %s686 = scalar_lea.vmem %s2, %s685
        $region92: #{run.3} parent=79 // pred_fallthru
          _
        // Predicated region
        $region93: #{run.3} parent=79 // pred_check
          %p687 = pneg %p131
        $region94: #{run.3} parent=79 // pred_check_branch
          %689 = sbr.rel (%p687) target = $region96
        $region95: #{run.3} parent=79 // pred_region
          %p690 = scmp.lt.s32.totalorder %s33, 1
          %s691 = scalar_select %p690, %s33, 1
          %s692 = scalar_lea.vmem %s3, %s691
        $region96: #{run.3} parent=79 // pred_fallthru
          _
      $region80: #{run.3} parent=5 // pred_fallthru
        _
      %p693 = scmp.le.s32.totalorder 1, %s33
      %p694 = scmp.lt.s32.totalorder %s33, 3
      %p695 = pnand %p693, %p694
      %p696 = pneg %p695
      // Predicated region
      $region97: #{run.3} parent=5 // pred_check
        _
      $region98: #{run.3} parent=5 // pred_check_branch
        %698 = sbr.rel (%p695) target = $region100
      $region99: #{run.3} parent=5 // pred_region
        %s699 = ssub.s32 %s33, 1
        // Predicated region
        $region101: #{run.3} parent=99 // pred_check
          %p700 = pneg %p158
        $region102: #{run.3} parent=99 // pred_check_branch
          %702 = sbr.rel (%p700) target = $region104
        $region103: #{run.3} parent=99 // pred_region
          %703 = dma.done [#allocation3], 16
        $region104: #{run.3} parent=99 // pred_fallthru
          _
        // Predicated region
        $region105: #{run.3} parent=99 // pred_check
          %p704 = pneg %p179
        $region106: #{run.3} parent=99 // pred_check_branch
          %706 = sbr.rel (%p704) target = $region108
        $region107: #{run.3} parent=99 // pred_region
          %707 = dma.done [#allocation5], 16
        $region108: #{run.3} parent=99 // pred_fallthru
          _
        // Predicated region
        $region109: #{run.3} parent=99 // pred_check
          %p708 = pneg %p200
        $region110: #{run.3} parent=99 // pred_check_branch
          %710 = sbr.rel (%p708) target = $region112
        $region111: #{run.3} parent=99 // pred_region
          %711 = dma.done [#allocation5], 16
        $region112: #{run.3} parent=99 // pred_fallthru
          _
        // Predicated region
        $region113: #{run.3} parent=99 // pred_check
          %p712 = pneg %p221
        $region114: #{run.3} parent=99 // pred_check_branch
          %714 = sbr.rel (%p712) target = $region116
        $region115: #{run.3} parent=99 // pred_region
          %715 = dma.done [#allocation8], 16
        $region116: #{run.3} parent=99 // pred_fallthru
          _
        // Predicated region
        $region117: #{run.3} parent=99 // pred_check
          %p716 = pneg %p263
        $region118: #{run.3} parent=99 // pred_check_branch
          %718 = sbr.rel (%p716) target = $region120
        $region119: #{run.3} parent=99 // pred_region
          %719 = dma.done [#allocation8], 16
        $region120: #{run.3} parent=99 // pred_fallthru
          _
        // Predicated region
        $region121: #{run.3} parent=99 // pred_check
          %p720 = pneg %p305
        $region122: #{run.3} parent=99 // pred_check_branch
          %722 = sbr.rel (%p720) target = $region124
        $region123: #{run.3} parent=99 // pred_region
          %723 = dma.done [#allocation11], 16
        $region124: #{run.3} parent=99 // pred_fallthru
          _
        // Predicated region
        $region125: #{run.3} parent=99 // pred_check
          %p724 = pneg %p347
        $region126: #{run.3} parent=99 // pred_check_branch
          %726 = sbr.rel (%p724) target = $region128
        $region127: #{run.3} parent=99 // pred_region
          %727 = dma.done [#allocation11], 16
        $region128: #{run.3} parent=99 // pred_fallthru
          _
        // Predicated region
        $region129: #{run.3} parent=99 // pred_check
          %p728 = pneg %p368
        $region130: #{run.3} parent=99 // pred_check_branch
          %730 = sbr.rel (%p728) target = $region132
        $region131: #{run.3} parent=99 // pred_region
          %731 = dma.done [#allocation14], 512
        $region132: #{run.3} parent=99 // pred_fallthru
          _
        // Predicated region
        $region133: #{run.3} parent=99 // pred_check
          %p732 = pneg %p389
        $region134: #{run.3} parent=99 // pred_check_branch
          %734 = sbr.rel (%p732) target = $region136
        $region135: #{run.3} parent=99 // pred_region
          %735 = dma.done [#allocation14], 16
        $region136: #{run.3} parent=99 // pred_fallthru
          _
        // Predicated region
        $region137: #{run.3} parent=99 // pred_check
          %p736 = pneg %p410
        $region138: #{run.3} parent=99 // pred_check_branch
          %738 = sbr.rel (%p736) target = $region140
        $region139: #{run.3} parent=99 // pred_region
          %739 = dma.done [#allocation17], 512
        $region140: #{run.3} parent=99 // pred_fallthru
          _
        // Predicated region
        $region141: #{run.3} parent=99 // pred_check
          %p740 = pneg %p431
        $region142: #{run.3} parent=99 // pred_check_branch
          %742 = sbr.rel (%p740) target = $region144
        $region143: #{run.3} parent=99 // pred_region
          %743 = dma.done [#allocation17], 16
        $region144: #{run.3} parent=99 // pred_fallthru
          _
        // Predicated region
        $region145: #{run.3} parent=99 // pred_check
          %p744 = pneg %p473
        $region146: #{run.3} parent=99 // pred_check_branch
          %746 = sbr.rel (%p744) target = $region148
        $region147: #{run.3} parent=99 // pred_region
          %747 = dma.done [#allocation20], 16
        $region148: #{run.3} parent=99 // pred_fallthru
          _
        %p748 = scmp.lt.s32.totalorder %s38, 1
        %s749 = scalar_select %p748, %s38, 1
        %s750 = smul.addr %s749, 8
        %s751 = scalar_lea.vmem %s0, %s750
        %p752 = pneg %p59
        %p753 = pneg %p56
        %p754 = scmp.lt.s32.totalorder %s38, 1
        %s755 = scalar_select %p754, %s38, 1
        %s756 = smul.addr %s755, 8
        %s757 = scalar_lea.vmem %s1, %s756
        %p758 = pneg %p85
        %p759 = pneg %p82
        %p760 = scmp.lt.s32.totalorder %s38, 1
        %s761 = scalar_select %p760, %s38, 1
        %s762 = smul.addr %s761, 8
        %s763 = scalar_lea.vmem %s2, %s762
        %p764 = pneg %p111
        %p765 = pneg %p108
        %p766 = scmp.lt.s32.totalorder %s38, 1
        %s767 = scalar_select %p766, %s38, 1
        %s768 = scalar_lea.vmem %s3, %s767
        %p769 = pneg %p137
        %p770 = pneg %p134
        %p771 = pneg %p158
        %p772 = pneg %p155
        %p773 = pneg %p179
        %p774 = pneg %p176
        %p775 = pneg %p200
        %p776 = pneg %p197
        %p777 = pneg %p221
        %p778 = pneg %p218
        %p779 = pneg %p242
        %p780 = pneg %p239
        %p781 = pneg %p263
        %p782 = pneg %p260
        %p783 = pneg %p284
        %p784 = pneg %p281
        %p785 = pneg %p305
        %p786 = pneg %p302
        %p787 = pneg %p326
        %p788 = pneg %p323
        %p789 = pneg %p347
        %p790 = pneg %p344
        %p791 = pneg %p368
        %p792 = pneg %p365
        %p793 = pneg %p389
        %p794 = pneg %p386
        %p795 = pneg %p410
        %p796 = pneg %p407
        %p797 = pneg %p431
        %p798 = pneg %p428
        %p799 = pneg %p452
        %p800 = pneg %p449
        %p801 = pneg %p473
        %p802 = pneg %p470
        %p803 = pneg %p499
        %p804 = pneg %p496
        %p805 = scmp.lt.s32.totalorder %s38, 1
        %s806 = scalar_select %p805, %s38, 1
        %s807 = smul.addr %s806, 8
        %s808 = scalar_lea.vmem %s20, %s807
        %p809 = scmp.lt.s32.totalorder %s38, 1
        %s810 = scalar_select %p809, %s38, 1
        %s811 = smul.addr %s810, 8
        %s812 = scalar_lea.vmem %s0, %s811
        %p813 = scmp.lt.s32.totalorder %s38, 1
        %s814 = scalar_select %p813, %s38, 1
        %s815 = smul.addr %s814, 8
        %s816 = scalar_lea.vmem %s1, %s815
        %p817 = scmp.lt.s32.totalorder %s38, 1
        %s818 = scalar_select %p817, %s38, 1
        %s819 = smul.addr %s818, 8
        %s820 = scalar_lea.vmem %s2, %s819
        %p821 = scmp.lt.s32.totalorder %s38, 1
        %s822 = scalar_select %p821, %s38, 1
        %s823 = scalar_lea.vmem %s3, %s822
        %p824 = scmp.lt.s32.totalorder %s38, 1
        %s825 = scalar_select %p824, %s38, 1
        %s826 = smul.addr %s825, 8
        %s827 = scalar_lea.vmem %s20, %s826
        %v828 = vld [vmem:[%s812] sm:$0xff]
        %v829 = vld [vmem:[#allocation2] sm:$0x1]
        %v830 = vld [vmem:[#allocation4] sm:$0x1]
        %vm831 = vcmask 261120
        %v832 = vsel %vm831, %v828, 0.0
        %833 = vadd.xlane.f32.xlu0 %v832
        %v834 = vpop.xlane.xlu0 %833
        %v835 = vrcp.pop 32.0
        %v836 = vmul.f32 %v834, %v835
        %v837 = vsub.f32 %v828, %v836
        %v838 = vmul.f32 %v837, %v837
        %v839 = vsel %vm831, %v838, 0.0
        %840 = vadd.xlane.f32.xlu0 %v839
        %v841 = vpop.xlane.xlu0 %840
        %v842 = vmul.f32 %v841, %v835
        %v843 = vadd.f32 %v842, 1e-05
        %v844 = vrsqrt.pop %v843
        %v845 = vmul.f32 %v837, %v844
        %v847 = vlaneseq
        %v848 = vshrl.u32 %v847, 7
        %v849 = vsub.s32 0, %v848
        %v850 = vrot.slane %v829, %v849
        %v852 = vmul.f32 %v845, %v850
        %v854 = vlaneseq
        %v855 = vshrl.u32 %v854, 7
        %v856 = vsub.s32 0, %v855
        %v857 = vrot.slane %v830, %v856
        %v859 = vadd.f32 %v852, %v857
        %v860 = vld [vmem:[%s816] sm:$0xff]
        %v861 = vld [vmem:[#allocation6] sm:$0x1]
        %v862 = vld [vmem:[#allocation7] sm:$0x1]
        %v863 = vsel %vm831, %v860, 0.0
        %864 = vadd.xlane.f32.xlu0 %v863
        %v865 = vpop.xlane.xlu0 %864
        %v866 = vmul.f32 %v865, %v835
        %v867 = vsub.f32 %v860, %v866
        %v868 = vmul.f32 %v867, %v867
        %v869 = vsel %vm831, %v868, 0.0
        %870 = vadd.xlane.f32.xlu0 %v869
        %v871 = vpop.xlane.xlu0 %870
        %v872 = vmul.f32 %v871, %v835
        %v873 = vadd.f32 %v872, 1e-05
        %v874 = vrsqrt.pop %v873
        %v875 = vmul.f32 %v867, %v874
        %v877 = vlaneseq
        %v878 = vshrl.u32 %v877, 7
        %v879 = vsub.s32 0, %v878
        %v880 = vrot.slane %v861, %v879
        %v882 = vmul.f32 %v875, %v880
        %v884 = vlaneseq
        %v885 = vshrl.u32 %v884, 7
        %v886 = vsub.s32 0, %v885
        %v887 = vrot.slane %v862, %v886
        %v889 = vadd.f32 %v882, %v887
        %v890 = vld [vmem:[%s820] sm:$0xff]
        %v891 = vsel %vm831, %v890, 0.0
        %892 = vadd.xlane.f32.xlu0 %v891
        %v893 = vpop.xlane.xlu0 %892
        %v894 = vmul.f32 %v893, %v835
        %v895 = vsub.f32 %v890, %v894
        %v896 = vmul.f32 %v895, %v895
        %v897 = vsel %vm831, %v896, 0.0
        %898 = vadd.xlane.f32.xlu0 %v897
        %v899 = vpop.xlane.xlu0 %898
        %v900 = vmul.f32 %v899, %v835
        %v901 = vadd.f32 %v900, 1e-05
        %v902 = vrsqrt.pop %v901
        %v903 = vmul.f32 %v895, %v902
        %v904 = vmul.f32 %v903, %v880
        %v905 = vadd.f32 %v904, %v887
        %v906 = vld [vmem:[%s8] sm:$0xff]
        %v907 = vld [vmem:[%s8 + $0x8] sm:$0xff]
        %v908 = vld [vmem:[%s8 + $0x10] sm:$0xff]
        %v909 = vld [vmem:[%s8 + $0x18] sm:$0xff]
        %v910 = vld [vmem:[#allocation9] sm:$0x1]
        %v912 = vlaneseq
        %v913 = vshrl.u32 %v912, 7
        %v914 = vsub.s32 0, %v913
        %v915 = vrot.slane %v910, %v914
        %v918 = vsel %vm831, %v859, 0
        %920 = vmatprep.subr.mxu0 0.0
        %921 = vmatpush1.msra.mxu0 %v906
        %922 = vmatprep.subr.mxu0 0.0
        %923 = vmatpush1.msra.mxu0 %v907
        %924 = vmatprep.subr.mxu0 0.0
        %925 = vmatpush1.msra.mxu0 %v908
        %926 = vmatprep.subr.mxu0 0.0
        %927 = vmatpush1.msra.mxu0 %v909
        %928 = vmatprep.subr.mxu0 0.0
        %929 = vmatpush1.msra.mxu0 0.0
        %930 = vmatprep.subr.mxu0 0.0
        %931 = vmatpush1.msra.mxu0 0.0
        %932 = vmatprep.subr.mxu0 0.0
        %933 = vmatpush1.msra.mxu0 0.0
        %934 = vmatprep.subr.mxu0 0.0
        %935 = vmatpush1.msra.mxu0 0.0
        %936 = vmatprep.subr.mxu0 0.0
        %937 = vmatpush1.msra.mxu0 0.0
        %938 = vmatprep.subr.mxu0 0.0
        %939 = vmatpush1.msra.mxu0 0.0
        %940 = vmatprep.subr.mxu0 0.0
        %941 = vmatpush1.msra.mxu0 0.0
        %942 = vmatprep.subr.mxu0 0.0
        %943 = vmatpush1.msra.mxu0 0.0
        %944 = vmatprep.subr.mxu0 0.0
        %945 = vmatpush1.msra.mxu0 0.0
        %946 = vmatprep.subr.mxu0 0.0
        %947 = vmatpush1.msra.mxu0 0.0
        %948 = vmatprep.subr.mxu0 0.0
        %949 = vmatpush1.msra.mxu0 0.0
        %950 = vmatprep.subr.mxu0 0.0
        %951 = vmatpush1.msra.mxu0 0.0
        %952 = vmatprep.subr.mxu0 0.0
        %953 = vmatpush1.msra.mxu0 0.0
        %954 = vmatprep.subr.mxu0 0.0
        %955 = vmatpush1.msra.mxu0 0.0
        %956 = vmatprep.subr.mxu0 0.0
        %957 = vmatpush1.msra.mxu0 0.0
        %958 = vmatprep.subr.mxu0 0.0
        %959 = vmatpush1.msra.mxu0 0.0
        %960 = vmatprep.subr.mxu0 0.0
        %961 = vmatpush1.msra.mxu0 0.0
        %962 = vmatprep.subr.mxu0 0.0
        %963 = vmatpush1.msra.mxu0 0.0
        %964 = vmatprep.subr.mxu0 0.0
        %965 = vmatpush1.msra.mxu0 0.0
        %966 = vmatprep.subr.mxu0 0.0
        %967 = vmatpush1.msra.mxu0 0.0
        %968 = vmatprep.subr.mxu0 0.0
        %969 = vmatpush1.msra.mxu0 0.0
        %970 = vmatprep.subr.mxu0 0.0
        %971 = vmatpush1.msra.mxu0 0.0
        %972 = vmatprep.subr.mxu0 0.0
        %973 = vmatpush1.msra.mxu0 0.0
        %974 = vmatprep.subr.mxu0 0.0
        %975 = vmatpush1.msra.mxu0 0.0
        %976 = vmatprep.subr.mxu0 0.0
        %977 = vmatpush1.msra.mxu0 0.0
        %978 = vmatprep.subr.mxu0 0.0
        %979 = vmatpush1.msra.mxu0 0.0
        %980 = vmatprep.subr.mxu0 0.0
        %981 = vmatpush1.msra.mxu0 0.0
        %982 = vmatprep.subr.mxu0 0.0
        %983 = vmatpush1.msra.mxu0 0.0
        %984 = vmatprep.mubr.f32.mxu0 0.0
        %985 = vmatmul.mubr.f32.gmra.mrb[0].mxu0 %v918
        %v986 = vpop.f32.mrb[0].mxu0
        %v987 = vadd.f32 %v915, %v986
        %v988 = vpop.f32.mrb[0].mxu0
        %989 = vdwg.mxu0
        %v990 = vld [vmem:[%s10] sm:$0xff]
        %v991 = vld [vmem:[%s10 + $0x8] sm:$0xff]
        %v992 = vld [vmem:[%s10 + $0x10] sm:$0xff]
        %v993 = vld [vmem:[%s10 + $0x18] sm:$0xff]
        %v994 = vld [vmem:[#allocation10] sm:$0x1]
        %v996 = vlaneseq
        %v997 = vshrl.u32 %v996, 7
        %v998 = vsub.s32 0, %v997
        %v999 = vrot.slane %v994, %v998
        %v1002 = vsel %vm831, %v889, 0
        %1004 = vmatprep.subr.mxu0 0.0
        %1005 = vmatpush1.msra.mxu0 %v990
        %1006 = vmatprep.subr.mxu0 0.0
        %1007 = vmatpush1.msra.mxu0 %v991
        %1008 = vmatprep.subr.mxu0 0.0
        %1009 = vmatpush1.msra.mxu0 %v992
        %1010 = vmatprep.subr.mxu0 0.0
        %1011 = vmatpush1.msra.mxu0 %v993
        %1012 = vmatprep.subr.mxu0 0.0
        %1013 = vmatpush1.msra.mxu0 0.0
        %1014 = vmatprep.subr.mxu0 0.0
        %1015 = vmatpush1.msra.mxu0 0.0
        %1016 = vmatprep.subr.mxu0 0.0
        %1017 = vmatpush1.msra.mxu0 0.0
        %1018 = vmatprep.subr.mxu0 0.0
        %1019 = vmatpush1.msra.mxu0 0.0
        %1020 = vmatprep.subr.mxu0 0.0
        %1021 = vmatpush1.msra.mxu0 0.0
        %1022 = vmatprep.subr.mxu0 0.0
        %1023 = vmatpush1.msra.mxu0 0.0
        %1024 = vmatprep.subr.mxu0 0.0
        %1025 = vmatpush1.msra.mxu0 0.0
        %1026 = vmatprep.subr.mxu0 0.0
        %1027 = vmatpush1.msra.mxu0 0.0
        %1028 = vmatprep.subr.mxu0 0.0
        %1029 = vmatpush1.msra.mxu0 0.0
        %1030 = vmatprep.subr.mxu0 0.0
        %1031 = vmatpush1.msra.mxu0 0.0
        %1032 = vmatprep.subr.mxu0 0.0
        %1033 = vmatpush1.msra.mxu0 0.0
        %1034 = vmatprep.subr.mxu0 0.0
        %1035 = vmatpush1.msra.mxu0 0.0
        %1036 = vmatprep.subr.mxu0 0.0
        %1037 = vmatpush1.msra.mxu0 0.0
        %1038 = vmatprep.subr.mxu0 0.0
        %1039 = vmatpush1.msra.mxu0 0.0
        %1040 = vmatprep.subr.mxu0 0.0
        %1041 = vmatpush1.msra.mxu0 0.0
        %1042 = vmatprep.subr.mxu0 0.0
        %1043 = vmatpush1.msra.mxu0 0.0
        %1044 = vmatprep.subr.mxu0 0.0
        %1045 = vmatpush1.msra.mxu0 0.0
        %1046 = vmatprep.subr.mxu0 0.0
        %1047 = vmatpush1.msra.mxu0 0.0
        %1048 = vmatprep.subr.mxu0 0.0
        %1049 = vmatpush1.msra.mxu0 0.0
        %1050 = vmatprep.subr.mxu0 0.0
        %1051 = vmatpush1.msra.mxu0 0.0
        %1052 = vmatprep.subr.mxu0 0.0
        %1053 = vmatpush1.msra.mxu0 0.0
        %1054 = vmatprep.subr.mxu0 0.0
        %1055 = vmatpush1.msra.mxu0 0.0
        %1056 = vmatprep.subr.mxu0 0.0
        %1057 = vmatpush1.msra.mxu0 0.0
        %1058 = vmatprep.subr.mxu0 0.0
        %1059 = vmatpush1.msra.mxu0 0.0
        %1060 = vmatprep.subr.mxu0 0.0
        %1061 = vmatpush1.msra.mxu0 0.0
        %1062 = vmatprep.subr.mxu0 0.0
        %1063 = vmatpush1.msra.mxu0 0.0
        %1064 = vmatprep.subr.mxu0 0.0
        %1065 = vmatpush1.msra.mxu0 0.0
        %1066 = vmatprep.subr.mxu0 0.0
        %1067 = vmatpush1.msra.mxu0 0.0
        %1068 = vmatprep.mubr.f32.mxu0 0.0
        %1069 = vmatmul.mubr.f32.gmra.mrb[0].mxu0 %v1002
        %v1070 = vpop.f32.mrb[0].mxu0
        %v1071 = vadd.f32 %v999, %v1070
        %v1072 = vpop.f32.mrb[0].mxu0
        %1073 = vdwg.mxu0
        %v1074 = vld [vmem:[%s12] sm:$0xff]
        %v1075 = vld [vmem:[%s12 + $0x8] sm:$0xff]
        %v1076 = vld [vmem:[%s12 + $0x10] sm:$0xff]
        %v1077 = vld [vmem:[%s12 + $0x18] sm:$0xff]
        %v1078 = vld [vmem:[#allocation12] sm:$0x1]
        %v1080 = vlaneseq
        %v1081 = vshrl.u32 %v1080, 7
        %v1082 = vsub.s32 0, %v1081
        %v1083 = vrot.slane %v1078, %v1082
        %v1086 = vsel %vm831, %v905, 0
        %1088 = vmatprep.subr.mxu0 0.0
        %1089 = vmatpush1.msra.mxu0 %v1074
        %1090 = vmatprep.subr.mxu0 0.0
        %1091 = vmatpush1.msra.mxu0 %v1075
        %1092 = vmatprep.subr.mxu0 0.0
        %1093 = vmatpush1.msra.mxu0 %v1076
        %1094 = vmatprep.subr.mxu0 0.0
        %1095 = vmatpush1.msra.mxu0 %v1077
        %1096 = vmatprep.subr.mxu0 0.0
        %1097 = vmatpush1.msra.mxu0 0.0
        %1098 = vmatprep.subr.mxu0 0.0
        %1099 = vmatpush1.msra.mxu0 0.0
        %1100 = vmatprep.subr.mxu0 0.0
        %1101 = vmatpush1.msra.mxu0 0.0
        %1102 = vmatprep.subr.mxu0 0.0
        %1103 = vmatpush1.msra.mxu0 0.0
        %1104 = vmatprep.subr.mxu0 0.0
        %1105 = vmatpush1.msra.mxu0 0.0
        %1106 = vmatprep.subr.mxu0 0.0
        %1107 = vmatpush1.msra.mxu0 0.0
        %1108 = vmatprep.subr.mxu0 0.0
        %1109 = vmatpush1.msra.mxu0 0.0
        %1110 = vmatprep.subr.mxu0 0.0
        %1111 = vmatpush1.msra.mxu0 0.0
        %1112 = vmatprep.subr.mxu0 0.0
        %1113 = vmatpush1.msra.mxu0 0.0
        %1114 = vmatprep.subr.mxu0 0.0
        %1115 = vmatpush1.msra.mxu0 0.0
        %1116 = vmatprep.subr.mxu0 0.0
        %1117 = vmatpush1.msra.mxu0 0.0
        %1118 = vmatprep.subr.mxu0 0.0
        %1119 = vmatpush1.msra.mxu0 0.0
        %1120 = vmatprep.subr.mxu0 0.0
        %1121 = vmatpush1.msra.mxu0 0.0
        %1122 = vmatprep.subr.mxu0 0.0
        %1123 = vmatpush1.msra.mxu0 0.0
        %1124 = vmatprep.subr.mxu0 0.0
        %1125 = vmatpush1.msra.mxu0 0.0
        %1126 = vmatprep.subr.mxu0 0.0
        %1127 = vmatpush1.msra.mxu0 0.0
        %1128 = vmatprep.subr.mxu0 0.0
        %1129 = vmatpush1.msra.mxu0 0.0
        %1130 = vmatprep.subr.mxu0 0.0
        %1131 = vmatpush1.msra.mxu0 0.0
        %1132 = vmatprep.subr.mxu0 0.0
        %1133 = vmatpush1.msra.mxu0 0.0
        %1134 = vmatprep.subr.mxu0 0.0
        %1135 = vmatpush1.msra.mxu0 0.0
        %1136 = vmatprep.subr.mxu0 0.0
        %1137 = vmatpush1.msra.mxu0 0.0
        %1138 = vmatprep.subr.mxu0 0.0
        %1139 = vmatpush1.msra.mxu0 0.0
        %1140 = vmatprep.subr.mxu0 0.0
        %1141 = vmatpush1.msra.mxu0 0.0
        %1142 = vmatprep.subr.mxu0 0.0
        %1143 = vmatpush1.msra.mxu0 0.0
        %1144 = vmatprep.subr.mxu0 0.0
        %1145 = vmatpush1.msra.mxu0 0.0
        %1146 = vmatprep.subr.mxu0 0.0
        %1147 = vmatpush1.msra.mxu0 0.0
        %1148 = vmatprep.subr.mxu0 0.0
        %1149 = vmatpush1.msra.mxu0 0.0
        %1150 = vmatprep.subr.mxu0 0.0
        %1151 = vmatpush1.msra.mxu0 0.0
        %1152 = vmatprep.mubr.f32.mxu0 0.0
        %1153 = vmatmul.mubr.f32.gmra.mrb[0].mxu0 %v1086
        %v1154 = vpop.f32.mrb[0].mxu0
        %v1155 = vadd.f32 %v1083, %v1154
        %v1156 = vpop.f32.mrb[0].mxu0
        %1157 = vdwg.mxu0
        %v1158 = vld [vmem:[%s823] sm:$0x1]
        %v1159 = vlaneseq
        %v1160 = vand.u32 %v1159, 127
        %vm1161 = vcmp.ge.s32.totalorder %v1160, 0
        %vm1162 = vcmp.lt.s32.totalorder %v1160, 8
        %vm1163 = vmand %vm1161, %vm1162
        %v1164 = vsel %vm1163, 1, 0
        %v1165 = vcvt.s32.f32 %v1164
        %v1166 = vmul.f32 %v987, %v1165
        %v1168 = vsel %vm831, %v1166, 0
        %v1171 = vsel %vm831, %v1071, 0
        %1173 = vmatprep.subr.mxu0 0.0
        %1174 = vmatpush1.xpose.msra.mxu0 %v1171
        %1175 = vmatprep.subr.mxu0 0.0
        %1176 = vmatpush1.xpose.msra.mxu0 0.0
        %1177 = vmatprep.subr.mxu0 0.0
        %1178 = vmatpush1.xpose.msra.mxu0 0.0
        %1179 = vmatprep.subr.mxu0 0.0
        %1180 = vmatpush1.xpose.msra.mxu0 0.0
        %1181 = vmatprep.subr.mxu0 0.0
        %1182 = vmatpush1.xpose.msra.mxu0 0.0
        %1183 = vmatprep.subr.mxu0 0.0
        %1184 = vmatpush1.xpose.msra.mxu0 0.0
        %1185 = vmatprep.subr.mxu0 0.0
        %1186 = vmatpush1.xpose.msra.mxu0 0.0
        %1187 = vmatprep.subr.mxu0 0.0
        %1188 = vmatpush1.xpose.msra.mxu0 0.0
        %1189 = vmatprep.subr.mxu0 0.0
        %1190 = vmatpush1.xpose.msra.mxu0 0.0
        %1191 = vmatprep.subr.mxu0 0.0
        %1192 = vmatpush1.xpose.msra.mxu0 0.0
        %1193 = vmatprep.subr.mxu0 0.0
        %1194 = vmatpush1.xpose.msra.mxu0 0.0
        %1195 = vmatprep.subr.mxu0 0.0
        %1196 = vmatpush1.xpose.msra.mxu0 0.0
        %1197 = vmatprep.subr.mxu0 0.0
        %1198 = vmatpush1.xpose.msra.mxu0 0.0
        %1199 = vmatprep.subr.mxu0 0.0
        %1200 = vmatpush1.xpose.msra.mxu0 0.0
        %1201 = vmatprep.subr.mxu0 0.0
        %1202 = vmatpush1.xpose.msra.mxu0 0.0
        %1203 = vmatprep.subr.mxu0 0.0
        %1204 = vmatpush1.xpose.msra.mxu0 0.0
        %1205 = vmatprep.subr.mxu0 0.0
        %1206 = vmatpush1.xpose.msra.mxu0 0.0
        %1207 = vmatprep.subr.mxu0 0.0
        %1208 = vmatpush1.xpose.msra.mxu0 0.0
        %1209 = vmatprep.subr.mxu0 0.0
        %1210 = vmatpush1.xpose.msra.mxu0 0.0
        %1211 = vmatprep.subr.mxu0 0.0
        %1212 = vmatpush1.xpose.msra.mxu0 0.0
        %1213 = vmatprep.subr.mxu0 0.0
        %1214 = vmatpush1.xpose.msra.mxu0 0.0
        %1215 = vmatprep.subr.mxu0 0.0
        %1216 = vmatpush1.xpose.msra.mxu0 0.0
        %1217 = vmatprep.subr.mxu0 0.0
        %1218 = vmatpush1.xpose.msra.mxu0 0.0
        %1219 = vmatprep.subr.mxu0 0.0
        %1220 = vmatpush1.xpose.msra.mxu0 0.0
        %1221 = vmatprep.subr.mxu0 0.0
        %1222 = vmatpush1.xpose.msra.mxu0 0.0
        %1223 = vmatprep.subr.mxu0 0.0
        %1224 = vmatpush1.xpose.msra.mxu0 0.0
        %1225 = vmatprep.subr.mxu0 0.0
        %1226 = vmatpush1.xpose.msra.mxu0 0.0
        %1227 = vmatprep.subr.mxu0 0.0
        %1228 = vmatpush1.xpose.msra.mxu0 0.0
        %1229 = vmatprep.subr.mxu0 0.0
        %1230 = vmatpush1.xpose.msra.mxu0 0.0
        %1231 = vmatprep.subr.mxu0 0.0
        %1232 = vmatpush1.xpose.msra.mxu0 0.0
        %1233 = vmatprep.subr.mxu0 0.0
        %1234 = vmatpush1.xpose.msra.mxu0 0.0
        %1235 = vmatprep.subr.mxu0 0.0
        %1236 = vmatpush1.xpose.msra.mxu0 0.0
        %1237 = vmatprep.mubr.f32.mxu0 0.0
        %1238 = vmatmul.mubr.f32.gmra.mrb[0].mxu0 %v1168
        %v1239 = vpop.f32.mrb[0].mxu0
        %v1240 = vadd.f32 0.0, %v1239
        %v1241 = vpop.f32.mrb[0].mxu0
        %1242 = vdwg.mxu0
        %v1243 = vmul.f32 %v1240, 0.35355338
        %v1245 = vlaneseq
        %v1246 = vshrl.u32 %v1245, 7
        %v1247 = vsub.s32 0, %v1246
        %v1248 = vrot.slane %v1158, %v1247
        %v1250 = vadd.f32 %v1243, %v1248
        %vm1251 = vcmask 64512
        %v1252 = vsel %vm1251, %v1250, -inf
        %1253 = vmax.xlane.f32.xlu0 %v1252
        %v1254 = vpop.xlane.xlu0 %1253
        %v1255 = vsub.f32 %v1250, %v1254
        %v1256 = vmul.f32 %v1255, 1.442695
        %v1257 = vpow.pop %v1256
        %v1258 = vsel %vm1251, %v1257, 0.0
        %1259 = vadd.xlane.f32.xlu0 %v1258
        %v1260 = vpop.xlane.xlu0 %1259
        %v1261 = vrcp.pop %v1260
        %v1262 = vmul.f32 %v1257, %v1261
        %v1263 = vmul.f32 %v1155, %v1165
        %vm1264 = vcmp.ge.s32.totalorder %v1160, 8
        %vm1265 = vcmp.lt.s32.totalorder %v1160, 16
        %vm1266 = vmand %vm1264, %vm1265
        %v1267 = vsel %vm1266, 1, 0
        %v1268 = vcvt.s32.f32 %v1267
        %v1269 = vmul.f32 %v987, %v1268
        %v1271 = vsel %vm831, %v1269, 0
        %1273 = vmatprep.subr.mxu0 0.0
        %1274 = vmatpush1.xpose.msra.mxu0 %v1171
        %1275 = vmatprep.subr.mxu0 0.0
        %1276 = vmatpush1.xpose.msra.mxu0 0.0
        %1277 = vmatprep.subr.mxu0 0.0
        %1278 = vmatpush1.xpose.msra.mxu0 0.0
        %1279 = vmatprep.subr.mxu0 0.0
        %1280 = vmatpush1.xpose.msra.mxu0 0.0
        %1281 = vmatprep.subr.mxu0 0.0
        %1282 = vmatpush1.xpose.msra.mxu0 0.0
        %1283 = vmatprep.subr.mxu0 0.0
        %1284 = vmatpush1.xpose.msra.mxu0 0.0
        %1285 = vmatprep.subr.mxu0 0.0
        %1286 = vmatpush1.xpose.msra.mxu0 0.0
        %1287 = vmatprep.subr.mxu0 0.0
        %1288 = vmatpush1.xpose.msra.mxu0 0.0
        %1289 = vmatprep.subr.mxu0 0.0
        %1290 = vmatpush1.xpose.msra.mxu0 0.0
        %1291 = vmatprep.subr.mxu0 0.0
        %1292 = vmatpush1.xpose.msra.mxu0 0.0
        %1293 = vmatprep.subr.mxu0 0.0
        %1294 = vmatpush1.xpose.msra.mxu0 0.0
        %1295 = vmatprep.subr.mxu0 0.0
        %1296 = vmatpush1.xpose.msra.mxu0 0.0
        %1297 = vmatprep.subr.mxu0 0.0
        %1298 = vmatpush1.xpose.msra.mxu0 0.0
        %1299 = vmatprep.subr.mxu0 0.0
        %1300 = vmatpush1.xpose.msra.mxu0 0.0
        %1301 = vmatprep.subr.mxu0 0.0
        %1302 = vmatpush1.xpose.msra.mxu0 0.0
        %1303 = vmatprep.subr.mxu0 0.0
        %1304 = vmatpush1.xpose.msra.mxu0 0.0
        %1305 = vmatprep.subr.mxu0 0.0
        %1306 = vmatpush1.xpose.msra.mxu0 0.0
        %1307 = vmatprep.subr.mxu0 0.0
        %1308 = vmatpush1.xpose.msra.mxu0 0.0
        %1309 = vmatprep.subr.mxu0 0.0
        %1310 = vmatpush1.xpose.msra.mxu0 0.0
        %1311 = vmatprep.subr.mxu0 0.0
        %1312 = vmatpush1.xpose.msra.mxu0 0.0
        %1313 = vmatprep.subr.mxu0 0.0
        %1314 = vmatpush1.xpose.msra.mxu0 0.0
        %1315 = vmatprep.subr.mxu0 0.0
        %1316 = vmatpush1.xpose.msra.mxu0 0.0
        %1317 = vmatprep.subr.mxu0 0.0
        %1318 = vmatpush1.xpose.msra.mxu0 0.0
        %1319 = vmatprep.subr.mxu0 0.0
        %1320 = vmatpush1.xpose.msra.mxu0 0.0
        %1321 = vmatprep.subr.mxu0 0.0
        %1322 = vmatpush1.xpose.msra.mxu0 0.0
        %1323 = vmatprep.subr.mxu0 0.0
        %1324 = vmatpush1.xpose.msra.mxu0 0.0
        %1325 = vmatprep.subr.mxu0 0.0
        %1326 = vmatpush1.xpose.msra.mxu0 0.0
        %1327 = vmatprep.subr.mxu0 0.0
        %1328 = vmatpush1.xpose.msra.mxu0 0.0
        %1329 = vmatprep.subr.mxu0 0.0
        %1330 = vmatpush1.xpose.msra.mxu0 0.0
        %1331 = vmatprep.subr.mxu0 0.0
        %1332 = vmatpush1.xpose.msra.mxu0 0.0
        %1333 = vmatprep.subr.mxu0 0.0
        %1334 = vmatpush1.xpose.msra.mxu0 0.0
        %1335 = vmatprep.subr.mxu0 0.0
        %1336 = vmatpush1.xpose.msra.mxu0 0.0
        %1337 = vmatprep.mubr.f32.mxu0 0.0
        %1338 = vmatmul.mubr.f32.gmra.mrb[0].mxu0 %v1271
        %v1339 = vpop.f32.mrb[0].mxu0
        %v1340 = vadd.f32 0.0, %v1339
        %v1341 = vpop.f32.mrb[0].mxu0
        %1342 = vdwg.mxu0
        %v1343 = vmul.f32 %v1340, 0.35355338
        %v1344 = vadd.f32 %v1343, %v1248
        %v1345 = vsel %vm1251, %v1344, -inf
        %1346 = vmax.xlane.f32.xlu0 %v1345
        %v1347 = vpop.xlane.xlu0 %1346
        %v1348 = vsub.f32 %v1344, %v1347
        %v1349 = vmul.f32 %v1348, 1.442695
        %v1350 = vpow.pop %v1349
        %v1351 = vsel %vm1251, %v1350, 0.0
        %1352 = vadd.xlane.f32.xlu0 %v1351
        %v1353 = vpop.xlane.xlu0 %1352
        %v1354 = vrcp.pop %v1353
        %v1355 = vmul.f32 %v1350, %v1354
        %v1356 = vmul.f32 %v1155, %v1268
        %v1358 = vsel %vm1251, %v1355, 0
        %1360 = vmatprep.subr.mxu0 0.0
        %1361 = vmatpush1.msra.mxu0 %v1356
        %1362 = vmatprep.subr.mxu0 0.0
        %1363 = vmatpush1.msra.mxu0 0.0
        %1364 = vmatprep.subr.mxu0 0.0
        %1365 = vmatpush1.msra.mxu0 0.0
        %1366 = vmatprep.subr.mxu0 0.0
        %1367 = vmatpush1.msra.mxu0 0.0
        %1368 = vmatprep.subr.mxu0 0.0
        %1369 = vmatpush1.msra.mxu0 0.0
        %1370 = vmatprep.subr.mxu0 0.0
        %1371 = vmatpush1.msra.mxu0 0.0
        %1372 = vmatprep.subr.mxu0 0.0
        %1373 = vmatpush1.msra.mxu0 0.0
        %1374 = vmatprep.subr.mxu0 0.0
        %1375 = vmatpush1.msra.mxu0 0.0
        %1376 = vmatprep.subr.mxu0 0.0
        %1377 = vmatpush1.msra.mxu0 0.0
        %1378 = vmatprep.subr.mxu0 0.0
        %1379 = vmatpush1.msra.mxu0 0.0
        %1380 = vmatprep.subr.mxu0 0.0
        %1381 = vmatpush1.msra.mxu0 0.0
        %1382 = vmatprep.subr.mxu0 0.0
        %1383 = vmatpush1.msra.mxu0 0.0
        %1384 = vmatprep.subr.mxu0 0.0
        %1385 = vmatpush1.msra.mxu0 0.0
        %1386 = vmatprep.subr.mxu0 0.0
        %1387 = vmatpush1.msra.mxu0 0.0
        %1388 = vmatprep.subr.mxu0 0.0
        %1389 = vmatpush1.msra.mxu0 0.0
        %1390 = vmatprep.subr.mxu0 0.0
        %1391 = vmatpush1.msra.mxu0 0.0
        %1392 = vmatprep.subr.mxu0 0.0
        %1393 = vmatpush1.msra.mxu0 0.0
        %1394 = vmatprep.subr.mxu0 0.0
        %1395 = vmatpush1.msra.mxu0 0.0
        %1396 = vmatprep.subr.mxu0 0.0
        %1397 = vmatpush1.msra.mxu0 0.0
        %1398 = vmatprep.subr.mxu0 0.0
        %1399 = vmatpush1.msra.mxu0 0.0
        %1400 = vmatprep.subr.mxu0 0.0
        %1401 = vmatpush1.msra.mxu0 0.0
        %1402 = vmatprep.subr.mxu0 0.0
        %1403 = vmatpush1.msra.mxu0 0.0
        %1404 = vmatprep.subr.mxu0 0.0
        %1405 = vmatpush1.msra.mxu0 0.0
        %1406 = vmatprep.subr.mxu0 0.0
        %1407 = vmatpush1.msra.mxu0 0.0
        %1408 = vmatprep.subr.mxu0 0.0
        %1409 = vmatpush1.msra.mxu0 0.0
        %1410 = vmatprep.subr.mxu0 0.0
        %1411 = vmatpush1.msra.mxu0 0.0
        %1412 = vmatprep.subr.mxu0 0.0
        %1413 = vmatpush1.msra.mxu0 0.0
        %1414 = vmatprep.subr.mxu0 0.0
        %1415 = vmatpush1.msra.mxu0 0.0
        %1416 = vmatprep.subr.mxu0 0.0
        %1417 = vmatpush1.msra.mxu0 0.0
        %1418 = vmatprep.subr.mxu0 0.0
        %1419 = vmatpush1.msra.mxu0 0.0
        %1420 = vmatprep.subr.mxu0 0.0
        %1421 = vmatpush1.msra.mxu0 0.0
        %1422 = vmatprep.subr.mxu0 0.0
        %1423 = vmatpush1.msra.mxu0 0.0
        %1424 = vmatprep.mubr.f32.mxu0 0.0
        %1425 = vmatmul.mubr.f32.gmra.mrb[0].mxu0 %v1358
        %v1426 = vpop.f32.mrb[0].mxu0
        %v1427 = vadd.f32 0.0, %v1426
        %v1428 = vpop.f32.mrb[0].mxu0
        %1429 = vdwg.mxu0
        %v1431 = vsel %vm1251, %v1262, 0
        %1433 = vmatprep.subr.mxu0 0.0
        %1434 = vmatpush1.msra.mxu0 %v1263
        %1435 = vmatprep.subr.mxu0 0.0
        %1436 = vmatpush1.msra.mxu0 0.0
        %1437 = vmatprep.subr.mxu0 0.0
        %1438 = vmatpush1.msra.mxu0 0.0
        %1439 = vmatprep.subr.mxu0 0.0
        %1440 = vmatpush1.msra.mxu0 0.0
        %1441 = vmatprep.subr.mxu0 0.0
        %1442 = vmatpush1.msra.mxu0 0.0
        %1443 = vmatprep.subr.mxu0 0.0
        %1444 = vmatpush1.msra.mxu0 0.0
        %1445 = vmatprep.subr.mxu0 0.0
        %1446 = vmatpush1.msra.mxu0 0.0
        %1447 = vmatprep.subr.mxu0 0.0
        %1448 = vmatpush1.msra.mxu0 0.0
        %1449 = vmatprep.subr.mxu0 0.0
        %1450 = vmatpush1.msra.mxu0 0.0
        %1451 = vmatprep.subr.mxu0 0.0
        %1452 = vmatpush1.msra.mxu0 0.0
        %1453 = vmatprep.subr.mxu0 0.0
        %1454 = vmatpush1.msra.mxu0 0.0
        %1455 = vmatprep.subr.mxu0 0.0
        %1456 = vmatpush1.msra.mxu0 0.0
        %1457 = vmatprep.subr.mxu0 0.0
        %1458 = vmatpush1.msra.mxu0 0.0
        %1459 = vmatprep.subr.mxu0 0.0
        %1460 = vmatpush1.msra.mxu0 0.0
        %1461 = vmatprep.subr.mxu0 0.0
        %1462 = vmatpush1.msra.mxu0 0.0
        %1463 = vmatprep.subr.mxu0 0.0
        %1464 = vmatpush1.msra.mxu0 0.0
        %1465 = vmatprep.subr.mxu0 0.0
        %1466 = vmatpush1.msra.mxu0 0.0
        %1467 = vmatprep.subr.mxu0 0.0
        %1468 = vmatpush1.msra.mxu0 0.0
        %1469 = vmatprep.subr.mxu0 0.0
        %1470 = vmatpush1.msra.mxu0 0.0
        %1471 = vmatprep.subr.mxu0 0.0
        %1472 = vmatpush1.msra.mxu0 0.0
        %1473 = vmatprep.subr.mxu0 0.0
        %1474 = vmatpush1.msra.mxu0 0.0
        %1475 = vmatprep.subr.mxu0 0.0
        %1476 = vmatpush1.msra.mxu0 0.0
        %1477 = vmatprep.subr.mxu0 0.0
        %1478 = vmatpush1.msra.mxu0 0.0
        %1479 = vmatprep.subr.mxu0 0.0
        %1480 = vmatpush1.msra.mxu0 0.0
        %1481 = vmatprep.subr.mxu0 0.0
        %1482 = vmatpush1.msra.mxu0 0.0
        %1483 = vmatprep.subr.mxu0 0.0
        %1484 = vmatpush1.msra.mxu0 0.0
        %1485 = vmatprep.subr.mxu0 0.0
        %1486 = vmatpush1.msra.mxu0 0.0
        %1487 = vmatprep.subr.mxu0 0.0
        %1488 = vmatpush1.msra.mxu0 0.0
        %1489 = vmatprep.subr.mxu0 0.0
        %1490 = vmatpush1.msra.mxu0 0.0
        %1491 = vmatprep.subr.mxu0 0.0
        %1492 = vmatpush1.msra.mxu0 0.0
        %1493 = vmatprep.subr.mxu0 0.0
        %1494 = vmatpush1.msra.mxu0 0.0
        %1495 = vmatprep.subr.mxu0 0.0
        %1496 = vmatpush1.msra.mxu0 0.0
        %1497 = vmatprep.mubr.f32.mxu0 0.0
        %1498 = vmatmul.mubr.f32.gmra.mrb[0].mxu0 %v1431
        %v1499 = vpop.f32.mrb[0].mxu0
        %v1500 = vadd.f32 %v1427, %v1499
        %v1501 = vpop.f32.mrb[0].mxu0
        %1502 = vdwg.mxu0
        %vm1503 = vcmp.ge.s32.totalorder %v1160, 16
        %vm1504 = vcmp.lt.s32.totalorder %v1160, 24
        %vm1505 = vmand %vm1503, %vm1504
        %v1506 = vsel %vm1505, 1, 0
        %v1507 = vcvt.s32.f32 %v1506
        %v1508 = vmul.f32 %v987, %v1507
        %v1510 = vsel %vm831, %v1508, 0
        %1512 = vmatprep.subr.mxu0 0.0
        %1513 = vmatpush1.xpose.msra.mxu0 %v1171
        %1514 = vmatprep.subr.mxu0 0.0
        %1515 = vmatpush1.xpose.msra.mxu0 0.0
        %1516 = vmatprep.subr.mxu0 0.0
        %1517 = vmatpush1.xpose.msra.mxu0 0.0
        %1518 = vmatprep.subr.mxu0 0.0
        %1519 = vmatpush1.xpose.msra.mxu0 0.0
        %1520 = vmatprep.subr.mxu0 0.0
        %1521 = vmatpush1.xpose.msra.mxu0 0.0
        %1522 = vmatprep.subr.mxu0 0.0
        %1523 = vmatpush1.xpose.msra.mxu0 0.0
        %1524 = vmatprep.subr.mxu0 0.0
        %1525 = vmatpush1.xpose.msra.mxu0 0.0
        %1526 = vmatprep.subr.mxu0 0.0
        %1527 = vmatpush1.xpose.msra.mxu0 0.0
        %1528 = vmatprep.subr.mxu0 0.0
        %1529 = vmatpush1.xpose.msra.mxu0 0.0
        %1530 = vmatprep.subr.mxu0 0.0
        %1531 = vmatpush1.xpose.msra.mxu0 0.0
        %1532 = vmatprep.subr.mxu0 0.0
        %1533 = vmatpush1.xpose.msra.mxu0 0.0
        %1534 = vmatprep.subr.mxu0 0.0
        %1535 = vmatpush1.xpose.msra.mxu0 0.0
        %1536 = vmatprep.subr.mxu0 0.0
        %1537 = vmatpush1.xpose.msra.mxu0 0.0
        %1538 = vmatprep.subr.mxu0 0.0
        %1539 = vmatpush1.xpose.msra.mxu0 0.0
        %1540 = vmatprep.subr.mxu0 0.0
        %1541 = vmatpush1.xpose.msra.mxu0 0.0
        %1542 = vmatprep.subr.mxu0 0.0
        %1543 = vmatpush1.xpose.msra.mxu0 0.0
        %1544 = vmatprep.subr.mxu0 0.0
        %1545 = vmatpush1.xpose.msra.mxu0 0.0
        %1546 = vmatprep.subr.mxu0 0.0
        %1547 = vmatpush1.xpose.msra.mxu0 0.0
        %1548 = vmatprep.subr.mxu0 0.0
        %1549 = vmatpush1.xpose.msra.mxu0 0.0
        %1550 = vmatprep.subr.mxu0 0.0
        %1551 = vmatpush1.xpose.msra.mxu0 0.0
        %1552 = vmatprep.subr.mxu0 0.0
        %1553 = vmatpush1.xpose.msra.mxu0 0.0
        %1554 = vmatprep.subr.mxu0 0.0
        %1555 = vmatpush1.xpose.msra.mxu0 0.0
        %1556 = vmatprep.subr.mxu0 0.0
        %1557 = vmatpush1.xpose.msra.mxu0 0.0
        %1558 = vmatprep.subr.mxu0 0.0
        %1559 = vmatpush1.xpose.msra.mxu0 0.0
        %1560 = vmatprep.subr.mxu0 0.0
        %1561 = vmatpush1.xpose.msra.mxu0 0.0
        %1562 = vmatprep.subr.mxu0 0.0
        %1563 = vmatpush1.xpose.msra.mxu0 0.0
        %1564 = vmatprep.subr.mxu0 0.0
        %1565 = vmatpush1.xpose.msra.mxu0 0.0
        %1566 = vmatprep.subr.mxu0 0.0
        %1567 = vmatpush1.xpose.msra.mxu0 0.0
        %1568 = vmatprep.subr.mxu0 0.0
        %1569 = vmatpush1.xpose.msra.mxu0 0.0
        %1570 = vmatprep.subr.mxu0 0.0
        %1571 = vmatpush1.xpose.msra.mxu0 0.0
        %1572 = vmatprep.subr.mxu0 0.0
        %1573 = vmatpush1.xpose.msra.mxu0 0.0
        %1574 = vmatprep.subr.mxu0 0.0
        %1575 = vmatpush1.xpose.msra.mxu0 0.0
        %1576 = vmatprep.mubr.f32.mxu0 0.0
        %1577 = vmatmul.mubr.f32.gmra.mrb[0].mxu0 %v1510
        %v1578 = vpop.f32.mrb[0].mxu0
        %v1579 = vadd.f32 0.0, %v1578
        %v1580 = vpop.f32.mrb[0].mxu0
        %1581 = vdwg.mxu0
        %v1582 = vmul.f32 %v1579, 0.35355338
        %v1583 = vadd.f32 %v1582, %v1248
        %v1584 = vsel %vm1251, %v1583, -inf
        %1585 = vmax.xlane.f32.xlu0 %v1584
        %v1586 = vpop.xlane.xlu0 %1585
        %v1587 = vsub.f32 %v1583, %v1586
        %v1588 = vmul.f32 %v1587, 1.442695
        %v1589 = vpow.pop %v1588
        %v1590 = vsel %vm1251, %v1589, 0.0
        %1591 = vadd.xlane.f32.xlu0 %v1590
        %v1592 = vpop.xlane.xlu0 %1591
        %v1593 = vrcp.pop %v1592
        %v1594 = vmul.f32 %v1589, %v1593
        %v1595 = vmul.f32 %v1155, %v1507
        %v1597 = vsel %vm1251, %v1594, 0
        %1599 = vmatprep.subr.mxu0 0.0
        %1600 = vmatpush1.msra.mxu0 %v1595
        %1601 = vmatprep.subr.mxu0 0.0
        %1602 = vmatpush1.msra.mxu0 0.0
        %1603 = vmatprep.subr.mxu0 0.0
        %1604 = vmatpush1.msra.mxu0 0.0
        %1605 = vmatprep.subr.mxu0 0.0
        %1606 = vmatpush1.msra.mxu0 0.0
        %1607 = vmatprep.subr.mxu0 0.0
        %1608 = vmatpush1.msra.mxu0 0.0
        %1609 = vmatprep.subr.mxu0 0.0
        %1610 = vmatpush1.msra.mxu0 0.0
        %1611 = vmatprep.subr.mxu0 0.0
        %1612 = vmatpush1.msra.mxu0 0.0
        %1613 = vmatprep.subr.mxu0 0.0
        %1614 = vmatpush1.msra.mxu0 0.0
        %1615 = vmatprep.subr.mxu0 0.0
        %1616 = vmatpush1.msra.mxu0 0.0
        %1617 = vmatprep.subr.mxu0 0.0
        %1618 = vmatpush1.msra.mxu0 0.0
        %1619 = vmatprep.subr.mxu0 0.0
        %1620 = vmatpush1.msra.mxu0 0.0
        %1621 = vmatprep.subr.mxu0 0.0
        %1622 = vmatpush1.msra.mxu0 0.0
        %1623 = vmatprep.subr.mxu0 0.0
        %1624 = vmatpush1.msra.mxu0 0.0
        %1625 = vmatprep.subr.mxu0 0.0
        %1626 = vmatpush1.msra.mxu0 0.0
        %1627 = vmatprep.subr.mxu0 0.0
        %1628 = vmatpush1.msra.mxu0 0.0
        %1629 = vmatprep.subr.mxu0 0.0
        %1630 = vmatpush1.msra.mxu0 0.0
        %1631 = vmatprep.subr.mxu0 0.0
        %1632 = vmatpush1.msra.mxu0 0.0
        %1633 = vmatprep.subr.mxu0 0.0
        %1634 = vmatpush1.msra.mxu0 0.0
        %1635 = vmatprep.subr.mxu0 0.0
        %1636 = vmatpush1.msra.mxu0 0.0
        %1637 = vmatprep.subr.mxu0 0.0
        %1638 = vmatpush1.msra.mxu0 0.0
        %1639 = vmatprep.subr.mxu0 0.0
        %1640 = vmatpush1.msra.mxu0 0.0
        %1641 = vmatprep.subr.mxu0 0.0
        %1642 = vmatpush1.msra.mxu0 0.0
        %1643 = vmatprep.subr.mxu0 0.0
        %1644 = vmatpush1.msra.mxu0 0.0
        %1645 = vmatprep.subr.mxu0 0.0
        %1646 = vmatpush1.msra.mxu0 0.0
        %1647 = vmatprep.subr.mxu0 0.0
        %1648 = vmatpush1.msra.mxu0 0.0
        %1649 = vmatprep.subr.mxu0 0.0
        %1650 = vmatpush1.msra.mxu0 0.0
        %1651 = vmatprep.subr.mxu0 0.0
        %1652 = vmatpush1.msra.mxu0 0.0
        %1653 = vmatprep.subr.mxu0 0.0
        %1654 = vmatpush1.msra.mxu0 0.0
        %1655 = vmatprep.subr.mxu0 0.0
        %1656 = vmatpush1.msra.mxu0 0.0
        %1657 = vmatprep.subr.mxu0 0.0
        %1658 = vmatpush1.msra.mxu0 0.0
        %1659 = vmatprep.subr.mxu0 0.0
        %1660 = vmatpush1.msra.mxu0 0.0
        %1661 = vmatprep.subr.mxu0 0.0
        %1662 = vmatpush1.msra.mxu0 0.0
        %1663 = vmatprep.mubr.f32.mxu0 0.0
        %1664 = vmatmul.mubr.f32.gmra.mrb[0].mxu0 %v1597
        %v1665 = vpop.f32.mrb[0].mxu0
        %v1666 = vadd.f32 0.0, %v1665
        %v1667 = vpop.f32.mrb[0].mxu0
        %1668 = vdwg.mxu0
        %v1669 = vadd.f32 %v1500, %v1666
        %vm1670 = vcmp.ge.s32.totalorder %v1160, 24
        %vm1671 = vcmp.lt.s32.totalorder %v1160, 32
        %vm1672 = vmand %vm1670, %vm1671
        %v1673 = vsel %vm1672, 1, 0
        %v1674 = vcvt.s32.f32 %v1673
        %v1675 = vmul.f32 %v987, %v1674
        %v1677 = vsel %vm831, %v1675, 0
        %1679 = vmatprep.subr.mxu0 0.0
        %1680 = vmatpush1.xpose.msra.mxu0 %v1171
        %1681 = vmatprep.subr.mxu0 0.0
        %1682 = vmatpush1.xpose.msra.mxu0 0.0
        %1683 = vmatprep.subr.mxu0 0.0
        %1684 = vmatpush1.xpose.msra.mxu0 0.0
        %1685 = vmatprep.subr.mxu0 0.0
        %1686 = vmatpush1.xpose.msra.mxu0 0.0
        %1687 = vmatprep.subr.mxu0 0.0
        %1688 = vmatpush1.xpose.msra.mxu0 0.0
        %1689 = vmatprep.subr.mxu0 0.0
        %1690 = vmatpush1.xpose.msra.mxu0 0.0
        %1691 = vmatprep.subr.mxu0 0.0
        %1692 = vmatpush1.xpose.msra.mxu0 0.0
        %1693 = vmatprep.subr.mxu0 0.0
        %1694 = vmatpush1.xpose.msra.mxu0 0.0
        %1695 = vmatprep.subr.mxu0 0.0
        %1696 = vmatpush1.xpose.msra.mxu0 0.0
        %1697 = vmatprep.subr.mxu0 0.0
        %1698 = vmatpush1.xpose.msra.mxu0 0.0
        %1699 = vmatprep.subr.mxu0 0.0
        %1700 = vmatpush1.xpose.msra.mxu0 0.0
        %1701 = vmatprep.subr.mxu0 0.0
        %1702 = vmatpush1.xpose.msra.mxu0 0.0
        %1703 = vmatprep.subr.mxu0 0.0
        %1704 = vmatpush1.xpose.msra.mxu0 0.0
        %1705 = vmatprep.subr.mxu0 0.0
        %1706 = vmatpush1.xpose.msra.mxu0 0.0
        %1707 = vmatprep.subr.mxu0 0.0
        %1708 = vmatpush1.xpose.msra.mxu0 0.0
        %1709 = vmatprep.subr.mxu0 0.0
        %1710 = vmatpush1.xpose.msra.mxu0 0.0
        %1711 = vmatprep.subr.mxu0 0.0
        %1712 = vmatpush1.xpose.msra.mxu0 0.0
        %1713 = vmatprep.subr.mxu0 0.0
        %1714 = vmatpush1.xpose.msra.mxu0 0.0
        %1715 = vmatprep.subr.mxu0 0.0
        %1716 = vmatpush1.xpose.msra.mxu0 0.0
        %1717 = vmatprep.subr.mxu0 0.0
        %1718 = vmatpush1.xpose.msra.mxu0 0.0
        %1719 = vmatprep.subr.mxu0 0.0
        %1720 = vmatpush1.xpose.msra.mxu0 0.0
        %1721 = vmatprep.subr.mxu0 0.0
        %1722 = vmatpush1.xpose.msra.mxu0 0.0
        %1723 = vmatprep.subr.mxu0 0.0
        %1724 = vmatpush1.xpose.msra.mxu0 0.0
        %1725 = vmatprep.subr.mxu0 0.0
        %1726 = vmatpush1.xpose.msra.mxu0 0.0
        %1727 = vmatprep.subr.mxu0 0.0
        %1728 = vmatpush1.xpose.msra.mxu0 0.0
        %1729 = vmatprep.subr.mxu0 0.0
        %1730 = vmatpush1.xpose.msra.mxu0 0.0
        %1731 = vmatprep.subr.mxu0 0.0
        %1732 = vmatpush1.xpose.msra.mxu0 0.0
        %1733 = vmatprep.subr.mxu0 0.0
        %1734 = vmatpush1.xpose.msra.mxu0 0.0
        %1735 = vmatprep.subr.mxu0 0.0
        %1736 = vmatpush1.xpose.msra.mxu0 0.0
        %1737 = vmatprep.subr.mxu0 0.0
        %1738 = vmatpush1.xpose.msra.mxu0 0.0
        %1739 = vmatprep.subr.mxu0 0.0
        %1740 = vmatpush1.xpose.msra.mxu0 0.0
        %1741 = vmatprep.subr.mxu0 0.0
        %1742 = vmatpush1.xpose.msra.mxu0 0.0
        %1743 = vmatprep.mubr.f32.mxu0 0.0
        %1744 = vmatmul.mubr.f32.gmra.mrb[0].mxu0 %v1677
        %v1745 = vpop.f32.mrb[0].mxu0
        %v1746 = vadd.f32 0.0, %v1745
        %v1747 = vpop.f32.mrb[0].mxu0
        %1748 = vdwg.mxu0
        %v1749 = vmul.f32 %v1746, 0.35355338
        %v1750 = vadd.f32 %v1749, %v1248
        %v1751 = vsel %vm1251, %v1750, -inf
        %1752 = vmax.xlane.f32.xlu0 %v1751
        %v1753 = vpop.xlane.xlu0 %1752
        %v1754 = vsub.f32 %v1750, %v1753
        %v1755 = vmul.f32 %v1754, 1.442695
        %v1756 = vpow.pop %v1755
        %v1757 = vsel %vm1251, %v1756, 0.0
        %1758 = vadd.xlane.f32.xlu0 %v1757
        %v1759 = vpop.xlane.xlu0 %1758
        %v1760 = vrcp.pop %v1759
        %v1761 = vmul.f32 %v1756, %v1760
        %v1762 = vmul.f32 %v1155, %v1674
        %v1764 = vsel %vm1251, %v1761, 0
        %1766 = vmatprep.subr.mxu0 0.0
        %1767 = vmatpush1.msra.mxu0 %v1762
        %1768 = vmatprep.subr.mxu0 0.0
        %1769 = vmatpush1.msra.mxu0 0.0
        %1770 = vmatprep.subr.mxu0 0.0
        %1771 = vmatpush1.msra.mxu0 0.0
        %1772 = vmatprep.subr.mxu0 0.0
        %1773 = vmatpush1.msra.mxu0 0.0
        %1774 = vmatprep.subr.mxu0 0.0
        %1775 = vmatpush1.msra.mxu0 0.0
        %1776 = vmatprep.subr.mxu0 0.0
        %1777 = vmatpush1.msra.mxu0 0.0
        %1778 = vmatprep.subr.mxu0 0.0
        %1779 = vmatpush1.msra.mxu0 0.0
        %1780 = vmatprep.subr.mxu0 0.0
        %1781 = vmatpush1.msra.mxu0 0.0
        %1782 = vmatprep.subr.mxu0 0.0
        %1783 = vmatpush1.msra.mxu0 0.0
        %1784 = vmatprep.subr.mxu0 0.0
        %1785 = vmatpush1.msra.mxu0 0.0
        %1786 = vmatprep.subr.mxu0 0.0
        %1787 = vmatpush1.msra.mxu0 0.0
        %1788 = vmatprep.subr.mxu0 0.0
        %1789 = vmatpush1.msra.mxu0 0.0
        %1790 = vmatprep.subr.mxu0 0.0
        %1791 = vmatpush1.msra.mxu0 0.0
        %1792 = vmatprep.subr.mxu0 0.0
        %1793 = vmatpush1.msra.mxu0 0.0
        %1794 = vmatprep.subr.mxu0 0.0
        %1795 = vmatpush1.msra.mxu0 0.0
        %1796 = vmatprep.subr.mxu0 0.0
        %1797 = vmatpush1.msra.mxu0 0.0
        %1798 = vmatprep.subr.mxu0 0.0
        %1799 = vmatpush1.msra.mxu0 0.0
        %1800 = vmatprep.subr.mxu0 0.0
        %1801 = vmatpush1.msra.mxu0 0.0
        %1802 = vmatprep.subr.mxu0 0.0
        %1803 = vmatpush1.msra.mxu0 0.0
        %1804 = vmatprep.subr.mxu0 0.0
        %1805 = vmatpush1.msra.mxu0 0.0
        %1806 = vmatprep.subr.mxu0 0.0
        %1807 = vmatpush1.msra.mxu0 0.0
        %1808 = vmatprep.subr.mxu0 0.0
        %1809 = vmatpush1.msra.mxu0 0.0
        %1810 = vmatprep.subr.mxu0 0.0
        %1811 = vmatpush1.msra.mxu0 0.0
        %1812 = vmatprep.subr.mxu0 0.0
        %1813 = vmatpush1.msra.mxu0 0.0
        %1814 = vmatprep.subr.mxu0 0.0
        %1815 = vmatpush1.msra.mxu0 0.0
        %1816 = vmatprep.subr.mxu0 0.0
        %1817 = vmatpush1.msra.mxu0 0.0
        %1818 = vmatprep.subr.mxu0 0.0
        %1819 = vmatpush1.msra.mxu0 0.0
        %1820 = vmatprep.subr.mxu0 0.0
        %1821 = vmatpush1.msra.mxu0 0.0
        %1822 = vmatprep.subr.mxu0 0.0
        %1823 = vmatpush1.msra.mxu0 0.0
        %1824 = vmatprep.subr.mxu0 0.0
        %1825 = vmatpush1.msra.mxu0 0.0
        %1826 = vmatprep.subr.mxu0 0.0
        %1827 = vmatpush1.msra.mxu0 0.0
        %1828 = vmatprep.subr.mxu0 0.0
        %1829 = vmatpush1.msra.mxu0 0.0
        %1830 = vmatprep.mubr.f32.mxu0 0.0
        %1831 = vmatmul.mubr.f32.gmra.mrb[0].mxu0 %v1764
        %v1832 = vpop.f32.mrb[0].mxu0
        %v1833 = vadd.f32 0.0, %v1832
        %v1834 = vpop.f32.mrb[0].mxu0
        %1835 = vdwg.mxu0
        %v1836 = vadd.f32 %v1669, %v1833
        %v1837 = vld [vmem:[#allocation13] sm:$0xff]
        %v1838 = vld [vmem:[#allocation13 + $0x8] sm:$0xff]
        %v1839 = vld [vmem:[#allocation13 + $0x10] sm:$0xff]
        %v1840 = vld [vmem:[#allocation13 + $0x18] sm:$0xff]
        %v1841 = vld [vmem:[#allocation15] sm:$0x1]
        %v1842 = vld [vmem:[#allocation16] sm:$0xff]
        %v1843 = vld [vmem:[#allocation16 + $0x8] sm:$0xff]
        %v1844 = vld [vmem:[#allocation16 + $0x10] sm:$0xff]
        %v1845 = vld [vmem:[#allocation16 + $0x18] sm:$0xff]
        %v1846 = vld [vmem:[#allocation18] sm:$0x1]
        %v1847 = vld [vmem:[%s18] sm:$0xff]
        %v1848 = vld [vmem:[%s18 + $0x8] sm:$0xff]
        %v1849 = vld [vmem:[%s18 + $0x10] sm:$0xff]
        %v1850 = vld [vmem:[%s18 + $0x18] sm:$0xff]
        %v1851 = vld [vmem:[%s18 + $0x20] sm:$0xff]
        %v1852 = vld [vmem:[%s18 + $0x28] sm:$0xff]
        %v1853 = vld [vmem:[%s18 + $0x30] sm:$0xff]
        %v1854 = vld [vmem:[%s18 + $0x38] sm:$0xff]
        %v1855 = vld [vmem:[#allocation19] sm:$0x1]
        %v1857 = vlaneseq
        %v1858 = vshrl.u32 %v1857, 7
        %v1859 = vsub.s32 0, %v1858
        %v1860 = vrot.slane %v1841, %v1859
        %v1863 = vsel %vm831, %v1836, 0
        %1865 = vmatprep.subr.mxu0 0.0
        %1866 = vmatpush1.msra.mxu0 %v1837
        %1867 = vmatprep.subr.mxu0 0.0
        %1868 = vmatpush1.msra.mxu0 %v1838
        %1869 = vmatprep.subr.mxu0 0.0
        %1870 = vmatpush1.msra.mxu0 %v1839
        %1871 = vmatprep.subr.mxu0 0.0
        %1872 = vmatpush1.msra.mxu0 %v1840
        %1873 = vmatprep.subr.mxu0 0.0
        %1874 = vmatpush1.msra.mxu0 0.0
        %1875 = vmatprep.subr.mxu0 0.0
        %1876 = vmatpush1.msra.mxu0 0.0
        %1877 = vmatprep.subr.mxu0 0.0
        %1878 = vmatpush1.msra.mxu0 0.0
        %1879 = vmatprep.subr.mxu0 0.0
        %1880 = vmatpush1.msra.mxu0 0.0
        %1881 = vmatprep.subr.mxu0 0.0
        %1882 = vmatpush1.msra.mxu0 0.0
        %1883 = vmatprep.subr.mxu0 0.0
        %1884 = vmatpush1.msra.mxu0 0.0
        %1885 = vmatprep.subr.mxu0 0.0
        %1886 = vmatpush1.msra.mxu0 0.0
        %1887 = vmatprep.subr.mxu0 0.0
        %1888 = vmatpush1.msra.mxu0 0.0
        %1889 = vmatprep.subr.mxu0 0.0
        %1890 = vmatpush1.msra.mxu0 0.0
        %1891 = vmatprep.subr.mxu0 0.0
        %1892 = vmatpush1.msra.mxu0 0.0
        %1893 = vmatprep.subr.mxu0 0.0
        %1894 = vmatpush1.msra.mxu0 0.0
        %1895 = vmatprep.subr.mxu0 0.0
        %1896 = vmatpush1.msra.mxu0 0.0
        %1897 = vmatprep.subr.mxu0 0.0
        %1898 = vmatpush1.msra.mxu0 0.0
        %1899 = vmatprep.subr.mxu0 0.0
        %1900 = vmatpush1.msra.mxu0 0.0
        %1901 = vmatprep.subr.mxu0 0.0
        %1902 = vmatpush1.msra.mxu0 0.0
        %1903 = vmatprep.subr.mxu0 0.0
        %1904 = vmatpush1.msra.mxu0 0.0
        %1905 = vmatprep.subr.mxu0 0.0
        %1906 = vmatpush1.msra.mxu0 0.0
        %1907 = vmatprep.subr.mxu0 0.0
        %1908 = vmatpush1.msra.mxu0 0.0
        %1909 = vmatprep.subr.mxu0 0.0
        %1910 = vmatpush1.msra.mxu0 0.0
        %1911 = vmatprep.subr.mxu0 0.0
        %1912 = vmatpush1.msra.mxu0 0.0
        %1913 = vmatprep.subr.mxu0 0.0
        %1914 = vmatpush1.msra.mxu0 0.0
        %1915 = vmatprep.subr.mxu0 0.0
        %1916 = vmatpush1.msra.mxu0 0.0
        %1917 = vmatprep.subr.mxu0 0.0
        %1918 = vmatpush1.msra.mxu0 0.0
        %1919 = vmatprep.subr.mxu0 0.0
        %1920 = vmatpush1.msra.mxu0 0.0
        %1921 = vmatprep.subr.mxu0 0.0
        %1922 = vmatpush1.msra.mxu0 0.0
        %1923 = vmatprep.subr.mxu0 0.0
        %1924 = vmatpush1.msra.mxu0 0.0
        %1925 = vmatprep.subr.mxu0 0.0
        %1926 = vmatpush1.msra.mxu0 0.0
        %1927 = vmatprep.subr.mxu0 0.0
        %1928 = vmatpush1.msra.mxu0 0.0
        %1929 = vmatprep.mubr.f32.mxu0 0.0
        %1930 = vmatmul.mubr.f32.gmra.mrb[0].mxu0 %v1863
        %v1931 = vpop.f32.mrb[0].mxu0
        %v1932 = vadd.f32 %v1860, %v1931
        %v1933 = vpop.f32.mrb[0].mxu0
        %1934 = vdwg.mxu0
        %v1935 = vadd.f32 %v1932, %v859
        %v1937 = vlaneseq
        %v1938 = vshrl.u32 %v1937, 7
        %v1939 = vsub.s32 0, %v1938
        %v1940 = vrot.slane %v1846, %v1939
        %v1943 = vsel %vm831, %v1935, 0
        %1945 = vmatprep.subr.mxu0 0.0
        %1946 = vmatpush1.msra.mxu0 %v1842
        %1947 = vmatprep.subr.mxu0 0.0
        %1948 = vmatpush1.msra.mxu0 %v1843
        %1949 = vmatprep.subr.mxu0 0.0
        %1950 = vmatpush1.msra.mxu0 %v1844
        %1951 = vmatprep.subr.mxu0 0.0
        %1952 = vmatpush1.msra.mxu0 %v1845
        %1953 = vmatprep.subr.mxu0 0.0
        %1954 = vmatpush1.msra.mxu0 0.0
        %1955 = vmatprep.subr.mxu0 0.0
        %1956 = vmatpush1.msra.mxu0 0.0
        %1957 = vmatprep.subr.mxu0 0.0
        %1958 = vmatpush1.msra.mxu0 0.0
        %1959 = vmatprep.subr.mxu0 0.0
        %1960 = vmatpush1.msra.mxu0 0.0
        %1961 = vmatprep.subr.mxu0 0.0
        %1962 = vmatpush1.msra.mxu0 0.0
        %1963 = vmatprep.subr.mxu0 0.0
        %1964 = vmatpush1.msra.mxu0 0.0
        %1965 = vmatprep.subr.mxu0 0.0
        %1966 = vmatpush1.msra.mxu0 0.0
        %1967 = vmatprep.subr.mxu0 0.0
        %1968 = vmatpush1.msra.mxu0 0.0
        %1969 = vmatprep.subr.mxu0 0.0
        %1970 = vmatpush1.msra.mxu0 0.0
        %1971 = vmatprep.subr.mxu0 0.0
        %1972 = vmatpush1.msra.mxu0 0.0
        %1973 = vmatprep.subr.mxu0 0.0
        %1974 = vmatpush1.msra.mxu0 0.0
        %1975 = vmatprep.subr.mxu0 0.0
        %1976 = vmatpush1.msra.mxu0 0.0
        %1977 = vmatprep.subr.mxu0 0.0
        %1978 = vmatpush1.msra.mxu0 0.0
        %1979 = vmatprep.subr.mxu0 0.0
        %1980 = vmatpush1.msra.mxu0 0.0
        %1981 = vmatprep.subr.mxu0 0.0
        %1982 = vmatpush1.msra.mxu0 0.0
        %1983 = vmatprep.subr.mxu0 0.0
        %1984 = vmatpush1.msra.mxu0 0.0
        %1985 = vmatprep.subr.mxu0 0.0
        %1986 = vmatpush1.msra.mxu0 0.0
        %1987 = vmatprep.subr.mxu0 0.0
        %1988 = vmatpush1.msra.mxu0 0.0
        %1989 = vmatprep.subr.mxu0 0.0
        %1990 = vmatpush1.msra.mxu0 0.0
        %1991 = vmatprep.subr.mxu0 0.0
        %1992 = vmatpush1.msra.mxu0 0.0
        %1993 = vmatprep.subr.mxu0 0.0
        %1994 = vmatpush1.msra.mxu0 0.0
        %1995 = vmatprep.subr.mxu0 0.0
        %1996 = vmatpush1.msra.mxu0 0.0
        %1997 = vmatprep.subr.mxu0 0.0
        %1998 = vmatpush1.msra.mxu0 0.0
        %1999 = vmatprep.subr.mxu0 0.0
        %2000 = vmatpush1.msra.mxu0 0.0
        %2001 = vmatprep.subr.mxu0 0.0
        %2002 = vmatpush1.msra.mxu0 0.0
        %2003 = vmatprep.subr.mxu0 0.0
        %2004 = vmatpush1.msra.mxu0 0.0
        %2005 = vmatprep.subr.mxu0 0.0
        %2006 = vmatpush1.msra.mxu0 0.0
        %2007 = vmatprep.subr.mxu0 0.0
        %2008 = vmatpush1.msra.mxu0 0.0
        %2009 = vmatprep.mubr.f32.mxu0 0.0
        %2010 = vmatmul.mubr.f32.gmra.mrb[0].mxu0 %v1943
        %v2011 = vpop.f32.mrb[0].mxu0
        %v2012 = vadd.f32 %v1940, %v2011
        %v2013 = vpop.f32.mrb[0].mxu0
        %2014 = vdwg.mxu0
        %v2015 = vmul.f32 %v2012, 0.5
        %v2016 = vmul.f32 %v2012, 0.70710677
        %v2017 = verf.f32.pop %v2016
        %v2018 = vadd.f32 %v2017, 1.0
        %v2019 = vmul.f32 %v2015, %v2018
        %v2021 = vlaneseq
        %v2022 = vshrl.u32 %v2021, 7
        %v2023 = vsub.s32 0, %v2022
        %v2024 = vrot.slane %v1855, %v2023
        %vm2026 = vcmask 523264
        %v2028 = vsel %vm2026, %v2019, 0
        %2030 = vmatprep.subr.mxu0 0.0
        %2031 = vmatpush1.msra.mxu0 %v1847
        %2032 = vmatprep.subr.mxu0 0.0
        %2033 = vmatpush1.msra.mxu0 %v1848
        %2034 = vmatprep.subr.mxu0 0.0
        %2035 = vmatpush1.msra.mxu0 %v1849
        %2036 = vmatprep.subr.mxu0 0.0
        %2037 = vmatpush1.msra.mxu0 %v1850
        %2038 = vmatprep.subr.mxu0 0.0
        %2039 = vmatpush1.msra.mxu0 %v1851
        %2040 = vmatprep.subr.mxu0 0.0
        %2041 = vmatpush1.msra.mxu0 %v1852
        %2042 = vmatprep.subr.mxu0 0.0
        %2043 = vmatpush1.msra.mxu0 %v1853
        %2044 = vmatprep.subr.mxu0 0.0
        %2045 = vmatpush1.msra.mxu0 %v1854
        %2046 = vmatprep.subr.mxu0 0.0
        %2047 = vmatpush1.msra.mxu0 0.0
        %2048 = vmatprep.subr.mxu0 0.0
        %2049 = vmatpush1.msra.mxu0 0.0
        %2050 = vmatprep.subr.mxu0 0.0
        %2051 = vmatpush1.msra.mxu0 0.0
        %2052 = vmatprep.subr.mxu0 0.0
        %2053 = vmatpush1.msra.mxu0 0.0
        %2054 = vmatprep.subr.mxu0 0.0
        %2055 = vmatpush1.msra.mxu0 0.0
        %2056 = vmatprep.subr.mxu0 0.0
        %2057 = vmatpush1.msra.mxu0 0.0
        %2058 = vmatprep.subr.mxu0 0.0
        %2059 = vmatpush1.msra.mxu0 0.0
        %2060 = vmatprep.subr.mxu0 0.0
        %2061 = vmatpush1.msra.mxu0 0.0
        %2062 = vmatprep.subr.mxu0 0.0
        %2063 = vmatpush1.msra.mxu0 0.0
        %2064 = vmatprep.subr.mxu0 0.0
        %2065 = vmatpush1.msra.mxu0 0.0
        %2066 = vmatprep.subr.mxu0 0.0
        %2067 = vmatpush1.msra.mxu0 0.0
        %2068 = vmatprep.subr.mxu0 0.0
        %2069 = vmatpush1.msra.mxu0 0.0
        %2070 = vmatprep.subr.mxu0 0.0
        %2071 = vmatpush1.msra.mxu0 0.0
        %2072 = vmatprep.subr.mxu0 0.0
        %2073 = vmatpush1.msra.mxu0 0.0
        %2074 = vmatprep.subr.mxu0 0.0
        %2075 = vmatpush1.msra.mxu0 0.0
        %2076 = vmatprep.subr.mxu0 0.0
        %2077 = vmatpush1.msra.mxu0 0.0
        %2078 = vmatprep.subr.mxu0 0.0
        %2079 = vmatpush1.msra.mxu0 0.0
        %2080 = vmatprep.subr.mxu0 0.0
        %2081 = vmatpush1.msra.mxu0 0.0
        %2082 = vmatprep.subr.mxu0 0.0
        %2083 = vmatpush1.msra.mxu0 0.0
        %2084 = vmatprep.subr.mxu0 0.0
        %2085 = vmatpush1.msra.mxu0 0.0
        %2086 = vmatprep.subr.mxu0 0.0
        %2087 = vmatpush1.msra.mxu0 0.0
        %2088 = vmatprep.subr.mxu0 0.0
        %2089 = vmatpush1.msra.mxu0 0.0
        %2090 = vmatprep.subr.mxu0 0.0
        %2091 = vmatpush1.msra.mxu0 0.0
        %2092 = vmatprep.subr.mxu0 0.0
        %2093 = vmatpush1.msra.mxu0 0.0
        %2094 = vmatprep.mubr.f32.mxu0 0.0
        %2095 = vmatmul.mubr.f32.gmra.mrb[0].mxu0 %v2028
        %v2096 = vpop.f32.mrb[0].mxu0
        %v2097 = vadd.f32 %v2024, %v2096
        %v2098 = vpop.f32.mrb[0].mxu0
        %2099 = vdwg.mxu0
        %v2100 = vadd.f32 %v2097, %v1935
        %2101 = vst.msk [vmem:[%s827] sm:$0xff] %vm831, %v2100
        %p2102 = scmp.lt.s32.totalorder %s38, 1
        %s2103 = scalar_select %p2102, %s38, 1
        %s2104 = smul.addr %s2103, 8
        %s2105 = scalar_lea.vmem %s20, %s2104
        // Predicated region
        $region149: #{run.3} parent=99 // pred_check
          %p2106 = pneg %p496
        $region150: #{run.3} parent=99 // pred_check_branch
          %2108 = sbr.rel (%p2106) target = $region152
        $region151: #{run.3} parent=99 // pred_region
          _
        $region152: #{run.3} parent=99 // pred_fallthru
          _
      $region100: #{run.3} parent=5 // pred_fallthru
        _
      %p2109 = scmp.le.s32.totalorder 2, %s33
      // Predicated region
      $region153: #{run.3} parent=5 // pred_check
        %p2110 = pneg %p2109
      $region154: #{run.3} parent=5 // pred_check_branch
        %2112 = sbr.rel (%p2110) target = $region156
      $region155: #{run.3} parent=5 // pred_region
        %s2113 = ssub.s32 %s33, 2
        // Predicated region
        $region157: #{run.3} parent=155 // pred_check
          %p2114 = pneg %p502
        $region158: #{run.3} parent=155 // pred_check_branch
          %2116 = sbr.rel (%p2114) target = $region160
        $region159: #{run.3} parent=155 // pred_region
          %p2117 = scmp.lt.s32.totalorder %s39, 1
          %s2118 = scalar_select %p2117, %s39, 1
          %s2119 = smul.addr %s2118, 8
          %s2120 = scalar_lea.vmem %s20, %s2119
        $region160: #{run.3} parent=155 // pred_fallthru
          _
      $region156: #{run.3} parent=5 // pred_fallthru
        _
    $region6: #{run.3} parent=1 // loop_footer
      %s37 = sadd.s32 1, %s33
    $region7: #{run.3} parent=1 // loop_footer_branch
      %32 = sbr.rel target = $region3
    $region8: #{run.3} parent=1 // loop_exit
      _
    %2121 = vsyncpa [#allocation3], 1
    %s2122 = scalar_lea.sflag [#allocation3], 1
    %2123 = vsyncpa %s2122, 1
    %2124 = vsyncpa [#allocation5], 1
    %2125 = vsyncpa [#allocation8], 1
    %2126 = vsyncpa [#allocation11], 1
    %2127 = vsyncpa [#allocation14], 1
    %2128 = vsyncpa [#allocation17], 1
    %2129 = vsyncpa [#allocation20], 1

</llo_original>
